<compile_context>
chip_gen: v5e
topology: v5e:2x2
jax: 0.10.0
libtpu: 0.0.40
codegen_flags: <defaults>
</compile_context>

<pallas_src>
import functools

import jax
import jax.numpy as jnp
from jax.experimental import pallas as pl
from jax.experimental.pallas import tpu as pltpu


# ----------------------------- Pallas kernels -------------------------------

def _matmul_bias_kernel(x_ref, w_ref, b_ref, o_ref, *, relu):
    # x_ref: (TM, K) bf16, w_ref: (K, N) bf16, b_ref: (1, N) f32, o_ref: (TM, N)
    acc = jnp.dot(x_ref[...], w_ref[...], preferred_element_type=jnp.float32)
    acc = acc + b_ref[...]
    if relu:
        acc = jnp.maximum(acc, 0.0)
    o_ref[...] = acc.astype(o_ref.dtype)


def _pick_tm(M):
    """Largest M-tile that divides M, preferring >= 2 grid steps (v7x megacore)."""
    for tm in (1024, 512, 256, 128):
        if M % tm == 0 and M // tm >= 2:
            return tm
    for tm in (1024, 512, 256, 128):
        if M % tm == 0:
            return tm
    return M  # every call site here has M a multiple of 8 (or M == full extent)


def matmul_bias(x, w, b, *, relu, out_dtype):
    """[relu](x @ w + b).  x:(M,K) bf16, w:(K,N) bf16, b:(1,N) f32.  No padding."""
    M, K = x.shape
    N = w.shape[1]
    tm = _pick_tm(M)
    grid = (M // tm,)
    kernel = functools.partial(_matmul_bias_kernel, relu=relu)
    return pl.pallas_call(
        kernel,
        out_shape=jax.ShapeDtypeStruct((M, N), out_dtype),
        grid=grid,
        in_specs=[
            pl.BlockSpec((tm, K), lambda i: (i, 0)),   # activations, tiled over M
            pl.BlockSpec((K, N), lambda i: (0, 0)),    # weights, resident
            pl.BlockSpec((1, N), lambda i: (0, 0)),    # bias, resident
        ],
        out_specs=pl.BlockSpec((tm, N), lambda i: (i, 0)),
        compiler_params=pltpu.CompilerParams(
            dimension_semantics=("parallel",),
            vmem_limit_bytes=32 * 1024 * 1024,  # lifts v5e's 16 MiB default
        ),
    )(x, w, b)


# ----------------------------- NHWC im2col glue ------------------------------

def _im2col_nhwc(x, kh, kw, stride, pad):
    """x: (B, H, W, C) -> (B*Ho*Wo, kh*kw*C), feature order (kh, kw, C)."""
    B, H, W, C = x.shape
    x_p = jnp.pad(x, ((0, 0), (pad, pad), (pad, pad), (0, 0)))
    Ho = (H + 2 * pad - kh) // stride + 1
    Wo = (W + 2 * pad - kw) // stride + 1
    cols = [x_p[:, i:i + stride * Ho:stride, j:j + stride * Wo:stride, :]
            for i in range(kh) for j in range(kw)]
    patches = jnp.concatenate(cols, axis=-1)              # (B, Ho, Wo, kh*kw*C)
    return patches.reshape(B * Ho * Wo, kh * kw * C), Ho, Wo


# ------------------------------- parameters ----------------------------------

def init_encoder_params(key, bottleneck_dim=256):
    ks = jax.random.split(key, 8)

    def uinit(k, shape, fan_in):
        bound = 1.0 / jnp.sqrt(fan_in)
        return jax.random.uniform(k, shape, jnp.float32, -bound, bound)

    return {
        "conv1_w": uinit(ks[0], (64, 3, 4, 4), 3 * 16),
        "conv1_b": uinit(ks[1], (64,), 3 * 16),
        "conv2_w": uinit(ks[2], (128, 64, 4, 4), 64 * 16),
        "conv2_b": uinit(ks[3], (128,), 64 * 16),
        "conv3_w": uinit(ks[4], (256, 128, 4, 4), 128 * 16),
        "conv3_b": uinit(ks[5], (256,), 128 * 16),
        "fc_w": uinit(ks[6], (bottleneck_dim, 256 * 4 * 4), 256 * 4 * 4),
        "fc_b": uinit(ks[7], (bottleneck_dim,), 256 * 4 * 4),
    }


def prepare_params(params):
    """One-time re-layout of PyTorch-style params into kernel-friendly bf16 form."""
    def conv_w(w):
        cout, cin, kh, kw = w.shape
        # im2col feature order is (kh, kw, Cin)  ->  matrix (kh*kw*Cin, Cout)
        return (jnp.transpose(w, (2, 3, 1, 0))
                .reshape(kh * kw * cin, cout).astype(jnp.bfloat16))

    fc_w = params["fc_w"]                      # (Nfc, 256*4*4), flatten order (C, H, W)
    nfc = fc_w.shape[0]
    # Re-order the 4096 contraction dim from PyTorch's (C,H,W) flatten order to
    # the NHWC (H,W,C) order of our conv3 output, so h.reshape(B, 4096) @ fc_w2d
    # needs no in-kernel transpose/reshape:  fc_w2d[(h*4+w)*256 + c, n].
    fc_w2d = (jnp.transpose(fc_w.reshape(nfc, 256, 4, 4), (2, 3, 1, 0))
              .reshape(16 * 256, nfc).astype(jnp.bfloat16))          # (4096, Nfc)

    return {
        "conv1_w": conv_w(params["conv1_w"]),
        "conv1_b": params["conv1_b"].reshape(1, -1).astype(jnp.float32),
        "conv2_w": conv_w(params["conv2_w"]),
        "conv2_b": params["conv2_b"].reshape(1, -1).astype(jnp.float32),
        "conv3_w": conv_w(params["conv3_w"]),
        "conv3_b": params["conv3_b"].reshape(1, -1).astype(jnp.float32),
        "fc_w": fc_w2d,
        "fc_b": params["fc_b"].reshape(1, -1).astype(jnp.float32),
    }


# --------------------------------- forward -----------------------------------

@jax.jit
def encoder_forward(prep, x):
    # x: (B, 3, 32, 32) NCHW f32 (PyTorch layout).  Single layout change here.
    B = x.shape[0]
    h = jnp.transpose(x, (0, 2, 3, 1)).astype(jnp.bfloat16)          # (B,32,32,3) NHWC

    # conv1: (B*256, 48) x (48, 64)
    p1, Ho, Wo = _im2col_nhwc(h, 4, 4, 2, 1)
    h = matmul_bias(p1, prep["conv1_w"], prep["conv1_b"],
                    relu=True, out_dtype=jnp.bfloat16)
    h = h.reshape(B, Ho, Wo, 64)                                      # (B,16,16,64)

    # conv2: (B*64, 1024) x (1024, 128)
    p2, Ho, Wo = _im2col_nhwc(h, 4, 4, 2, 1)
    h = matmul_bias(p2, prep["conv2_w"], prep["conv2_b"],
                    relu=True, out_dtype=jnp.bfloat16)
    h = h.reshape(B, Ho, Wo, 128)                                     # (B,8,8,128)

    # conv3 as ONE batched GEMM: (B*16, 2048) x (2048, 256)
    p3, Ho, Wo = _im2col_nhwc(h, 4, 4, 2, 1)
    h = matmul_bias(p3, prep["conv3_w"], prep["conv3_b"],
                    relu=True, out_dtype=jnp.bfloat16)                # (B*16, 256)

    # Flatten: NHWC (B,4,4,256) -> (B, 4096) in (H,W,C) order; this order is
    # already folded into prep["fc_w"], so the reshape is layout-free.
    h = h.reshape(B, 16 * 256)

    # FC as ONE matmul: (B, 4096) x (4096, Nfc)
    z = matmul_bias(h, prep["fc_w"], prep["fc_b"],
                    relu=False, out_dtype=jnp.float32)
    return z


# ----------------------- Pure-JAX reference (sanity) --------------------------

def _reference_forward(params, x):
    def conv(x, w, b):
        y = jax.lax.conv_general_dilated(
            x, w, window_strides=(2, 2), padding=((1, 1), (1, 1)),
            dimension_numbers=("NCHW", "OIHW", "NCHW"))
        return jax.nn.relu(y + b[None, :, None, None])

    h = conv(x, params["conv1_w"], params["conv1_b"])
    h = conv(h, params["conv2_w"], params["conv2_b"])
    h = conv(h, params["conv3_w"], params["conv3_b"])
    h = h.reshape(h.shape[0], -1)
    return h @ params["fc_w"].T + params["fc_b"]


# ----------------------------------- main -------------------------------------

if __name__ == "__main__":
    bottleneck_dim = 256
    root = jax.random.PRNGKey(0)
    k_params, k_x = jax.random.split(root)

    params = init_encoder_params(k_params, bottleneck_dim)
    prep = prepare_params(params)   # one-time weight re-layout, outside the jitted forward

    # Input shape implied by fc = Linear(256*4*4, .): 3 channels, 32x32 spatial.
    x = jax.random.normal(k_x, (2, 3, 32, 32), jnp.float32)

    z = encoder_forward(prep, x)
    z = jax.block_until_ready(z)
    assert z.shape == (2, bottleneck_dim), z.shape

    z_ref = _reference_forward(params, x)
    max_err = float(jnp.max(jnp.abs(z - z_ref)))
    # bf16 matmul operands with f32 accumulation: allow a few % tolerance vs.
    # the f32 reference (real bugs produce O(1) errors).
    assert jnp.allclose(z, z_ref, rtol=3e-2, atol=3e-2), max_err

    print("KERNEL_OK")
</pallas_src>

<mosaic_0001>
module attributes {stable_mosaic.version = 11 : i64} {
  func.func @_matmul_bias_kernel(%arg0: i32, %arg1: memref<256x48xbf16, #tpu.memory_space<vmem>>, %arg2: memref<48x64xbf16, #tpu.memory_space<vmem>>, %arg3: memref<1x64xf32, #tpu.memory_space<vmem>>, %arg4: memref<256x64xbf16, #tpu.memory_space<vmem>>) attributes {dimension_semantics = [#tpu.dimension_semantics<parallel>], iteration_bounds = array<i64: 2>, scalar_prefetch = 0 : i64, scratch_operands = 0 : i64, tpu.core_type = #tpu.core_type<tc>, window_params = [{transform_indices = @transform_0, window_bounds = array<i64: 256, 48>}, {pipeline_mode = #tpu.pipeline_mode<synchronous>, transform_indices = @transform_1, window_bounds = array<i64: 48, 64>}, {pipeline_mode = #tpu.pipeline_mode<synchronous>, transform_indices = @transform_2, window_bounds = array<i64: 1, 64>}, {transform_indices = @transform_3, window_bounds = array<i64: 256, 64>}]} {
    %c0 = arith.constant 0 : index
    %c0_0 = arith.constant 0 : index
    %0 = vector.load %arg1[%c0, %c0_0] : memref<256x48xbf16, #tpu.memory_space<vmem>>, vector<256x48xbf16>
    %c0_1 = arith.constant 0 : index
    %c0_2 = arith.constant 0 : index
    %1 = vector.load %arg2[%c0_1, %c0_2] : memref<48x64xbf16, #tpu.memory_space<vmem>>, vector<48x64xbf16>
    %cst = arith.constant dense<0.000000e+00> : vector<256x64xf32>
    %2 = tpu.matmul %0, %1, %cst {dimension_numbers = #tpu.dot_dimension_numbers<[1], [0], [0], [1], [0, 0, 1, 1], [], []>} : vector<256x48xbf16>, vector<48x64xbf16>, vector<256x64xf32> -> vector<256x64xf32>
    %c0_3 = arith.constant 0 : index
    %c0_4 = arith.constant 0 : index
    %3 = vector.load %arg3[%c0_3, %c0_4] : memref<1x64xf32, #tpu.memory_space<vmem>>, vector<1x64xf32>
    %4 = vector.broadcast %3 : vector<1x64xf32> to vector<256x64xf32>
    %5 = arith.addf %2, %4 : vector<256x64xf32>
    %cst_5 = arith.constant 0.000000e+00 : f32
    %6 = vector.broadcast %cst_5 : f32 to vector<256x64xf32>
    %7 = arith.maximumf %5, %6 : vector<256x64xf32>
    %8 = arith.truncf %7 : vector<256x64xf32> to vector<256x64xbf16>
    %c0_6 = arith.constant 0 : index
    %c0_7 = arith.constant 0 : index
    %9 = vector.load %arg4[%c0_6, %c0_7] : memref<256x64xbf16, #tpu.memory_space<vmem>>, vector<256x64xbf16>
    tpu.vector_store %arg4[%c0_6, %c0_7], %8 {strides = array<i32>} : memref<256x64xbf16, #tpu.memory_space<vmem>>, vector<256x64xbf16>,
    return
  }
  func.func @transform_0(%arg0: i32) -> (i32, i32) {
    %c0_i32 = arith.constant 0 : i32
    %c0_i32_0 = arith.constant 0 : i32
    return %arg0, %c0_i32 : i32, i32
  }
  func.func @transform_1(%arg0: i32) -> (i32, i32) {
    %c0_i32 = arith.constant 0 : i32
    %c0_i32_0 = arith.constant 0 : i32
    %c0_i32_1 = arith.constant 0 : i32
    return %c0_i32, %c0_i32_0 : i32, i32
  }
  func.func @transform_2(%arg0: i32) -> (i32, i32) {
    %c0_i32 = arith.constant 0 : i32
    %c0_i32_0 = arith.constant 0 : i32
    %c0_i32_1 = arith.constant 0 : i32
    return %c0_i32, %c0_i32_0 : i32, i32
  }
  func.func @transform_3(%arg0: i32) -> (i32, i32) {
    %c0_i32 = arith.constant 0 : i32
    %c0_i32_0 = arith.constant 0 : i32
    return %arg0, %c0_i32 : i32, i32
  }
}

module attributes {stable_mosaic.version = 11 : i64} {
  func.func @_matmul_bias_kernel(%arg0: i32, %arg1: memref<128x1024xbf16, #tpu.memory_space<vmem>>, %arg2: memref<1024x128xbf16, #tpu.memory_space<vmem>>, %arg3: memref<1x128xf32, #tpu.memory_space<vmem>>, %arg4: memref<128x128xbf16, #tpu.memory_space<vmem>>) attributes {dimension_semantics = [#tpu.dimension_semantics<parallel>], iteration_bounds = array<i64: 1>, scalar_prefetch = 0 : i64, scratch_operands = 0 : i64, tpu.core_type = #tpu.core_type<tc>, window_params = [{transform_indices = @transform_0, window_bounds = array<i64: 128, 1024>}, {pipeline_mode = #tpu.pipeline_mode<synchronous>, transform_indices = @transform_1, window_bounds = array<i64: 1024, 128>}, {pipeline_mode = #tpu.pipeline_mode<synchronous>, transform_indices = @transform_2, window_bounds = array<i64: 1, 128>}, {transform_indices = @transform_3, window_bounds = array<i64: 128, 128>}]} {
    %c0 = arith.constant 0 : index
    %c0_0 = arith.constant 0 : index
    %0 = vector.load %arg1[%c0, %c0_0] : memref<128x1024xbf16, #tpu.memory_space<vmem>>, vector<128x1024xbf16>
    %c0_1 = arith.constant 0 : index
    %c0_2 = arith.constant 0 : index
    %1 = vector.load %arg2[%c0_1, %c0_2] : memref<1024x128xbf16, #tpu.memory_space<vmem>>, vector<1024x128xbf16>
    %cst = arith.constant dense<0.000000e+00> : vector<128x128xf32>
    %2 = tpu.matmul %0, %1, %cst {dimension_numbers = #tpu.dot_dimension_numbers<[1], [0], [0], [1], [0, 0, 1, 1], [], []>} : vector<128x1024xbf16>, vector<1024x128xbf16>, vector<128x128xf32> -> vector<128x128xf32>
    %c0_3 = arith.constant 0 : index
    %c0_4 = arith.constant 0 : index
    %3 = vector.load %arg3[%c0_3, %c0_4] : memref<1x128xf32, #tpu.memory_space<vmem>>, vector<1x128xf32>
    %4 = vector.broadcast %3 : vector<1x128xf32> to vector<128x128xf32>
    %5 = arith.addf %2, %4 : vector<128x128xf32>
    %cst_5 = arith.constant 0.000000e+00 : f32
    %6 = vector.broadcast %cst_5 : f32 to vector<128x128xf32>
    %7 = arith.maximumf %5, %6 : vector<128x128xf32>
    %8 = arith.truncf %7 : vector<128x128xf32> to vector<128x128xbf16>
    %c0_6 = arith.constant 0 : index
    %c0_7 = arith.constant 0 : index
    %9 = vector.load %arg4[%c0_6, %c0_7] : memref<128x128xbf16, #tpu.memory_space<vmem>>, vector<128x128xbf16>
    tpu.vector_store %arg4[%c0_6, %c0_7], %8 {strides = array<i32>} : memref<128x128xbf16, #tpu.memory_space<vmem>>, vector<128x128xbf16>,
    return
  }
  func.func @transform_0(%arg0: i32) -> (i32, i32) {
    %c0_i32 = arith.constant 0 : i32
    %c0_i32_0 = arith.constant 0 : i32
    return %arg0, %c0_i32 : i32, i32
  }
  func.func @transform_1(%arg0: i32) -> (i32, i32) {
    %c0_i32 = arith.constant 0 : i32
    %c0_i32_0 = arith.constant 0 : i32
    %c0_i32_1 = arith.constant 0 : i32
    return %c0_i32, %c0_i32_0 : i32, i32
  }
  func.func @transform_2(%arg0: i32) -> (i32, i32) {
    %c0_i32 = arith.constant 0 : i32
    %c0_i32_0 = arith.constant 0 : i32
    %c0_i32_1 = arith.constant 0 : i32
    return %c0_i32, %c0_i32_0 : i32, i32
  }
  func.func @transform_3(%arg0: i32) -> (i32, i32) {
    %c0_i32 = arith.constant 0 : i32
    %c0_i32_0 = arith.constant 0 : i32
    return %arg0, %c0_i32 : i32, i32
  }
}

module attributes {stable_mosaic.version = 11 : i64} {
  func.func @_matmul_bias_kernel(%arg0: i32, %arg1: memref<32x2048xbf16, #tpu.memory_space<vmem>>, %arg2: memref<2048x256xbf16, #tpu.memory_space<vmem>>, %arg3: memref<1x256xf32, #tpu.memory_space<vmem>>, %arg4: memref<32x256xbf16, #tpu.memory_space<vmem>>) attributes {dimension_semantics = [#tpu.dimension_semantics<parallel>], iteration_bounds = array<i64: 1>, scalar_prefetch = 0 : i64, scratch_operands = 0 : i64, tpu.core_type = #tpu.core_type<tc>, window_params = [{transform_indices = @transform_0, window_bounds = array<i64: 32, 2048>}, {pipeline_mode = #tpu.pipeline_mode<synchronous>, transform_indices = @transform_1, window_bounds = array<i64: 2048, 256>}, {pipeline_mode = #tpu.pipeline_mode<synchronous>, transform_indices = @transform_2, window_bounds = array<i64: 1, 256>}, {transform_indices = @transform_3, window_bounds = array<i64: 32, 256>}]} {
    %c0 = arith.constant 0 : index
    %c0_0 = arith.constant 0 : index
    %0 = vector.load %arg1[%c0, %c0_0] : memref<32x2048xbf16, #tpu.memory_space<vmem>>, vector<32x2048xbf16>
    %c0_1 = arith.constant 0 : index
    %c0_2 = arith.constant 0 : index
    %1 = vector.load %arg2[%c0_1, %c0_2] : memref<2048x256xbf16, #tpu.memory_space<vmem>>, vector<2048x256xbf16>
    %cst = arith.constant dense<0.000000e+00> : vector<32x256xf32>
    %2 = tpu.matmul %0, %1, %cst {dimension_numbers = #tpu.dot_dimension_numbers<[1], [0], [0], [1], [0, 0, 1, 1], [], []>} : vector<32x2048xbf16>, vector<2048x256xbf16>, vector<32x256xf32> -> vector<32x256xf32>
    %c0_3 = arith.constant 0 : index
    %c0_4 = arith.constant 0 : index
    %3 = vector.load %arg3[%c0_3, %c0_4] : memref<1x256xf32, #tpu.memory_space<vmem>>, vector<1x256xf32>
    %4 = vector.broadcast %3 : vector<1x256xf32> to vector<32x256xf32>
    %5 = arith.addf %2, %4 : vector<32x256xf32>
    %cst_5 = arith.constant 0.000000e+00 : f32
    %6 = vector.broadcast %cst_5 : f32 to vector<32x256xf32>
    %7 = arith.maximumf %5, %6 : vector<32x256xf32>
    %8 = arith.truncf %7 : vector<32x256xf32> to vector<32x256xbf16>
    %c0_6 = arith.constant 0 : index
    %c0_7 = arith.constant 0 : index
    %9 = vector.load %arg4[%c0_6, %c0_7] : memref<32x256xbf16, #tpu.memory_space<vmem>>, vector<32x256xbf16>
    tpu.vector_store %arg4[%c0_6, %c0_7], %8 {strides = array<i32>} : memref<32x256xbf16, #tpu.memory_space<vmem>>, vector<32x256xbf16>,
    return
  }
  func.func @transform_0(%arg0: i32) -> (i32, i32) {
    %c0_i32 = arith.constant 0 : i32
    %c0_i32_0 = arith.constant 0 : i32
    return %arg0, %c0_i32 : i32, i32
  }
  func.func @transform_1(%arg0: i32) -> (i32, i32) {
    %c0_i32 = arith.constant 0 : i32
    %c0_i32_0 = arith.constant 0 : i32
    %c0_i32_1 = arith.constant 0 : i32
    return %c0_i32, %c0_i32_0 : i32, i32
  }
  func.func @transform_2(%arg0: i32) -> (i32, i32) {
    %c0_i32 = arith.constant 0 : i32
    %c0_i32_0 = arith.constant 0 : i32
    %c0_i32_1 = arith.constant 0 : i32
    return %c0_i32, %c0_i32_0 : i32, i32
  }
  func.func @transform_3(%arg0: i32) -> (i32, i32) {
    %c0_i32 = arith.constant 0 : i32
    %c0_i32_0 = arith.constant 0 : i32
    return %arg0, %c0_i32 : i32, i32
  }
}

module attributes {stable_mosaic.version = 11 : i64} {
  func.func @_matmul_bias_kernel(%arg0: i32, %arg1: memref<2x4096xbf16, #tpu.memory_space<vmem>>, %arg2: memref<4096x256xbf16, #tpu.memory_space<vmem>>, %arg3: memref<1x256xf32, #tpu.memory_space<vmem>>, %arg4: memref<2x256xf32, #tpu.memory_space<vmem>>) attributes {dimension_semantics = [#tpu.dimension_semantics<parallel>], iteration_bounds = array<i64: 1>, scalar_prefetch = 0 : i64, scratch_operands = 0 : i64, tpu.core_type = #tpu.core_type<tc>, window_params = [{transform_indices = @transform_0, window_bounds = array<i64: 2, 4096>}, {pipeline_mode = #tpu.pipeline_mode<synchronous>, transform_indices = @transform_1, window_bounds = array<i64: 4096, 256>}, {pipeline_mode = #tpu.pipeline_mode<synchronous>, transform_indices = @transform_2, window_bounds = array<i64: 1, 256>}, {transform_indices = @transform_3, window_bounds = array<i64: 2, 256>}]} {
    %c0 = arith.constant 0 : index
    %c0_0 = arith.constant 0 : index
    %0 = vector.load %arg1[%c0, %c0_0] : memref<2x4096xbf16, #tpu.memory_space<vmem>>, vector<2x4096xbf16>
    %c0_1 = arith.constant 0 : index
    %c0_2 = arith.constant 0 : index
    %1 = vector.load %arg2[%c0_1, %c0_2] : memref<4096x256xbf16, #tpu.memory_space<vmem>>, vector<4096x256xbf16>
    %cst = arith.constant dense<0.000000e+00> : vector<2x256xf32>
    %2 = tpu.matmul %0, %1, %cst {dimension_numbers = #tpu.dot_dimension_numbers<[1], [0], [0], [1], [0, 0, 1, 1], [], []>} : vector<2x4096xbf16>, vector<4096x256xbf16>, vector<2x256xf32> -> vector<2x256xf32>
    %c0_3 = arith.constant 0 : index
    %c0_4 = arith.constant 0 : index
    %3 = vector.load %arg3[%c0_3, %c0_4] : memref<1x256xf32, #tpu.memory_space<vmem>>, vector<1x256xf32>
    %4 = vector.broadcast %3 : vector<1x256xf32> to vector<2x256xf32>
    %5 = arith.addf %2, %4 : vector<2x256xf32>
    %c0_5 = arith.constant 0 : index
    %c0_6 = arith.constant 0 : index
    %6 = vector.load %arg4[%c0_5, %c0_6] : memref<2x256xf32, #tpu.memory_space<vmem>>, vector<2x256xf32>
    tpu.vector_store %arg4[%c0_5, %c0_6], %5 {strides = array<i32>} : memref<2x256xf32, #tpu.memory_space<vmem>>, vector<2x256xf32>,
    return
  }
  func.func @transform_0(%arg0: i32) -> (i32, i32) {
    %c0_i32 = arith.constant 0 : i32
    %c0_i32_0 = arith.constant 0 : i32
    return %arg0, %c0_i32 : i32, i32
  }
  func.func @transform_1(%arg0: i32) -> (i32, i32) {
    %c0_i32 = arith.constant 0 : i32
    %c0_i32_0 = arith.constant 0 : i32
    %c0_i32_1 = arith.constant 0 : i32
    return %c0_i32, %c0_i32_0 : i32, i32
  }
  func.func @transform_2(%arg0: i32) -> (i32, i32) {
    %c0_i32 = arith.constant 0 : i32
    %c0_i32_0 = arith.constant 0 : i32
    %c0_i32_1 = arith.constant 0 : i32
    return %c0_i32, %c0_i32_0 : i32, i32
  }
  func.func @transform_3(%arg0: i32) -> (i32, i32) {
    %c0_i32 = arith.constant 0 : i32
    %c0_i32_0 = arith.constant 0 : i32
    return %arg0, %c0_i32 : i32, i32
  }
}

</mosaic_0001>

<llo_original>
// kernel: encoder_forward.4
$region0: #{encoder_forward.4}
  #allocation0 [shape = 'u32[]', space=smem, size = 0x4, offset = 0x4, fixed_abs, tag = 'smem constant byte address 0x4 - core index']
  #allocation1 [shape = 'u32[72,128]{1,0:T(1,128)}', space=vmem, size = 0x9000, scoped, tag = 'internal scratch']
  %s0 = inlined_call_operand.vmem [shape: bf16[512,48], index: 0, kind: input, shape index: {}]
  %s1 = inlined_call_operand.vmem [shape: bf16[48,64], index: 1, kind: input, shape index: {}]
  %s2 = inlined_call_operand.vmem [shape: f32[1,64], index: 2, kind: input, shape index: {}]
  %s3 = inlined_call_operand.vmem [shape: bf16[512,64], index: 3, kind: output, shape index: {}]
  %s4 = sld [smem:[#allocation0]]
  $region45: #{encoder_forward.4} parent=0
    _
  %s6 = ssub.s32 1, %s4
  %s7 = scalar_select 0, %s6, %s4
  loop: start=0, step=1, limit=4
  $region2: #{encoder_forward.4} parent=0 // loop_pre_header
    _
  $region3: #{encoder_forward.4} parent=0 // loop_header
    %s9 = sphi 0, %s13
    %p10 = scmp.ge.s32.totalorder %s9, 4
    %s19 = sphi 0, %s21
    %s22 = sphi 0, %s19
    %s23 = sphi 0, %s22
    %s39 = sphi 0, %s23
    %s43 = sphi 0, %s43
    %s45 = sphi 0, %s43
    %s46 = sphi 0, %s45
    %s60 = sphi 0, %s46
    %s64 = sphi 0, %s64
    %s66 = sphi 0, %s64
    %s67 = sphi 0, %s66
    %s81 = sphi 0, %s67
    %s87 = sphi 0, %s89
    %s90 = sphi 0, %s87
    %s91 = sphi 0, %s90
    %s107 = sphi 0, %s91
  $region4: #{encoder_forward.4} parent=0 // loop_header_branch
    %12 = sbr.rel (%p10) target = $region8
  $region5: #{encoder_forward.4} parent=0 // loop_body
    %s14 = ssub.s32 %s9, 1
    %s15 = ssub.s32 %s9, 2
    %s16 = sadd.s32 %s9, 1
    %s17 = ssub.s32 %s9, %s16
    %p18 = scmp.eq.s32.totalorder %s17, 0
    %s20 = sadd.s32 %s19, 1
    %s21 = scalar_select %p18, %s19, %s20
    %p24 = pneg %p18
    %p25 = scmp.eq.s32.totalorder %s9, 1
    %p26 = por %p24, %p25
    %p27 = scmp.ne.s32.totalorder %s19, %s22
    %p28 = scmp.eq.s32.totalorder %s9, 0
    %p29 = por %p27, %p28
    %p30 = scmp.ne.s32.totalorder %s19, %s22
    %p31 = scmp.eq.s32.totalorder %s14, 1
    %p32 = por %p30, %p31
    %p33 = scmp.ne.s32.totalorder %s22, %s23
    %p34 = scmp.eq.s32.totalorder %s14, 0
    %p35 = por %p33, %p34
    %p36 = scmp.ne.s32.totalorder %s22, %s23
    %p37 = scmp.eq.s32.totalorder %s15, 1
    %p38 = por %p36, %p37
    %p40 = scmp.ne.s32.totalorder %s23, %s39
    %p41 = scmp.eq.s32.totalorder %s15, 0
    %p42 = por %p40, %p41
    %s44 = sadd.s32 %s43, 1
    %p47 = scmp.eq.s32.totalorder %s9, 1
    %p48 = scmp.ne.s32.totalorder %s43, %s45
    %p49 = scmp.eq.s32.totalorder %s9, 0
    %p50 = por %p48, %p49
    %p51 = scmp.ne.s32.totalorder %s43, %s45
    %p52 = scmp.eq.s32.totalorder %s14, 1
    %p53 = por %p51, %p52
    %p54 = scmp.ne.s32.totalorder %s45, %s46
    %p55 = scmp.eq.s32.totalorder %s14, 0
    %p56 = por %p54, %p55
    %p57 = scmp.ne.s32.totalorder %s45, %s46
    %p58 = scmp.eq.s32.totalorder %s15, 1
    %p59 = por %p57, %p58
    %p61 = scmp.ne.s32.totalorder %s46, %s60
    %p62 = scmp.eq.s32.totalorder %s15, 0
    %p63 = por %p61, %p62
    %s65 = sadd.s32 %s64, 1
    %p68 = scmp.eq.s32.totalorder %s9, 1
    %p69 = scmp.ne.s32.totalorder %s64, %s66
    %p70 = scmp.eq.s32.totalorder %s9, 0
    %p71 = por %p69, %p70
    %p72 = scmp.ne.s32.totalorder %s64, %s66
    %p73 = scmp.eq.s32.totalorder %s14, 1
    %p74 = por %p72, %p73
    %p75 = scmp.ne.s32.totalorder %s66, %s67
    %p76 = scmp.eq.s32.totalorder %s14, 0
    %p77 = por %p75, %p76
    %p78 = scmp.ne.s32.totalorder %s66, %s67
    %p79 = scmp.eq.s32.totalorder %s15, 1
    %p80 = por %p78, %p79
    %p82 = scmp.ne.s32.totalorder %s67, %s81
    %p83 = scmp.eq.s32.totalorder %s15, 0
    %p84 = por %p82, %p83
    %s85 = ssub.s32 %s9, %s16
    %p86 = scmp.eq.s32.totalorder %s85, 0
    %s88 = sadd.s32 %s87, 1
    %s89 = scalar_select %p86, %s87, %s88
    %p92 = pneg %p86
    %p93 = scmp.eq.s32.totalorder %s9, 1
    %p94 = por %p92, %p93
    %p95 = scmp.ne.s32.totalorder %s87, %s90
    %p96 = scmp.eq.s32.totalorder %s9, 0
    %p97 = por %p95, %p96
    %p98 = scmp.ne.s32.totalorder %s87, %s90
    %p99 = scmp.eq.s32.totalorder %s14, 1
    %p100 = por %p98, %p99
    %p101 = scmp.ne.s32.totalorder %s90, %s91
    %p102 = scmp.eq.s32.totalorder %s14, 0
    %p103 = por %p101, %p102
    %p104 = scmp.ne.s32.totalorder %s90, %s91
    %p105 = scmp.eq.s32.totalorder %s15, 1
    %p106 = por %p104, %p105
    %p108 = scmp.ne.s32.totalorder %s91, %s107
    %p109 = scmp.eq.s32.totalorder %s15, 0
    %p110 = por %p108, %p109
    %p111 = scmp.le.s32.totalorder 1, %s9
    %p112 = scmp.lt.s32.totalorder %s9, 3
    %p113 = pnand %p111, %p112
    %p114 = pneg %p113
    // Predicated region
    $region9: #{encoder_forward.4} parent=5 // pred_check
      _
    $region10: #{encoder_forward.4} parent=5 // pred_check_branch
      %116 = sbr.rel (%p113) target = $region12
    $region11: #{encoder_forward.4} parent=5 // pred_region
      %s117 = ssub.s32 %s9, 1
      // Predicated region
      $region13: #{encoder_forward.4} parent=11 // pred_check
        %p118 = pneg %p56
      $region14: #{encoder_forward.4} parent=11 // pred_check_branch
        %120 = sbr.rel (%p118) target = $region16
      $region15: #{encoder_forward.4} parent=11 // pred_region
        _
      $region16: #{encoder_forward.4} parent=11 // pred_fallthru
        _
      // Predicated region
      $region17: #{encoder_forward.4} parent=11 // pred_check
        %p121 = pneg %p77
      $region18: #{encoder_forward.4} parent=11 // pred_check_branch
        %123 = sbr.rel (%p121) target = $region20
      $region19: #{encoder_forward.4} parent=11 // pred_region
        _
      $region20: #{encoder_forward.4} parent=11 // pred_fallthru
        _
    $region12: #{encoder_forward.4} parent=5 // pred_fallthru
      _
    %p124 = scmp.lt.s32.totalorder %s9, 2
    // Predicated region
    $region21: #{encoder_forward.4} parent=5 // pred_check
      %p125 = pneg %p124
    $region22: #{encoder_forward.4} parent=5 // pred_check_branch
      %127 = sbr.rel (%p125) target = $region24
    $region23: #{encoder_forward.4} parent=5 // pred_region
      // Predicated region
      $region25: #{encoder_forward.4} parent=23 // pred_check
        %p128 = pneg %p29
      $region26: #{encoder_forward.4} parent=23 // pred_check_branch
        %130 = sbr.rel (%p128) target = $region28
      $region27: #{encoder_forward.4} parent=23 // pred_region
        %s131 = smul.u32 32, %s9
        %p132 = scmp.lt.s32.totalorder %s131, 63
        %s133 = scalar_select %p132, %s131, 63
        %s134 = smul.addr %s133, 4
        %s135 = scalar_lea.vmem %s0, %s134
        %s136 = smul.u32 32, %s9
      $region28: #{encoder_forward.4} parent=23 // pred_fallthru
        _
    $region24: #{encoder_forward.4} parent=5 // pred_fallthru
      _
    %p137 = scmp.le.s32.totalorder 1, %s9
    %p138 = scmp.lt.s32.totalorder %s9, 3
    %p139 = pnand %p137, %p138
    %p140 = pneg %p139
    // Predicated region
    $region29: #{encoder_forward.4} parent=5 // pred_check
      _
    $region30: #{encoder_forward.4} parent=5 // pred_check_branch
      %142 = sbr.rel (%p139) target = $region32
    $region31: #{encoder_forward.4} parent=5 // pred_region
      %s143 = ssub.s32 %s9, 1
      %s144 = smul.u32 32, %s14
      %p145 = scmp.lt.s32.totalorder %s144, 63
      %s146 = scalar_select %p145, %s144, 63
      %s147 = smul.addr %s146, 4
      %s148 = scalar_lea.vmem %s0, %s147
      %p149 = pneg %p35
      %p150 = pneg %p32
      %p151 = pneg %p56
      %p152 = pneg %p53
      %p153 = pneg %p77
      %p154 = pneg %p74
      %p155 = pneg %p103
      %p156 = pneg %p100
      %s157 = smul.u32 32, %s14
      %p158 = scmp.lt.s32.totalorder %s157, 63
      %s159 = scalar_select %p158, %s157, 63
      %s160 = smul.addr %s159, 4
      %s161 = scalar_lea.vmem %s3, %s160
      %s162 = smul.u32 32, %s14
      %p163 = scmp.lt.s32.totalorder %s162, 63
      %s164 = scalar_select %p163, %s162, 63
      %s165 = smul.addr %s164, 4
      %s166 = scalar_lea.vmem %s0, %s165
      %s167 = smul.u32 32, %s14
      %s168 = smul.u32 32, %s14
      %p169 = scmp.lt.s32.totalorder %s168, 63
      %s170 = scalar_select %p169, %s168, 63
      %s171 = smul.addr %s170, 4
      %s172 = scalar_lea.vmem %s3, %s171
      %s173 = smul.u32 32, %s14
      %v175 = vld [vmem:[%s166] sm:$0xf]
      %v176 = vld [vmem:[%s166 + $0x4] sm:$0xf]
      %v177 = vld [vmem:[%s166 + $0x8] sm:$0xf]
      %v178 = vld [vmem:[%s166 + $0xc] sm:$0xf]
      %v179 = vld [vmem:[%s166 + $0x10] sm:$0xf]
      %v180 = vld [vmem:[%s166 + $0x14] sm:$0xf]
      %v181 = vld [vmem:[%s166 + $0x18] sm:$0xf]
      %v182 = vld [vmem:[%s166 + $0x1c] sm:$0xf]
      %v183 = vld [vmem:[%s166 + $0x20] sm:$0xf]
      %v184 = vld [vmem:[%s166 + $0x24] sm:$0xf]
      %v185 = vld [vmem:[%s166 + $0x28] sm:$0xf]
      %v186 = vld [vmem:[%s166 + $0x2c] sm:$0xf]
      %v187 = vld [vmem:[%s166 + $0x30] sm:$0xf]
      %v188 = vld [vmem:[%s166 + $0x34] sm:$0xf]
      %v189 = vld [vmem:[%s166 + $0x38] sm:$0xf]
      %v190 = vld [vmem:[%s166 + $0x3c] sm:$0xf]
      %v191 = vld [vmem:[%s166 + $0x40] sm:$0xf]
      %v192 = vld [vmem:[%s166 + $0x44] sm:$0xf]
      %v193 = vld [vmem:[%s166 + $0x48] sm:$0xf]
      %v194 = vld [vmem:[%s166 + $0x4c] sm:$0xf]
      %v195 = vld [vmem:[%s166 + $0x50] sm:$0xf]
      %v196 = vld [vmem:[%s166 + $0x54] sm:$0xf]
      %v197 = vld [vmem:[%s166 + $0x58] sm:$0xf]
      %v198 = vld [vmem:[%s166 + $0x5c] sm:$0xf]
      %v199 = vld [vmem:[%s166 + $0x60] sm:$0xf]
      %v200 = vld [vmem:[%s166 + $0x64] sm:$0xf]
      %v201 = vld [vmem:[%s166 + $0x68] sm:$0xf]
      %v202 = vld [vmem:[%s166 + $0x6c] sm:$0xf]
      %v203 = vld [vmem:[%s166 + $0x70] sm:$0xf]
      %v204 = vld [vmem:[%s166 + $0x74] sm:$0xf]
      %v205 = vld [vmem:[%s166 + $0x78] sm:$0xf]
      %v206 = vld [vmem:[%s166 + $0x7c] sm:$0xf]
      %v207 = vld [vmem:[%s1] sm:$0xf]
      %v208 = vld [vmem:[%s1 + $0x4] sm:$0xf]
      %v209 = vld [vmem:[%s1 + $0x8] sm:$0xf]
      %v210 = vld [vmem:[%s1 + $0xc] sm:$0xf]
      %v211 = vld [vmem:[%s1 + $0x10] sm:$0xf]
      %v212 = vld [vmem:[%s1 + $0x14] sm:$0xf]
      %v213 = vld [vmem:[%s2] sm:$0x1]
      %v215 = vperm.slane %v213, 0
      %v249 = vunpack.c.l.b16 %v175
      %v250 = vunpack.c.l.b16 %v176
      %v251 = vunpack.c.l.b16 %v177
      %v252 = vunpack.c.l.b16 %v178
      %v253 = vunpack.c.l.b16 %v179
      %v254 = vunpack.c.l.b16 %v180
      %v255 = vunpack.c.l.b16 %v181
      %v256 = vunpack.c.l.b16 %v182
      %v257 = vunpack.c.l.b16 %v183
      %v258 = vunpack.c.l.b16 %v184
      %v259 = vunpack.c.l.b16 %v185
      %v260 = vunpack.c.l.b16 %v186
      %v261 = vunpack.c.l.b16 %v187
      %v262 = vunpack.c.l.b16 %v188
      %v263 = vunpack.c.l.b16 %v189
      %v264 = vunpack.c.l.b16 %v190
      %v265 = vunpack.c.l.b16 %v191
      %v266 = vunpack.c.l.b16 %v192
      %v267 = vunpack.c.l.b16 %v193
      %v268 = vunpack.c.l.b16 %v194
      %v269 = vunpack.c.l.b16 %v195
      %v270 = vunpack.c.l.b16 %v196
      %v271 = vunpack.c.l.b16 %v197
      %v272 = vunpack.c.l.b16 %v198
      %v273 = vunpack.c.l.b16 %v199
      %v274 = vunpack.c.l.b16 %v200
      %v275 = vunpack.c.l.b16 %v201
      %v276 = vunpack.c.l.b16 %v202
      %v277 = vunpack.c.l.b16 %v203
      %v278 = vunpack.c.l.b16 %v204
      %v279 = vunpack.c.l.b16 %v205
      %v280 = vunpack.c.l.b16 %v206
      %v281 = vpack.c.b16 %v250, %v249
      %v282 = vpack.c.b16 %v252, %v251
      %v283 = vpack.c.b16 %v254, %v253
      %v284 = vpack.c.b16 %v256, %v255
      %v285 = vpack.c.b16 %v258, %v257
      %v286 = vpack.c.b16 %v260, %v259
      %v287 = vpack.c.b16 %v262, %v261
      %v288 = vpack.c.b16 %v264, %v263
      %v289 = vpack.c.b16 %v266, %v265
      %v290 = vpack.c.b16 %v268, %v267
      %v291 = vpack.c.b16 %v270, %v269
      %v292 = vpack.c.b16 %v272, %v271
      %v293 = vpack.c.b16 %v274, %v273
      %v294 = vpack.c.b16 %v276, %v275
      %v295 = vpack.c.b16 %v278, %v277
      %v296 = vpack.c.b16 %v280, %v279
      %v303 = vunpack.c.l.b16 %v207
      %v304 = vunpack.c.l.b16 %v208
      %v305 = vunpack.c.l.b16 %v209
      %v306 = vunpack.c.l.b16 %v210
      %v307 = vunpack.c.l.b16 %v211
      %v308 = vunpack.c.l.b16 %v212
      %v309 = vpack.c.b16 %v304, %v303
      %v310 = vpack.c.b16 %v306, %v305
      %v311 = vpack.c.b16 %v308, %v307
      %vm315 = vcmask 392192
      %v317 = vsel %vm315, %v281, 0
      %v320 = vsel %vm315, %v282, 0
      %v323 = vsel %vm315, %v283, 0
      %v326 = vsel %vm315, %v284, 0
      %v329 = vsel %vm315, %v285, 0
      %v332 = vsel %vm315, %v286, 0
      %v335 = vsel %vm315, %v287, 0
      %v338 = vsel %vm315, %v288, 0
      %v341 = vsel %vm315, %v289, 0
      %v344 = vsel %vm315, %v290, 0
      %v347 = vsel %vm315, %v291, 0
      %v350 = vsel %vm315, %v292, 0
      %v353 = vsel %vm315, %v293, 0
      %v356 = vsel %vm315, %v294, 0
      %v359 = vsel %vm315, %v295, 0
      %v362 = vsel %vm315, %v296, 0
      %364 = vmatpush.bf16.msra.mxu0 0
      %365 = vmatpush.bf16.msra.mxu0 0
      %366 = vmatpush.bf16.msra.mxu0 0
      %367 = vmatpush.bf16.msra.mxu0 0
      %368 = vmatpush.bf16.msra.mxu0 0
      %369 = vmatpush.bf16.msra.mxu0 %v311
      %370 = vmatpush.bf16.msra.mxu0 %v310
      %371 = vmatpush.bf16.msra.mxu0 %v309
      %372 = vmatmul.bf16.gmra.mxu0 %v317
      %v373 = vpop.f32.mrf.mxu0
      %v374 = vadd.f32 %v215, %v373
      %v375 = vpop.f32.mrf.mxu0
      %v376 = vadd.f32 %v215, %v375
      %377 = vmatmul.bf16.gmra.mxu0 %v320
      %v378 = vpop.f32.mrf.mxu0
      %v379 = vadd.f32 %v215, %v378
      %v380 = vpop.f32.mrf.mxu0
      %v381 = vadd.f32 %v215, %v380
      %382 = vmatmul.bf16.gmra.mxu0 %v323
      %v383 = vpop.f32.mrf.mxu0
      %v384 = vadd.f32 %v215, %v383
      %v385 = vpop.f32.mrf.mxu0
      %v386 = vadd.f32 %v215, %v385
      %387 = vmatmul.bf16.gmra.mxu0 %v326
      %v388 = vpop.f32.mrf.mxu0
      %v389 = vadd.f32 %v215, %v388
      %v390 = vpop.f32.mrf.mxu0
      %v391 = vadd.f32 %v215, %v390
      %392 = vmatmul.bf16.gmra.mxu0 %v329
      %v393 = vpop.f32.mrf.mxu0
      %v394 = vadd.f32 %v215, %v393
      %v395 = vpop.f32.mrf.mxu0
      %v396 = vadd.f32 %v215, %v395
      %397 = vmatmul.bf16.gmra.mxu0 %v332
      %v398 = vpop.f32.mrf.mxu0
      %v399 = vadd.f32 %v215, %v398
      %v400 = vpop.f32.mrf.mxu0
      %v401 = vadd.f32 %v215, %v400
      %402 = vmatmul.bf16.gmra.mxu0 %v335
      %v403 = vpop.f32.mrf.mxu0
      %v404 = vadd.f32 %v215, %v403
      %v405 = vpop.f32.mrf.mxu0
      %v406 = vadd.f32 %v215, %v405
      %407 = vmatmul.bf16.gmra.mxu0 %v338
      %v408 = vpop.f32.mrf.mxu0
      %v409 = vadd.f32 %v215, %v408
      %v410 = vpop.f32.mrf.mxu0
      %v411 = vadd.f32 %v215, %v410
      %412 = vmatmul.bf16.gmra.mxu0 %v341
      %v413 = vpop.f32.mrf.mxu0
      %v414 = vadd.f32 %v215, %v413
      %v415 = vpop.f32.mrf.mxu0
      %v416 = vadd.f32 %v215, %v415
      %417 = vmatmul.bf16.gmra.mxu0 %v344
      %v418 = vpop.f32.mrf.mxu0
      %v419 = vadd.f32 %v215, %v418
      %v420 = vpop.f32.mrf.mxu0
      %v421 = vadd.f32 %v215, %v420
      %422 = vmatmul.bf16.gmra.mxu0 %v347
      %v423 = vpop.f32.mrf.mxu0
      %v424 = vadd.f32 %v215, %v423
      %v425 = vpop.f32.mrf.mxu0
      %v426 = vadd.f32 %v215, %v425
      %427 = vmatmul.bf16.gmra.mxu0 %v350
      %v428 = vpop.f32.mrf.mxu0
      %v429 = vadd.f32 %v215, %v428
      %v430 = vpop.f32.mrf.mxu0
      %v431 = vadd.f32 %v215, %v430
      %432 = vmatmul.bf16.gmra.mxu0 %v353
      %v433 = vpop.f32.mrf.mxu0
      %v434 = vadd.f32 %v215, %v433
      %v435 = vpop.f32.mrf.mxu0
      %v436 = vadd.f32 %v215, %v435
      %437 = vmatmul.bf16.gmra.mxu0 %v356
      %v438 = vpop.f32.mrf.mxu0
      %v439 = vadd.f32 %v215, %v438
      %v440 = vpop.f32.mrf.mxu0
      %v441 = vadd.f32 %v215, %v440
      %442 = vmatmul.bf16.gmra.mxu0 %v359
      %v443 = vpop.f32.mrf.mxu0
      %v444 = vadd.f32 %v215, %v443
      %v445 = vpop.f32.mrf.mxu0
      %v446 = vadd.f32 %v215, %v445
      %447 = vmatmul.bf16.gmra.mxu0 %v362
      %v448 = vpop.f32.mrf.mxu0
      %v449 = vadd.f32 %v215, %v448
      %v450 = vpop.f32.mrf.mxu0
      %v451 = vadd.f32 %v215, %v450
      %452 = vdwg.mxu0
      %v453 = vmax.f32 %v374, 0.0
      %v454 = vmax.f32 %v376, 0.0
      %v455 = vmax.f32 %v379, 0.0
      %v456 = vmax.f32 %v381, 0.0
      %v457 = vmax.f32 %v384, 0.0
      %v458 = vmax.f32 %v386, 0.0
      %v459 = vmax.f32 %v389, 0.0
      %v460 = vmax.f32 %v391, 0.0
      %v461 = vmax.f32 %v394, 0.0
      %v462 = vmax.f32 %v396, 0.0
      %v463 = vmax.f32 %v399, 0.0
      %v464 = vmax.f32 %v401, 0.0
      %v465 = vmax.f32 %v404, 0.0
      %v466 = vmax.f32 %v406, 0.0
      %v467 = vmax.f32 %v409, 0.0
      %v468 = vmax.f32 %v411, 0.0
      %v469 = vmax.f32 %v414, 0.0
      %v470 = vmax.f32 %v416, 0.0
      %v471 = vmax.f32 %v419, 0.0
      %v472 = vmax.f32 %v421, 0.0
      %v473 = vmax.f32 %v424, 0.0
      %v474 = vmax.f32 %v426, 0.0
      %v475 = vmax.f32 %v429, 0.0
      %v476 = vmax.f32 %v431, 0.0
      %v477 = vmax.f32 %v434, 0.0
      %v478 = vmax.f32 %v436, 0.0
      %v479 = vmax.f32 %v439, 0.0
      %v480 = vmax.f32 %v441, 0.0
      %v481 = vmax.f32 %v444, 0.0
      %v482 = vmax.f32 %v446, 0.0
      %v483 = vmax.f32 %v449, 0.0
      %v484 = vmax.f32 %v451, 0.0
      %v485 = vpack.c.bf16 %v453, %v453
      %v486 = vpack.c.bf16 %v454, %v454
      %v487 = vpack.c.bf16 %v455, %v455
      %v488 = vpack.c.bf16 %v456, %v456
      %v489 = vpack.c.bf16 %v457, %v457
      %v490 = vpack.c.bf16 %v458, %v458
      %v491 = vpack.c.bf16 %v459, %v459
      %v492 = vpack.c.bf16 %v460, %v460
      %v493 = vpack.c.bf16 %v461, %v461
      %v494 = vpack.c.bf16 %v462, %v462
      %v495 = vpack.c.bf16 %v463, %v463
      %v496 = vpack.c.bf16 %v464, %v464
      %v497 = vpack.c.bf16 %v465, %v465
      %v498 = vpack.c.bf16 %v466, %v466
      %v499 = vpack.c.bf16 %v467, %v467
      %v500 = vpack.c.bf16 %v468, %v468
      %v501 = vpack.c.bf16 %v469, %v469
      %v502 = vpack.c.bf16 %v470, %v470
      %v503 = vpack.c.bf16 %v471, %v471
      %v504 = vpack.c.bf16 %v472, %v472
      %v505 = vpack.c.bf16 %v473, %v473
      %v506 = vpack.c.bf16 %v474, %v474
      %v507 = vpack.c.bf16 %v475, %v475
      %v508 = vpack.c.bf16 %v476, %v476
      %v509 = vpack.c.bf16 %v477, %v477
      %v510 = vpack.c.bf16 %v478, %v478
      %v511 = vpack.c.bf16 %v479, %v479
      %v512 = vpack.c.bf16 %v480, %v480
      %v513 = vpack.c.bf16 %v481, %v481
      %v514 = vpack.c.bf16 %v482, %v482
      %v515 = vpack.c.bf16 %v483, %v483
      %v516 = vpack.c.bf16 %v484, %v484
      %vm517 = vcmask 519168
      %518 = vst.msk [vmem:[%s172] sm:$0xf] %vm517, %v485
      %519 = vst.msk [vmem:[%s172 + $0x4] sm:$0xf] %vm517, %v486
      %520 = vst.msk [vmem:[%s172 + $0x8] sm:$0xf] %vm517, %v487
      %521 = vst.msk [vmem:[%s172 + $0xc] sm:$0xf] %vm517, %v488
      %522 = vst.msk [vmem:[%s172 + $0x10] sm:$0xf] %vm517, %v489
      %523 = vst.msk [vmem:[%s172 + $0x14] sm:$0xf] %vm517, %v490
      %524 = vst.msk [vmem:[%s172 + $0x18] sm:$0xf] %vm517, %v491
      %525 = vst.msk [vmem:[%s172 + $0x1c] sm:$0xf] %vm517, %v492
      %526 = vst.msk [vmem:[%s172 + $0x20] sm:$0xf] %vm517, %v493
      %527 = vst.msk [vmem:[%s172 + $0x24] sm:$0xf] %vm517, %v494
      %528 = vst.msk [vmem:[%s172 + $0x28] sm:$0xf] %vm517, %v495
      %529 = vst.msk [vmem:[%s172 + $0x2c] sm:$0xf] %vm517, %v496
      %530 = vst.msk [vmem:[%s172 + $0x30] sm:$0xf] %vm517, %v497
      %531 = vst.msk [vmem:[%s172 + $0x34] sm:$0xf] %vm517, %v498
      %532 = vst.msk [vmem:[%s172 + $0x38] sm:$0xf] %vm517, %v499
      %533 = vst.msk [vmem:[%s172 + $0x3c] sm:$0xf] %vm517, %v500
      %534 = vst.msk [vmem:[%s172 + $0x40] sm:$0xf] %vm517, %v501
      %535 = vst.msk [vmem:[%s172 + $0x44] sm:$0xf] %vm517, %v502
      %536 = vst.msk [vmem:[%s172 + $0x48] sm:$0xf] %vm517, %v503
      %537 = vst.msk [vmem:[%s172 + $0x4c] sm:$0xf] %vm517, %v504
      %538 = vst.msk [vmem:[%s172 + $0x50] sm:$0xf] %vm517, %v505
      %539 = vst.msk [vmem:[%s172 + $0x54] sm:$0xf] %vm517, %v506
      %540 = vst.msk [vmem:[%s172 + $0x58] sm:$0xf] %vm517, %v507
      %541 = vst.msk [vmem:[%s172 + $0x5c] sm:$0xf] %vm517, %v508
      %542 = vst.msk [vmem:[%s172 + $0x60] sm:$0xf] %vm517, %v509
      %543 = vst.msk [vmem:[%s172 + $0x64] sm:$0xf] %vm517, %v510
      %544 = vst.msk [vmem:[%s172 + $0x68] sm:$0xf] %vm517, %v511
      %545 = vst.msk [vmem:[%s172 + $0x6c] sm:$0xf] %vm517, %v512
      %546 = vst.msk [vmem:[%s172 + $0x70] sm:$0xf] %vm517, %v513
      %547 = vst.msk [vmem:[%s172 + $0x74] sm:$0xf] %vm517, %v514
      %548 = vst.msk [vmem:[%s172 + $0x78] sm:$0xf] %vm517, %v515
      %549 = vst.msk [vmem:[%s172 + $0x7c] sm:$0xf] %vm517, %v516
      %s550 = smul.u32 32, %s14
      %p551 = scmp.lt.s32.totalorder %s550, 63
      %s552 = scalar_select %p551, %s550, 63
      %s553 = smul.addr %s552, 4
      %s554 = scalar_lea.vmem %s3, %s553
      // Predicated region
      $region33: #{encoder_forward.4} parent=31 // pred_check
        %p555 = pneg %p100
      $region34: #{encoder_forward.4} parent=31 // pred_check_branch
        %557 = sbr.rel (%p555) target = $region36
      $region35: #{encoder_forward.4} parent=31 // pred_region
        %s558 = smul.u32 32, %s14
      $region36: #{encoder_forward.4} parent=31 // pred_fallthru
        _
    $region32: #{encoder_forward.4} parent=5 // pred_fallthru
      _
    %p559 = scmp.le.s32.totalorder 2, %s9
    // Predicated region
    $region37: #{encoder_forward.4} parent=5 // pred_check
      %p560 = pneg %p559
    $region38: #{encoder_forward.4} parent=5 // pred_check_branch
      %562 = sbr.rel (%p560) target = $region40
    $region39: #{encoder_forward.4} parent=5 // pred_region
      %s563 = ssub.s32 %s9, 2
      // Predicated region
      $region41: #{encoder_forward.4} parent=39 // pred_check
        %p564 = pneg %p106
      $region42: #{encoder_forward.4} parent=39 // pred_check_branch
        %566 = sbr.rel (%p564) target = $region44
      $region43: #{encoder_forward.4} parent=39 // pred_region
        %s567 = smul.u32 32, %s15
        %p568 = scmp.lt.s32.totalorder %s567, 63
        %s569 = scalar_select %p568, %s567, 63
        %s570 = smul.addr %s569, 4
        %s571 = scalar_lea.vmem %s3, %s570
      $region44: #{encoder_forward.4} parent=39 // pred_fallthru
        _
    $region40: #{encoder_forward.4} parent=5 // pred_fallthru
      _
  $region6: #{encoder_forward.4} parent=0 // loop_footer
    %s13 = sadd.s32 1, %s9
  $region7: #{encoder_forward.4} parent=0 // loop_footer_branch
    %8 = sbr.rel target = $region3
  $region8: #{encoder_forward.4} parent=0 // loop_exit
    _

// kernel: encoder_forward.5
$region0: #{encoder_forward.5}
  #allocation0 [shape = 'u32[]', space=smem, size = 0x4, offset = 0x4, fixed_abs, tag = 'smem constant byte address 0x4 - core index']
  #allocation1 [shape = 'u32[72,128]{1,0:T(1,128)}', space=vmem, size = 0x9000, scoped, tag = 'internal scratch']
  %s0 = inlined_call_operand.vmem [shape: bf16[128,1024], index: 0, kind: input, shape index: {}]
  %s1 = inlined_call_operand.vmem [shape: bf16[1024,128], index: 1, kind: input, shape index: {}]
  %s2 = inlined_call_operand.vmem [shape: f32[1,128], index: 2, kind: input, shape index: {}]
  %s3 = inlined_call_operand.vmem [shape: bf16[128,128], index: 3, kind: output, shape index: {}]
  %s4 = sld [smem:[#allocation0]]
  $region22: #{encoder_forward.5} parent=0
    _
  %s6 = ssub.s32 1, %s4
  %s7 = scalar_select 0, %s6, %s4
  // Predicated region
  $region2: #{encoder_forward.5} parent=0 // pred_check
    _
  $region3: #{encoder_forward.5} parent=0 // pred_check_branch
    %9 = sbr.rel (0) target = $region5
  $region4: #{encoder_forward.5} parent=0 // pred_region
    _
  $region5: #{encoder_forward.5} parent=0 // pred_fallthru
    _
  // Predicated region
  $region6: #{encoder_forward.5} parent=0 // pred_check
    _
  $region7: #{encoder_forward.5} parent=0 // pred_check_branch
    %11 = sbr.rel (0) target = $region9
  $region8: #{encoder_forward.5} parent=0 // pred_region
    _
  $region9: #{encoder_forward.5} parent=0 // pred_fallthru
    _
  // Predicated region
  $region10: #{encoder_forward.5} parent=0 // pred_check
    _
  $region11: #{encoder_forward.5} parent=0 // pred_check_branch
    %13 = sbr.rel (0) target = $region13
  $region12: #{encoder_forward.5} parent=0 // pred_region
    _
  $region13: #{encoder_forward.5} parent=0 // pred_fallthru
    _
  %v14 = vld [vmem:[%s0] sm:$0xff]
  %v15 = vld [vmem:[%s0 + $0x8] sm:$0xff]
  %v16 = vld [vmem:[%s0 + $0x10] sm:$0xff]
  %v17 = vld [vmem:[%s0 + $0x18] sm:$0xff]
  %v18 = vld [vmem:[%s0 + $0x20] sm:$0xff]
  %v19 = vld [vmem:[%s0 + $0x28] sm:$0xff]
  %v20 = vld [vmem:[%s0 + $0x30] sm:$0xff]
  %v21 = vld [vmem:[%s0 + $0x38] sm:$0xff]
  %v22 = vld [vmem:[%s0 + $0x40] sm:$0xff]
  %v23 = vld [vmem:[%s0 + $0x48] sm:$0xff]
  %v24 = vld [vmem:[%s0 + $0x50] sm:$0xff]
  %v25 = vld [vmem:[%s0 + $0x58] sm:$0xff]
  %v26 = vld [vmem:[%s0 + $0x60] sm:$0xff]
  %v27 = vld [vmem:[%s0 + $0x68] sm:$0xff]
  %v28 = vld [vmem:[%s0 + $0x70] sm:$0xff]
  %v29 = vld [vmem:[%s0 + $0x78] sm:$0xff]
  %v30 = vld [vmem:[%s0 + $0x80] sm:$0xff]
  %v31 = vld [vmem:[%s0 + $0x88] sm:$0xff]
  %v32 = vld [vmem:[%s0 + $0x90] sm:$0xff]
  %v33 = vld [vmem:[%s0 + $0x98] sm:$0xff]
  %v34 = vld [vmem:[%s0 + $0xa0] sm:$0xff]
  %v35 = vld [vmem:[%s0 + $0xa8] sm:$0xff]
  %v36 = vld [vmem:[%s0 + $0xb0] sm:$0xff]
  %v37 = vld [vmem:[%s0 + $0xb8] sm:$0xff]
  %v38 = vld [vmem:[%s0 + $0xc0] sm:$0xff]
  %v39 = vld [vmem:[%s0 + $0xc8] sm:$0xff]
  %v40 = vld [vmem:[%s0 + $0xd0] sm:$0xff]
  %v41 = vld [vmem:[%s0 + $0xd8] sm:$0xff]
  %v42 = vld [vmem:[%s0 + $0xe0] sm:$0xff]
  %v43 = vld [vmem:[%s0 + $0xe8] sm:$0xff]
  %v44 = vld [vmem:[%s0 + $0xf0] sm:$0xff]
  %v45 = vld [vmem:[%s0 + $0xf8] sm:$0xff]
  %v46 = vld [vmem:[%s0 + $0x100] sm:$0xff]
  %v47 = vld [vmem:[%s0 + $0x108] sm:$0xff]
  %v48 = vld [vmem:[%s0 + $0x110] sm:$0xff]
  %v49 = vld [vmem:[%s0 + $0x118] sm:$0xff]
  %v50 = vld [vmem:[%s0 + $0x120] sm:$0xff]
  %v51 = vld [vmem:[%s0 + $0x128] sm:$0xff]
  %v52 = vld [vmem:[%s0 + $0x130] sm:$0xff]
  %v53 = vld [vmem:[%s0 + $0x138] sm:$0xff]
  %v54 = vld [vmem:[%s0 + $0x140] sm:$0xff]
  %v55 = vld [vmem:[%s0 + $0x148] sm:$0xff]
  %v56 = vld [vmem:[%s0 + $0x150] sm:$0xff]
  %v57 = vld [vmem:[%s0 + $0x158] sm:$0xff]
  %v58 = vld [vmem:[%s0 + $0x160] sm:$0xff]
  %v59 = vld [vmem:[%s0 + $0x168] sm:$0xff]
  %v60 = vld [vmem:[%s0 + $0x170] sm:$0xff]
  %v61 = vld [vmem:[%s0 + $0x178] sm:$0xff]
  %v62 = vld [vmem:[%s0 + $0x180] sm:$0xff]
  %v63 = vld [vmem:[%s0 + $0x188] sm:$0xff]
  %v64 = vld [vmem:[%s0 + $0x190] sm:$0xff]
  %v65 = vld [vmem:[%s0 + $0x198] sm:$0xff]
  %v66 = vld [vmem:[%s0 + $0x1a0] sm:$0xff]
  %v67 = vld [vmem:[%s0 + $0x1a8] sm:$0xff]
  %v68 = vld [vmem:[%s0 + $0x1b0] sm:$0xff]
  %v69 = vld [vmem:[%s0 + $0x1b8] sm:$0xff]
  %v70 = vld [vmem:[%s0 + $0x1c0] sm:$0xff]
  %v71 = vld [vmem:[%s0 + $0x1c8] sm:$0xff]
  %v72 = vld [vmem:[%s0 + $0x1d0] sm:$0xff]
  %v73 = vld [vmem:[%s0 + $0x1d8] sm:$0xff]
  %v74 = vld [vmem:[%s0 + $0x1e0] sm:$0xff]
  %v75 = vld [vmem:[%s0 + $0x1e8] sm:$0xff]
  %v76 = vld [vmem:[%s0 + $0x1f0] sm:$0xff]
  %v77 = vld [vmem:[%s0 + $0x1f8] sm:$0xff]
  %v78 = vld [vmem:[%s1] sm:$0xf]
  %v79 = vld [vmem:[%s1 + $0x4] sm:$0xf]
  %v80 = vld [vmem:[%s1 + $0x8] sm:$0xf]
  %v81 = vld [vmem:[%s1 + $0xc] sm:$0xf]
  %v82 = vld [vmem:[%s1 + $0x10] sm:$0xf]
  %v83 = vld [vmem:[%s1 + $0x14] sm:$0xf]
  %v84 = vld [vmem:[%s1 + $0x18] sm:$0xf]
  %v85 = vld [vmem:[%s1 + $0x1c] sm:$0xf]
  %v86 = vld [vmem:[%s1 + $0x20] sm:$0xf]
  %v87 = vld [vmem:[%s1 + $0x24] sm:$0xf]
  %v88 = vld [vmem:[%s1 + $0x28] sm:$0xf]
  %v89 = vld [vmem:[%s1 + $0x2c] sm:$0xf]
  %v90 = vld [vmem:[%s1 + $0x30] sm:$0xf]
  %v91 = vld [vmem:[%s1 + $0x34] sm:$0xf]
  %v92 = vld [vmem:[%s1 + $0x38] sm:$0xf]
  %v93 = vld [vmem:[%s1 + $0x3c] sm:$0xf]
  %v94 = vld [vmem:[%s1 + $0x40] sm:$0xf]
  %v95 = vld [vmem:[%s1 + $0x44] sm:$0xf]
  %v96 = vld [vmem:[%s1 + $0x48] sm:$0xf]
  %v97 = vld [vmem:[%s1 + $0x4c] sm:$0xf]
  %v98 = vld [vmem:[%s1 + $0x50] sm:$0xf]
  %v99 = vld [vmem:[%s1 + $0x54] sm:$0xf]
  %v100 = vld [vmem:[%s1 + $0x58] sm:$0xf]
  %v101 = vld [vmem:[%s1 + $0x5c] sm:$0xf]
  %v102 = vld [vmem:[%s1 + $0x60] sm:$0xf]
  %v103 = vld [vmem:[%s1 + $0x64] sm:$0xf]
  %v104 = vld [vmem:[%s1 + $0x68] sm:$0xf]
  %v105 = vld [vmem:[%s1 + $0x6c] sm:$0xf]
  %v106 = vld [vmem:[%s1 + $0x70] sm:$0xf]
  %v107 = vld [vmem:[%s1 + $0x74] sm:$0xf]
  %v108 = vld [vmem:[%s1 + $0x78] sm:$0xf]
  %v109 = vld [vmem:[%s1 + $0x7c] sm:$0xf]
  %v110 = vld [vmem:[%s1 + $0x80] sm:$0xf]
  %v111 = vld [vmem:[%s1 + $0x84] sm:$0xf]
  %v112 = vld [vmem:[%s1 + $0x88] sm:$0xf]
  %v113 = vld [vmem:[%s1 + $0x8c] sm:$0xf]
  %v114 = vld [vmem:[%s1 + $0x90] sm:$0xf]
  %v115 = vld [vmem:[%s1 + $0x94] sm:$0xf]
  %v116 = vld [vmem:[%s1 + $0x98] sm:$0xf]
  %v117 = vld [vmem:[%s1 + $0x9c] sm:$0xf]
  %v118 = vld [vmem:[%s1 + $0xa0] sm:$0xf]
  %v119 = vld [vmem:[%s1 + $0xa4] sm:$0xf]
  %v120 = vld [vmem:[%s1 + $0xa8] sm:$0xf]
  %v121 = vld [vmem:[%s1 + $0xac] sm:$0xf]
  %v122 = vld [vmem:[%s1 + $0xb0] sm:$0xf]
  %v123 = vld [vmem:[%s1 + $0xb4] sm:$0xf]
  %v124 = vld [vmem:[%s1 + $0xb8] sm:$0xf]
  %v125 = vld [vmem:[%s1 + $0xbc] sm:$0xf]
  %v126 = vld [vmem:[%s1 + $0xc0] sm:$0xf]
  %v127 = vld [vmem:[%s1 + $0xc4] sm:$0xf]
  %v128 = vld [vmem:[%s1 + $0xc8] sm:$0xf]
  %v129 = vld [vmem:[%s1 + $0xcc] sm:$0xf]
  %v130 = vld [vmem:[%s1 + $0xd0] sm:$0xf]
  %v131 = vld [vmem:[%s1 + $0xd4] sm:$0xf]
  %v132 = vld [vmem:[%s1 + $0xd8] sm:$0xf]
  %v133 = vld [vmem:[%s1 + $0xdc] sm:$0xf]
  %v134 = vld [vmem:[%s1 + $0xe0] sm:$0xf]
  %v135 = vld [vmem:[%s1 + $0xe4] sm:$0xf]
  %v136 = vld [vmem:[%s1 + $0xe8] sm:$0xf]
  %v137 = vld [vmem:[%s1 + $0xec] sm:$0xf]
  %v138 = vld [vmem:[%s1 + $0xf0] sm:$0xf]
  %v139 = vld [vmem:[%s1 + $0xf4] sm:$0xf]
  %v140 = vld [vmem:[%s1 + $0xf8] sm:$0xf]
  %v141 = vld [vmem:[%s1 + $0xfc] sm:$0xf]
  %v142 = vld [vmem:[%s1 + $0x100] sm:$0xf]
  %v143 = vld [vmem:[%s1 + $0x104] sm:$0xf]
  %v144 = vld [vmem:[%s1 + $0x108] sm:$0xf]
  %v145 = vld [vmem:[%s1 + $0x10c] sm:$0xf]
  %v146 = vld [vmem:[%s1 + $0x110] sm:$0xf]
  %v147 = vld [vmem:[%s1 + $0x114] sm:$0xf]
  %v148 = vld [vmem:[%s1 + $0x118] sm:$0xf]
  %v149 = vld [vmem:[%s1 + $0x11c] sm:$0xf]
  %v150 = vld [vmem:[%s1 + $0x120] sm:$0xf]
  %v151 = vld [vmem:[%s1 + $0x124] sm:$0xf]
  %v152 = vld [vmem:[%s1 + $0x128] sm:$0xf]
  %v153 = vld [vmem:[%s1 + $0x12c] sm:$0xf]
  %v154 = vld [vmem:[%s1 + $0x130] sm:$0xf]
  %v155 = vld [vmem:[%s1 + $0x134] sm:$0xf]
  %v156 = vld [vmem:[%s1 + $0x138] sm:$0xf]
  %v157 = vld [vmem:[%s1 + $0x13c] sm:$0xf]
  %v158 = vld [vmem:[%s1 + $0x140] sm:$0xf]
  %v159 = vld [vmem:[%s1 + $0x144] sm:$0xf]
  %v160 = vld [vmem:[%s1 + $0x148] sm:$0xf]
  %v161 = vld [vmem:[%s1 + $0x14c] sm:$0xf]
  %v162 = vld [vmem:[%s1 + $0x150] sm:$0xf]
  %v163 = vld [vmem:[%s1 + $0x154] sm:$0xf]
  %v164 = vld [vmem:[%s1 + $0x158] sm:$0xf]
  %v165 = vld [vmem:[%s1 + $0x15c] sm:$0xf]
  %v166 = vld [vmem:[%s1 + $0x160] sm:$0xf]
  %v167 = vld [vmem:[%s1 + $0x164] sm:$0xf]
  %v168 = vld [vmem:[%s1 + $0x168] sm:$0xf]
  %v169 = vld [vmem:[%s1 + $0x16c] sm:$0xf]
  %v170 = vld [vmem:[%s1 + $0x170] sm:$0xf]
  %v171 = vld [vmem:[%s1 + $0x174] sm:$0xf]
  %v172 = vld [vmem:[%s1 + $0x178] sm:$0xf]
  %v173 = vld [vmem:[%s1 + $0x17c] sm:$0xf]
  %v174 = vld [vmem:[%s1 + $0x180] sm:$0xf]
  %v175 = vld [vmem:[%s1 + $0x184] sm:$0xf]
  %v176 = vld [vmem:[%s1 + $0x188] sm:$0xf]
  %v177 = vld [vmem:[%s1 + $0x18c] sm:$0xf]
  %v178 = vld [vmem:[%s1 + $0x190] sm:$0xf]
  %v179 = vld [vmem:[%s1 + $0x194] sm:$0xf]
  %v180 = vld [vmem:[%s1 + $0x198] sm:$0xf]
  %v181 = vld [vmem:[%s1 + $0x19c] sm:$0xf]
  %v182 = vld [vmem:[%s1 + $0x1a0] sm:$0xf]
  %v183 = vld [vmem:[%s1 + $0x1a4] sm:$0xf]
  %v184 = vld [vmem:[%s1 + $0x1a8] sm:$0xf]
  %v185 = vld [vmem:[%s1 + $0x1ac] sm:$0xf]
  %v186 = vld [vmem:[%s1 + $0x1b0] sm:$0xf]
  %v187 = vld [vmem:[%s1 + $0x1b4] sm:$0xf]
  %v188 = vld [vmem:[%s1 + $0x1b8] sm:$0xf]
  %v189 = vld [vmem:[%s1 + $0x1bc] sm:$0xf]
  %v190 = vld [vmem:[%s1 + $0x1c0] sm:$0xf]
  %v191 = vld [vmem:[%s1 + $0x1c4] sm:$0xf]
  %v192 = vld [vmem:[%s1 + $0x1c8] sm:$0xf]
  %v193 = vld [vmem:[%s1 + $0x1cc] sm:$0xf]
  %v194 = vld [vmem:[%s1 + $0x1d0] sm:$0xf]
  %v195 = vld [vmem:[%s1 + $0x1d4] sm:$0xf]
  %v196 = vld [vmem:[%s1 + $0x1d8] sm:$0xf]
  %v197 = vld [vmem:[%s1 + $0x1dc] sm:$0xf]
  %v198 = vld [vmem:[%s1 + $0x1e0] sm:$0xf]
  %v199 = vld [vmem:[%s1 + $0x1e4] sm:$0xf]
  %v200 = vld [vmem:[%s1 + $0x1e8] sm:$0xf]
  %v201 = vld [vmem:[%s1 + $0x1ec] sm:$0xf]
  %v202 = vld [vmem:[%s1 + $0x1f0] sm:$0xf]
  %v203 = vld [vmem:[%s1 + $0x1f4] sm:$0xf]
  %v204 = vld [vmem:[%s1 + $0x1f8] sm:$0xf]
  %v205 = vld [vmem:[%s1 + $0x1fc] sm:$0xf]
  %v206 = vld [vmem:[%s2] sm:$0x1]
  %v208 = vperm.slane %v206, 0
  %v274 = vunpack.c.l.b16 %v14
  %v275 = vunpack.c.h.b16 %v14
  %v276 = vunpack.c.l.b16 %v15
  %v277 = vunpack.c.h.b16 %v15
  %v278 = vunpack.c.l.b16 %v16
  %v279 = vunpack.c.h.b16 %v16
  %v280 = vunpack.c.l.b16 %v17
  %v281 = vunpack.c.h.b16 %v17
  %v282 = vunpack.c.l.b16 %v18
  %v283 = vunpack.c.h.b16 %v18
  %v284 = vunpack.c.l.b16 %v19
  %v285 = vunpack.c.h.b16 %v19
  %v286 = vunpack.c.l.b16 %v20
  %v287 = vunpack.c.h.b16 %v20
  %v288 = vunpack.c.l.b16 %v21
  %v289 = vunpack.c.h.b16 %v21
  %v290 = vunpack.c.l.b16 %v22
  %v291 = vunpack.c.h.b16 %v22
  %v292 = vunpack.c.l.b16 %v23
  %v293 = vunpack.c.h.b16 %v23
  %v294 = vunpack.c.l.b16 %v24
  %v295 = vunpack.c.h.b16 %v24
  %v296 = vunpack.c.l.b16 %v25
  %v297 = vunpack.c.h.b16 %v25
  %v298 = vunpack.c.l.b16 %v26
  %v299 = vunpack.c.h.b16 %v26
  %v300 = vunpack.c.l.b16 %v27
  %v301 = vunpack.c.h.b16 %v27
  %v302 = vunpack.c.l.b16 %v28
  %v303 = vunpack.c.h.b16 %v28
  %v304 = vunpack.c.l.b16 %v29
  %v305 = vunpack.c.h.b16 %v29
  %v306 = vunpack.c.l.b16 %v30
  %v307 = vunpack.c.h.b16 %v30
  %v308 = vunpack.c.l.b16 %v31
  %v309 = vunpack.c.h.b16 %v31
  %v310 = vunpack.c.l.b16 %v32
  %v311 = vunpack.c.h.b16 %v32
  %v312 = vunpack.c.l.b16 %v33
  %v313 = vunpack.c.h.b16 %v33
  %v314 = vunpack.c.l.b16 %v34
  %v315 = vunpack.c.h.b16 %v34
  %v316 = vunpack.c.l.b16 %v35
  %v317 = vunpack.c.h.b16 %v35
  %v318 = vunpack.c.l.b16 %v36
  %v319 = vunpack.c.h.b16 %v36
  %v320 = vunpack.c.l.b16 %v37
  %v321 = vunpack.c.h.b16 %v37
  %v322 = vunpack.c.l.b16 %v38
  %v323 = vunpack.c.h.b16 %v38
  %v324 = vunpack.c.l.b16 %v39
  %v325 = vunpack.c.h.b16 %v39
  %v326 = vunpack.c.l.b16 %v40
  %v327 = vunpack.c.h.b16 %v40
  %v328 = vunpack.c.l.b16 %v41
  %v329 = vunpack.c.h.b16 %v41
  %v330 = vunpack.c.l.b16 %v42
  %v331 = vunpack.c.h.b16 %v42
  %v332 = vunpack.c.l.b16 %v43
  %v333 = vunpack.c.h.b16 %v43
  %v334 = vunpack.c.l.b16 %v44
  %v335 = vunpack.c.h.b16 %v44
  %v336 = vunpack.c.l.b16 %v45
  %v337 = vunpack.c.h.b16 %v45
  %v338 = vunpack.c.l.b16 %v46
  %v339 = vunpack.c.h.b16 %v46
  %v340 = vunpack.c.l.b16 %v47
  %v341 = vunpack.c.h.b16 %v47
  %v342 = vunpack.c.l.b16 %v48
  %v343 = vunpack.c.h.b16 %v48
  %v344 = vunpack.c.l.b16 %v49
  %v345 = vunpack.c.h.b16 %v49
  %v346 = vunpack.c.l.b16 %v50
  %v347 = vunpack.c.h.b16 %v50
  %v348 = vunpack.c.l.b16 %v51
  %v349 = vunpack.c.h.b16 %v51
  %v350 = vunpack.c.l.b16 %v52
  %v351 = vunpack.c.h.b16 %v52
  %v352 = vunpack.c.l.b16 %v53
  %v353 = vunpack.c.h.b16 %v53
  %v354 = vunpack.c.l.b16 %v54
  %v355 = vunpack.c.h.b16 %v54
  %v356 = vunpack.c.l.b16 %v55
  %v357 = vunpack.c.h.b16 %v55
  %v358 = vunpack.c.l.b16 %v56
  %v359 = vunpack.c.h.b16 %v56
  %v360 = vunpack.c.l.b16 %v57
  %v361 = vunpack.c.h.b16 %v57
  %v362 = vunpack.c.l.b16 %v58
  %v363 = vunpack.c.h.b16 %v58
  %v364 = vunpack.c.l.b16 %v59
  %v365 = vunpack.c.h.b16 %v59
  %v366 = vunpack.c.l.b16 %v60
  %v367 = vunpack.c.h.b16 %v60
  %v368 = vunpack.c.l.b16 %v61
  %v369 = vunpack.c.h.b16 %v61
  %v370 = vunpack.c.l.b16 %v62
  %v371 = vunpack.c.h.b16 %v62
  %v372 = vunpack.c.l.b16 %v63
  %v373 = vunpack.c.h.b16 %v63
  %v374 = vunpack.c.l.b16 %v64
  %v375 = vunpack.c.h.b16 %v64
  %v376 = vunpack.c.l.b16 %v65
  %v377 = vunpack.c.h.b16 %v65
  %v378 = vunpack.c.l.b16 %v66
  %v379 = vunpack.c.h.b16 %v66
  %v380 = vunpack.c.l.b16 %v67
  %v381 = vunpack.c.h.b16 %v67
  %v382 = vunpack.c.l.b16 %v68
  %v383 = vunpack.c.h.b16 %v68
  %v384 = vunpack.c.l.b16 %v69
  %v385 = vunpack.c.h.b16 %v69
  %v386 = vunpack.c.l.b16 %v70
  %v387 = vunpack.c.h.b16 %v70
  %v388 = vunpack.c.l.b16 %v71
  %v389 = vunpack.c.h.b16 %v71
  %v390 = vunpack.c.l.b16 %v72
  %v391 = vunpack.c.h.b16 %v72
  %v392 = vunpack.c.l.b16 %v73
  %v393 = vunpack.c.h.b16 %v73
  %v394 = vunpack.c.l.b16 %v74
  %v395 = vunpack.c.h.b16 %v74
  %v396 = vunpack.c.l.b16 %v75
  %v397 = vunpack.c.h.b16 %v75
  %v398 = vunpack.c.l.b16 %v76
  %v399 = vunpack.c.h.b16 %v76
  %v400 = vunpack.c.l.b16 %v77
  %v401 = vunpack.c.h.b16 %v77
  %v402 = vpack.c.b16 %v282, %v274
  %v403 = vpack.c.b16 %v283, %v275
  %v404 = vpack.c.b16 %v284, %v276
  %v405 = vpack.c.b16 %v285, %v277
  %v406 = vpack.c.b16 %v286, %v278
  %v407 = vpack.c.b16 %v287, %v279
  %v408 = vpack.c.b16 %v288, %v280
  %v409 = vpack.c.b16 %v289, %v281
  %v410 = vpack.c.b16 %v298, %v290
  %v411 = vpack.c.b16 %v299, %v291
  %v412 = vpack.c.b16 %v300, %v292
  %v413 = vpack.c.b16 %v301, %v293
  %v414 = vpack.c.b16 %v302, %v294
  %v415 = vpack.c.b16 %v303, %v295
  %v416 = vpack.c.b16 %v304, %v296
  %v417 = vpack.c.b16 %v305, %v297
  %v418 = vpack.c.b16 %v314, %v306
  %v419 = vpack.c.b16 %v315, %v307
  %v420 = vpack.c.b16 %v316, %v308
  %v421 = vpack.c.b16 %v317, %v309
  %v422 = vpack.c.b16 %v318, %v310
  %v423 = vpack.c.b16 %v319, %v311
  %v424 = vpack.c.b16 %v320, %v312
  %v425 = vpack.c.b16 %v321, %v313
  %v426 = vpack.c.b16 %v330, %v322
  %v427 = vpack.c.b16 %v331, %v323
  %v428 = vpack.c.b16 %v332, %v324
  %v429 = vpack.c.b16 %v333, %v325
  %v430 = vpack.c.b16 %v334, %v326
  %v431 = vpack.c.b16 %v335, %v327
  %v432 = vpack.c.b16 %v336, %v328
  %v433 = vpack.c.b16 %v337, %v329
  %v434 = vpack.c.b16 %v346, %v338
  %v435 = vpack.c.b16 %v347, %v339
  %v436 = vpack.c.b16 %v348, %v340
  %v437 = vpack.c.b16 %v349, %v341
  %v438 = vpack.c.b16 %v350, %v342
  %v439 = vpack.c.b16 %v351, %v343
  %v440 = vpack.c.b16 %v352, %v344
  %v441 = vpack.c.b16 %v353, %v345
  %v442 = vpack.c.b16 %v362, %v354
  %v443 = vpack.c.b16 %v363, %v355
  %v444 = vpack.c.b16 %v364, %v356
  %v445 = vpack.c.b16 %v365, %v357
  %v446 = vpack.c.b16 %v366, %v358
  %v447 = vpack.c.b16 %v367, %v359
  %v448 = vpack.c.b16 %v368, %v360
  %v449 = vpack.c.b16 %v369, %v361
  %v450 = vpack.c.b16 %v378, %v370
  %v451 = vpack.c.b16 %v379, %v371
  %v452 = vpack.c.b16 %v380, %v372
  %v453 = vpack.c.b16 %v381, %v373
  %v454 = vpack.c.b16 %v382, %v374
  %v455 = vpack.c.b16 %v383, %v375
  %v456 = vpack.c.b16 %v384, %v376
  %v457 = vpack.c.b16 %v385, %v377
  %v458 = vpack.c.b16 %v394, %v386
  %v459 = vpack.c.b16 %v395, %v387
  %v460 = vpack.c.b16 %v396, %v388
  %v461 = vpack.c.b16 %v397, %v389
  %v462 = vpack.c.b16 %v398, %v390
  %v463 = vpack.c.b16 %v399, %v391
  %v464 = vpack.c.b16 %v400, %v392
  %v465 = vpack.c.b16 %v401, %v393
  %v658 = vunpack.c.l.b16 %v78
  %v659 = vunpack.c.l.b16 %v79
  %v660 = vunpack.c.l.b16 %v80
  %v661 = vunpack.c.l.b16 %v81
  %v662 = vunpack.c.l.b16 %v82
  %v663 = vunpack.c.l.b16 %v83
  %v664 = vunpack.c.l.b16 %v84
  %v665 = vunpack.c.l.b16 %v85
  %v666 = vunpack.c.l.b16 %v86
  %v667 = vunpack.c.l.b16 %v87
  %v668 = vunpack.c.l.b16 %v88
  %v669 = vunpack.c.l.b16 %v89
  %v670 = vunpack.c.l.b16 %v90
  %v671 = vunpack.c.l.b16 %v91
  %v672 = vunpack.c.l.b16 %v92
  %v673 = vunpack.c.l.b16 %v93
  %v674 = vunpack.c.l.b16 %v94
  %v675 = vunpack.c.l.b16 %v95
  %v676 = vunpack.c.l.b16 %v96
  %v677 = vunpack.c.l.b16 %v97
  %v678 = vunpack.c.l.b16 %v98
  %v679 = vunpack.c.l.b16 %v99
  %v680 = vunpack.c.l.b16 %v100
  %v681 = vunpack.c.l.b16 %v101
  %v682 = vunpack.c.l.b16 %v102
  %v683 = vunpack.c.l.b16 %v103
  %v684 = vunpack.c.l.b16 %v104
  %v685 = vunpack.c.l.b16 %v105
  %v686 = vunpack.c.l.b16 %v106
  %v687 = vunpack.c.l.b16 %v107
  %v688 = vunpack.c.l.b16 %v108
  %v689 = vunpack.c.l.b16 %v109
  %v690 = vunpack.c.l.b16 %v110
  %v691 = vunpack.c.l.b16 %v111
  %v692 = vunpack.c.l.b16 %v112
  %v693 = vunpack.c.l.b16 %v113
  %v694 = vunpack.c.l.b16 %v114
  %v695 = vunpack.c.l.b16 %v115
  %v696 = vunpack.c.l.b16 %v116
  %v697 = vunpack.c.l.b16 %v117
  %v698 = vunpack.c.l.b16 %v118
  %v699 = vunpack.c.l.b16 %v119
  %v700 = vunpack.c.l.b16 %v120
  %v701 = vunpack.c.l.b16 %v121
  %v702 = vunpack.c.l.b16 %v122
  %v703 = vunpack.c.l.b16 %v123
  %v704 = vunpack.c.l.b16 %v124
  %v705 = vunpack.c.l.b16 %v125
  %v706 = vunpack.c.l.b16 %v126
  %v707 = vunpack.c.l.b16 %v127
  %v708 = vunpack.c.l.b16 %v128
  %v709 = vunpack.c.l.b16 %v129
  %v710 = vunpack.c.l.b16 %v130
  %v711 = vunpack.c.l.b16 %v131
  %v712 = vunpack.c.l.b16 %v132
  %v713 = vunpack.c.l.b16 %v133
  %v714 = vunpack.c.l.b16 %v134
  %v715 = vunpack.c.l.b16 %v135
  %v716 = vunpack.c.l.b16 %v136
  %v717 = vunpack.c.l.b16 %v137
  %v718 = vunpack.c.l.b16 %v138
  %v719 = vunpack.c.l.b16 %v139
  %v720 = vunpack.c.l.b16 %v140
  %v721 = vunpack.c.l.b16 %v141
  %v722 = vunpack.c.l.b16 %v142
  %v723 = vunpack.c.l.b16 %v143
  %v724 = vunpack.c.l.b16 %v144
  %v725 = vunpack.c.l.b16 %v145
  %v726 = vunpack.c.l.b16 %v146
  %v727 = vunpack.c.l.b16 %v147
  %v728 = vunpack.c.l.b16 %v148
  %v729 = vunpack.c.l.b16 %v149
  %v730 = vunpack.c.l.b16 %v150
  %v731 = vunpack.c.l.b16 %v151
  %v732 = vunpack.c.l.b16 %v152
  %v733 = vunpack.c.l.b16 %v153
  %v734 = vunpack.c.l.b16 %v154
  %v735 = vunpack.c.l.b16 %v155
  %v736 = vunpack.c.l.b16 %v156
  %v737 = vunpack.c.l.b16 %v157
  %v738 = vunpack.c.l.b16 %v158
  %v739 = vunpack.c.l.b16 %v159
  %v740 = vunpack.c.l.b16 %v160
  %v741 = vunpack.c.l.b16 %v161
  %v742 = vunpack.c.l.b16 %v162
  %v743 = vunpack.c.l.b16 %v163
  %v744 = vunpack.c.l.b16 %v164
  %v745 = vunpack.c.l.b16 %v165
  %v746 = vunpack.c.l.b16 %v166
  %v747 = vunpack.c.l.b16 %v167
  %v748 = vunpack.c.l.b16 %v168
  %v749 = vunpack.c.l.b16 %v169
  %v750 = vunpack.c.l.b16 %v170
  %v751 = vunpack.c.l.b16 %v171
  %v752 = vunpack.c.l.b16 %v172
  %v753 = vunpack.c.l.b16 %v173
  %v754 = vunpack.c.l.b16 %v174
  %v755 = vunpack.c.l.b16 %v175
  %v756 = vunpack.c.l.b16 %v176
  %v757 = vunpack.c.l.b16 %v177
  %v758 = vunpack.c.l.b16 %v178
  %v759 = vunpack.c.l.b16 %v179
  %v760 = vunpack.c.l.b16 %v180
  %v761 = vunpack.c.l.b16 %v181
  %v762 = vunpack.c.l.b16 %v182
  %v763 = vunpack.c.l.b16 %v183
  %v764 = vunpack.c.l.b16 %v184
  %v765 = vunpack.c.l.b16 %v185
  %v766 = vunpack.c.l.b16 %v186
  %v767 = vunpack.c.l.b16 %v187
  %v768 = vunpack.c.l.b16 %v188
  %v769 = vunpack.c.l.b16 %v189
  %v770 = vunpack.c.l.b16 %v190
  %v771 = vunpack.c.l.b16 %v191
  %v772 = vunpack.c.l.b16 %v192
  %v773 = vunpack.c.l.b16 %v193
  %v774 = vunpack.c.l.b16 %v194
  %v775 = vunpack.c.l.b16 %v195
  %v776 = vunpack.c.l.b16 %v196
  %v777 = vunpack.c.l.b16 %v197
  %v778 = vunpack.c.l.b16 %v198
  %v779 = vunpack.c.l.b16 %v199
  %v780 = vunpack.c.l.b16 %v200
  %v781 = vunpack.c.l.b16 %v201
  %v782 = vunpack.c.l.b16 %v202
  %v783 = vunpack.c.l.b16 %v203
  %v784 = vunpack.c.l.b16 %v204
  %v785 = vunpack.c.l.b16 %v205
  %v786 = vpack.c.b16 %v659, %v658
  %v787 = vpack.c.b16 %v661, %v660
  %v788 = vpack.c.b16 %v663, %v662
  %v789 = vpack.c.b16 %v665, %v664
  %v790 = vpack.c.b16 %v667, %v666
  %v791 = vpack.c.b16 %v669, %v668
  %v792 = vpack.c.b16 %v671, %v670
  %v793 = vpack.c.b16 %v673, %v672
  %v794 = vpack.c.b16 %v675, %v674
  %v795 = vpack.c.b16 %v677, %v676
  %v796 = vpack.c.b16 %v679, %v678
  %v797 = vpack.c.b16 %v681, %v680
  %v798 = vpack.c.b16 %v683, %v682
  %v799 = vpack.c.b16 %v685, %v684
  %v800 = vpack.c.b16 %v687, %v686
  %v801 = vpack.c.b16 %v689, %v688
  %v802 = vpack.c.b16 %v691, %v690
  %v803 = vpack.c.b16 %v693, %v692
  %v804 = vpack.c.b16 %v695, %v694
  %v805 = vpack.c.b16 %v697, %v696
  %v806 = vpack.c.b16 %v699, %v698
  %v807 = vpack.c.b16 %v701, %v700
  %v808 = vpack.c.b16 %v703, %v702
  %v809 = vpack.c.b16 %v705, %v704
  %v810 = vpack.c.b16 %v707, %v706
  %v811 = vpack.c.b16 %v709, %v708
  %v812 = vpack.c.b16 %v711, %v710
  %v813 = vpack.c.b16 %v713, %v712
  %v814 = vpack.c.b16 %v715, %v714
  %v815 = vpack.c.b16 %v717, %v716
  %v816 = vpack.c.b16 %v719, %v718
  %v817 = vpack.c.b16 %v721, %v720
  %v818 = vpack.c.b16 %v723, %v722
  %v819 = vpack.c.b16 %v725, %v724
  %v820 = vpack.c.b16 %v727, %v726
  %v821 = vpack.c.b16 %v729, %v728
  %v822 = vpack.c.b16 %v731, %v730
  %v823 = vpack.c.b16 %v733, %v732
  %v824 = vpack.c.b16 %v735, %v734
  %v825 = vpack.c.b16 %v737, %v736
  %v826 = vpack.c.b16 %v739, %v738
  %v827 = vpack.c.b16 %v741, %v740
  %v828 = vpack.c.b16 %v743, %v742
  %v829 = vpack.c.b16 %v745, %v744
  %v830 = vpack.c.b16 %v747, %v746
  %v831 = vpack.c.b16 %v749, %v748
  %v832 = vpack.c.b16 %v751, %v750
  %v833 = vpack.c.b16 %v753, %v752
  %v834 = vpack.c.b16 %v755, %v754
  %v835 = vpack.c.b16 %v757, %v756
  %v836 = vpack.c.b16 %v759, %v758
  %v837 = vpack.c.b16 %v761, %v760
  %v838 = vpack.c.b16 %v763, %v762
  %v839 = vpack.c.b16 %v765, %v764
  %v840 = vpack.c.b16 %v767, %v766
  %v841 = vpack.c.b16 %v769, %v768
  %v842 = vpack.c.b16 %v771, %v770
  %v843 = vpack.c.b16 %v773, %v772
  %v844 = vpack.c.b16 %v775, %v774
  %v845 = vpack.c.b16 %v777, %v776
  %v846 = vpack.c.b16 %v779, %v778
  %v847 = vpack.c.b16 %v781, %v780
  %v848 = vpack.c.b16 %v783, %v782
  %v849 = vpack.c.b16 %v785, %v784
  %914 = vmatpush.bf16.msra.mxu0 %v793
  %915 = vmatpush.bf16.msra.mxu0 %v792
  %916 = vmatpush.bf16.msra.mxu0 %v791
  %917 = vmatpush.bf16.msra.mxu0 %v790
  %918 = vmatpush.bf16.msra.mxu0 %v789
  %919 = vmatpush.bf16.msra.mxu0 %v788
  %920 = vmatpush.bf16.msra.mxu0 %v787
  %921 = vmatpush.bf16.msra.mxu0 %v786
  %922 = vmatmul.bf16.gmra.mxu0 %v402
  %v923 = vpop.f32.mrf.mxu0
  %v924 = vadd.f32 %v208, %v923
  %v925 = vpop.f32.mrf.mxu0
  %v926 = vadd.f32 %v208, %v925
  %927 = vmatmul.bf16.gmra.mxu0 %v410
  %v928 = vpop.f32.mrf.mxu0
  %v929 = vadd.f32 %v208, %v928
  %v930 = vpop.f32.mrf.mxu0
  %v931 = vadd.f32 %v208, %v930
  %932 = vmatmul.bf16.gmra.mxu0 %v418
  %v933 = vpop.f32.mrf.mxu0
  %v934 = vadd.f32 %v208, %v933
  %v935 = vpop.f32.mrf.mxu0
  %v936 = vadd.f32 %v208, %v935
  %937 = vmatmul.bf16.gmra.mxu0 %v426
  %v938 = vpop.f32.mrf.mxu0
  %v939 = vadd.f32 %v208, %v938
  %v940 = vpop.f32.mrf.mxu0
  %v941 = vadd.f32 %v208, %v940
  %942 = vmatmul.bf16.gmra.mxu0 %v434
  %v943 = vpop.f32.mrf.mxu0
  %v944 = vadd.f32 %v208, %v943
  %v945 = vpop.f32.mrf.mxu0
  %v946 = vadd.f32 %v208, %v945
  %947 = vmatmul.bf16.gmra.mxu0 %v442
  %v948 = vpop.f32.mrf.mxu0
  %v949 = vadd.f32 %v208, %v948
  %v950 = vpop.f32.mrf.mxu0
  %v951 = vadd.f32 %v208, %v950
  %952 = vmatmul.bf16.gmra.mxu0 %v450
  %v953 = vpop.f32.mrf.mxu0
  %v954 = vadd.f32 %v208, %v953
  %v955 = vpop.f32.mrf.mxu0
  %v956 = vadd.f32 %v208, %v955
  %957 = vmatmul.bf16.gmra.mxu0 %v458
  %v958 = vpop.f32.mrf.mxu0
  %v959 = vadd.f32 %v208, %v958
  %v960 = vpop.f32.mrf.mxu0
  %v961 = vadd.f32 %v208, %v960
  %962 = vdwg.mxu0
  %963 = vmatpush.bf16.msra.mxu0 %v801
  %964 = vmatpush.bf16.msra.mxu0 %v800
  %965 = vmatpush.bf16.msra.mxu0 %v799
  %966 = vmatpush.bf16.msra.mxu0 %v798
  %967 = vmatpush.bf16.msra.mxu0 %v797
  %968 = vmatpush.bf16.msra.mxu0 %v796
  %969 = vmatpush.bf16.msra.mxu0 %v795
  %970 = vmatpush.bf16.msra.mxu0 %v794
  %971 = vmatmul.bf16.gmra.mxu0 %v403
  %v972 = vpop.f32.mrf.mxu0
  %v973 = vadd.f32 %v924, %v972
  %v974 = vpop.f32.mrf.mxu0
  %v975 = vadd.f32 %v926, %v974
  %976 = vmatmul.bf16.gmra.mxu0 %v411
  %v977 = vpop.f32.mrf.mxu0
  %v978 = vadd.f32 %v929, %v977
  %v979 = vpop.f32.mrf.mxu0
  %v980 = vadd.f32 %v931, %v979
  %981 = vmatmul.bf16.gmra.mxu0 %v419
  %v982 = vpop.f32.mrf.mxu0
  %v983 = vadd.f32 %v934, %v982
  %v984 = vpop.f32.mrf.mxu0
  %v985 = vadd.f32 %v936, %v984
  %986 = vmatmul.bf16.gmra.mxu0 %v427
  %v987 = vpop.f32.mrf.mxu0
  %v988 = vadd.f32 %v939, %v987
  %v989 = vpop.f32.mrf.mxu0
  %v990 = vadd.f32 %v941, %v989
  %991 = vmatmul.bf16.gmra.mxu0 %v435
  %v992 = vpop.f32.mrf.mxu0
  %v993 = vadd.f32 %v944, %v992
  %v994 = vpop.f32.mrf.mxu0
  %v995 = vadd.f32 %v946, %v994
  %996 = vmatmul.bf16.gmra.mxu0 %v443
  %v997 = vpop.f32.mrf.mxu0
  %v998 = vadd.f32 %v949, %v997
  %v999 = vpop.f32.mrf.mxu0
  %v1000 = vadd.f32 %v951, %v999
  %1001 = vmatmul.bf16.gmra.mxu0 %v451
  %v1002 = vpop.f32.mrf.mxu0
  %v1003 = vadd.f32 %v954, %v1002
  %v1004 = vpop.f32.mrf.mxu0
  %v1005 = vadd.f32 %v956, %v1004
  %1006 = vmatmul.bf16.gmra.mxu0 %v459
  %v1007 = vpop.f32.mrf.mxu0
  %v1008 = vadd.f32 %v959, %v1007
  %v1009 = vpop.f32.mrf.mxu0
  %v1010 = vadd.f32 %v961, %v1009
  %1011 = vdwg.mxu0
  %1012 = vmatpush.bf16.msra.mxu0 %v809
  %1013 = vmatpush.bf16.msra.mxu0 %v808
  %1014 = vmatpush.bf16.msra.mxu0 %v807
  %1015 = vmatpush.bf16.msra.mxu0 %v806
  %1016 = vmatpush.bf16.msra.mxu0 %v805
  %1017 = vmatpush.bf16.msra.mxu0 %v804
  %1018 = vmatpush.bf16.msra.mxu0 %v803
  %1019 = vmatpush.bf16.msra.mxu0 %v802
  %1020 = vmatmul.bf16.gmra.mxu0 %v404
  %v1021 = vpop.f32.mrf.mxu0
  %v1022 = vadd.f32 %v973, %v1021
  %v1023 = vpop.f32.mrf.mxu0
  %v1024 = vadd.f32 %v975, %v1023
  %1025 = vmatmul.bf16.gmra.mxu0 %v412
  %v1026 = vpop.f32.mrf.mxu0
  %v1027 = vadd.f32 %v978, %v1026
  %v1028 = vpop.f32.mrf.mxu0
  %v1029 = vadd.f32 %v980, %v1028
  %1030 = vmatmul.bf16.gmra.mxu0 %v420
  %v1031 = vpop.f32.mrf.mxu0
  %v1032 = vadd.f32 %v983, %v1031
  %v1033 = vpop.f32.mrf.mxu0
  %v1034 = vadd.f32 %v985, %v1033
  %1035 = vmatmul.bf16.gmra.mxu0 %v428
  %v1036 = vpop.f32.mrf.mxu0
  %v1037 = vadd.f32 %v988, %v1036
  %v1038 = vpop.f32.mrf.mxu0
  %v1039 = vadd.f32 %v990, %v1038
  %1040 = vmatmul.bf16.gmra.mxu0 %v436
  %v1041 = vpop.f32.mrf.mxu0
  %v1042 = vadd.f32 %v993, %v1041
  %v1043 = vpop.f32.mrf.mxu0
  %v1044 = vadd.f32 %v995, %v1043
  %1045 = vmatmul.bf16.gmra.mxu0 %v444
  %v1046 = vpop.f32.mrf.mxu0
  %v1047 = vadd.f32 %v998, %v1046
  %v1048 = vpop.f32.mrf.mxu0
  %v1049 = vadd.f32 %v1000, %v1048
  %1050 = vmatmul.bf16.gmra.mxu0 %v452
  %v1051 = vpop.f32.mrf.mxu0
  %v1052 = vadd.f32 %v1003, %v1051
  %v1053 = vpop.f32.mrf.mxu0
  %v1054 = vadd.f32 %v1005, %v1053
  %1055 = vmatmul.bf16.gmra.mxu0 %v460
  %v1056 = vpop.f32.mrf.mxu0
  %v1057 = vadd.f32 %v1008, %v1056
  %v1058 = vpop.f32.mrf.mxu0
  %v1059 = vadd.f32 %v1010, %v1058
  %1060 = vdwg.mxu0
  %1061 = vmatpush.bf16.msra.mxu0 %v817
  %1062 = vmatpush.bf16.msra.mxu0 %v816
  %1063 = vmatpush.bf16.msra.mxu0 %v815
  %1064 = vmatpush.bf16.msra.mxu0 %v814
  %1065 = vmatpush.bf16.msra.mxu0 %v813
  %1066 = vmatpush.bf16.msra.mxu0 %v812
  %1067 = vmatpush.bf16.msra.mxu0 %v811
  %1068 = vmatpush.bf16.msra.mxu0 %v810
  %1069 = vmatmul.bf16.gmra.mxu0 %v405
  %v1070 = vpop.f32.mrf.mxu0
  %v1071 = vadd.f32 %v1022, %v1070
  %v1072 = vpop.f32.mrf.mxu0
  %v1073 = vadd.f32 %v1024, %v1072
  %1074 = vmatmul.bf16.gmra.mxu0 %v413
  %v1075 = vpop.f32.mrf.mxu0
  %v1076 = vadd.f32 %v1027, %v1075
  %v1077 = vpop.f32.mrf.mxu0
  %v1078 = vadd.f32 %v1029, %v1077
  %1079 = vmatmul.bf16.gmra.mxu0 %v421
  %v1080 = vpop.f32.mrf.mxu0
  %v1081 = vadd.f32 %v1032, %v1080
  %v1082 = vpop.f32.mrf.mxu0
  %v1083 = vadd.f32 %v1034, %v1082
  %1084 = vmatmul.bf16.gmra.mxu0 %v429
  %v1085 = vpop.f32.mrf.mxu0
  %v1086 = vadd.f32 %v1037, %v1085
  %v1087 = vpop.f32.mrf.mxu0
  %v1088 = vadd.f32 %v1039, %v1087
  %1089 = vmatmul.bf16.gmra.mxu0 %v437
  %v1090 = vpop.f32.mrf.mxu0
  %v1091 = vadd.f32 %v1042, %v1090
  %v1092 = vpop.f32.mrf.mxu0
  %v1093 = vadd.f32 %v1044, %v1092
  %1094 = vmatmul.bf16.gmra.mxu0 %v445
  %v1095 = vpop.f32.mrf.mxu0
  %v1096 = vadd.f32 %v1047, %v1095
  %v1097 = vpop.f32.mrf.mxu0
  %v1098 = vadd.f32 %v1049, %v1097
  %1099 = vmatmul.bf16.gmra.mxu0 %v453
  %v1100 = vpop.f32.mrf.mxu0
  %v1101 = vadd.f32 %v1052, %v1100
  %v1102 = vpop.f32.mrf.mxu0
  %v1103 = vadd.f32 %v1054, %v1102
  %1104 = vmatmul.bf16.gmra.mxu0 %v461
  %v1105 = vpop.f32.mrf.mxu0
  %v1106 = vadd.f32 %v1057, %v1105
  %v1107 = vpop.f32.mrf.mxu0
  %v1108 = vadd.f32 %v1059, %v1107
  %1109 = vdwg.mxu0
  %1110 = vmatpush.bf16.msra.mxu0 %v825
  %1111 = vmatpush.bf16.msra.mxu0 %v824
  %1112 = vmatpush.bf16.msra.mxu0 %v823
  %1113 = vmatpush.bf16.msra.mxu0 %v822
  %1114 = vmatpush.bf16.msra.mxu0 %v821
  %1115 = vmatpush.bf16.msra.mxu0 %v820
  %1116 = vmatpush.bf16.msra.mxu0 %v819
  %1117 = vmatpush.bf16.msra.mxu0 %v818
  %1118 = vmatmul.bf16.gmra.mxu0 %v406
  %v1119 = vpop.f32.mrf.mxu0
  %v1120 = vadd.f32 %v1071, %v1119
  %v1121 = vpop.f32.mrf.mxu0
  %v1122 = vadd.f32 %v1073, %v1121
  %1123 = vmatmul.bf16.gmra.mxu0 %v414
  %v1124 = vpop.f32.mrf.mxu0
  %v1125 = vadd.f32 %v1076, %v1124
  %v1126 = vpop.f32.mrf.mxu0
  %v1127 = vadd.f32 %v1078, %v1126
  %1128 = vmatmul.bf16.gmra.mxu0 %v422
  %v1129 = vpop.f32.mrf.mxu0
  %v1130 = vadd.f32 %v1081, %v1129
  %v1131 = vpop.f32.mrf.mxu0
  %v1132 = vadd.f32 %v1083, %v1131
  %1133 = vmatmul.bf16.gmra.mxu0 %v430
  %v1134 = vpop.f32.mrf.mxu0
  %v1135 = vadd.f32 %v1086, %v1134
  %v1136 = vpop.f32.mrf.mxu0
  %v1137 = vadd.f32 %v1088, %v1136
  %1138 = vmatmul.bf16.gmra.mxu0 %v438
  %v1139 = vpop.f32.mrf.mxu0
  %v1140 = vadd.f32 %v1091, %v1139
  %v1141 = vpop.f32.mrf.mxu0
  %v1142 = vadd.f32 %v1093, %v1141
  %1143 = vmatmul.bf16.gmra.mxu0 %v446
  %v1144 = vpop.f32.mrf.mxu0
  %v1145 = vadd.f32 %v1096, %v1144
  %v1146 = vpop.f32.mrf.mxu0
  %v1147 = vadd.f32 %v1098, %v1146
  %1148 = vmatmul.bf16.gmra.mxu0 %v454
  %v1149 = vpop.f32.mrf.mxu0
  %v1150 = vadd.f32 %v1101, %v1149
  %v1151 = vpop.f32.mrf.mxu0
  %v1152 = vadd.f32 %v1103, %v1151
  %1153 = vmatmul.bf16.gmra.mxu0 %v462
  %v1154 = vpop.f32.mrf.mxu0
  %v1155 = vadd.f32 %v1106, %v1154
  %v1156 = vpop.f32.mrf.mxu0
  %v1157 = vadd.f32 %v1108, %v1156
  %1158 = vdwg.mxu0
  %1159 = vmatpush.bf16.msra.mxu0 %v833
  %1160 = vmatpush.bf16.msra.mxu0 %v832
  %1161 = vmatpush.bf16.msra.mxu0 %v831
  %1162 = vmatpush.bf16.msra.mxu0 %v830
  %1163 = vmatpush.bf16.msra.mxu0 %v829
  %1164 = vmatpush.bf16.msra.mxu0 %v828
  %1165 = vmatpush.bf16.msra.mxu0 %v827
  %1166 = vmatpush.bf16.msra.mxu0 %v826
  %1167 = vmatmul.bf16.gmra.mxu0 %v407
  %v1168 = vpop.f32.mrf.mxu0
  %v1169 = vadd.f32 %v1120, %v1168
  %v1170 = vpop.f32.mrf.mxu0
  %v1171 = vadd.f32 %v1122, %v1170
  %1172 = vmatmul.bf16.gmra.mxu0 %v415
  %v1173 = vpop.f32.mrf.mxu0
  %v1174 = vadd.f32 %v1125, %v1173
  %v1175 = vpop.f32.mrf.mxu0
  %v1176 = vadd.f32 %v1127, %v1175
  %1177 = vmatmul.bf16.gmra.mxu0 %v423
  %v1178 = vpop.f32.mrf.mxu0
  %v1179 = vadd.f32 %v1130, %v1178
  %v1180 = vpop.f32.mrf.mxu0
  %v1181 = vadd.f32 %v1132, %v1180
  %1182 = vmatmul.bf16.gmra.mxu0 %v431
  %v1183 = vpop.f32.mrf.mxu0
  %v1184 = vadd.f32 %v1135, %v1183
  %v1185 = vpop.f32.mrf.mxu0
  %v1186 = vadd.f32 %v1137, %v1185
  %1187 = vmatmul.bf16.gmra.mxu0 %v439
  %v1188 = vpop.f32.mrf.mxu0
  %v1189 = vadd.f32 %v1140, %v1188
  %v1190 = vpop.f32.mrf.mxu0
  %v1191 = vadd.f32 %v1142, %v1190
  %1192 = vmatmul.bf16.gmra.mxu0 %v447
  %v1193 = vpop.f32.mrf.mxu0
  %v1194 = vadd.f32 %v1145, %v1193
  %v1195 = vpop.f32.mrf.mxu0
  %v1196 = vadd.f32 %v1147, %v1195
  %1197 = vmatmul.bf16.gmra.mxu0 %v455
  %v1198 = vpop.f32.mrf.mxu0
  %v1199 = vadd.f32 %v1150, %v1198
  %v1200 = vpop.f32.mrf.mxu0
  %v1201 = vadd.f32 %v1152, %v1200
  %1202 = vmatmul.bf16.gmra.mxu0 %v463
  %v1203 = vpop.f32.mrf.mxu0
  %v1204 = vadd.f32 %v1155, %v1203
  %v1205 = vpop.f32.mrf.mxu0
  %v1206 = vadd.f32 %v1157, %v1205
  %1207 = vdwg.mxu0
  %1208 = vmatpush.bf16.msra.mxu0 %v841
  %1209 = vmatpush.bf16.msra.mxu0 %v840
  %1210 = vmatpush.bf16.msra.mxu0 %v839
  %1211 = vmatpush.bf16.msra.mxu0 %v838
  %1212 = vmatpush.bf16.msra.mxu0 %v837
  %1213 = vmatpush.bf16.msra.mxu0 %v836
  %1214 = vmatpush.bf16.msra.mxu0 %v835
  %1215 = vmatpush.bf16.msra.mxu0 %v834
  %1216 = vmatmul.bf16.gmra.mxu0 %v408
  %v1217 = vpop.f32.mrf.mxu0
  %v1218 = vadd.f32 %v1169, %v1217
  %v1219 = vpop.f32.mrf.mxu0
  %v1220 = vadd.f32 %v1171, %v1219
  %1221 = vmatmul.bf16.gmra.mxu0 %v416
  %v1222 = vpop.f32.mrf.mxu0
  %v1223 = vadd.f32 %v1174, %v1222
  %v1224 = vpop.f32.mrf.mxu0
  %v1225 = vadd.f32 %v1176, %v1224
  %1226 = vmatmul.bf16.gmra.mxu0 %v424
  %v1227 = vpop.f32.mrf.mxu0
  %v1228 = vadd.f32 %v1179, %v1227
  %v1229 = vpop.f32.mrf.mxu0
  %v1230 = vadd.f32 %v1181, %v1229
  %1231 = vmatmul.bf16.gmra.mxu0 %v432
  %v1232 = vpop.f32.mrf.mxu0
  %v1233 = vadd.f32 %v1184, %v1232
  %v1234 = vpop.f32.mrf.mxu0
  %v1235 = vadd.f32 %v1186, %v1234
  %1236 = vmatmul.bf16.gmra.mxu0 %v440
  %v1237 = vpop.f32.mrf.mxu0
  %v1238 = vadd.f32 %v1189, %v1237
  %v1239 = vpop.f32.mrf.mxu0
  %v1240 = vadd.f32 %v1191, %v1239
  %1241 = vmatmul.bf16.gmra.mxu0 %v448
  %v1242 = vpop.f32.mrf.mxu0
  %v1243 = vadd.f32 %v1194, %v1242
  %v1244 = vpop.f32.mrf.mxu0
  %v1245 = vadd.f32 %v1196, %v1244
  %1246 = vmatmul.bf16.gmra.mxu0 %v456
  %v1247 = vpop.f32.mrf.mxu0
  %v1248 = vadd.f32 %v1199, %v1247
  %v1249 = vpop.f32.mrf.mxu0
  %v1250 = vadd.f32 %v1201, %v1249
  %1251 = vmatmul.bf16.gmra.mxu0 %v464
  %v1252 = vpop.f32.mrf.mxu0
  %v1253 = vadd.f32 %v1204, %v1252
  %v1254 = vpop.f32.mrf.mxu0
  %v1255 = vadd.f32 %v1206, %v1254
  %1256 = vdwg.mxu0
  %1257 = vmatpush.bf16.msra.mxu0 %v849
  %1258 = vmatpush.bf16.msra.mxu0 %v848
  %1259 = vmatpush.bf16.msra.mxu0 %v847
  %1260 = vmatpush.bf16.msra.mxu0 %v846
  %1261 = vmatpush.bf16.msra.mxu0 %v845
  %1262 = vmatpush.bf16.msra.mxu0 %v844
  %1263 = vmatpush.bf16.msra.mxu0 %v843
  %1264 = vmatpush.bf16.msra.mxu0 %v842
  %1265 = vmatmul.bf16.gmra.mxu0 %v409
  %v1266 = vpop.f32.mrf.mxu0
  %v1267 = vadd.f32 %v1218, %v1266
  %v1268 = vpop.f32.mrf.mxu0
  %v1269 = vadd.f32 %v1220, %v1268
  %1270 = vmatmul.bf16.gmra.mxu0 %v417
  %v1271 = vpop.f32.mrf.mxu0
  %v1272 = vadd.f32 %v1223, %v1271
  %v1273 = vpop.f32.mrf.mxu0
  %v1274 = vadd.f32 %v1225, %v1273
  %1275 = vmatmul.bf16.gmra.mxu0 %v425
  %v1276 = vpop.f32.mrf.mxu0
  %v1277 = vadd.f32 %v1228, %v1276
  %v1278 = vpop.f32.mrf.mxu0
  %v1279 = vadd.f32 %v1230, %v1278
  %1280 = vmatmul.bf16.gmra.mxu0 %v433
  %v1281 = vpop.f32.mrf.mxu0
  %v1282 = vadd.f32 %v1233, %v1281
  %v1283 = vpop.f32.mrf.mxu0
  %v1284 = vadd.f32 %v1235, %v1283
  %1285 = vmatmul.bf16.gmra.mxu0 %v441
  %v1286 = vpop.f32.mrf.mxu0
  %v1287 = vadd.f32 %v1238, %v1286
  %v1288 = vpop.f32.mrf.mxu0
  %v1289 = vadd.f32 %v1240, %v1288
  %1290 = vmatmul.bf16.gmra.mxu0 %v449
  %v1291 = vpop.f32.mrf.mxu0
  %v1292 = vadd.f32 %v1243, %v1291
  %v1293 = vpop.f32.mrf.mxu0
  %v1294 = vadd.f32 %v1245, %v1293
  %1295 = vmatmul.bf16.gmra.mxu0 %v457
  %v1296 = vpop.f32.mrf.mxu0
  %v1297 = vadd.f32 %v1248, %v1296
  %v1298 = vpop.f32.mrf.mxu0
  %v1299 = vadd.f32 %v1250, %v1298
  %1300 = vmatmul.bf16.gmra.mxu0 %v465
  %v1301 = vpop.f32.mrf.mxu0
  %v1302 = vadd.f32 %v1253, %v1301
  %v1303 = vpop.f32.mrf.mxu0
  %v1304 = vadd.f32 %v1255, %v1303
  %1305 = vdwg.mxu0
  %v1306 = vmax.f32 %v1267, 0.0
  %v1307 = vmax.f32 %v1269, 0.0
  %v1308 = vmax.f32 %v1272, 0.0
  %v1309 = vmax.f32 %v1274, 0.0
  %v1310 = vmax.f32 %v1277, 0.0
  %v1311 = vmax.f32 %v1279, 0.0
  %v1312 = vmax.f32 %v1282, 0.0
  %v1313 = vmax.f32 %v1284, 0.0
  %v1314 = vmax.f32 %v1287, 0.0
  %v1315 = vmax.f32 %v1289, 0.0
  %v1316 = vmax.f32 %v1292, 0.0
  %v1317 = vmax.f32 %v1294, 0.0
  %v1318 = vmax.f32 %v1297, 0.0
  %v1319 = vmax.f32 %v1299, 0.0
  %v1320 = vmax.f32 %v1302, 0.0
  %v1321 = vmax.f32 %v1304, 0.0
  %v1322 = vpack.c.bf16 %v1306, %v1306
  %v1323 = vpack.c.bf16 %v1307, %v1307
  %v1324 = vpack.c.bf16 %v1308, %v1308
  %v1325 = vpack.c.bf16 %v1309, %v1309
  %v1326 = vpack.c.bf16 %v1310, %v1310
  %v1327 = vpack.c.bf16 %v1311, %v1311
  %v1328 = vpack.c.bf16 %v1312, %v1312
  %v1329 = vpack.c.bf16 %v1313, %v1313
  %v1330 = vpack.c.bf16 %v1314, %v1314
  %v1331 = vpack.c.bf16 %v1315, %v1315
  %v1332 = vpack.c.bf16 %v1316, %v1316
  %v1333 = vpack.c.bf16 %v1317, %v1317
  %v1334 = vpack.c.bf16 %v1318, %v1318
  %v1335 = vpack.c.bf16 %v1319, %v1319
  %v1336 = vpack.c.bf16 %v1320, %v1320
  %v1337 = vpack.c.bf16 %v1321, %v1321
  %1338 = vst [vmem:[%s3] sm:$0xf] %v1322
  %1339 = vst [vmem:[%s3 + $0x4] sm:$0xf] %v1323
  %1340 = vst [vmem:[%s3 + $0x8] sm:$0xf] %v1324
  %1341 = vst [vmem:[%s3 + $0xc] sm:$0xf] %v1325
  %1342 = vst [vmem:[%s3 + $0x10] sm:$0xf] %v1326
  %1343 = vst [vmem:[%s3 + $0x14] sm:$0xf] %v1327
  %1344 = vst [vmem:[%s3 + $0x18] sm:$0xf] %v1328
  %1345 = vst [vmem:[%s3 + $0x1c] sm:$0xf] %v1329
  %1346 = vst [vmem:[%s3 + $0x20] sm:$0xf] %v1330
  %1347 = vst [vmem:[%s3 + $0x24] sm:$0xf] %v1331
  %1348 = vst [vmem:[%s3 + $0x28] sm:$0xf] %v1332
  %1349 = vst [vmem:[%s3 + $0x2c] sm:$0xf] %v1333
  %1350 = vst [vmem:[%s3 + $0x30] sm:$0xf] %v1334
  %1351 = vst [vmem:[%s3 + $0x34] sm:$0xf] %v1335
  %1352 = vst [vmem:[%s3 + $0x38] sm:$0xf] %v1336
  %1353 = vst [vmem:[%s3 + $0x3c] sm:$0xf] %v1337
  // Predicated region
  $region14: #{encoder_forward.5} parent=0 // pred_check
    _
  $region15: #{encoder_forward.5} parent=0 // pred_check_branch
    %1355 = sbr.rel (0) target = $region17
  $region16: #{encoder_forward.5} parent=0 // pred_region
    _
  $region17: #{encoder_forward.5} parent=0 // pred_fallthru
    _
  // Predicated region
  $region18: #{encoder_forward.5} parent=0 // pred_check
    _
  $region19: #{encoder_forward.5} parent=0 // pred_check_branch
    %1357 = sbr.rel (0) target = $region21
  $region20: #{encoder_forward.5} parent=0 // pred_region
    _
  $region21: #{encoder_forward.5} parent=0 // pred_fallthru
    _

// kernel: encoder_forward.6
$region0: #{encoder_forward.6}
  #allocation0 [shape = 'u32[]', space=smem, size = 0x4, offset = 0x4, fixed_abs, tag = 'smem constant byte address 0x4 - core index']
  #allocation1 [shape = 'u32[72,128]{1,0:T(1,128)}', space=vmem, size = 0x9000, scoped, tag = 'internal scratch']
  %s0 = inlined_call_operand.vmem [shape: bf16[32,2048], index: 0, kind: input, shape index: {}]
  %s1 = inlined_call_operand.vmem [shape: bf16[2048,256], index: 1, kind: input, shape index: {}]
  %s2 = inlined_call_operand.vmem [shape: f32[1,256], index: 2, kind: input, shape index: {}]
  %s3 = inlined_call_operand.vmem [shape: bf16[32,256], index: 3, kind: output, shape index: {}]
  %s4 = sld [smem:[#allocation0]]
  $region22: #{encoder_forward.6} parent=0
    _
  %s6 = ssub.s32 1, %s4
  %s7 = scalar_select 0, %s6, %s4
  // Predicated region
  $region2: #{encoder_forward.6} parent=0 // pred_check
    _
  $region3: #{encoder_forward.6} parent=0 // pred_check_branch
    %9 = sbr.rel (0) target = $region5
  $region4: #{encoder_forward.6} parent=0 // pred_region
    _
  $region5: #{encoder_forward.6} parent=0 // pred_fallthru
    _
  // Predicated region
  $region6: #{encoder_forward.6} parent=0 // pred_check
    _
  $region7: #{encoder_forward.6} parent=0 // pred_check_branch
    %11 = sbr.rel (0) target = $region9
  $region8: #{encoder_forward.6} parent=0 // pred_region
    _
  $region9: #{encoder_forward.6} parent=0 // pred_fallthru
    _
  // Predicated region
  $region10: #{encoder_forward.6} parent=0 // pred_check
    _
  $region11: #{encoder_forward.6} parent=0 // pred_check_branch
    %13 = sbr.rel (0) target = $region13
  $region12: #{encoder_forward.6} parent=0 // pred_region
    _
  $region13: #{encoder_forward.6} parent=0 // pred_fallthru
    _
  %v14 = vld [vmem:[%s0] sm:$0xff]
  %v15 = vld [vmem:[%s0 + $0x8] sm:$0xff]
  %v16 = vld [vmem:[%s0 + $0x10] sm:$0xff]
  %v17 = vld [vmem:[%s0 + $0x18] sm:$0xff]
  %v18 = vld [vmem:[%s0 + $0x20] sm:$0xff]
  %v19 = vld [vmem:[%s0 + $0x28] sm:$0xff]
  %v20 = vld [vmem:[%s0 + $0x30] sm:$0xff]
  %v21 = vld [vmem:[%s0 + $0x38] sm:$0xff]
  %v22 = vld [vmem:[%s0 + $0x40] sm:$0xff]
  %v23 = vld [vmem:[%s0 + $0x48] sm:$0xff]
  %v24 = vld [vmem:[%s0 + $0x50] sm:$0xff]
  %v25 = vld [vmem:[%s0 + $0x58] sm:$0xff]
  %v26 = vld [vmem:[%s0 + $0x60] sm:$0xff]
  %v27 = vld [vmem:[%s0 + $0x68] sm:$0xff]
  %v28 = vld [vmem:[%s0 + $0x70] sm:$0xff]
  %v29 = vld [vmem:[%s0 + $0x78] sm:$0xff]
  %v30 = vld [vmem:[%s0 + $0x80] sm:$0xff]
  %v31 = vld [vmem:[%s0 + $0x88] sm:$0xff]
  %v32 = vld [vmem:[%s0 + $0x90] sm:$0xff]
  %v33 = vld [vmem:[%s0 + $0x98] sm:$0xff]
  %v34 = vld [vmem:[%s0 + $0xa0] sm:$0xff]
  %v35 = vld [vmem:[%s0 + $0xa8] sm:$0xff]
  %v36 = vld [vmem:[%s0 + $0xb0] sm:$0xff]
  %v37 = vld [vmem:[%s0 + $0xb8] sm:$0xff]
  %v38 = vld [vmem:[%s0 + $0xc0] sm:$0xff]
  %v39 = vld [vmem:[%s0 + $0xc8] sm:$0xff]
  %v40 = vld [vmem:[%s0 + $0xd0] sm:$0xff]
  %v41 = vld [vmem:[%s0 + $0xd8] sm:$0xff]
  %v42 = vld [vmem:[%s0 + $0xe0] sm:$0xff]
  %v43 = vld [vmem:[%s0 + $0xe8] sm:$0xff]
  %v44 = vld [vmem:[%s0 + $0xf0] sm:$0xff]
  %v45 = vld [vmem:[%s0 + $0xf8] sm:$0xff]
  %v46 = vld [vmem:[%s1] sm:$0xff]
  %v47 = vld [vmem:[%s1 + $0x8] sm:$0xff]
  %v48 = vld [vmem:[%s1 + $0x10] sm:$0xff]
  %v49 = vld [vmem:[%s1 + $0x18] sm:$0xff]
  %v50 = vld [vmem:[%s1 + $0x20] sm:$0xff]
  %v51 = vld [vmem:[%s1 + $0x28] sm:$0xff]
  %v52 = vld [vmem:[%s1 + $0x30] sm:$0xff]
  %v53 = vld [vmem:[%s1 + $0x38] sm:$0xff]
  %v54 = vld [vmem:[%s1 + $0x40] sm:$0xff]
  %v55 = vld [vmem:[%s1 + $0x48] sm:$0xff]
  %v56 = vld [vmem:[%s1 + $0x50] sm:$0xff]
  %v57 = vld [vmem:[%s1 + $0x58] sm:$0xff]
  %v58 = vld [vmem:[%s1 + $0x60] sm:$0xff]
  %v59 = vld [vmem:[%s1 + $0x68] sm:$0xff]
  %v60 = vld [vmem:[%s1 + $0x70] sm:$0xff]
  %v61 = vld [vmem:[%s1 + $0x78] sm:$0xff]
  %v62 = vld [vmem:[%s1 + $0x80] sm:$0xff]
  %v63 = vld [vmem:[%s1 + $0x88] sm:$0xff]
  %v64 = vld [vmem:[%s1 + $0x90] sm:$0xff]
  %v65 = vld [vmem:[%s1 + $0x98] sm:$0xff]
  %v66 = vld [vmem:[%s1 + $0xa0] sm:$0xff]
  %v67 = vld [vmem:[%s1 + $0xa8] sm:$0xff]
  %v68 = vld [vmem:[%s1 + $0xb0] sm:$0xff]
  %v69 = vld [vmem:[%s1 + $0xb8] sm:$0xff]
  %v70 = vld [vmem:[%s1 + $0xc0] sm:$0xff]
  %v71 = vld [vmem:[%s1 + $0xc8] sm:$0xff]
  %v72 = vld [vmem:[%s1 + $0xd0] sm:$0xff]
  %v73 = vld [vmem:[%s1 + $0xd8] sm:$0xff]
  %v74 = vld [vmem:[%s1 + $0xe0] sm:$0xff]
  %v75 = vld [vmem:[%s1 + $0xe8] sm:$0xff]
  %v76 = vld [vmem:[%s1 + $0xf0] sm:$0xff]
  %v77 = vld [vmem:[%s1 + $0xf8] sm:$0xff]
  %v78 = vld [vmem:[%s1 + $0x100] sm:$0xff]
  %v79 = vld [vmem:[%s1 + $0x108] sm:$0xff]
  %v80 = vld [vmem:[%s1 + $0x110] sm:$0xff]
  %v81 = vld [vmem:[%s1 + $0x118] sm:$0xff]
  %v82 = vld [vmem:[%s1 + $0x120] sm:$0xff]
  %v83 = vld [vmem:[%s1 + $0x128] sm:$0xff]
  %v84 = vld [vmem:[%s1 + $0x130] sm:$0xff]
  %v85 = vld [vmem:[%s1 + $0x138] sm:$0xff]
  %v86 = vld [vmem:[%s1 + $0x140] sm:$0xff]
  %v87 = vld [vmem:[%s1 + $0x148] sm:$0xff]
  %v88 = vld [vmem:[%s1 + $0x150] sm:$0xff]
  %v89 = vld [vmem:[%s1 + $0x158] sm:$0xff]
  %v90 = vld [vmem:[%s1 + $0x160] sm:$0xff]
  %v91 = vld [vmem:[%s1 + $0x168] sm:$0xff]
  %v92 = vld [vmem:[%s1 + $0x170] sm:$0xff]
  %v93 = vld [vmem:[%s1 + $0x178] sm:$0xff]
  %v94 = vld [vmem:[%s1 + $0x180] sm:$0xff]
  %v95 = vld [vmem:[%s1 + $0x188] sm:$0xff]
  %v96 = vld [vmem:[%s1 + $0x190] sm:$0xff]
  %v97 = vld [vmem:[%s1 + $0x198] sm:$0xff]
  %v98 = vld [vmem:[%s1 + $0x1a0] sm:$0xff]
  %v99 = vld [vmem:[%s1 + $0x1a8] sm:$0xff]
  %v100 = vld [vmem:[%s1 + $0x1b0] sm:$0xff]
  %v101 = vld [vmem:[%s1 + $0x1b8] sm:$0xff]
  %v102 = vld [vmem:[%s1 + $0x1c0] sm:$0xff]
  %v103 = vld [vmem:[%s1 + $0x1c8] sm:$0xff]
  %v104 = vld [vmem:[%s1 + $0x1d0] sm:$0xff]
  %v105 = vld [vmem:[%s1 + $0x1d8] sm:$0xff]
  %v106 = vld [vmem:[%s1 + $0x1e0] sm:$0xff]
  %v107 = vld [vmem:[%s1 + $0x1e8] sm:$0xff]
  %v108 = vld [vmem:[%s1 + $0x1f0] sm:$0xff]
  %v109 = vld [vmem:[%s1 + $0x1f8] sm:$0xff]
  %v110 = vld [vmem:[%s1 + $0x200] sm:$0xff]
  %v111 = vld [vmem:[%s1 + $0x208] sm:$0xff]
  %v112 = vld [vmem:[%s1 + $0x210] sm:$0xff]
  %v113 = vld [vmem:[%s1 + $0x218] sm:$0xff]
  %v114 = vld [vmem:[%s1 + $0x220] sm:$0xff]
  %v115 = vld [vmem:[%s1 + $0x228] sm:$0xff]
  %v116 = vld [vmem:[%s1 + $0x230] sm:$0xff]
  %v117 = vld [vmem:[%s1 + $0x238] sm:$0xff]
  %v118 = vld [vmem:[%s1 + $0x240] sm:$0xff]
  %v119 = vld [vmem:[%s1 + $0x248] sm:$0xff]
  %v120 = vld [vmem:[%s1 + $0x250] sm:$0xff]
  %v121 = vld [vmem:[%s1 + $0x258] sm:$0xff]
  %v122 = vld [vmem:[%s1 + $0x260] sm:$0xff]
  %v123 = vld [vmem:[%s1 + $0x268] sm:$0xff]
  %v124 = vld [vmem:[%s1 + $0x270] sm:$0xff]
  %v125 = vld [vmem:[%s1 + $0x278] sm:$0xff]
  %v126 = vld [vmem:[%s1 + $0x280] sm:$0xff]
  %v127 = vld [vmem:[%s1 + $0x288] sm:$0xff]
  %v128 = vld [vmem:[%s1 + $0x290] sm:$0xff]
  %v129 = vld [vmem:[%s1 + $0x298] sm:$0xff]
  %v130 = vld [vmem:[%s1 + $0x2a0] sm:$0xff]
  %v131 = vld [vmem:[%s1 + $0x2a8] sm:$0xff]
  %v132 = vld [vmem:[%s1 + $0x2b0] sm:$0xff]
  %v133 = vld [vmem:[%s1 + $0x2b8] sm:$0xff]
  %v134 = vld [vmem:[%s1 + $0x2c0] sm:$0xff]
  %v135 = vld [vmem:[%s1 + $0x2c8] sm:$0xff]
  %v136 = vld [vmem:[%s1 + $0x2d0] sm:$0xff]
  %v137 = vld [vmem:[%s1 + $0x2d8] sm:$0xff]
  %v138 = vld [vmem:[%s1 + $0x2e0] sm:$0xff]
  %v139 = vld [vmem:[%s1 + $0x2e8] sm:$0xff]
  %v140 = vld [vmem:[%s1 + $0x2f0] sm:$0xff]
  %v141 = vld [vmem:[%s1 + $0x2f8] sm:$0xff]
  %v142 = vld [vmem:[%s1 + $0x300] sm:$0xff]
  %v143 = vld [vmem:[%s1 + $0x308] sm:$0xff]
  %v144 = vld [vmem:[%s1 + $0x310] sm:$0xff]
  %v145 = vld [vmem:[%s1 + $0x318] sm:$0xff]
  %v146 = vld [vmem:[%s1 + $0x320] sm:$0xff]
  %v147 = vld [vmem:[%s1 + $0x328] sm:$0xff]
  %v148 = vld [vmem:[%s1 + $0x330] sm:$0xff]
  %v149 = vld [vmem:[%s1 + $0x338] sm:$0xff]
  %v150 = vld [vmem:[%s1 + $0x340] sm:$0xff]
  %v151 = vld [vmem:[%s1 + $0x348] sm:$0xff]
  %v152 = vld [vmem:[%s1 + $0x350] sm:$0xff]
  %v153 = vld [vmem:[%s1 + $0x358] sm:$0xff]
  %v154 = vld [vmem:[%s1 + $0x360] sm:$0xff]
  %v155 = vld [vmem:[%s1 + $0x368] sm:$0xff]
  %v156 = vld [vmem:[%s1 + $0x370] sm:$0xff]
  %v157 = vld [vmem:[%s1 + $0x378] sm:$0xff]
  %v158 = vld [vmem:[%s1 + $0x380] sm:$0xff]
  %v159 = vld [vmem:[%s1 + $0x388] sm:$0xff]
  %v160 = vld [vmem:[%s1 + $0x390] sm:$0xff]
  %v161 = vld [vmem:[%s1 + $0x398] sm:$0xff]
  %v162 = vld [vmem:[%s1 + $0x3a0] sm:$0xff]
  %v163 = vld [vmem:[%s1 + $0x3a8] sm:$0xff]
  %v164 = vld [vmem:[%s1 + $0x3b0] sm:$0xff]
  %v165 = vld [vmem:[%s1 + $0x3b8] sm:$0xff]
  %v166 = vld [vmem:[%s1 + $0x3c0] sm:$0xff]
  %v167 = vld [vmem:[%s1 + $0x3c8] sm:$0xff]
  %v168 = vld [vmem:[%s1 + $0x3d0] sm:$0xff]
  %v169 = vld [vmem:[%s1 + $0x3d8] sm:$0xff]
  %v170 = vld [vmem:[%s1 + $0x3e0] sm:$0xff]
  %v171 = vld [vmem:[%s1 + $0x3e8] sm:$0xff]
  %v172 = vld [vmem:[%s1 + $0x3f0] sm:$0xff]
  %v173 = vld [vmem:[%s1 + $0x3f8] sm:$0xff]
  %v174 = vld [vmem:[%s1 + $0x400] sm:$0xff]
  %v175 = vld [vmem:[%s1 + $0x408] sm:$0xff]
  %v176 = vld [vmem:[%s1 + $0x410] sm:$0xff]
  %v177 = vld [vmem:[%s1 + $0x418] sm:$0xff]
  %v178 = vld [vmem:[%s1 + $0x420] sm:$0xff]
  %v179 = vld [vmem:[%s1 + $0x428] sm:$0xff]
  %v180 = vld [vmem:[%s1 + $0x430] sm:$0xff]
  %v181 = vld [vmem:[%s1 + $0x438] sm:$0xff]
  %v182 = vld [vmem:[%s1 + $0x440] sm:$0xff]
  %v183 = vld [vmem:[%s1 + $0x448] sm:$0xff]
  %v184 = vld [vmem:[%s1 + $0x450] sm:$0xff]
  %v185 = vld [vmem:[%s1 + $0x458] sm:$0xff]
  %v186 = vld [vmem:[%s1 + $0x460] sm:$0xff]
  %v187 = vld [vmem:[%s1 + $0x468] sm:$0xff]
  %v188 = vld [vmem:[%s1 + $0x470] sm:$0xff]
  %v189 = vld [vmem:[%s1 + $0x478] sm:$0xff]
  %v190 = vld [vmem:[%s1 + $0x480] sm:$0xff]
  %v191 = vld [vmem:[%s1 + $0x488] sm:$0xff]
  %v192 = vld [vmem:[%s1 + $0x490] sm:$0xff]
  %v193 = vld [vmem:[%s1 + $0x498] sm:$0xff]
  %v194 = vld [vmem:[%s1 + $0x4a0] sm:$0xff]
  %v195 = vld [vmem:[%s1 + $0x4a8] sm:$0xff]
  %v196 = vld [vmem:[%s1 + $0x4b0] sm:$0xff]
  %v197 = vld [vmem:[%s1 + $0x4b8] sm:$0xff]
  %v198 = vld [vmem:[%s1 + $0x4c0] sm:$0xff]
  %v199 = vld [vmem:[%s1 + $0x4c8] sm:$0xff]
  %v200 = vld [vmem:[%s1 + $0x4d0] sm:$0xff]
  %v201 = vld [vmem:[%s1 + $0x4d8] sm:$0xff]
  %v202 = vld [vmem:[%s1 + $0x4e0] sm:$0xff]
  %v203 = vld [vmem:[%s1 + $0x4e8] sm:$0xff]
  %v204 = vld [vmem:[%s1 + $0x4f0] sm:$0xff]
  %v205 = vld [vmem:[%s1 + $0x4f8] sm:$0xff]
  %v206 = vld [vmem:[%s1 + $0x500] sm:$0xff]
  %v207 = vld [vmem:[%s1 + $0x508] sm:$0xff]
  %v208 = vld [vmem:[%s1 + $0x510] sm:$0xff]
  %v209 = vld [vmem:[%s1 + $0x518] sm:$0xff]
  %v210 = vld [vmem:[%s1 + $0x520] sm:$0xff]
  %v211 = vld [vmem:[%s1 + $0x528] sm:$0xff]
  %v212 = vld [vmem:[%s1 + $0x530] sm:$0xff]
  %v213 = vld [vmem:[%s1 + $0x538] sm:$0xff]
  %v214 = vld [vmem:[%s1 + $0x540] sm:$0xff]
  %v215 = vld [vmem:[%s1 + $0x548] sm:$0xff]
  %v216 = vld [vmem:[%s1 + $0x550] sm:$0xff]
  %v217 = vld [vmem:[%s1 + $0x558] sm:$0xff]
  %v218 = vld [vmem:[%s1 + $0x560] sm:$0xff]
  %v219 = vld [vmem:[%s1 + $0x568] sm:$0xff]
  %v220 = vld [vmem:[%s1 + $0x570] sm:$0xff]
  %v221 = vld [vmem:[%s1 + $0x578] sm:$0xff]
  %v222 = vld [vmem:[%s1 + $0x580] sm:$0xff]
  %v223 = vld [vmem:[%s1 + $0x588] sm:$0xff]
  %v224 = vld [vmem:[%s1 + $0x590] sm:$0xff]
  %v225 = vld [vmem:[%s1 + $0x598] sm:$0xff]
  %v226 = vld [vmem:[%s1 + $0x5a0] sm:$0xff]
  %v227 = vld [vmem:[%s1 + $0x5a8] sm:$0xff]
  %v228 = vld [vmem:[%s1 + $0x5b0] sm:$0xff]
  %v229 = vld [vmem:[%s1 + $0x5b8] sm:$0xff]
  %v230 = vld [vmem:[%s1 + $0x5c0] sm:$0xff]
  %v231 = vld [vmem:[%s1 + $0x5c8] sm:$0xff]
  %v232 = vld [vmem:[%s1 + $0x5d0] sm:$0xff]
  %v233 = vld [vmem:[%s1 + $0x5d8] sm:$0xff]
  %v234 = vld [vmem:[%s1 + $0x5e0] sm:$0xff]
  %v235 = vld [vmem:[%s1 + $0x5e8] sm:$0xff]
  %v236 = vld [vmem:[%s1 + $0x5f0] sm:$0xff]
  %v237 = vld [vmem:[%s1 + $0x5f8] sm:$0xff]
  %v238 = vld [vmem:[%s1 + $0x600] sm:$0xff]
  %v239 = vld [vmem:[%s1 + $0x608] sm:$0xff]
  %v240 = vld [vmem:[%s1 + $0x610] sm:$0xff]
  %v241 = vld [vmem:[%s1 + $0x618] sm:$0xff]
  %v242 = vld [vmem:[%s1 + $0x620] sm:$0xff]
  %v243 = vld [vmem:[%s1 + $0x628] sm:$0xff]
  %v244 = vld [vmem:[%s1 + $0x630] sm:$0xff]
  %v245 = vld [vmem:[%s1 + $0x638] sm:$0xff]
  %v246 = vld [vmem:[%s1 + $0x640] sm:$0xff]
  %v247 = vld [vmem:[%s1 + $0x648] sm:$0xff]
  %v248 = vld [vmem:[%s1 + $0x650] sm:$0xff]
  %v249 = vld [vmem:[%s1 + $0x658] sm:$0xff]
  %v250 = vld [vmem:[%s1 + $0x660] sm:$0xff]
  %v251 = vld [vmem:[%s1 + $0x668] sm:$0xff]
  %v252 = vld [vmem:[%s1 + $0x670] sm:$0xff]
  %v253 = vld [vmem:[%s1 + $0x678] sm:$0xff]
  %v254 = vld [vmem:[%s1 + $0x680] sm:$0xff]
  %v255 = vld [vmem:[%s1 + $0x688] sm:$0xff]
  %v256 = vld [vmem:[%s1 + $0x690] sm:$0xff]
  %v257 = vld [vmem:[%s1 + $0x698] sm:$0xff]
  %v258 = vld [vmem:[%s1 + $0x6a0] sm:$0xff]
  %v259 = vld [vmem:[%s1 + $0x6a8] sm:$0xff]
  %v260 = vld [vmem:[%s1 + $0x6b0] sm:$0xff]
  %v261 = vld [vmem:[%s1 + $0x6b8] sm:$0xff]
  %v262 = vld [vmem:[%s1 + $0x6c0] sm:$0xff]
  %v263 = vld [vmem:[%s1 + $0x6c8] sm:$0xff]
  %v264 = vld [vmem:[%s1 + $0x6d0] sm:$0xff]
  %v265 = vld [vmem:[%s1 + $0x6d8] sm:$0xff]
  %v266 = vld [vmem:[%s1 + $0x6e0] sm:$0xff]
  %v267 = vld [vmem:[%s1 + $0x6e8] sm:$0xff]
  %v268 = vld [vmem:[%s1 + $0x6f0] sm:$0xff]
  %v269 = vld [vmem:[%s1 + $0x6f8] sm:$0xff]
  %v270 = vld [vmem:[%s1 + $0x700] sm:$0xff]
  %v271 = vld [vmem:[%s1 + $0x708] sm:$0xff]
  %v272 = vld [vmem:[%s1 + $0x710] sm:$0xff]
  %v273 = vld [vmem:[%s1 + $0x718] sm:$0xff]
  %v274 = vld [vmem:[%s1 + $0x720] sm:$0xff]
  %v275 = vld [vmem:[%s1 + $0x728] sm:$0xff]
  %v276 = vld [vmem:[%s1 + $0x730] sm:$0xff]
  %v277 = vld [vmem:[%s1 + $0x738] sm:$0xff]
  %v278 = vld [vmem:[%s1 + $0x740] sm:$0xff]
  %v279 = vld [vmem:[%s1 + $0x748] sm:$0xff]
  %v280 = vld [vmem:[%s1 + $0x750] sm:$0xff]
  %v281 = vld [vmem:[%s1 + $0x758] sm:$0xff]
  %v282 = vld [vmem:[%s1 + $0x760] sm:$0xff]
  %v283 = vld [vmem:[%s1 + $0x768] sm:$0xff]
  %v284 = vld [vmem:[%s1 + $0x770] sm:$0xff]
  %v285 = vld [vmem:[%s1 + $0x778] sm:$0xff]
  %v286 = vld [vmem:[%s1 + $0x780] sm:$0xff]
  %v287 = vld [vmem:[%s1 + $0x788] sm:$0xff]
  %v288 = vld [vmem:[%s1 + $0x790] sm:$0xff]
  %v289 = vld [vmem:[%s1 + $0x798] sm:$0xff]
  %v290 = vld [vmem:[%s1 + $0x7a0] sm:$0xff]
  %v291 = vld [vmem:[%s1 + $0x7a8] sm:$0xff]
  %v292 = vld [vmem:[%s1 + $0x7b0] sm:$0xff]
  %v293 = vld [vmem:[%s1 + $0x7b8] sm:$0xff]
  %v294 = vld [vmem:[%s1 + $0x7c0] sm:$0xff]
  %v295 = vld [vmem:[%s1 + $0x7c8] sm:$0xff]
  %v296 = vld [vmem:[%s1 + $0x7d0] sm:$0xff]
  %v297 = vld [vmem:[%s1 + $0x7d8] sm:$0xff]
  %v298 = vld [vmem:[%s1 + $0x7e0] sm:$0xff]
  %v299 = vld [vmem:[%s1 + $0x7e8] sm:$0xff]
  %v300 = vld [vmem:[%s1 + $0x7f0] sm:$0xff]
  %v301 = vld [vmem:[%s1 + $0x7f8] sm:$0xff]
  %v302 = vld [vmem:[%s2] sm:$0x3]
  %v304 = vperm.slane %v302, 0
  %v305 = vperm.slane %v302, 1
  %v340 = vunpack.c.l.b16 %v14
  %v341 = vunpack.c.h.b16 %v14
  %v342 = vunpack.c.l.b16 %v15
  %v343 = vunpack.c.h.b16 %v15
  %v344 = vunpack.c.l.b16 %v16
  %v345 = vunpack.c.h.b16 %v16
  %v346 = vunpack.c.l.b16 %v17
  %v347 = vunpack.c.h.b16 %v17
  %v348 = vunpack.c.l.b16 %v18
  %v349 = vunpack.c.h.b16 %v18
  %v350 = vunpack.c.l.b16 %v19
  %v351 = vunpack.c.h.b16 %v19
  %v352 = vunpack.c.l.b16 %v20
  %v353 = vunpack.c.h.b16 %v20
  %v354 = vunpack.c.l.b16 %v21
  %v355 = vunpack.c.h.b16 %v21
  %v356 = vunpack.c.l.b16 %v22
  %v357 = vunpack.c.h.b16 %v22
  %v358 = vunpack.c.l.b16 %v23
  %v359 = vunpack.c.h.b16 %v23
  %v360 = vunpack.c.l.b16 %v24
  %v361 = vunpack.c.h.b16 %v24
  %v362 = vunpack.c.l.b16 %v25
  %v363 = vunpack.c.h.b16 %v25
  %v364 = vunpack.c.l.b16 %v26
  %v365 = vunpack.c.h.b16 %v26
  %v366 = vunpack.c.l.b16 %v27
  %v367 = vunpack.c.h.b16 %v27
  %v368 = vunpack.c.l.b16 %v28
  %v369 = vunpack.c.h.b16 %v28
  %v370 = vunpack.c.l.b16 %v29
  %v371 = vunpack.c.h.b16 %v29
  %v372 = vunpack.c.l.b16 %v30
  %v373 = vunpack.c.h.b16 %v30
  %v374 = vunpack.c.l.b16 %v31
  %v375 = vunpack.c.h.b16 %v31
  %v376 = vunpack.c.l.b16 %v32
  %v377 = vunpack.c.h.b16 %v32
  %v378 = vunpack.c.l.b16 %v33
  %v379 = vunpack.c.h.b16 %v33
  %v380 = vunpack.c.l.b16 %v34
  %v381 = vunpack.c.h.b16 %v34
  %v382 = vunpack.c.l.b16 %v35
  %v383 = vunpack.c.h.b16 %v35
  %v384 = vunpack.c.l.b16 %v36
  %v385 = vunpack.c.h.b16 %v36
  %v386 = vunpack.c.l.b16 %v37
  %v387 = vunpack.c.h.b16 %v37
  %v388 = vunpack.c.l.b16 %v38
  %v389 = vunpack.c.h.b16 %v38
  %v390 = vunpack.c.l.b16 %v39
  %v391 = vunpack.c.h.b16 %v39
  %v392 = vunpack.c.l.b16 %v40
  %v393 = vunpack.c.h.b16 %v40
  %v394 = vunpack.c.l.b16 %v41
  %v395 = vunpack.c.h.b16 %v41
  %v396 = vunpack.c.l.b16 %v42
  %v397 = vunpack.c.h.b16 %v42
  %v398 = vunpack.c.l.b16 %v43
  %v399 = vunpack.c.h.b16 %v43
  %v400 = vunpack.c.l.b16 %v44
  %v401 = vunpack.c.h.b16 %v44
  %v402 = vunpack.c.l.b16 %v45
  %v403 = vunpack.c.h.b16 %v45
  %v404 = vpack.c.b16 %v356, %v340
  %v405 = vpack.c.b16 %v357, %v341
  %v406 = vpack.c.b16 %v358, %v342
  %v407 = vpack.c.b16 %v359, %v343
  %v408 = vpack.c.b16 %v360, %v344
  %v409 = vpack.c.b16 %v361, %v345
  %v410 = vpack.c.b16 %v362, %v346
  %v411 = vpack.c.b16 %v363, %v347
  %v412 = vpack.c.b16 %v364, %v348
  %v413 = vpack.c.b16 %v365, %v349
  %v414 = vpack.c.b16 %v366, %v350
  %v415 = vpack.c.b16 %v367, %v351
  %v416 = vpack.c.b16 %v368, %v352
  %v417 = vpack.c.b16 %v369, %v353
  %v418 = vpack.c.b16 %v370, %v354
  %v419 = vpack.c.b16 %v371, %v355
  %v420 = vpack.c.b16 %v388, %v372
  %v421 = vpack.c.b16 %v389, %v373
  %v422 = vpack.c.b16 %v390, %v374
  %v423 = vpack.c.b16 %v391, %v375
  %v424 = vpack.c.b16 %v392, %v376
  %v425 = vpack.c.b16 %v393, %v377
  %v426 = vpack.c.b16 %v394, %v378
  %v427 = vpack.c.b16 %v395, %v379
  %v428 = vpack.c.b16 %v396, %v380
  %v429 = vpack.c.b16 %v397, %v381
  %v430 = vpack.c.b16 %v398, %v382
  %v431 = vpack.c.b16 %v399, %v383
  %v432 = vpack.c.b16 %v400, %v384
  %v433 = vpack.c.b16 %v401, %v385
  %v434 = vpack.c.b16 %v402, %v386
  %v435 = vpack.c.b16 %v403, %v387
  %v724 = vunpack.c.l.b16 %v46
  %v725 = vunpack.c.h.b16 %v46
  %v726 = vunpack.c.l.b16 %v47
  %v727 = vunpack.c.h.b16 %v47
  %v728 = vunpack.c.l.b16 %v48
  %v729 = vunpack.c.h.b16 %v48
  %v730 = vunpack.c.l.b16 %v49
  %v731 = vunpack.c.h.b16 %v49
  %v732 = vunpack.c.l.b16 %v50
  %v733 = vunpack.c.h.b16 %v50
  %v734 = vunpack.c.l.b16 %v51
  %v735 = vunpack.c.h.b16 %v51
  %v736 = vunpack.c.l.b16 %v52
  %v737 = vunpack.c.h.b16 %v52
  %v738 = vunpack.c.l.b16 %v53
  %v739 = vunpack.c.h.b16 %v53
  %v740 = vunpack.c.l.b16 %v54
  %v741 = vunpack.c.h.b16 %v54
  %v742 = vunpack.c.l.b16 %v55
  %v743 = vunpack.c.h.b16 %v55
  %v744 = vunpack.c.l.b16 %v56
  %v745 = vunpack.c.h.b16 %v56
  %v746 = vunpack.c.l.b16 %v57
  %v747 = vunpack.c.h.b16 %v57
  %v748 = vunpack.c.l.b16 %v58
  %v749 = vunpack.c.h.b16 %v58
  %v750 = vunpack.c.l.b16 %v59
  %v751 = vunpack.c.h.b16 %v59
  %v752 = vunpack.c.l.b16 %v60
  %v753 = vunpack.c.h.b16 %v60
  %v754 = vunpack.c.l.b16 %v61
  %v755 = vunpack.c.h.b16 %v61
  %v756 = vunpack.c.l.b16 %v62
  %v757 = vunpack.c.h.b16 %v62
  %v758 = vunpack.c.l.b16 %v63
  %v759 = vunpack.c.h.b16 %v63
  %v760 = vunpack.c.l.b16 %v64
  %v761 = vunpack.c.h.b16 %v64
  %v762 = vunpack.c.l.b16 %v65
  %v763 = vunpack.c.h.b16 %v65
  %v764 = vunpack.c.l.b16 %v66
  %v765 = vunpack.c.h.b16 %v66
  %v766 = vunpack.c.l.b16 %v67
  %v767 = vunpack.c.h.b16 %v67
  %v768 = vunpack.c.l.b16 %v68
  %v769 = vunpack.c.h.b16 %v68
  %v770 = vunpack.c.l.b16 %v69
  %v771 = vunpack.c.h.b16 %v69
  %v772 = vunpack.c.l.b16 %v70
  %v773 = vunpack.c.h.b16 %v70
  %v774 = vunpack.c.l.b16 %v71
  %v775 = vunpack.c.h.b16 %v71
  %v776 = vunpack.c.l.b16 %v72
  %v777 = vunpack.c.h.b16 %v72
  %v778 = vunpack.c.l.b16 %v73
  %v779 = vunpack.c.h.b16 %v73
  %v780 = vunpack.c.l.b16 %v74
  %v781 = vunpack.c.h.b16 %v74
  %v782 = vunpack.c.l.b16 %v75
  %v783 = vunpack.c.h.b16 %v75
  %v784 = vunpack.c.l.b16 %v76
  %v785 = vunpack.c.h.b16 %v76
  %v786 = vunpack.c.l.b16 %v77
  %v787 = vunpack.c.h.b16 %v77
  %v788 = vunpack.c.l.b16 %v78
  %v789 = vunpack.c.h.b16 %v78
  %v790 = vunpack.c.l.b16 %v79
  %v791 = vunpack.c.h.b16 %v79
  %v792 = vunpack.c.l.b16 %v80
  %v793 = vunpack.c.h.b16 %v80
  %v794 = vunpack.c.l.b16 %v81
  %v795 = vunpack.c.h.b16 %v81
  %v796 = vunpack.c.l.b16 %v82
  %v797 = vunpack.c.h.b16 %v82
  %v798 = vunpack.c.l.b16 %v83
  %v799 = vunpack.c.h.b16 %v83
  %v800 = vunpack.c.l.b16 %v84
  %v801 = vunpack.c.h.b16 %v84
  %v802 = vunpack.c.l.b16 %v85
  %v803 = vunpack.c.h.b16 %v85
  %v804 = vunpack.c.l.b16 %v86
  %v805 = vunpack.c.h.b16 %v86
  %v806 = vunpack.c.l.b16 %v87
  %v807 = vunpack.c.h.b16 %v87
  %v808 = vunpack.c.l.b16 %v88
  %v809 = vunpack.c.h.b16 %v88
  %v810 = vunpack.c.l.b16 %v89
  %v811 = vunpack.c.h.b16 %v89
  %v812 = vunpack.c.l.b16 %v90
  %v813 = vunpack.c.h.b16 %v90
  %v814 = vunpack.c.l.b16 %v91
  %v815 = vunpack.c.h.b16 %v91
  %v816 = vunpack.c.l.b16 %v92
  %v817 = vunpack.c.h.b16 %v92
  %v818 = vunpack.c.l.b16 %v93
  %v819 = vunpack.c.h.b16 %v93
  %v820 = vunpack.c.l.b16 %v94
  %v821 = vunpack.c.h.b16 %v94
  %v822 = vunpack.c.l.b16 %v95
  %v823 = vunpack.c.h.b16 %v95
  %v824 = vunpack.c.l.b16 %v96
  %v825 = vunpack.c.h.b16 %v96
  %v826 = vunpack.c.l.b16 %v97
  %v827 = vunpack.c.h.b16 %v97
  %v828 = vunpack.c.l.b16 %v98
  %v829 = vunpack.c.h.b16 %v98
  %v830 = vunpack.c.l.b16 %v99
  %v831 = vunpack.c.h.b16 %v99
  %v832 = vunpack.c.l.b16 %v100
  %v833 = vunpack.c.h.b16 %v100
  %v834 = vunpack.c.l.b16 %v101
  %v835 = vunpack.c.h.b16 %v101
  %v836 = vunpack.c.l.b16 %v102
  %v837 = vunpack.c.h.b16 %v102
  %v838 = vunpack.c.l.b16 %v103
  %v839 = vunpack.c.h.b16 %v103
  %v840 = vunpack.c.l.b16 %v104
  %v841 = vunpack.c.h.b16 %v104
  %v842 = vunpack.c.l.b16 %v105
  %v843 = vunpack.c.h.b16 %v105
  %v844 = vunpack.c.l.b16 %v106
  %v845 = vunpack.c.h.b16 %v106
  %v846 = vunpack.c.l.b16 %v107
  %v847 = vunpack.c.h.b16 %v107
  %v848 = vunpack.c.l.b16 %v108
  %v849 = vunpack.c.h.b16 %v108
  %v850 = vunpack.c.l.b16 %v109
  %v851 = vunpack.c.h.b16 %v109
  %v852 = vunpack.c.l.b16 %v110
  %v853 = vunpack.c.h.b16 %v110
  %v854 = vunpack.c.l.b16 %v111
  %v855 = vunpack.c.h.b16 %v111
  %v856 = vunpack.c.l.b16 %v112
  %v857 = vunpack.c.h.b16 %v112
  %v858 = vunpack.c.l.b16 %v113
  %v859 = vunpack.c.h.b16 %v113
  %v860 = vunpack.c.l.b16 %v114
  %v861 = vunpack.c.h.b16 %v114
  %v862 = vunpack.c.l.b16 %v115
  %v863 = vunpack.c.h.b16 %v115
  %v864 = vunpack.c.l.b16 %v116
  %v865 = vunpack.c.h.b16 %v116
  %v866 = vunpack.c.l.b16 %v117
  %v867 = vunpack.c.h.b16 %v117
  %v868 = vunpack.c.l.b16 %v118
  %v869 = vunpack.c.h.b16 %v118
  %v870 = vunpack.c.l.b16 %v119
  %v871 = vunpack.c.h.b16 %v119
  %v872 = vunpack.c.l.b16 %v120
  %v873 = vunpack.c.h.b16 %v120
  %v874 = vunpack.c.l.b16 %v121
  %v875 = vunpack.c.h.b16 %v121
  %v876 = vunpack.c.l.b16 %v122
  %v877 = vunpack.c.h.b16 %v122
  %v878 = vunpack.c.l.b16 %v123
  %v879 = vunpack.c.h.b16 %v123
  %v880 = vunpack.c.l.b16 %v124
  %v881 = vunpack.c.h.b16 %v124
  %v882 = vunpack.c.l.b16 %v125
  %v883 = vunpack.c.h.b16 %v125
  %v884 = vunpack.c.l.b16 %v126
  %v885 = vunpack.c.h.b16 %v126
  %v886 = vunpack.c.l.b16 %v127
  %v887 = vunpack.c.h.b16 %v127
  %v888 = vunpack.c.l.b16 %v128
  %v889 = vunpack.c.h.b16 %v128
  %v890 = vunpack.c.l.b16 %v129
  %v891 = vunpack.c.h.b16 %v129
  %v892 = vunpack.c.l.b16 %v130
  %v893 = vunpack.c.h.b16 %v130
  %v894 = vunpack.c.l.b16 %v131
  %v895 = vunpack.c.h.b16 %v131
  %v896 = vunpack.c.l.b16 %v132
  %v897 = vunpack.c.h.b16 %v132
  %v898 = vunpack.c.l.b16 %v133
  %v899 = vunpack.c.h.b16 %v133
  %v900 = vunpack.c.l.b16 %v134
  %v901 = vunpack.c.h.b16 %v134
  %v902 = vunpack.c.l.b16 %v135
  %v903 = vunpack.c.h.b16 %v135
  %v904 = vunpack.c.l.b16 %v136
  %v905 = vunpack.c.h.b16 %v136
  %v906 = vunpack.c.l.b16 %v137
  %v907 = vunpack.c.h.b16 %v137
  %v908 = vunpack.c.l.b16 %v138
  %v909 = vunpack.c.h.b16 %v138
  %v910 = vunpack.c.l.b16 %v139
  %v911 = vunpack.c.h.b16 %v139
  %v912 = vunpack.c.l.b16 %v140
  %v913 = vunpack.c.h.b16 %v140
  %v914 = vunpack.c.l.b16 %v141
  %v915 = vunpack.c.h.b16 %v141
  %v916 = vunpack.c.l.b16 %v142
  %v917 = vunpack.c.h.b16 %v142
  %v918 = vunpack.c.l.b16 %v143
  %v919 = vunpack.c.h.b16 %v143
  %v920 = vunpack.c.l.b16 %v144
  %v921 = vunpack.c.h.b16 %v144
  %v922 = vunpack.c.l.b16 %v145
  %v923 = vunpack.c.h.b16 %v145
  %v924 = vunpack.c.l.b16 %v146
  %v925 = vunpack.c.h.b16 %v146
  %v926 = vunpack.c.l.b16 %v147
  %v927 = vunpack.c.h.b16 %v147
  %v928 = vunpack.c.l.b16 %v148
  %v929 = vunpack.c.h.b16 %v148
  %v930 = vunpack.c.l.b16 %v149
  %v931 = vunpack.c.h.b16 %v149
  %v932 = vunpack.c.l.b16 %v150
  %v933 = vunpack.c.h.b16 %v150
  %v934 = vunpack.c.l.b16 %v151
  %v935 = vunpack.c.h.b16 %v151
  %v936 = vunpack.c.l.b16 %v152
  %v937 = vunpack.c.h.b16 %v152
  %v938 = vunpack.c.l.b16 %v153
  %v939 = vunpack.c.h.b16 %v153
  %v940 = vunpack.c.l.b16 %v154
  %v941 = vunpack.c.h.b16 %v154
  %v942 = vunpack.c.l.b16 %v155
  %v943 = vunpack.c.h.b16 %v155
  %v944 = vunpack.c.l.b16 %v156
  %v945 = vunpack.c.h.b16 %v156
  %v946 = vunpack.c.l.b16 %v157
  %v947 = vunpack.c.h.b16 %v157
  %v948 = vunpack.c.l.b16 %v158
  %v949 = vunpack.c.h.b16 %v158
  %v950 = vunpack.c.l.b16 %v159
  %v951 = vunpack.c.h.b16 %v159
  %v952 = vunpack.c.l.b16 %v160
  %v953 = vunpack.c.h.b16 %v160
  %v954 = vunpack.c.l.b16 %v161
  %v955 = vunpack.c.h.b16 %v161
  %v956 = vunpack.c.l.b16 %v162
  %v957 = vunpack.c.h.b16 %v162
  %v958 = vunpack.c.l.b16 %v163
  %v959 = vunpack.c.h.b16 %v163
  %v960 = vunpack.c.l.b16 %v164
  %v961 = vunpack.c.h.b16 %v164
  %v962 = vunpack.c.l.b16 %v165
  %v963 = vunpack.c.h.b16 %v165
  %v964 = vunpack.c.l.b16 %v166
  %v965 = vunpack.c.h.b16 %v166
  %v966 = vunpack.c.l.b16 %v167
  %v967 = vunpack.c.h.b16 %v167
  %v968 = vunpack.c.l.b16 %v168
  %v969 = vunpack.c.h.b16 %v168
  %v970 = vunpack.c.l.b16 %v169
  %v971 = vunpack.c.h.b16 %v169
  %v972 = vunpack.c.l.b16 %v170
  %v973 = vunpack.c.h.b16 %v170
  %v974 = vunpack.c.l.b16 %v171
  %v975 = vunpack.c.h.b16 %v171
  %v976 = vunpack.c.l.b16 %v172
  %v977 = vunpack.c.h.b16 %v172
  %v978 = vunpack.c.l.b16 %v173
  %v979 = vunpack.c.h.b16 %v173
  %v980 = vunpack.c.l.b16 %v174
  %v981 = vunpack.c.h.b16 %v174
  %v982 = vunpack.c.l.b16 %v175
  %v983 = vunpack.c.h.b16 %v175
  %v984 = vunpack.c.l.b16 %v176
  %v985 = vunpack.c.h.b16 %v176
  %v986 = vunpack.c.l.b16 %v177
  %v987 = vunpack.c.h.b16 %v177
  %v988 = vunpack.c.l.b16 %v178
  %v989 = vunpack.c.h.b16 %v178
  %v990 = vunpack.c.l.b16 %v179
  %v991 = vunpack.c.h.b16 %v179
  %v992 = vunpack.c.l.b16 %v180
  %v993 = vunpack.c.h.b16 %v180
  %v994 = vunpack.c.l.b16 %v181
  %v995 = vunpack.c.h.b16 %v181
  %v996 = vunpack.c.l.b16 %v182
  %v997 = vunpack.c.h.b16 %v182
  %v998 = vunpack.c.l.b16 %v183
  %v999 = vunpack.c.h.b16 %v183
  %v1000 = vunpack.c.l.b16 %v184
  %v1001 = vunpack.c.h.b16 %v184
  %v1002 = vunpack.c.l.b16 %v185
  %v1003 = vunpack.c.h.b16 %v185
  %v1004 = vunpack.c.l.b16 %v186
  %v1005 = vunpack.c.h.b16 %v186
  %v1006 = vunpack.c.l.b16 %v187
  %v1007 = vunpack.c.h.b16 %v187
  %v1008 = vunpack.c.l.b16 %v188
  %v1009 = vunpack.c.h.b16 %v188
  %v1010 = vunpack.c.l.b16 %v189
  %v1011 = vunpack.c.h.b16 %v189
  %v1012 = vunpack.c.l.b16 %v190
  %v1013 = vunpack.c.h.b16 %v190
  %v1014 = vunpack.c.l.b16 %v191
  %v1015 = vunpack.c.h.b16 %v191
  %v1016 = vunpack.c.l.b16 %v192
  %v1017 = vunpack.c.h.b16 %v192
  %v1018 = vunpack.c.l.b16 %v193
  %v1019 = vunpack.c.h.b16 %v193
  %v1020 = vunpack.c.l.b16 %v194
  %v1021 = vunpack.c.h.b16 %v194
  %v1022 = vunpack.c.l.b16 %v195
  %v1023 = vunpack.c.h.b16 %v195
  %v1024 = vunpack.c.l.b16 %v196
  %v1025 = vunpack.c.h.b16 %v196
  %v1026 = vunpack.c.l.b16 %v197
  %v1027 = vunpack.c.h.b16 %v197
  %v1028 = vunpack.c.l.b16 %v198
  %v1029 = vunpack.c.h.b16 %v198
  %v1030 = vunpack.c.l.b16 %v199
  %v1031 = vunpack.c.h.b16 %v199
  %v1032 = vunpack.c.l.b16 %v200
  %v1033 = vunpack.c.h.b16 %v200
  %v1034 = vunpack.c.l.b16 %v201
  %v1035 = vunpack.c.h.b16 %v201
  %v1036 = vunpack.c.l.b16 %v202
  %v1037 = vunpack.c.h.b16 %v202
  %v1038 = vunpack.c.l.b16 %v203
  %v1039 = vunpack.c.h.b16 %v203
  %v1040 = vunpack.c.l.b16 %v204
  %v1041 = vunpack.c.h.b16 %v204
  %v1042 = vunpack.c.l.b16 %v205
  %v1043 = vunpack.c.h.b16 %v205
  %v1044 = vunpack.c.l.b16 %v206
  %v1045 = vunpack.c.h.b16 %v206
  %v1046 = vunpack.c.l.b16 %v207
  %v1047 = vunpack.c.h.b16 %v207
  %v1048 = vunpack.c.l.b16 %v208
  %v1049 = vunpack.c.h.b16 %v208
  %v1050 = vunpack.c.l.b16 %v209
  %v1051 = vunpack.c.h.b16 %v209
  %v1052 = vunpack.c.l.b16 %v210
  %v1053 = vunpack.c.h.b16 %v210
  %v1054 = vunpack.c.l.b16 %v211
  %v1055 = vunpack.c.h.b16 %v211
  %v1056 = vunpack.c.l.b16 %v212
  %v1057 = vunpack.c.h.b16 %v212
  %v1058 = vunpack.c.l.b16 %v213
  %v1059 = vunpack.c.h.b16 %v213
  %v1060 = vunpack.c.l.b16 %v214
  %v1061 = vunpack.c.h.b16 %v214
  %v1062 = vunpack.c.l.b16 %v215
  %v1063 = vunpack.c.h.b16 %v215
  %v1064 = vunpack.c.l.b16 %v216
  %v1065 = vunpack.c.h.b16 %v216
  %v1066 = vunpack.c.l.b16 %v217
  %v1067 = vunpack.c.h.b16 %v217
  %v1068 = vunpack.c.l.b16 %v218
  %v1069 = vunpack.c.h.b16 %v218
  %v1070 = vunpack.c.l.b16 %v219
  %v1071 = vunpack.c.h.b16 %v219
  %v1072 = vunpack.c.l.b16 %v220
  %v1073 = vunpack.c.h.b16 %v220
  %v1074 = vunpack.c.l.b16 %v221
  %v1075 = vunpack.c.h.b16 %v221
  %v1076 = vunpack.c.l.b16 %v222
  %v1077 = vunpack.c.h.b16 %v222
  %v1078 = vunpack.c.l.b16 %v223
  %v1079 = vunpack.c.h.b16 %v223
  %v1080 = vunpack.c.l.b16 %v224
  %v1081 = vunpack.c.h.b16 %v224
  %v1082 = vunpack.c.l.b16 %v225
  %v1083 = vunpack.c.h.b16 %v225
  %v1084 = vunpack.c.l.b16 %v226
  %v1085 = vunpack.c.h.b16 %v226
  %v1086 = vunpack.c.l.b16 %v227
  %v1087 = vunpack.c.h.b16 %v227
  %v1088 = vunpack.c.l.b16 %v228
  %v1089 = vunpack.c.h.b16 %v228
  %v1090 = vunpack.c.l.b16 %v229
  %v1091 = vunpack.c.h.b16 %v229
  %v1092 = vunpack.c.l.b16 %v230
  %v1093 = vunpack.c.h.b16 %v230
  %v1094 = vunpack.c.l.b16 %v231
  %v1095 = vunpack.c.h.b16 %v231
  %v1096 = vunpack.c.l.b16 %v232
  %v1097 = vunpack.c.h.b16 %v232
  %v1098 = vunpack.c.l.b16 %v233
  %v1099 = vunpack.c.h.b16 %v233
  %v1100 = vunpack.c.l.b16 %v234
  %v1101 = vunpack.c.h.b16 %v234
  %v1102 = vunpack.c.l.b16 %v235
  %v1103 = vunpack.c.h.b16 %v235
  %v1104 = vunpack.c.l.b16 %v236
  %v1105 = vunpack.c.h.b16 %v236
  %v1106 = vunpack.c.l.b16 %v237
  %v1107 = vunpack.c.h.b16 %v237
  %v1108 = vunpack.c.l.b16 %v238
  %v1109 = vunpack.c.h.b16 %v238
  %v1110 = vunpack.c.l.b16 %v239
  %v1111 = vunpack.c.h.b16 %v239
  %v1112 = vunpack.c.l.b16 %v240
  %v1113 = vunpack.c.h.b16 %v240
  %v1114 = vunpack.c.l.b16 %v241
  %v1115 = vunpack.c.h.b16 %v241
  %v1116 = vunpack.c.l.b16 %v242
  %v1117 = vunpack.c.h.b16 %v242
  %v1118 = vunpack.c.l.b16 %v243
  %v1119 = vunpack.c.h.b16 %v243
  %v1120 = vunpack.c.l.b16 %v244
  %v1121 = vunpack.c.h.b16 %v244
  %v1122 = vunpack.c.l.b16 %v245
  %v1123 = vunpack.c.h.b16 %v245
  %v1124 = vunpack.c.l.b16 %v246
  %v1125 = vunpack.c.h.b16 %v246
  %v1126 = vunpack.c.l.b16 %v247
  %v1127 = vunpack.c.h.b16 %v247
  %v1128 = vunpack.c.l.b16 %v248
  %v1129 = vunpack.c.h.b16 %v248
  %v1130 = vunpack.c.l.b16 %v249
  %v1131 = vunpack.c.h.b16 %v249
  %v1132 = vunpack.c.l.b16 %v250
  %v1133 = vunpack.c.h.b16 %v250
  %v1134 = vunpack.c.l.b16 %v251
  %v1135 = vunpack.c.h.b16 %v251
  %v1136 = vunpack.c.l.b16 %v252
  %v1137 = vunpack.c.h.b16 %v252
  %v1138 = vunpack.c.l.b16 %v253
  %v1139 = vunpack.c.h.b16 %v253
  %v1140 = vunpack.c.l.b16 %v254
  %v1141 = vunpack.c.h.b16 %v254
  %v1142 = vunpack.c.l.b16 %v255
  %v1143 = vunpack.c.h.b16 %v255
  %v1144 = vunpack.c.l.b16 %v256
  %v1145 = vunpack.c.h.b16 %v256
  %v1146 = vunpack.c.l.b16 %v257
  %v1147 = vunpack.c.h.b16 %v257
  %v1148 = vunpack.c.l.b16 %v258
  %v1149 = vunpack.c.h.b16 %v258
  %v1150 = vunpack.c.l.b16 %v259
  %v1151 = vunpack.c.h.b16 %v259
  %v1152 = vunpack.c.l.b16 %v260
  %v1153 = vunpack.c.h.b16 %v260
  %v1154 = vunpack.c.l.b16 %v261
  %v1155 = vunpack.c.h.b16 %v261
  %v1156 = vunpack.c.l.b16 %v262
  %v1157 = vunpack.c.h.b16 %v262
  %v1158 = vunpack.c.l.b16 %v263
  %v1159 = vunpack.c.h.b16 %v263
  %v1160 = vunpack.c.l.b16 %v264
  %v1161 = vunpack.c.h.b16 %v264
  %v1162 = vunpack.c.l.b16 %v265
  %v1163 = vunpack.c.h.b16 %v265
  %v1164 = vunpack.c.l.b16 %v266
  %v1165 = vunpack.c.h.b16 %v266
  %v1166 = vunpack.c.l.b16 %v267
  %v1167 = vunpack.c.h.b16 %v267
  %v1168 = vunpack.c.l.b16 %v268
  %v1169 = vunpack.c.h.b16 %v268
  %v1170 = vunpack.c.l.b16 %v269
  %v1171 = vunpack.c.h.b16 %v269
  %v1172 = vunpack.c.l.b16 %v270
  %v1173 = vunpack.c.h.b16 %v270
  %v1174 = vunpack.c.l.b16 %v271
  %v1175 = vunpack.c.h.b16 %v271
  %v1176 = vunpack.c.l.b16 %v272
  %v1177 = vunpack.c.h.b16 %v272
  %v1178 = vunpack.c.l.b16 %v273
  %v1179 = vunpack.c.h.b16 %v273
  %v1180 = vunpack.c.l.b16 %v274
  %v1181 = vunpack.c.h.b16 %v274
  %v1182 = vunpack.c.l.b16 %v275
  %v1183 = vunpack.c.h.b16 %v275
  %v1184 = vunpack.c.l.b16 %v276
  %v1185 = vunpack.c.h.b16 %v276
  %v1186 = vunpack.c.l.b16 %v277
  %v1187 = vunpack.c.h.b16 %v277
  %v1188 = vunpack.c.l.b16 %v278
  %v1189 = vunpack.c.h.b16 %v278
  %v1190 = vunpack.c.l.b16 %v279
  %v1191 = vunpack.c.h.b16 %v279
  %v1192 = vunpack.c.l.b16 %v280
  %v1193 = vunpack.c.h.b16 %v280
  %v1194 = vunpack.c.l.b16 %v281
  %v1195 = vunpack.c.h.b16 %v281
  %v1196 = vunpack.c.l.b16 %v282
  %v1197 = vunpack.c.h.b16 %v282
  %v1198 = vunpack.c.l.b16 %v283
  %v1199 = vunpack.c.h.b16 %v283
  %v1200 = vunpack.c.l.b16 %v284
  %v1201 = vunpack.c.h.b16 %v284
  %v1202 = vunpack.c.l.b16 %v285
  %v1203 = vunpack.c.h.b16 %v285
  %v1204 = vunpack.c.l.b16 %v286
  %v1205 = vunpack.c.h.b16 %v286
  %v1206 = vunpack.c.l.b16 %v287
  %v1207 = vunpack.c.h.b16 %v287
  %v1208 = vunpack.c.l.b16 %v288
  %v1209 = vunpack.c.h.b16 %v288
  %v1210 = vunpack.c.l.b16 %v289
  %v1211 = vunpack.c.h.b16 %v289
  %v1212 = vunpack.c.l.b16 %v290
  %v1213 = vunpack.c.h.b16 %v290
  %v1214 = vunpack.c.l.b16 %v291
  %v1215 = vunpack.c.h.b16 %v291
  %v1216 = vunpack.c.l.b16 %v292
  %v1217 = vunpack.c.h.b16 %v292
  %v1218 = vunpack.c.l.b16 %v293
  %v1219 = vunpack.c.h.b16 %v293
  %v1220 = vunpack.c.l.b16 %v294
  %v1221 = vunpack.c.h.b16 %v294
  %v1222 = vunpack.c.l.b16 %v295
  %v1223 = vunpack.c.h.b16 %v295
  %v1224 = vunpack.c.l.b16 %v296
  %v1225 = vunpack.c.h.b16 %v296
  %v1226 = vunpack.c.l.b16 %v297
  %v1227 = vunpack.c.h.b16 %v297
  %v1228 = vunpack.c.l.b16 %v298
  %v1229 = vunpack.c.h.b16 %v298
  %v1230 = vunpack.c.l.b16 %v299
  %v1231 = vunpack.c.h.b16 %v299
  %v1232 = vunpack.c.l.b16 %v300
  %v1233 = vunpack.c.h.b16 %v300
  %v1234 = vunpack.c.l.b16 %v301
  %v1235 = vunpack.c.h.b16 %v301
  %v1236 = vpack.c.b16 %v726, %v724
  %v1237 = vpack.c.b16 %v727, %v725
  %v1238 = vpack.c.b16 %v730, %v728
  %v1239 = vpack.c.b16 %v731, %v729
  %v1240 = vpack.c.b16 %v734, %v732
  %v1241 = vpack.c.b16 %v735, %v733
  %v1242 = vpack.c.b16 %v738, %v736
  %v1243 = vpack.c.b16 %v739, %v737
  %v1244 = vpack.c.b16 %v742, %v740
  %v1245 = vpack.c.b16 %v743, %v741
  %v1246 = vpack.c.b16 %v746, %v744
  %v1247 = vpack.c.b16 %v747, %v745
  %v1248 = vpack.c.b16 %v750, %v748
  %v1249 = vpack.c.b16 %v751, %v749
  %v1250 = vpack.c.b16 %v754, %v752
  %v1251 = vpack.c.b16 %v755, %v753
  %v1252 = vpack.c.b16 %v758, %v756
  %v1253 = vpack.c.b16 %v759, %v757
  %v1254 = vpack.c.b16 %v762, %v760
  %v1255 = vpack.c.b16 %v763, %v761
  %v1256 = vpack.c.b16 %v766, %v764
  %v1257 = vpack.c.b16 %v767, %v765
  %v1258 = vpack.c.b16 %v770, %v768
  %v1259 = vpack.c.b16 %v771, %v769
  %v1260 = vpack.c.b16 %v774, %v772
  %v1261 = vpack.c.b16 %v775, %v773
  %v1262 = vpack.c.b16 %v778, %v776
  %v1263 = vpack.c.b16 %v779, %v777
  %v1264 = vpack.c.b16 %v782, %v780
  %v1265 = vpack.c.b16 %v783, %v781
  %v1266 = vpack.c.b16 %v786, %v784
  %v1267 = vpack.c.b16 %v787, %v785
  %v1268 = vpack.c.b16 %v790, %v788
  %v1269 = vpack.c.b16 %v791, %v789
  %v1270 = vpack.c.b16 %v794, %v792
  %v1271 = vpack.c.b16 %v795, %v793
  %v1272 = vpack.c.b16 %v798, %v796
  %v1273 = vpack.c.b16 %v799, %v797
  %v1274 = vpack.c.b16 %v802, %v800
  %v1275 = vpack.c.b16 %v803, %v801
  %v1276 = vpack.c.b16 %v806, %v804
  %v1277 = vpack.c.b16 %v807, %v805
  %v1278 = vpack.c.b16 %v810, %v808
  %v1279 = vpack.c.b16 %v811, %v809
  %v1280 = vpack.c.b16 %v814, %v812
  %v1281 = vpack.c.b16 %v815, %v813
  %v1282 = vpack.c.b16 %v818, %v816
  %v1283 = vpack.c.b16 %v819, %v817
  %v1284 = vpack.c.b16 %v822, %v820
  %v1285 = vpack.c.b16 %v823, %v821
  %v1286 = vpack.c.b16 %v826, %v824
  %v1287 = vpack.c.b16 %v827, %v825
  %v1288 = vpack.c.b16 %v830, %v828
  %v1289 = vpack.c.b16 %v831, %v829
  %v1290 = vpack.c.b16 %v834, %v832
  %v1291 = vpack.c.b16 %v835, %v833
  %v1292 = vpack.c.b16 %v838, %v836
  %v1293 = vpack.c.b16 %v839, %v837
  %v1294 = vpack.c.b16 %v842, %v840
  %v1295 = vpack.c.b16 %v843, %v841
  %v1296 = vpack.c.b16 %v846, %v844
  %v1297 = vpack.c.b16 %v847, %v845
  %v1298 = vpack.c.b16 %v850, %v848
  %v1299 = vpack.c.b16 %v851, %v849
  %v1300 = vpack.c.b16 %v854, %v852
  %v1301 = vpack.c.b16 %v855, %v853
  %v1302 = vpack.c.b16 %v858, %v856
  %v1303 = vpack.c.b16 %v859, %v857
  %v1304 = vpack.c.b16 %v862, %v860
  %v1305 = vpack.c.b16 %v863, %v861
  %v1306 = vpack.c.b16 %v866, %v864
  %v1307 = vpack.c.b16 %v867, %v865
  %v1308 = vpack.c.b16 %v870, %v868
  %v1309 = vpack.c.b16 %v871, %v869
  %v1310 = vpack.c.b16 %v874, %v872
  %v1311 = vpack.c.b16 %v875, %v873
  %v1312 = vpack.c.b16 %v878, %v876
  %v1313 = vpack.c.b16 %v879, %v877
  %v1314 = vpack.c.b16 %v882, %v880
  %v1315 = vpack.c.b16 %v883, %v881
  %v1316 = vpack.c.b16 %v886, %v884
  %v1317 = vpack.c.b16 %v887, %v885
  %v1318 = vpack.c.b16 %v890, %v888
  %v1319 = vpack.c.b16 %v891, %v889
  %v1320 = vpack.c.b16 %v894, %v892
  %v1321 = vpack.c.b16 %v895, %v893
  %v1322 = vpack.c.b16 %v898, %v896
  %v1323 = vpack.c.b16 %v899, %v897
  %v1324 = vpack.c.b16 %v902, %v900
  %v1325 = vpack.c.b16 %v903, %v901
  %v1326 = vpack.c.b16 %v906, %v904
  %v1327 = vpack.c.b16 %v907, %v905
  %v1328 = vpack.c.b16 %v910, %v908
  %v1329 = vpack.c.b16 %v911, %v909
  %v1330 = vpack.c.b16 %v914, %v912
  %v1331 = vpack.c.b16 %v915, %v913
  %v1332 = vpack.c.b16 %v918, %v916
  %v1333 = vpack.c.b16 %v919, %v917
  %v1334 = vpack.c.b16 %v922, %v920
  %v1335 = vpack.c.b16 %v923, %v921
  %v1336 = vpack.c.b16 %v926, %v924
  %v1337 = vpack.c.b16 %v927, %v925
  %v1338 = vpack.c.b16 %v930, %v928
  %v1339 = vpack.c.b16 %v931, %v929
  %v1340 = vpack.c.b16 %v934, %v932
  %v1341 = vpack.c.b16 %v935, %v933
  %v1342 = vpack.c.b16 %v938, %v936
  %v1343 = vpack.c.b16 %v939, %v937
  %v1344 = vpack.c.b16 %v942, %v940
  %v1345 = vpack.c.b16 %v943, %v941
  %v1346 = vpack.c.b16 %v946, %v944
  %v1347 = vpack.c.b16 %v947, %v945
  %v1348 = vpack.c.b16 %v950, %v948
  %v1349 = vpack.c.b16 %v951, %v949
  %v1350 = vpack.c.b16 %v954, %v952
  %v1351 = vpack.c.b16 %v955, %v953
  %v1352 = vpack.c.b16 %v958, %v956
  %v1353 = vpack.c.b16 %v959, %v957
  %v1354 = vpack.c.b16 %v962, %v960
  %v1355 = vpack.c.b16 %v963, %v961
  %v1356 = vpack.c.b16 %v966, %v964
  %v1357 = vpack.c.b16 %v967, %v965
  %v1358 = vpack.c.b16 %v970, %v968
  %v1359 = vpack.c.b16 %v971, %v969
  %v1360 = vpack.c.b16 %v974, %v972
  %v1361 = vpack.c.b16 %v975, %v973
  %v1362 = vpack.c.b16 %v978, %v976
  %v1363 = vpack.c.b16 %v979, %v977
  %v1364 = vpack.c.b16 %v982, %v980
  %v1365 = vpack.c.b16 %v983, %v981
  %v1366 = vpack.c.b16 %v986, %v984
  %v1367 = vpack.c.b16 %v987, %v985
  %v1368 = vpack.c.b16 %v990, %v988
  %v1369 = vpack.c.b16 %v991, %v989
  %v1370 = vpack.c.b16 %v994, %v992
  %v1371 = vpack.c.b16 %v995, %v993
  %v1372 = vpack.c.b16 %v998, %v996
  %v1373 = vpack.c.b16 %v999, %v997
  %v1374 = vpack.c.b16 %v1002, %v1000
  %v1375 = vpack.c.b16 %v1003, %v1001
  %v1376 = vpack.c.b16 %v1006, %v1004
  %v1377 = vpack.c.b16 %v1007, %v1005
  %v1378 = vpack.c.b16 %v1010, %v1008
  %v1379 = vpack.c.b16 %v1011, %v1009
  %v1380 = vpack.c.b16 %v1014, %v1012
  %v1381 = vpack.c.b16 %v1015, %v1013
  %v1382 = vpack.c.b16 %v1018, %v1016
  %v1383 = vpack.c.b16 %v1019, %v1017
  %v1384 = vpack.c.b16 %v1022, %v1020
  %v1385 = vpack.c.b16 %v1023, %v1021
  %v1386 = vpack.c.b16 %v1026, %v1024
  %v1387 = vpack.c.b16 %v1027, %v1025
  %v1388 = vpack.c.b16 %v1030, %v1028
  %v1389 = vpack.c.b16 %v1031, %v1029
  %v1390 = vpack.c.b16 %v1034, %v1032
  %v1391 = vpack.c.b16 %v1035, %v1033
  %v1392 = vpack.c.b16 %v1038, %v1036
  %v1393 = vpack.c.b16 %v1039, %v1037
  %v1394 = vpack.c.b16 %v1042, %v1040
  %v1395 = vpack.c.b16 %v1043, %v1041
  %v1396 = vpack.c.b16 %v1046, %v1044
  %v1397 = vpack.c.b16 %v1047, %v1045
  %v1398 = vpack.c.b16 %v1050, %v1048
  %v1399 = vpack.c.b16 %v1051, %v1049
  %v1400 = vpack.c.b16 %v1054, %v1052
  %v1401 = vpack.c.b16 %v1055, %v1053
  %v1402 = vpack.c.b16 %v1058, %v1056
  %v1403 = vpack.c.b16 %v1059, %v1057
  %v1404 = vpack.c.b16 %v1062, %v1060
  %v1405 = vpack.c.b16 %v1063, %v1061
  %v1406 = vpack.c.b16 %v1066, %v1064
  %v1407 = vpack.c.b16 %v1067, %v1065
  %v1408 = vpack.c.b16 %v1070, %v1068
  %v1409 = vpack.c.b16 %v1071, %v1069
  %v1410 = vpack.c.b16 %v1074, %v1072
  %v1411 = vpack.c.b16 %v1075, %v1073
  %v1412 = vpack.c.b16 %v1078, %v1076
  %v1413 = vpack.c.b16 %v1079, %v1077
  %v1414 = vpack.c.b16 %v1082, %v1080
  %v1415 = vpack.c.b16 %v1083, %v1081
  %v1416 = vpack.c.b16 %v1086, %v1084
  %v1417 = vpack.c.b16 %v1087, %v1085
  %v1418 = vpack.c.b16 %v1090, %v1088
  %v1419 = vpack.c.b16 %v1091, %v1089
  %v1420 = vpack.c.b16 %v1094, %v1092
  %v1421 = vpack.c.b16 %v1095, %v1093
  %v1422 = vpack.c.b16 %v1098, %v1096
  %v1423 = vpack.c.b16 %v1099, %v1097
  %v1424 = vpack.c.b16 %v1102, %v1100
  %v1425 = vpack.c.b16 %v1103, %v1101
  %v1426 = vpack.c.b16 %v1106, %v1104
  %v1427 = vpack.c.b16 %v1107, %v1105
  %v1428 = vpack.c.b16 %v1110, %v1108
  %v1429 = vpack.c.b16 %v1111, %v1109
  %v1430 = vpack.c.b16 %v1114, %v1112
  %v1431 = vpack.c.b16 %v1115, %v1113
  %v1432 = vpack.c.b16 %v1118, %v1116
  %v1433 = vpack.c.b16 %v1119, %v1117
  %v1434 = vpack.c.b16 %v1122, %v1120
  %v1435 = vpack.c.b16 %v1123, %v1121
  %v1436 = vpack.c.b16 %v1126, %v1124
  %v1437 = vpack.c.b16 %v1127, %v1125
  %v1438 = vpack.c.b16 %v1130, %v1128
  %v1439 = vpack.c.b16 %v1131, %v1129
  %v1440 = vpack.c.b16 %v1134, %v1132
  %v1441 = vpack.c.b16 %v1135, %v1133
  %v1442 = vpack.c.b16 %v1138, %v1136
  %v1443 = vpack.c.b16 %v1139, %v1137
  %v1444 = vpack.c.b16 %v1142, %v1140
  %v1445 = vpack.c.b16 %v1143, %v1141
  %v1446 = vpack.c.b16 %v1146, %v1144
  %v1447 = vpack.c.b16 %v1147, %v1145
  %v1448 = vpack.c.b16 %v1150, %v1148
  %v1449 = vpack.c.b16 %v1151, %v1149
  %v1450 = vpack.c.b16 %v1154, %v1152
  %v1451 = vpack.c.b16 %v1155, %v1153
  %v1452 = vpack.c.b16 %v1158, %v1156
  %v1453 = vpack.c.b16 %v1159, %v1157
  %v1454 = vpack.c.b16 %v1162, %v1160
  %v1455 = vpack.c.b16 %v1163, %v1161
  %v1456 = vpack.c.b16 %v1166, %v1164
  %v1457 = vpack.c.b16 %v1167, %v1165
  %v1458 = vpack.c.b16 %v1170, %v1168
  %v1459 = vpack.c.b16 %v1171, %v1169
  %v1460 = vpack.c.b16 %v1174, %v1172
  %v1461 = vpack.c.b16 %v1175, %v1173
  %v1462 = vpack.c.b16 %v1178, %v1176
  %v1463 = vpack.c.b16 %v1179, %v1177
  %v1464 = vpack.c.b16 %v1182, %v1180
  %v1465 = vpack.c.b16 %v1183, %v1181
  %v1466 = vpack.c.b16 %v1186, %v1184
  %v1467 = vpack.c.b16 %v1187, %v1185
  %v1468 = vpack.c.b16 %v1190, %v1188
  %v1469 = vpack.c.b16 %v1191, %v1189
  %v1470 = vpack.c.b16 %v1194, %v1192
  %v1471 = vpack.c.b16 %v1195, %v1193
  %v1472 = vpack.c.b16 %v1198, %v1196
  %v1473 = vpack.c.b16 %v1199, %v1197
  %v1474 = vpack.c.b16 %v1202, %v1200
  %v1475 = vpack.c.b16 %v1203, %v1201
  %v1476 = vpack.c.b16 %v1206, %v1204
  %v1477 = vpack.c.b16 %v1207, %v1205
  %v1478 = vpack.c.b16 %v1210, %v1208
  %v1479 = vpack.c.b16 %v1211, %v1209
  %v1480 = vpack.c.b16 %v1214, %v1212
  %v1481 = vpack.c.b16 %v1215, %v1213
  %v1482 = vpack.c.b16 %v1218, %v1216
  %v1483 = vpack.c.b16 %v1219, %v1217
  %v1484 = vpack.c.b16 %v1222, %v1220
  %v1485 = vpack.c.b16 %v1223, %v1221
  %v1486 = vpack.c.b16 %v1226, %v1224
  %v1487 = vpack.c.b16 %v1227, %v1225
  %v1488 = vpack.c.b16 %v1230, %v1228
  %v1489 = vpack.c.b16 %v1231, %v1229
  %v1490 = vpack.c.b16 %v1234, %v1232
  %v1491 = vpack.c.b16 %v1235, %v1233
  %1748 = vmatpush.bf16.msra.mxu0 %v1250
  %1749 = vmatpush.bf16.msra.mxu0 %v1248
  %1750 = vmatpush.bf16.msra.mxu0 %v1246
  %1751 = vmatpush.bf16.msra.mxu0 %v1244
  %1752 = vmatpush.bf16.msra.mxu0 %v1242
  %1753 = vmatpush.bf16.msra.mxu0 %v1240
  %1754 = vmatpush.bf16.msra.mxu0 %v1238
  %1755 = vmatpush.bf16.msra.mxu0 %v1236
  %1756 = vmatmul.bf16.gmra.mxu0 %v404
  %v1757 = vpop.f32.mrf.mxu0
  %v1758 = vadd.f32 %v304, %v1757
  %v1759 = vpop.f32.mrf.mxu0
  %v1760 = vadd.f32 %v304, %v1759
  %1761 = vmatmul.bf16.gmra.mxu0 %v420
  %v1762 = vpop.f32.mrf.mxu0
  %v1763 = vadd.f32 %v304, %v1762
  %v1764 = vpop.f32.mrf.mxu0
  %v1765 = vadd.f32 %v304, %v1764
  %1766 = vdwg.mxu0
  %1767 = vmatpush.bf16.msra.mxu0 %v1266
  %1768 = vmatpush.bf16.msra.mxu0 %v1264
  %1769 = vmatpush.bf16.msra.mxu0 %v1262
  %1770 = vmatpush.bf16.msra.mxu0 %v1260
  %1771 = vmatpush.bf16.msra.mxu0 %v1258
  %1772 = vmatpush.bf16.msra.mxu0 %v1256
  %1773 = vmatpush.bf16.msra.mxu0 %v1254
  %1774 = vmatpush.bf16.msra.mxu0 %v1252
  %1775 = vmatmul.bf16.gmra.mxu0 %v405
  %v1776 = vpop.f32.mrf.mxu0
  %v1777 = vadd.f32 %v1758, %v1776
  %v1778 = vpop.f32.mrf.mxu0
  %v1779 = vadd.f32 %v1760, %v1778
  %1780 = vmatmul.bf16.gmra.mxu0 %v421
  %v1781 = vpop.f32.mrf.mxu0
  %v1782 = vadd.f32 %v1763, %v1781
  %v1783 = vpop.f32.mrf.mxu0
  %v1784 = vadd.f32 %v1765, %v1783
  %1785 = vdwg.mxu0
  %1786 = vmatpush.bf16.msra.mxu0 %v1282
  %1787 = vmatpush.bf16.msra.mxu0 %v1280
  %1788 = vmatpush.bf16.msra.mxu0 %v1278
  %1789 = vmatpush.bf16.msra.mxu0 %v1276
  %1790 = vmatpush.bf16.msra.mxu0 %v1274
  %1791 = vmatpush.bf16.msra.mxu0 %v1272
  %1792 = vmatpush.bf16.msra.mxu0 %v1270
  %1793 = vmatpush.bf16.msra.mxu0 %v1268
  %1794 = vmatmul.bf16.gmra.mxu0 %v406
  %v1795 = vpop.f32.mrf.mxu0
  %v1796 = vadd.f32 %v1777, %v1795
  %v1797 = vpop.f32.mrf.mxu0
  %v1798 = vadd.f32 %v1779, %v1797
  %1799 = vmatmul.bf16.gmra.mxu0 %v422
  %v1800 = vpop.f32.mrf.mxu0
  %v1801 = vadd.f32 %v1782, %v1800
  %v1802 = vpop.f32.mrf.mxu0
  %v1803 = vadd.f32 %v1784, %v1802
  %1804 = vdwg.mxu0
  %1805 = vmatpush.bf16.msra.mxu0 %v1298
  %1806 = vmatpush.bf16.msra.mxu0 %v1296
  %1807 = vmatpush.bf16.msra.mxu0 %v1294
  %1808 = vmatpush.bf16.msra.mxu0 %v1292
  %1809 = vmatpush.bf16.msra.mxu0 %v1290
  %1810 = vmatpush.bf16.msra.mxu0 %v1288
  %1811 = vmatpush.bf16.msra.mxu0 %v1286
  %1812 = vmatpush.bf16.msra.mxu0 %v1284
  %1813 = vmatmul.bf16.gmra.mxu0 %v407
  %v1814 = vpop.f32.mrf.mxu0
  %v1815 = vadd.f32 %v1796, %v1814
  %v1816 = vpop.f32.mrf.mxu0
  %v1817 = vadd.f32 %v1798, %v1816
  %1818 = vmatmul.bf16.gmra.mxu0 %v423
  %v1819 = vpop.f32.mrf.mxu0
  %v1820 = vadd.f32 %v1801, %v1819
  %v1821 = vpop.f32.mrf.mxu0
  %v1822 = vadd.f32 %v1803, %v1821
  %1823 = vdwg.mxu0
  %1824 = vmatpush.bf16.msra.mxu0 %v1314
  %1825 = vmatpush.bf16.msra.mxu0 %v1312
  %1826 = vmatpush.bf16.msra.mxu0 %v1310
  %1827 = vmatpush.bf16.msra.mxu0 %v1308
  %1828 = vmatpush.bf16.msra.mxu0 %v1306
  %1829 = vmatpush.bf16.msra.mxu0 %v1304
  %1830 = vmatpush.bf16.msra.mxu0 %v1302
  %1831 = vmatpush.bf16.msra.mxu0 %v1300
  %1832 = vmatmul.bf16.gmra.mxu0 %v408
  %v1833 = vpop.f32.mrf.mxu0
  %v1834 = vadd.f32 %v1815, %v1833
  %v1835 = vpop.f32.mrf.mxu0
  %v1836 = vadd.f32 %v1817, %v1835
  %1837 = vmatmul.bf16.gmra.mxu0 %v424
  %v1838 = vpop.f32.mrf.mxu0
  %v1839 = vadd.f32 %v1820, %v1838
  %v1840 = vpop.f32.mrf.mxu0
  %v1841 = vadd.f32 %v1822, %v1840
  %1842 = vdwg.mxu0
  %1843 = vmatpush.bf16.msra.mxu0 %v1330
  %1844 = vmatpush.bf16.msra.mxu0 %v1328
  %1845 = vmatpush.bf16.msra.mxu0 %v1326
  %1846 = vmatpush.bf16.msra.mxu0 %v1324
  %1847 = vmatpush.bf16.msra.mxu0 %v1322
  %1848 = vmatpush.bf16.msra.mxu0 %v1320
  %1849 = vmatpush.bf16.msra.mxu0 %v1318
  %1850 = vmatpush.bf16.msra.mxu0 %v1316
  %1851 = vmatmul.bf16.gmra.mxu0 %v409
  %v1852 = vpop.f32.mrf.mxu0
  %v1853 = vadd.f32 %v1834, %v1852
  %v1854 = vpop.f32.mrf.mxu0
  %v1855 = vadd.f32 %v1836, %v1854
  %1856 = vmatmul.bf16.gmra.mxu0 %v425
  %v1857 = vpop.f32.mrf.mxu0
  %v1858 = vadd.f32 %v1839, %v1857
  %v1859 = vpop.f32.mrf.mxu0
  %v1860 = vadd.f32 %v1841, %v1859
  %1861 = vdwg.mxu0
  %1862 = vmatpush.bf16.msra.mxu0 %v1346
  %1863 = vmatpush.bf16.msra.mxu0 %v1344
  %1864 = vmatpush.bf16.msra.mxu0 %v1342
  %1865 = vmatpush.bf16.msra.mxu0 %v1340
  %1866 = vmatpush.bf16.msra.mxu0 %v1338
  %1867 = vmatpush.bf16.msra.mxu0 %v1336
  %1868 = vmatpush.bf16.msra.mxu0 %v1334
  %1869 = vmatpush.bf16.msra.mxu0 %v1332
  %1870 = vmatmul.bf16.gmra.mxu0 %v410
  %v1871 = vpop.f32.mrf.mxu0
  %v1872 = vadd.f32 %v1853, %v1871
  %v1873 = vpop.f32.mrf.mxu0
  %v1874 = vadd.f32 %v1855, %v1873
  %1875 = vmatmul.bf16.gmra.mxu0 %v426
  %v1876 = vpop.f32.mrf.mxu0
  %v1877 = vadd.f32 %v1858, %v1876
  %v1878 = vpop.f32.mrf.mxu0
  %v1879 = vadd.f32 %v1860, %v1878
  %1880 = vdwg.mxu0
  %1881 = vmatpush.bf16.msra.mxu0 %v1362
  %1882 = vmatpush.bf16.msra.mxu0 %v1360
  %1883 = vmatpush.bf16.msra.mxu0 %v1358
  %1884 = vmatpush.bf16.msra.mxu0 %v1356
  %1885 = vmatpush.bf16.msra.mxu0 %v1354
  %1886 = vmatpush.bf16.msra.mxu0 %v1352
  %1887 = vmatpush.bf16.msra.mxu0 %v1350
  %1888 = vmatpush.bf16.msra.mxu0 %v1348
  %1889 = vmatmul.bf16.gmra.mxu0 %v411
  %v1890 = vpop.f32.mrf.mxu0
  %v1891 = vadd.f32 %v1872, %v1890
  %v1892 = vpop.f32.mrf.mxu0
  %v1893 = vadd.f32 %v1874, %v1892
  %1894 = vmatmul.bf16.gmra.mxu0 %v427
  %v1895 = vpop.f32.mrf.mxu0
  %v1896 = vadd.f32 %v1877, %v1895
  %v1897 = vpop.f32.mrf.mxu0
  %v1898 = vadd.f32 %v1879, %v1897
  %1899 = vdwg.mxu0
  %1900 = vmatpush.bf16.msra.mxu0 %v1378
  %1901 = vmatpush.bf16.msra.mxu0 %v1376
  %1902 = vmatpush.bf16.msra.mxu0 %v1374
  %1903 = vmatpush.bf16.msra.mxu0 %v1372
  %1904 = vmatpush.bf16.msra.mxu0 %v1370
  %1905 = vmatpush.bf16.msra.mxu0 %v1368
  %1906 = vmatpush.bf16.msra.mxu0 %v1366
  %1907 = vmatpush.bf16.msra.mxu0 %v1364
  %1908 = vmatmul.bf16.gmra.mxu0 %v412
  %v1909 = vpop.f32.mrf.mxu0
  %v1910 = vadd.f32 %v1891, %v1909
  %v1911 = vpop.f32.mrf.mxu0
  %v1912 = vadd.f32 %v1893, %v1911
  %1913 = vmatmul.bf16.gmra.mxu0 %v428
  %v1914 = vpop.f32.mrf.mxu0
  %v1915 = vadd.f32 %v1896, %v1914
  %v1916 = vpop.f32.mrf.mxu0
  %v1917 = vadd.f32 %v1898, %v1916
  %1918 = vdwg.mxu0
  %1919 = vmatpush.bf16.msra.mxu0 %v1394
  %1920 = vmatpush.bf16.msra.mxu0 %v1392
  %1921 = vmatpush.bf16.msra.mxu0 %v1390
  %1922 = vmatpush.bf16.msra.mxu0 %v1388
  %1923 = vmatpush.bf16.msra.mxu0 %v1386
  %1924 = vmatpush.bf16.msra.mxu0 %v1384
  %1925 = vmatpush.bf16.msra.mxu0 %v1382
  %1926 = vmatpush.bf16.msra.mxu0 %v1380
  %1927 = vmatmul.bf16.gmra.mxu0 %v413
  %v1928 = vpop.f32.mrf.mxu0
  %v1929 = vadd.f32 %v1910, %v1928
  %v1930 = vpop.f32.mrf.mxu0
  %v1931 = vadd.f32 %v1912, %v1930
  %1932 = vmatmul.bf16.gmra.mxu0 %v429
  %v1933 = vpop.f32.mrf.mxu0
  %v1934 = vadd.f32 %v1915, %v1933
  %v1935 = vpop.f32.mrf.mxu0
  %v1936 = vadd.f32 %v1917, %v1935
  %1937 = vdwg.mxu0
  %1938 = vmatpush.bf16.msra.mxu0 %v1410
  %1939 = vmatpush.bf16.msra.mxu0 %v1408
  %1940 = vmatpush.bf16.msra.mxu0 %v1406
  %1941 = vmatpush.bf16.msra.mxu0 %v1404
  %1942 = vmatpush.bf16.msra.mxu0 %v1402
  %1943 = vmatpush.bf16.msra.mxu0 %v1400
  %1944 = vmatpush.bf16.msra.mxu0 %v1398
  %1945 = vmatpush.bf16.msra.mxu0 %v1396
  %1946 = vmatmul.bf16.gmra.mxu0 %v414
  %v1947 = vpop.f32.mrf.mxu0
  %v1948 = vadd.f32 %v1929, %v1947
  %v1949 = vpop.f32.mrf.mxu0
  %v1950 = vadd.f32 %v1931, %v1949
  %1951 = vmatmul.bf16.gmra.mxu0 %v430
  %v1952 = vpop.f32.mrf.mxu0
  %v1953 = vadd.f32 %v1934, %v1952
  %v1954 = vpop.f32.mrf.mxu0
  %v1955 = vadd.f32 %v1936, %v1954
  %1956 = vdwg.mxu0
  %1957 = vmatpush.bf16.msra.mxu0 %v1426
  %1958 = vmatpush.bf16.msra.mxu0 %v1424
  %1959 = vmatpush.bf16.msra.mxu0 %v1422
  %1960 = vmatpush.bf16.msra.mxu0 %v1420
  %1961 = vmatpush.bf16.msra.mxu0 %v1418
  %1962 = vmatpush.bf16.msra.mxu0 %v1416
  %1963 = vmatpush.bf16.msra.mxu0 %v1414
  %1964 = vmatpush.bf16.msra.mxu0 %v1412
  %1965 = vmatmul.bf16.gmra.mxu0 %v415
  %v1966 = vpop.f32.mrf.mxu0
  %v1967 = vadd.f32 %v1948, %v1966
  %v1968 = vpop.f32.mrf.mxu0
  %v1969 = vadd.f32 %v1950, %v1968
  %1970 = vmatmul.bf16.gmra.mxu0 %v431
  %v1971 = vpop.f32.mrf.mxu0
  %v1972 = vadd.f32 %v1953, %v1971
  %v1973 = vpop.f32.mrf.mxu0
  %v1974 = vadd.f32 %v1955, %v1973
  %1975 = vdwg.mxu0
  %1976 = vmatpush.bf16.msra.mxu0 %v1442
  %1977 = vmatpush.bf16.msra.mxu0 %v1440
  %1978 = vmatpush.bf16.msra.mxu0 %v1438
  %1979 = vmatpush.bf16.msra.mxu0 %v1436
  %1980 = vmatpush.bf16.msra.mxu0 %v1434
  %1981 = vmatpush.bf16.msra.mxu0 %v1432
  %1982 = vmatpush.bf16.msra.mxu0 %v1430
  %1983 = vmatpush.bf16.msra.mxu0 %v1428
  %1984 = vmatmul.bf16.gmra.mxu0 %v416
  %v1985 = vpop.f32.mrf.mxu0
  %v1986 = vadd.f32 %v1967, %v1985
  %v1987 = vpop.f32.mrf.mxu0
  %v1988 = vadd.f32 %v1969, %v1987
  %1989 = vmatmul.bf16.gmra.mxu0 %v432
  %v1990 = vpop.f32.mrf.mxu0
  %v1991 = vadd.f32 %v1972, %v1990
  %v1992 = vpop.f32.mrf.mxu0
  %v1993 = vadd.f32 %v1974, %v1992
  %1994 = vdwg.mxu0
  %1995 = vmatpush.bf16.msra.mxu0 %v1458
  %1996 = vmatpush.bf16.msra.mxu0 %v1456
  %1997 = vmatpush.bf16.msra.mxu0 %v1454
  %1998 = vmatpush.bf16.msra.mxu0 %v1452
  %1999 = vmatpush.bf16.msra.mxu0 %v1450
  %2000 = vmatpush.bf16.msra.mxu0 %v1448
  %2001 = vmatpush.bf16.msra.mxu0 %v1446
  %2002 = vmatpush.bf16.msra.mxu0 %v1444
  %2003 = vmatmul.bf16.gmra.mxu0 %v417
  %v2004 = vpop.f32.mrf.mxu0
  %v2005 = vadd.f32 %v1986, %v2004
  %v2006 = vpop.f32.mrf.mxu0
  %v2007 = vadd.f32 %v1988, %v2006
  %2008 = vmatmul.bf16.gmra.mxu0 %v433
  %v2009 = vpop.f32.mrf.mxu0
  %v2010 = vadd.f32 %v1991, %v2009
  %v2011 = vpop.f32.mrf.mxu0
  %v2012 = vadd.f32 %v1993, %v2011
  %2013 = vdwg.mxu0
  %2014 = vmatpush.bf16.msra.mxu0 %v1474
  %2015 = vmatpush.bf16.msra.mxu0 %v1472
  %2016 = vmatpush.bf16.msra.mxu0 %v1470
  %2017 = vmatpush.bf16.msra.mxu0 %v1468
  %2018 = vmatpush.bf16.msra.mxu0 %v1466
  %2019 = vmatpush.bf16.msra.mxu0 %v1464
  %2020 = vmatpush.bf16.msra.mxu0 %v1462
  %2021 = vmatpush.bf16.msra.mxu0 %v1460
  %2022 = vmatmul.bf16.gmra.mxu0 %v418
  %v2023 = vpop.f32.mrf.mxu0
  %v2024 = vadd.f32 %v2005, %v2023
  %v2025 = vpop.f32.mrf.mxu0
  %v2026 = vadd.f32 %v2007, %v2025
  %2027 = vmatmul.bf16.gmra.mxu0 %v434
  %v2028 = vpop.f32.mrf.mxu0
  %v2029 = vadd.f32 %v2010, %v2028
  %v2030 = vpop.f32.mrf.mxu0
  %v2031 = vadd.f32 %v2012, %v2030
  %2032 = vdwg.mxu0
  %2033 = vmatpush.bf16.msra.mxu0 %v1490
  %2034 = vmatpush.bf16.msra.mxu0 %v1488
  %2035 = vmatpush.bf16.msra.mxu0 %v1486
  %2036 = vmatpush.bf16.msra.mxu0 %v1484
  %2037 = vmatpush.bf16.msra.mxu0 %v1482
  %2038 = vmatpush.bf16.msra.mxu0 %v1480
  %2039 = vmatpush.bf16.msra.mxu0 %v1478
  %2040 = vmatpush.bf16.msra.mxu0 %v1476
  %2041 = vmatmul.bf16.gmra.mxu0 %v419
  %v2042 = vpop.f32.mrf.mxu0
  %v2043 = vadd.f32 %v2024, %v2042
  %v2044 = vpop.f32.mrf.mxu0
  %v2045 = vadd.f32 %v2026, %v2044
  %2046 = vmatmul.bf16.gmra.mxu0 %v435
  %v2047 = vpop.f32.mrf.mxu0
  %v2048 = vadd.f32 %v2029, %v2047
  %v2049 = vpop.f32.mrf.mxu0
  %v2050 = vadd.f32 %v2031, %v2049
  %2051 = vdwg.mxu0
  %2052 = vmatpush.bf16.msra.mxu0 %v1251
  %2053 = vmatpush.bf16.msra.mxu0 %v1249
  %2054 = vmatpush.bf16.msra.mxu0 %v1247
  %2055 = vmatpush.bf16.msra.mxu0 %v1245
  %2056 = vmatpush.bf16.msra.mxu0 %v1243
  %2057 = vmatpush.bf16.msra.mxu0 %v1241
  %2058 = vmatpush.bf16.msra.mxu0 %v1239
  %2059 = vmatpush.bf16.msra.mxu0 %v1237
  %2060 = vmatmul.bf16.gmra.mxu0 %v404
  %v2061 = vpop.f32.mrf.mxu0
  %v2062 = vadd.f32 %v305, %v2061
  %v2063 = vpop.f32.mrf.mxu0
  %v2064 = vadd.f32 %v305, %v2063
  %2065 = vmatmul.bf16.gmra.mxu0 %v420
  %v2066 = vpop.f32.mrf.mxu0
  %v2067 = vadd.f32 %v305, %v2066
  %v2068 = vpop.f32.mrf.mxu0
  %v2069 = vadd.f32 %v305, %v2068
  %2070 = vdwg.mxu0
  %2071 = vmatpush.bf16.msra.mxu0 %v1267
  %2072 = vmatpush.bf16.msra.mxu0 %v1265
  %2073 = vmatpush.bf16.msra.mxu0 %v1263
  %2074 = vmatpush.bf16.msra.mxu0 %v1261
  %2075 = vmatpush.bf16.msra.mxu0 %v1259
  %2076 = vmatpush.bf16.msra.mxu0 %v1257
  %2077 = vmatpush.bf16.msra.mxu0 %v1255
  %2078 = vmatpush.bf16.msra.mxu0 %v1253
  %2079 = vmatmul.bf16.gmra.mxu0 %v405
  %v2080 = vpop.f32.mrf.mxu0
  %v2081 = vadd.f32 %v2062, %v2080
  %v2082 = vpop.f32.mrf.mxu0
  %v2083 = vadd.f32 %v2064, %v2082
  %2084 = vmatmul.bf16.gmra.mxu0 %v421
  %v2085 = vpop.f32.mrf.mxu0
  %v2086 = vadd.f32 %v2067, %v2085
  %v2087 = vpop.f32.mrf.mxu0
  %v2088 = vadd.f32 %v2069, %v2087
  %2089 = vdwg.mxu0
  %2090 = vmatpush.bf16.msra.mxu0 %v1283
  %2091 = vmatpush.bf16.msra.mxu0 %v1281
  %2092 = vmatpush.bf16.msra.mxu0 %v1279
  %2093 = vmatpush.bf16.msra.mxu0 %v1277
  %2094 = vmatpush.bf16.msra.mxu0 %v1275
  %2095 = vmatpush.bf16.msra.mxu0 %v1273
  %2096 = vmatpush.bf16.msra.mxu0 %v1271
  %2097 = vmatpush.bf16.msra.mxu0 %v1269
  %2098 = vmatmul.bf16.gmra.mxu0 %v406
  %v2099 = vpop.f32.mrf.mxu0
  %v2100 = vadd.f32 %v2081, %v2099
  %v2101 = vpop.f32.mrf.mxu0
  %v2102 = vadd.f32 %v2083, %v2101
  %2103 = vmatmul.bf16.gmra.mxu0 %v422
  %v2104 = vpop.f32.mrf.mxu0
  %v2105 = vadd.f32 %v2086, %v2104
  %v2106 = vpop.f32.mrf.mxu0
  %v2107 = vadd.f32 %v2088, %v2106
  %2108 = vdwg.mxu0
  %2109 = vmatpush.bf16.msra.mxu0 %v1299
  %2110 = vmatpush.bf16.msra.mxu0 %v1297
  %2111 = vmatpush.bf16.msra.mxu0 %v1295
  %2112 = vmatpush.bf16.msra.mxu0 %v1293
  %2113 = vmatpush.bf16.msra.mxu0 %v1291
  %2114 = vmatpush.bf16.msra.mxu0 %v1289
  %2115 = vmatpush.bf16.msra.mxu0 %v1287
  %2116 = vmatpush.bf16.msra.mxu0 %v1285
  %2117 = vmatmul.bf16.gmra.mxu0 %v407
  %v2118 = vpop.f32.mrf.mxu0
  %v2119 = vadd.f32 %v2100, %v2118
  %v2120 = vpop.f32.mrf.mxu0
  %v2121 = vadd.f32 %v2102, %v2120
  %2122 = vmatmul.bf16.gmra.mxu0 %v423
  %v2123 = vpop.f32.mrf.mxu0
  %v2124 = vadd.f32 %v2105, %v2123
  %v2125 = vpop.f32.mrf.mxu0
  %v2126 = vadd.f32 %v2107, %v2125
  %2127 = vdwg.mxu0
  %2128 = vmatpush.bf16.msra.mxu0 %v1315
  %2129 = vmatpush.bf16.msra.mxu0 %v1313
  %2130 = vmatpush.bf16.msra.mxu0 %v1311
  %2131 = vmatpush.bf16.msra.mxu0 %v1309
  %2132 = vmatpush.bf16.msra.mxu0 %v1307
  %2133 = vmatpush.bf16.msra.mxu0 %v1305
  %2134 = vmatpush.bf16.msra.mxu0 %v1303
  %2135 = vmatpush.bf16.msra.mxu0 %v1301
  %2136 = vmatmul.bf16.gmra.mxu0 %v408
  %v2137 = vpop.f32.mrf.mxu0
  %v2138 = vadd.f32 %v2119, %v2137
  %v2139 = vpop.f32.mrf.mxu0
  %v2140 = vadd.f32 %v2121, %v2139
  %2141 = vmatmul.bf16.gmra.mxu0 %v424
  %v2142 = vpop.f32.mrf.mxu0
  %v2143 = vadd.f32 %v2124, %v2142
  %v2144 = vpop.f32.mrf.mxu0
  %v2145 = vadd.f32 %v2126, %v2144
  %2146 = vdwg.mxu0
  %2147 = vmatpush.bf16.msra.mxu0 %v1331
  %2148 = vmatpush.bf16.msra.mxu0 %v1329
  %2149 = vmatpush.bf16.msra.mxu0 %v1327
  %2150 = vmatpush.bf16.msra.mxu0 %v1325
  %2151 = vmatpush.bf16.msra.mxu0 %v1323
  %2152 = vmatpush.bf16.msra.mxu0 %v1321
  %2153 = vmatpush.bf16.msra.mxu0 %v1319
  %2154 = vmatpush.bf16.msra.mxu0 %v1317
  %2155 = vmatmul.bf16.gmra.mxu0 %v409
  %v2156 = vpop.f32.mrf.mxu0
  %v2157 = vadd.f32 %v2138, %v2156
  %v2158 = vpop.f32.mrf.mxu0
  %v2159 = vadd.f32 %v2140, %v2158
  %2160 = vmatmul.bf16.gmra.mxu0 %v425
  %v2161 = vpop.f32.mrf.mxu0
  %v2162 = vadd.f32 %v2143, %v2161
  %v2163 = vpop.f32.mrf.mxu0
  %v2164 = vadd.f32 %v2145, %v2163
  %2165 = vdwg.mxu0
  %2166 = vmatpush.bf16.msra.mxu0 %v1347
  %2167 = vmatpush.bf16.msra.mxu0 %v1345
  %2168 = vmatpush.bf16.msra.mxu0 %v1343
  %2169 = vmatpush.bf16.msra.mxu0 %v1341
  %2170 = vmatpush.bf16.msra.mxu0 %v1339
  %2171 = vmatpush.bf16.msra.mxu0 %v1337
  %2172 = vmatpush.bf16.msra.mxu0 %v1335
  %2173 = vmatpush.bf16.msra.mxu0 %v1333
  %2174 = vmatmul.bf16.gmra.mxu0 %v410
  %v2175 = vpop.f32.mrf.mxu0
  %v2176 = vadd.f32 %v2157, %v2175
  %v2177 = vpop.f32.mrf.mxu0
  %v2178 = vadd.f32 %v2159, %v2177
  %2179 = vmatmul.bf16.gmra.mxu0 %v426
  %v2180 = vpop.f32.mrf.mxu0
  %v2181 = vadd.f32 %v2162, %v2180
  %v2182 = vpop.f32.mrf.mxu0
  %v2183 = vadd.f32 %v2164, %v2182
  %2184 = vdwg.mxu0
  %2185 = vmatpush.bf16.msra.mxu0 %v1363
  %2186 = vmatpush.bf16.msra.mxu0 %v1361
  %2187 = vmatpush.bf16.msra.mxu0 %v1359
  %2188 = vmatpush.bf16.msra.mxu0 %v1357
  %2189 = vmatpush.bf16.msra.mxu0 %v1355
  %2190 = vmatpush.bf16.msra.mxu0 %v1353
  %2191 = vmatpush.bf16.msra.mxu0 %v1351
  %2192 = vmatpush.bf16.msra.mxu0 %v1349
  %2193 = vmatmul.bf16.gmra.mxu0 %v411
  %v2194 = vpop.f32.mrf.mxu0
  %v2195 = vadd.f32 %v2176, %v2194
  %v2196 = vpop.f32.mrf.mxu0
  %v2197 = vadd.f32 %v2178, %v2196
  %2198 = vmatmul.bf16.gmra.mxu0 %v427
  %v2199 = vpop.f32.mrf.mxu0
  %v2200 = vadd.f32 %v2181, %v2199
  %v2201 = vpop.f32.mrf.mxu0
  %v2202 = vadd.f32 %v2183, %v2201
  %2203 = vdwg.mxu0
  %2204 = vmatpush.bf16.msra.mxu0 %v1379
  %2205 = vmatpush.bf16.msra.mxu0 %v1377
  %2206 = vmatpush.bf16.msra.mxu0 %v1375
  %2207 = vmatpush.bf16.msra.mxu0 %v1373
  %2208 = vmatpush.bf16.msra.mxu0 %v1371
  %2209 = vmatpush.bf16.msra.mxu0 %v1369
  %2210 = vmatpush.bf16.msra.mxu0 %v1367
  %2211 = vmatpush.bf16.msra.mxu0 %v1365
  %2212 = vmatmul.bf16.gmra.mxu0 %v412
  %v2213 = vpop.f32.mrf.mxu0
  %v2214 = vadd.f32 %v2195, %v2213
  %v2215 = vpop.f32.mrf.mxu0
  %v2216 = vadd.f32 %v2197, %v2215
  %2217 = vmatmul.bf16.gmra.mxu0 %v428
  %v2218 = vpop.f32.mrf.mxu0
  %v2219 = vadd.f32 %v2200, %v2218
  %v2220 = vpop.f32.mrf.mxu0
  %v2221 = vadd.f32 %v2202, %v2220
  %2222 = vdwg.mxu0
  %2223 = vmatpush.bf16.msra.mxu0 %v1395
  %2224 = vmatpush.bf16.msra.mxu0 %v1393
  %2225 = vmatpush.bf16.msra.mxu0 %v1391
  %2226 = vmatpush.bf16.msra.mxu0 %v1389
  %2227 = vmatpush.bf16.msra.mxu0 %v1387
  %2228 = vmatpush.bf16.msra.mxu0 %v1385
  %2229 = vmatpush.bf16.msra.mxu0 %v1383
  %2230 = vmatpush.bf16.msra.mxu0 %v1381
  %2231 = vmatmul.bf16.gmra.mxu0 %v413
  %v2232 = vpop.f32.mrf.mxu0
  %v2233 = vadd.f32 %v2214, %v2232
  %v2234 = vpop.f32.mrf.mxu0
  %v2235 = vadd.f32 %v2216, %v2234
  %2236 = vmatmul.bf16.gmra.mxu0 %v429
  %v2237 = vpop.f32.mrf.mxu0
  %v2238 = vadd.f32 %v2219, %v2237
  %v2239 = vpop.f32.mrf.mxu0
  %v2240 = vadd.f32 %v2221, %v2239
  %2241 = vdwg.mxu0
  %2242 = vmatpush.bf16.msra.mxu0 %v1411
  %2243 = vmatpush.bf16.msra.mxu0 %v1409
  %2244 = vmatpush.bf16.msra.mxu0 %v1407
  %2245 = vmatpush.bf16.msra.mxu0 %v1405
  %2246 = vmatpush.bf16.msra.mxu0 %v1403
  %2247 = vmatpush.bf16.msra.mxu0 %v1401
  %2248 = vmatpush.bf16.msra.mxu0 %v1399
  %2249 = vmatpush.bf16.msra.mxu0 %v1397
  %2250 = vmatmul.bf16.gmra.mxu0 %v414
  %v2251 = vpop.f32.mrf.mxu0
  %v2252 = vadd.f32 %v2233, %v2251
  %v2253 = vpop.f32.mrf.mxu0
  %v2254 = vadd.f32 %v2235, %v2253
  %2255 = vmatmul.bf16.gmra.mxu0 %v430
  %v2256 = vpop.f32.mrf.mxu0
  %v2257 = vadd.f32 %v2238, %v2256
  %v2258 = vpop.f32.mrf.mxu0
  %v2259 = vadd.f32 %v2240, %v2258
  %2260 = vdwg.mxu0
  %2261 = vmatpush.bf16.msra.mxu0 %v1427
  %2262 = vmatpush.bf16.msra.mxu0 %v1425
  %2263 = vmatpush.bf16.msra.mxu0 %v1423
  %2264 = vmatpush.bf16.msra.mxu0 %v1421
  %2265 = vmatpush.bf16.msra.mxu0 %v1419
  %2266 = vmatpush.bf16.msra.mxu0 %v1417
  %2267 = vmatpush.bf16.msra.mxu0 %v1415
  %2268 = vmatpush.bf16.msra.mxu0 %v1413
  %2269 = vmatmul.bf16.gmra.mxu0 %v415
  %v2270 = vpop.f32.mrf.mxu0
  %v2271 = vadd.f32 %v2252, %v2270
  %v2272 = vpop.f32.mrf.mxu0
  %v2273 = vadd.f32 %v2254, %v2272
  %2274 = vmatmul.bf16.gmra.mxu0 %v431
  %v2275 = vpop.f32.mrf.mxu0
  %v2276 = vadd.f32 %v2257, %v2275
  %v2277 = vpop.f32.mrf.mxu0
  %v2278 = vadd.f32 %v2259, %v2277
  %2279 = vdwg.mxu0
  %2280 = vmatpush.bf16.msra.mxu0 %v1443
  %2281 = vmatpush.bf16.msra.mxu0 %v1441
  %2282 = vmatpush.bf16.msra.mxu0 %v1439
  %2283 = vmatpush.bf16.msra.mxu0 %v1437
  %2284 = vmatpush.bf16.msra.mxu0 %v1435
  %2285 = vmatpush.bf16.msra.mxu0 %v1433
  %2286 = vmatpush.bf16.msra.mxu0 %v1431
  %2287 = vmatpush.bf16.msra.mxu0 %v1429
  %2288 = vmatmul.bf16.gmra.mxu0 %v416
  %v2289 = vpop.f32.mrf.mxu0
  %v2290 = vadd.f32 %v2271, %v2289
  %v2291 = vpop.f32.mrf.mxu0
  %v2292 = vadd.f32 %v2273, %v2291
  %2293 = vmatmul.bf16.gmra.mxu0 %v432
  %v2294 = vpop.f32.mrf.mxu0
  %v2295 = vadd.f32 %v2276, %v2294
  %v2296 = vpop.f32.mrf.mxu0
  %v2297 = vadd.f32 %v2278, %v2296
  %2298 = vdwg.mxu0
  %2299 = vmatpush.bf16.msra.mxu0 %v1459
  %2300 = vmatpush.bf16.msra.mxu0 %v1457
  %2301 = vmatpush.bf16.msra.mxu0 %v1455
  %2302 = vmatpush.bf16.msra.mxu0 %v1453
  %2303 = vmatpush.bf16.msra.mxu0 %v1451
  %2304 = vmatpush.bf16.msra.mxu0 %v1449
  %2305 = vmatpush.bf16.msra.mxu0 %v1447
  %2306 = vmatpush.bf16.msra.mxu0 %v1445
  %2307 = vmatmul.bf16.gmra.mxu0 %v417
  %v2308 = vpop.f32.mrf.mxu0
  %v2309 = vadd.f32 %v2290, %v2308
  %v2310 = vpop.f32.mrf.mxu0
  %v2311 = vadd.f32 %v2292, %v2310
  %2312 = vmatmul.bf16.gmra.mxu0 %v433
  %v2313 = vpop.f32.mrf.mxu0
  %v2314 = vadd.f32 %v2295, %v2313
  %v2315 = vpop.f32.mrf.mxu0
  %v2316 = vadd.f32 %v2297, %v2315
  %2317 = vdwg.mxu0
  %2318 = vmatpush.bf16.msra.mxu0 %v1475
  %2319 = vmatpush.bf16.msra.mxu0 %v1473
  %2320 = vmatpush.bf16.msra.mxu0 %v1471
  %2321 = vmatpush.bf16.msra.mxu0 %v1469
  %2322 = vmatpush.bf16.msra.mxu0 %v1467
  %2323 = vmatpush.bf16.msra.mxu0 %v1465
  %2324 = vmatpush.bf16.msra.mxu0 %v1463
  %2325 = vmatpush.bf16.msra.mxu0 %v1461
  %2326 = vmatmul.bf16.gmra.mxu0 %v418
  %v2327 = vpop.f32.mrf.mxu0
  %v2328 = vadd.f32 %v2309, %v2327
  %v2329 = vpop.f32.mrf.mxu0
  %v2330 = vadd.f32 %v2311, %v2329
  %2331 = vmatmul.bf16.gmra.mxu0 %v434
  %v2332 = vpop.f32.mrf.mxu0
  %v2333 = vadd.f32 %v2314, %v2332
  %v2334 = vpop.f32.mrf.mxu0
  %v2335 = vadd.f32 %v2316, %v2334
  %2336 = vdwg.mxu0
  %2337 = vmatpush.bf16.msra.mxu0 %v1491
  %2338 = vmatpush.bf16.msra.mxu0 %v1489
  %2339 = vmatpush.bf16.msra.mxu0 %v1487
  %2340 = vmatpush.bf16.msra.mxu0 %v1485
  %2341 = vmatpush.bf16.msra.mxu0 %v1483
  %2342 = vmatpush.bf16.msra.mxu0 %v1481
  %2343 = vmatpush.bf16.msra.mxu0 %v1479
  %2344 = vmatpush.bf16.msra.mxu0 %v1477
  %2345 = vmatmul.bf16.gmra.mxu0 %v419
  %v2346 = vpop.f32.mrf.mxu0
  %v2347 = vadd.f32 %v2328, %v2346
  %v2348 = vpop.f32.mrf.mxu0
  %v2349 = vadd.f32 %v2330, %v2348
  %2350 = vmatmul.bf16.gmra.mxu0 %v435
  %v2351 = vpop.f32.mrf.mxu0
  %v2352 = vadd.f32 %v2333, %v2351
  %v2353 = vpop.f32.mrf.mxu0
  %v2354 = vadd.f32 %v2335, %v2353
  %2355 = vdwg.mxu0
  %v2356 = vmax.f32 %v2043, 0.0
  %v2357 = vmax.f32 %v2347, 0.0
  %v2358 = vmax.f32 %v2045, 0.0
  %v2359 = vmax.f32 %v2349, 0.0
  %v2360 = vmax.f32 %v2048, 0.0
  %v2361 = vmax.f32 %v2352, 0.0
  %v2362 = vmax.f32 %v2050, 0.0
  %v2363 = vmax.f32 %v2354, 0.0
  %v2364 = vpack.c.bf16 %v2357, %v2356
  %v2365 = vpack.c.bf16 %v2359, %v2358
  %v2366 = vpack.c.bf16 %v2361, %v2360
  %v2367 = vpack.c.bf16 %v2363, %v2362
  %2368 = vst [vmem:[%s3] sm:$0xff] %v2364
  %2369 = vst [vmem:[%s3 + $0x8] sm:$0xff] %v2365
  %2370 = vst [vmem:[%s3 + $0x10] sm:$0xff] %v2366
  %2371 = vst [vmem:[%s3 + $0x18] sm:$0xff] %v2367
  // Predicated region
  $region14: #{encoder_forward.6} parent=0 // pred_check
    _
  $region15: #{encoder_forward.6} parent=0 // pred_check_branch
    %2373 = sbr.rel (0) target = $region17
  $region16: #{encoder_forward.6} parent=0 // pred_region
    _
  $region17: #{encoder_forward.6} parent=0 // pred_fallthru
    _
  // Predicated region
  $region18: #{encoder_forward.6} parent=0 // pred_check
    _
  $region19: #{encoder_forward.6} parent=0 // pred_check_branch
    %2375 = sbr.rel (0) target = $region21
  $region20: #{encoder_forward.6} parent=0 // pred_region
    _
  $region21: #{encoder_forward.6} parent=0 // pred_fallthru
    _

// kernel: encoder_forward.7
$region0: #{encoder_forward.7}
  #allocation0 [shape = 'u32[]', space=smem, size = 0x4, offset = 0x4, fixed_abs, tag = 'smem constant byte address 0x4 - core index']
  #allocation1 [shape = 'u32[72,128]{1,0:T(1,128)}', space=vmem, size = 0x9000, scoped, tag = 'internal scratch']
  %s0 = inlined_call_operand.vmem [shape: bf16[2,4096], index: 0, kind: input, shape index: {}]
  %s1 = inlined_call_operand.vmem [shape: bf16[4096,256], index: 1, kind: input, shape index: {}]
  %s2 = inlined_call_operand.vmem [shape: f32[1,256], index: 2, kind: input, shape index: {}]
  %s3 = inlined_call_operand.hbm [shape: f32[2,256], index: 3, kind: output, shape index: {}]
  %s4 = sld [smem:[#allocation0]]
  $region22: #{encoder_forward.7} parent=0
    _
  %s6 = ssub.s32 1, %s4
  %s7 = scalar_select 0, %s6, %s4
  $region1: #{encoder_forward.7} parent=0
    #allocation2 [shape = 'u8[2048]{0}', space=vmem, size = 0x800, scoped, tag = 'output window, operand 0, single buffered']
    #allocation3 [shape = 's32[1]{0}', space=sflag, size = 0x4, scoped, tag = 'scoped memory for encoder_forward.7']
    %8 = vsyncpa [#allocation3], 0
    // Predicated region
    $region2: #{encoder_forward.7} parent=1 // pred_check
      _
    $region3: #{encoder_forward.7} parent=1 // pred_check_branch
      %10 = sbr.rel (0) target = $region5
    $region4: #{encoder_forward.7} parent=1 // pred_region
      _
    $region5: #{encoder_forward.7} parent=1 // pred_fallthru
      _
    // Predicated region
    $region6: #{encoder_forward.7} parent=1 // pred_check
      _
    $region7: #{encoder_forward.7} parent=1 // pred_check_branch
      %12 = sbr.rel (0) target = $region9
    $region8: #{encoder_forward.7} parent=1 // pred_region
      _
    $region9: #{encoder_forward.7} parent=1 // pred_fallthru
      _
    // Predicated region
    $region10: #{encoder_forward.7} parent=1 // pred_check
      _
    $region11: #{encoder_forward.7} parent=1 // pred_check_branch
      %14 = sbr.rel (0) target = $region13
    $region12: #{encoder_forward.7} parent=1 // pred_region
      _
    $region13: #{encoder_forward.7} parent=1 // pred_fallthru
      _
    %v15 = vld [vmem:[%s0] sm:$0xff]
    %v16 = vld [vmem:[%s0 + $0x8] sm:$0xff]
    %v17 = vld [vmem:[%s0 + $0x10] sm:$0xff]
    %v18 = vld [vmem:[%s0 + $0x18] sm:$0xff]
    %v19 = vld [vmem:[%s1] sm:$0xff]
    %v20 = vld [vmem:[%s1 + $0x8] sm:$0xff]
    %v21 = vld [vmem:[%s1 + $0x10] sm:$0xff]
    %v22 = vld [vmem:[%s1 + $0x18] sm:$0xff]
    %v23 = vld [vmem:[%s1 + $0x20] sm:$0xff]
    %v24 = vld [vmem:[%s1 + $0x28] sm:$0xff]
    %v25 = vld [vmem:[%s1 + $0x30] sm:$0xff]
    %v26 = vld [vmem:[%s1 + $0x38] sm:$0xff]
    %v27 = vld [vmem:[%s1 + $0x40] sm:$0xff]
    %v28 = vld [vmem:[%s1 + $0x48] sm:$0xff]
    %v29 = vld [vmem:[%s1 + $0x50] sm:$0xff]
    %v30 = vld [vmem:[%s1 + $0x58] sm:$0xff]
    %v31 = vld [vmem:[%s1 + $0x60] sm:$0xff]
    %v32 = vld [vmem:[%s1 + $0x68] sm:$0xff]
    %v33 = vld [vmem:[%s1 + $0x70] sm:$0xff]
    %v34 = vld [vmem:[%s1 + $0x78] sm:$0xff]
    %v35 = vld [vmem:[%s1 + $0x80] sm:$0xff]
    %v36 = vld [vmem:[%s1 + $0x88] sm:$0xff]
    %v37 = vld [vmem:[%s1 + $0x90] sm:$0xff]
    %v38 = vld [vmem:[%s1 + $0x98] sm:$0xff]
    %v39 = vld [vmem:[%s1 + $0xa0] sm:$0xff]
    %v40 = vld [vmem:[%s1 + $0xa8] sm:$0xff]
    %v41 = vld [vmem:[%s1 + $0xb0] sm:$0xff]
    %v42 = vld [vmem:[%s1 + $0xb8] sm:$0xff]
    %v43 = vld [vmem:[%s1 + $0xc0] sm:$0xff]
    %v44 = vld [vmem:[%s1 + $0xc8] sm:$0xff]
    %v45 = vld [vmem:[%s1 + $0xd0] sm:$0xff]
    %v46 = vld [vmem:[%s1 + $0xd8] sm:$0xff]
    %v47 = vld [vmem:[%s1 + $0xe0] sm:$0xff]
    %v48 = vld [vmem:[%s1 + $0xe8] sm:$0xff]
    %v49 = vld [vmem:[%s1 + $0xf0] sm:$0xff]
    %v50 = vld [vmem:[%s1 + $0xf8] sm:$0xff]
    %v51 = vld [vmem:[%s1 + $0x100] sm:$0xff]
    %v52 = vld [vmem:[%s1 + $0x108] sm:$0xff]
    %v53 = vld [vmem:[%s1 + $0x110] sm:$0xff]
    %v54 = vld [vmem:[%s1 + $0x118] sm:$0xff]
    %v55 = vld [vmem:[%s1 + $0x120] sm:$0xff]
    %v56 = vld [vmem:[%s1 + $0x128] sm:$0xff]
    %v57 = vld [vmem:[%s1 + $0x130] sm:$0xff]
    %v58 = vld [vmem:[%s1 + $0x138] sm:$0xff]
    %v59 = vld [vmem:[%s1 + $0x140] sm:$0xff]
    %v60 = vld [vmem:[%s1 + $0x148] sm:$0xff]
    %v61 = vld [vmem:[%s1 + $0x150] sm:$0xff]
    %v62 = vld [vmem:[%s1 + $0x158] sm:$0xff]
    %v63 = vld [vmem:[%s1 + $0x160] sm:$0xff]
    %v64 = vld [vmem:[%s1 + $0x168] sm:$0xff]
    %v65 = vld [vmem:[%s1 + $0x170] sm:$0xff]
    %v66 = vld [vmem:[%s1 + $0x178] sm:$0xff]
    %v67 = vld [vmem:[%s1 + $0x180] sm:$0xff]
    %v68 = vld [vmem:[%s1 + $0x188] sm:$0xff]
    %v69 = vld [vmem:[%s1 + $0x190] sm:$0xff]
    %v70 = vld [vmem:[%s1 + $0x198] sm:$0xff]
    %v71 = vld [vmem:[%s1 + $0x1a0] sm:$0xff]
    %v72 = vld [vmem:[%s1 + $0x1a8] sm:$0xff]
    %v73 = vld [vmem:[%s1 + $0x1b0] sm:$0xff]
    %v74 = vld [vmem:[%s1 + $0x1b8] sm:$0xff]
    %v75 = vld [vmem:[%s1 + $0x1c0] sm:$0xff]
    %v76 = vld [vmem:[%s1 + $0x1c8] sm:$0xff]
    %v77 = vld [vmem:[%s1 + $0x1d0] sm:$0xff]
    %v78 = vld [vmem:[%s1 + $0x1d8] sm:$0xff]
    %v79 = vld [vmem:[%s1 + $0x1e0] sm:$0xff]
    %v80 = vld [vmem:[%s1 + $0x1e8] sm:$0xff]
    %v81 = vld [vmem:[%s1 + $0x1f0] sm:$0xff]
    %v82 = vld [vmem:[%s1 + $0x1f8] sm:$0xff]
    %v83 = vld [vmem:[%s1 + $0x200] sm:$0xff]
    %v84 = vld [vmem:[%s1 + $0x208] sm:$0xff]
    %v85 = vld [vmem:[%s1 + $0x210] sm:$0xff]
    %v86 = vld [vmem:[%s1 + $0x218] sm:$0xff]
    %v87 = vld [vmem:[%s1 + $0x220] sm:$0xff]
    %v88 = vld [vmem:[%s1 + $0x228] sm:$0xff]
    %v89 = vld [vmem:[%s1 + $0x230] sm:$0xff]
    %v90 = vld [vmem:[%s1 + $0x238] sm:$0xff]
    %v91 = vld [vmem:[%s1 + $0x240] sm:$0xff]
    %v92 = vld [vmem:[%s1 + $0x248] sm:$0xff]
    %v93 = vld [vmem:[%s1 + $0x250] sm:$0xff]
    %v94 = vld [vmem:[%s1 + $0x258] sm:$0xff]
    %v95 = vld [vmem:[%s1 + $0x260] sm:$0xff]
    %v96 = vld [vmem:[%s1 + $0x268] sm:$0xff]
    %v97 = vld [vmem:[%s1 + $0x270] sm:$0xff]
    %v98 = vld [vmem:[%s1 + $0x278] sm:$0xff]
    %v99 = vld [vmem:[%s1 + $0x280] sm:$0xff]
    %v100 = vld [vmem:[%s1 + $0x288] sm:$0xff]
    %v101 = vld [vmem:[%s1 + $0x290] sm:$0xff]
    %v102 = vld [vmem:[%s1 + $0x298] sm:$0xff]
    %v103 = vld [vmem:[%s1 + $0x2a0] sm:$0xff]
    %v104 = vld [vmem:[%s1 + $0x2a8] sm:$0xff]
    %v105 = vld [vmem:[%s1 + $0x2b0] sm:$0xff]
    %v106 = vld [vmem:[%s1 + $0x2b8] sm:$0xff]
    %v107 = vld [vmem:[%s1 + $0x2c0] sm:$0xff]
    %v108 = vld [vmem:[%s1 + $0x2c8] sm:$0xff]
    %v109 = vld [vmem:[%s1 + $0x2d0] sm:$0xff]
    %v110 = vld [vmem:[%s1 + $0x2d8] sm:$0xff]
    %v111 = vld [vmem:[%s1 + $0x2e0] sm:$0xff]
    %v112 = vld [vmem:[%s1 + $0x2e8] sm:$0xff]
    %v113 = vld [vmem:[%s1 + $0x2f0] sm:$0xff]
    %v114 = vld [vmem:[%s1 + $0x2f8] sm:$0xff]
    %v115 = vld [vmem:[%s1 + $0x300] sm:$0xff]
    %v116 = vld [vmem:[%s1 + $0x308] sm:$0xff]
    %v117 = vld [vmem:[%s1 + $0x310] sm:$0xff]
    %v118 = vld [vmem:[%s1 + $0x318] sm:$0xff]
    %v119 = vld [vmem:[%s1 + $0x320] sm:$0xff]
    %v120 = vld [vmem:[%s1 + $0x328] sm:$0xff]
    %v121 = vld [vmem:[%s1 + $0x330] sm:$0xff]
    %v122 = vld [vmem:[%s1 + $0x338] sm:$0xff]
    %v123 = vld [vmem:[%s1 + $0x340] sm:$0xff]
    %v124 = vld [vmem:[%s1 + $0x348] sm:$0xff]
    %v125 = vld [vmem:[%s1 + $0x350] sm:$0xff]
    %v126 = vld [vmem:[%s1 + $0x358] sm:$0xff]
    %v127 = vld [vmem:[%s1 + $0x360] sm:$0xff]
    %v128 = vld [vmem:[%s1 + $0x368] sm:$0xff]
    %v129 = vld [vmem:[%s1 + $0x370] sm:$0xff]
    %v130 = vld [vmem:[%s1 + $0x378] sm:$0xff]
    %v131 = vld [vmem:[%s1 + $0x380] sm:$0xff]
    %v132 = vld [vmem:[%s1 + $0x388] sm:$0xff]
    %v133 = vld [vmem:[%s1 + $0x390] sm:$0xff]
    %v134 = vld [vmem:[%s1 + $0x398] sm:$0xff]
    %v135 = vld [vmem:[%s1 + $0x3a0] sm:$0xff]
    %v136 = vld [vmem:[%s1 + $0x3a8] sm:$0xff]
    %v137 = vld [vmem:[%s1 + $0x3b0] sm:$0xff]
    %v138 = vld [vmem:[%s1 + $0x3b8] sm:$0xff]
    %v139 = vld [vmem:[%s1 + $0x3c0] sm:$0xff]
    %v140 = vld [vmem:[%s1 + $0x3c8] sm:$0xff]
    %v141 = vld [vmem:[%s1 + $0x3d0] sm:$0xff]
    %v142 = vld [vmem:[%s1 + $0x3d8] sm:$0xff]
    %v143 = vld [vmem:[%s1 + $0x3e0] sm:$0xff]
    %v144 = vld [vmem:[%s1 + $0x3e8] sm:$0xff]
    %v145 = vld [vmem:[%s1 + $0x3f0] sm:$0xff]
    %v146 = vld [vmem:[%s1 + $0x3f8] sm:$0xff]
    %v147 = vld [vmem:[%s1 + $0x400] sm:$0xff]
    %v148 = vld [vmem:[%s1 + $0x408] sm:$0xff]
    %v149 = vld [vmem:[%s1 + $0x410] sm:$0xff]
    %v150 = vld [vmem:[%s1 + $0x418] sm:$0xff]
    %v151 = vld [vmem:[%s1 + $0x420] sm:$0xff]
    %v152 = vld [vmem:[%s1 + $0x428] sm:$0xff]
    %v153 = vld [vmem:[%s1 + $0x430] sm:$0xff]
    %v154 = vld [vmem:[%s1 + $0x438] sm:$0xff]
    %v155 = vld [vmem:[%s1 + $0x440] sm:$0xff]
    %v156 = vld [vmem:[%s1 + $0x448] sm:$0xff]
    %v157 = vld [vmem:[%s1 + $0x450] sm:$0xff]
    %v158 = vld [vmem:[%s1 + $0x458] sm:$0xff]
    %v159 = vld [vmem:[%s1 + $0x460] sm:$0xff]
    %v160 = vld [vmem:[%s1 + $0x468] sm:$0xff]
    %v161 = vld [vmem:[%s1 + $0x470] sm:$0xff]
    %v162 = vld [vmem:[%s1 + $0x478] sm:$0xff]
    %v163 = vld [vmem:[%s1 + $0x480] sm:$0xff]
    %v164 = vld [vmem:[%s1 + $0x488] sm:$0xff]
    %v165 = vld [vmem:[%s1 + $0x490] sm:$0xff]
    %v166 = vld [vmem:[%s1 + $0x498] sm:$0xff]
    %v167 = vld [vmem:[%s1 + $0x4a0] sm:$0xff]
    %v168 = vld [vmem:[%s1 + $0x4a8] sm:$0xff]
    %v169 = vld [vmem:[%s1 + $0x4b0] sm:$0xff]
    %v170 = vld [vmem:[%s1 + $0x4b8] sm:$0xff]
    %v171 = vld [vmem:[%s1 + $0x4c0] sm:$0xff]
    %v172 = vld [vmem:[%s1 + $0x4c8] sm:$0xff]
    %v173 = vld [vmem:[%s1 + $0x4d0] sm:$0xff]
    %v174 = vld [vmem:[%s1 + $0x4d8] sm:$0xff]
    %v175 = vld [vmem:[%s1 + $0x4e0] sm:$0xff]
    %v176 = vld [vmem:[%s1 + $0x4e8] sm:$0xff]
    %v177 = vld [vmem:[%s1 + $0x4f0] sm:$0xff]
    %v178 = vld [vmem:[%s1 + $0x4f8] sm:$0xff]
    %v179 = vld [vmem:[%s1 + $0x500] sm:$0xff]
    %v180 = vld [vmem:[%s1 + $0x508] sm:$0xff]
    %v181 = vld [vmem:[%s1 + $0x510] sm:$0xff]
    %v182 = vld [vmem:[%s1 + $0x518] sm:$0xff]
    %v183 = vld [vmem:[%s1 + $0x520] sm:$0xff]
    %v184 = vld [vmem:[%s1 + $0x528] sm:$0xff]
    %v185 = vld [vmem:[%s1 + $0x530] sm:$0xff]
    %v186 = vld [vmem:[%s1 + $0x538] sm:$0xff]
    %v187 = vld [vmem:[%s1 + $0x540] sm:$0xff]
    %v188 = vld [vmem:[%s1 + $0x548] sm:$0xff]
    %v189 = vld [vmem:[%s1 + $0x550] sm:$0xff]
    %v190 = vld [vmem:[%s1 + $0x558] sm:$0xff]
    %v191 = vld [vmem:[%s1 + $0x560] sm:$0xff]
    %v192 = vld [vmem:[%s1 + $0x568] sm:$0xff]
    %v193 = vld [vmem:[%s1 + $0x570] sm:$0xff]
    %v194 = vld [vmem:[%s1 + $0x578] sm:$0xff]
    %v195 = vld [vmem:[%s1 + $0x580] sm:$0xff]
    %v196 = vld [vmem:[%s1 + $0x588] sm:$0xff]
    %v197 = vld [vmem:[%s1 + $0x590] sm:$0xff]
    %v198 = vld [vmem:[%s1 + $0x598] sm:$0xff]
    %v199 = vld [vmem:[%s1 + $0x5a0] sm:$0xff]
    %v200 = vld [vmem:[%s1 + $0x5a8] sm:$0xff]
    %v201 = vld [vmem:[%s1 + $0x5b0] sm:$0xff]
    %v202 = vld [vmem:[%s1 + $0x5b8] sm:$0xff]
    %v203 = vld [vmem:[%s1 + $0x5c0] sm:$0xff]
    %v204 = vld [vmem:[%s1 + $0x5c8] sm:$0xff]
    %v205 = vld [vmem:[%s1 + $0x5d0] sm:$0xff]
    %v206 = vld [vmem:[%s1 + $0x5d8] sm:$0xff]
    %v207 = vld [vmem:[%s1 + $0x5e0] sm:$0xff]
    %v208 = vld [vmem:[%s1 + $0x5e8] sm:$0xff]
    %v209 = vld [vmem:[%s1 + $0x5f0] sm:$0xff]
    %v210 = vld [vmem:[%s1 + $0x5f8] sm:$0xff]
    %v211 = vld [vmem:[%s1 + $0x600] sm:$0xff]
    %v212 = vld [vmem:[%s1 + $0x608] sm:$0xff]
    %v213 = vld [vmem:[%s1 + $0x610] sm:$0xff]
    %v214 = vld [vmem:[%s1 + $0x618] sm:$0xff]
    %v215 = vld [vmem:[%s1 + $0x620] sm:$0xff]
    %v216 = vld [vmem:[%s1 + $0x628] sm:$0xff]
    %v217 = vld [vmem:[%s1 + $0x630] sm:$0xff]
    %v218 = vld [vmem:[%s1 + $0x638] sm:$0xff]
    %v219 = vld [vmem:[%s1 + $0x640] sm:$0xff]
    %v220 = vld [vmem:[%s1 + $0x648] sm:$0xff]
    %v221 = vld [vmem:[%s1 + $0x650] sm:$0xff]
    %v222 = vld [vmem:[%s1 + $0x658] sm:$0xff]
    %v223 = vld [vmem:[%s1 + $0x660] sm:$0xff]
    %v224 = vld [vmem:[%s1 + $0x668] sm:$0xff]
    %v225 = vld [vmem:[%s1 + $0x670] sm:$0xff]
    %v226 = vld [vmem:[%s1 + $0x678] sm:$0xff]
    %v227 = vld [vmem:[%s1 + $0x680] sm:$0xff]
    %v228 = vld [vmem:[%s1 + $0x688] sm:$0xff]
    %v229 = vld [vmem:[%s1 + $0x690] sm:$0xff]
    %v230 = vld [vmem:[%s1 + $0x698] sm:$0xff]
    %v231 = vld [vmem:[%s1 + $0x6a0] sm:$0xff]
    %v232 = vld [vmem:[%s1 + $0x6a8] sm:$0xff]
    %v233 = vld [vmem:[%s1 + $0x6b0] sm:$0xff]
    %v234 = vld [vmem:[%s1 + $0x6b8] sm:$0xff]
    %v235 = vld [vmem:[%s1 + $0x6c0] sm:$0xff]
    %v236 = vld [vmem:[%s1 + $0x6c8] sm:$0xff]
    %v237 = vld [vmem:[%s1 + $0x6d0] sm:$0xff]
    %v238 = vld [vmem:[%s1 + $0x6d8] sm:$0xff]
    %v239 = vld [vmem:[%s1 + $0x6e0] sm:$0xff]
    %v240 = vld [vmem:[%s1 + $0x6e8] sm:$0xff]
    %v241 = vld [vmem:[%s1 + $0x6f0] sm:$0xff]
    %v242 = vld [vmem:[%s1 + $0x6f8] sm:$0xff]
    %v243 = vld [vmem:[%s1 + $0x700] sm:$0xff]
    %v244 = vld [vmem:[%s1 + $0x708] sm:$0xff]
    %v245 = vld [vmem:[%s1 + $0x710] sm:$0xff]
    %v246 = vld [vmem:[%s1 + $0x718] sm:$0xff]
    %v247 = vld [vmem:[%s1 + $0x720] sm:$0xff]
    %v248 = vld [vmem:[%s1 + $0x728] sm:$0xff]
    %v249 = vld [vmem:[%s1 + $0x730] sm:$0xff]
    %v250 = vld [vmem:[%s1 + $0x738] sm:$0xff]
    %v251 = vld [vmem:[%s1 + $0x740] sm:$0xff]
    %v252 = vld [vmem:[%s1 + $0x748] sm:$0xff]
    %v253 = vld [vmem:[%s1 + $0x750] sm:$0xff]
    %v254 = vld [vmem:[%s1 + $0x758] sm:$0xff]
    %v255 = vld [vmem:[%s1 + $0x760] sm:$0xff]
    %v256 = vld [vmem:[%s1 + $0x768] sm:$0xff]
    %v257 = vld [vmem:[%s1 + $0x770] sm:$0xff]
    %v258 = vld [vmem:[%s1 + $0x778] sm:$0xff]
    %v259 = vld [vmem:[%s1 + $0x780] sm:$0xff]
    %v260 = vld [vmem:[%s1 + $0x788] sm:$0xff]
    %v261 = vld [vmem:[%s1 + $0x790] sm:$0xff]
    %v262 = vld [vmem:[%s1 + $0x798] sm:$0xff]
    %v263 = vld [vmem:[%s1 + $0x7a0] sm:$0xff]
    %v264 = vld [vmem:[%s1 + $0x7a8] sm:$0xff]
    %v265 = vld [vmem:[%s1 + $0x7b0] sm:$0xff]
    %v266 = vld [vmem:[%s1 + $0x7b8] sm:$0xff]
    %v267 = vld [vmem:[%s1 + $0x7c0] sm:$0xff]
    %v268 = vld [vmem:[%s1 + $0x7c8] sm:$0xff]
    %v269 = vld [vmem:[%s1 + $0x7d0] sm:$0xff]
    %v270 = vld [vmem:[%s1 + $0x7d8] sm:$0xff]
    %v271 = vld [vmem:[%s1 + $0x7e0] sm:$0xff]
    %v272 = vld [vmem:[%s1 + $0x7e8] sm:$0xff]
    %v273 = vld [vmem:[%s1 + $0x7f0] sm:$0xff]
    %v274 = vld [vmem:[%s1 + $0x7f8] sm:$0xff]
    %v275 = vld [vmem:[%s1 + $0x800] sm:$0xff]
    %v276 = vld [vmem:[%s1 + $0x808] sm:$0xff]
    %v277 = vld [vmem:[%s1 + $0x810] sm:$0xff]
    %v278 = vld [vmem:[%s1 + $0x818] sm:$0xff]
    %v279 = vld [vmem:[%s1 + $0x820] sm:$0xff]
    %v280 = vld [vmem:[%s1 + $0x828] sm:$0xff]
    %v281 = vld [vmem:[%s1 + $0x830] sm:$0xff]
    %v282 = vld [vmem:[%s1 + $0x838] sm:$0xff]
    %v283 = vld [vmem:[%s1 + $0x840] sm:$0xff]
    %v284 = vld [vmem:[%s1 + $0x848] sm:$0xff]
    %v285 = vld [vmem:[%s1 + $0x850] sm:$0xff]
    %v286 = vld [vmem:[%s1 + $0x858] sm:$0xff]
    %v287 = vld [vmem:[%s1 + $0x860] sm:$0xff]
    %v288 = vld [vmem:[%s1 + $0x868] sm:$0xff]
    %v289 = vld [vmem:[%s1 + $0x870] sm:$0xff]
    %v290 = vld [vmem:[%s1 + $0x878] sm:$0xff]
    %v291 = vld [vmem:[%s1 + $0x880] sm:$0xff]
    %v292 = vld [vmem:[%s1 + $0x888] sm:$0xff]
    %v293 = vld [vmem:[%s1 + $0x890] sm:$0xff]
    %v294 = vld [vmem:[%s1 + $0x898] sm:$0xff]
    %v295 = vld [vmem:[%s1 + $0x8a0] sm:$0xff]
    %v296 = vld [vmem:[%s1 + $0x8a8] sm:$0xff]
    %v297 = vld [vmem:[%s1 + $0x8b0] sm:$0xff]
    %v298 = vld [vmem:[%s1 + $0x8b8] sm:$0xff]
    %v299 = vld [vmem:[%s1 + $0x8c0] sm:$0xff]
    %v300 = vld [vmem:[%s1 + $0x8c8] sm:$0xff]
    %v301 = vld [vmem:[%s1 + $0x8d0] sm:$0xff]
    %v302 = vld [vmem:[%s1 + $0x8d8] sm:$0xff]
    %v303 = vld [vmem:[%s1 + $0x8e0] sm:$0xff]
    %v304 = vld [vmem:[%s1 + $0x8e8] sm:$0xff]
    %v305 = vld [vmem:[%s1 + $0x8f0] sm:$0xff]
    %v306 = vld [vmem:[%s1 + $0x8f8] sm:$0xff]
    %v307 = vld [vmem:[%s1 + $0x900] sm:$0xff]
    %v308 = vld [vmem:[%s1 + $0x908] sm:$0xff]
    %v309 = vld [vmem:[%s1 + $0x910] sm:$0xff]
    %v310 = vld [vmem:[%s1 + $0x918] sm:$0xff]
    %v311 = vld [vmem:[%s1 + $0x920] sm:$0xff]
    %v312 = vld [vmem:[%s1 + $0x928] sm:$0xff]
    %v313 = vld [vmem:[%s1 + $0x930] sm:$0xff]
    %v314 = vld [vmem:[%s1 + $0x938] sm:$0xff]
    %v315 = vld [vmem:[%s1 + $0x940] sm:$0xff]
    %v316 = vld [vmem:[%s1 + $0x948] sm:$0xff]
    %v317 = vld [vmem:[%s1 + $0x950] sm:$0xff]
    %v318 = vld [vmem:[%s1 + $0x958] sm:$0xff]
    %v319 = vld [vmem:[%s1 + $0x960] sm:$0xff]
    %v320 = vld [vmem:[%s1 + $0x968] sm:$0xff]
    %v321 = vld [vmem:[%s1 + $0x970] sm:$0xff]
    %v322 = vld [vmem:[%s1 + $0x978] sm:$0xff]
    %v323 = vld [vmem:[%s1 + $0x980] sm:$0xff]
    %v324 = vld [vmem:[%s1 + $0x988] sm:$0xff]
    %v325 = vld [vmem:[%s1 + $0x990] sm:$0xff]
    %v326 = vld [vmem:[%s1 + $0x998] sm:$0xff]
    %v327 = vld [vmem:[%s1 + $0x9a0] sm:$0xff]
    %v328 = vld [vmem:[%s1 + $0x9a8] sm:$0xff]
    %v329 = vld [vmem:[%s1 + $0x9b0] sm:$0xff]
    %v330 = vld [vmem:[%s1 + $0x9b8] sm:$0xff]
    %v331 = vld [vmem:[%s1 + $0x9c0] sm:$0xff]
    %v332 = vld [vmem:[%s1 + $0x9c8] sm:$0xff]
    %v333 = vld [vmem:[%s1 + $0x9d0] sm:$0xff]
    %v334 = vld [vmem:[%s1 + $0x9d8] sm:$0xff]
    %v335 = vld [vmem:[%s1 + $0x9e0] sm:$0xff]
    %v336 = vld [vmem:[%s1 + $0x9e8] sm:$0xff]
    %v337 = vld [vmem:[%s1 + $0x9f0] sm:$0xff]
    %v338 = vld [vmem:[%s1 + $0x9f8] sm:$0xff]
    %v339 = vld [vmem:[%s1 + $0xa00] sm:$0xff]
    %v340 = vld [vmem:[%s1 + $0xa08] sm:$0xff]
    %v341 = vld [vmem:[%s1 + $0xa10] sm:$0xff]
    %v342 = vld [vmem:[%s1 + $0xa18] sm:$0xff]
    %v343 = vld [vmem:[%s1 + $0xa20] sm:$0xff]
    %v344 = vld [vmem:[%s1 + $0xa28] sm:$0xff]
    %v345 = vld [vmem:[%s1 + $0xa30] sm:$0xff]
    %v346 = vld [vmem:[%s1 + $0xa38] sm:$0xff]
    %v347 = vld [vmem:[%s1 + $0xa40] sm:$0xff]
    %v348 = vld [vmem:[%s1 + $0xa48] sm:$0xff]
    %v349 = vld [vmem:[%s1 + $0xa50] sm:$0xff]
    %v350 = vld [vmem:[%s1 + $0xa58] sm:$0xff]
    %v351 = vld [vmem:[%s1 + $0xa60] sm:$0xff]
    %v352 = vld [vmem:[%s1 + $0xa68] sm:$0xff]
    %v353 = vld [vmem:[%s1 + $0xa70] sm:$0xff]
    %v354 = vld [vmem:[%s1 + $0xa78] sm:$0xff]
    %v355 = vld [vmem:[%s1 + $0xa80] sm:$0xff]
    %v356 = vld [vmem:[%s1 + $0xa88] sm:$0xff]
    %v357 = vld [vmem:[%s1 + $0xa90] sm:$0xff]
    %v358 = vld [vmem:[%s1 + $0xa98] sm:$0xff]
    %v359 = vld [vmem:[%s1 + $0xaa0] sm:$0xff]
    %v360 = vld [vmem:[%s1 + $0xaa8] sm:$0xff]
    %v361 = vld [vmem:[%s1 + $0xab0] sm:$0xff]
    %v362 = vld [vmem:[%s1 + $0xab8] sm:$0xff]
    %v363 = vld [vmem:[%s1 + $0xac0] sm:$0xff]
    %v364 = vld [vmem:[%s1 + $0xac8] sm:$0xff]
    %v365 = vld [vmem:[%s1 + $0xad0] sm:$0xff]
    %v366 = vld [vmem:[%s1 + $0xad8] sm:$0xff]
    %v367 = vld [vmem:[%s1 + $0xae0] sm:$0xff]
    %v368 = vld [vmem:[%s1 + $0xae8] sm:$0xff]
    %v369 = vld [vmem:[%s1 + $0xaf0] sm:$0xff]
    %v370 = vld [vmem:[%s1 + $0xaf8] sm:$0xff]
    %v371 = vld [vmem:[%s1 + $0xb00] sm:$0xff]
    %v372 = vld [vmem:[%s1 + $0xb08] sm:$0xff]
    %v373 = vld [vmem:[%s1 + $0xb10] sm:$0xff]
    %v374 = vld [vmem:[%s1 + $0xb18] sm:$0xff]
    %v375 = vld [vmem:[%s1 + $0xb20] sm:$0xff]
    %v376 = vld [vmem:[%s1 + $0xb28] sm:$0xff]
    %v377 = vld [vmem:[%s1 + $0xb30] sm:$0xff]
    %v378 = vld [vmem:[%s1 + $0xb38] sm:$0xff]
    %v379 = vld [vmem:[%s1 + $0xb40] sm:$0xff]
    %v380 = vld [vmem:[%s1 + $0xb48] sm:$0xff]
    %v381 = vld [vmem:[%s1 + $0xb50] sm:$0xff]
    %v382 = vld [vmem:[%s1 + $0xb58] sm:$0xff]
    %v383 = vld [vmem:[%s1 + $0xb60] sm:$0xff]
    %v384 = vld [vmem:[%s1 + $0xb68] sm:$0xff]
    %v385 = vld [vmem:[%s1 + $0xb70] sm:$0xff]
    %v386 = vld [vmem:[%s1 + $0xb78] sm:$0xff]
    %v387 = vld [vmem:[%s1 + $0xb80] sm:$0xff]
    %v388 = vld [vmem:[%s1 + $0xb88] sm:$0xff]
    %v389 = vld [vmem:[%s1 + $0xb90] sm:$0xff]
    %v390 = vld [vmem:[%s1 + $0xb98] sm:$0xff]
    %v391 = vld [vmem:[%s1 + $0xba0] sm:$0xff]
    %v392 = vld [vmem:[%s1 + $0xba8] sm:$0xff]
    %v393 = vld [vmem:[%s1 + $0xbb0] sm:$0xff]
    %v394 = vld [vmem:[%s1 + $0xbb8] sm:$0xff]
    %v395 = vld [vmem:[%s1 + $0xbc0] sm:$0xff]
    %v396 = vld [vmem:[%s1 + $0xbc8] sm:$0xff]
    %v397 = vld [vmem:[%s1 + $0xbd0] sm:$0xff]
    %v398 = vld [vmem:[%s1 + $0xbd8] sm:$0xff]
    %v399 = vld [vmem:[%s1 + $0xbe0] sm:$0xff]
    %v400 = vld [vmem:[%s1 + $0xbe8] sm:$0xff]
    %v401 = vld [vmem:[%s1 + $0xbf0] sm:$0xff]
    %v402 = vld [vmem:[%s1 + $0xbf8] sm:$0xff]
    %v403 = vld [vmem:[%s1 + $0xc00] sm:$0xff]
    %v404 = vld [vmem:[%s1 + $0xc08] sm:$0xff]
    %v405 = vld [vmem:[%s1 + $0xc10] sm:$0xff]
    %v406 = vld [vmem:[%s1 + $0xc18] sm:$0xff]
    %v407 = vld [vmem:[%s1 + $0xc20] sm:$0xff]
    %v408 = vld [vmem:[%s1 + $0xc28] sm:$0xff]
    %v409 = vld [vmem:[%s1 + $0xc30] sm:$0xff]
    %v410 = vld [vmem:[%s1 + $0xc38] sm:$0xff]
    %v411 = vld [vmem:[%s1 + $0xc40] sm:$0xff]
    %v412 = vld [vmem:[%s1 + $0xc48] sm:$0xff]
    %v413 = vld [vmem:[%s1 + $0xc50] sm:$0xff]
    %v414 = vld [vmem:[%s1 + $0xc58] sm:$0xff]
    %v415 = vld [vmem:[%s1 + $0xc60] sm:$0xff]
    %v416 = vld [vmem:[%s1 + $0xc68] sm:$0xff]
    %v417 = vld [vmem:[%s1 + $0xc70] sm:$0xff]
    %v418 = vld [vmem:[%s1 + $0xc78] sm:$0xff]
    %v419 = vld [vmem:[%s1 + $0xc80] sm:$0xff]
    %v420 = vld [vmem:[%s1 + $0xc88] sm:$0xff]
    %v421 = vld [vmem:[%s1 + $0xc90] sm:$0xff]
    %v422 = vld [vmem:[%s1 + $0xc98] sm:$0xff]
    %v423 = vld [vmem:[%s1 + $0xca0] sm:$0xff]
    %v424 = vld [vmem:[%s1 + $0xca8] sm:$0xff]
    %v425 = vld [vmem:[%s1 + $0xcb0] sm:$0xff]
    %v426 = vld [vmem:[%s1 + $0xcb8] sm:$0xff]
    %v427 = vld [vmem:[%s1 + $0xcc0] sm:$0xff]
    %v428 = vld [vmem:[%s1 + $0xcc8] sm:$0xff]
    %v429 = vld [vmem:[%s1 + $0xcd0] sm:$0xff]
    %v430 = vld [vmem:[%s1 + $0xcd8] sm:$0xff]
    %v431 = vld [vmem:[%s1 + $0xce0] sm:$0xff]
    %v432 = vld [vmem:[%s1 + $0xce8] sm:$0xff]
    %v433 = vld [vmem:[%s1 + $0xcf0] sm:$0xff]
    %v434 = vld [vmem:[%s1 + $0xcf8] sm:$0xff]
    %v435 = vld [vmem:[%s1 + $0xd00] sm:$0xff]
    %v436 = vld [vmem:[%s1 + $0xd08] sm:$0xff]
    %v437 = vld [vmem:[%s1 + $0xd10] sm:$0xff]
    %v438 = vld [vmem:[%s1 + $0xd18] sm:$0xff]
    %v439 = vld [vmem:[%s1 + $0xd20] sm:$0xff]
    %v440 = vld [vmem:[%s1 + $0xd28] sm:$0xff]
    %v441 = vld [vmem:[%s1 + $0xd30] sm:$0xff]
    %v442 = vld [vmem:[%s1 + $0xd38] sm:$0xff]
    %v443 = vld [vmem:[%s1 + $0xd40] sm:$0xff]
    %v444 = vld [vmem:[%s1 + $0xd48] sm:$0xff]
    %v445 = vld [vmem:[%s1 + $0xd50] sm:$0xff]
    %v446 = vld [vmem:[%s1 + $0xd58] sm:$0xff]
    %v447 = vld [vmem:[%s1 + $0xd60] sm:$0xff]
    %v448 = vld [vmem:[%s1 + $0xd68] sm:$0xff]
    %v449 = vld [vmem:[%s1 + $0xd70] sm:$0xff]
    %v450 = vld [vmem:[%s1 + $0xd78] sm:$0xff]
    %v451 = vld [vmem:[%s1 + $0xd80] sm:$0xff]
    %v452 = vld [vmem:[%s1 + $0xd88] sm:$0xff]
    %v453 = vld [vmem:[%s1 + $0xd90] sm:$0xff]
    %v454 = vld [vmem:[%s1 + $0xd98] sm:$0xff]
    %v455 = vld [vmem:[%s1 + $0xda0] sm:$0xff]
    %v456 = vld [vmem:[%s1 + $0xda8] sm:$0xff]
    %v457 = vld [vmem:[%s1 + $0xdb0] sm:$0xff]
    %v458 = vld [vmem:[%s1 + $0xdb8] sm:$0xff]
    %v459 = vld [vmem:[%s1 + $0xdc0] sm:$0xff]
    %v460 = vld [vmem:[%s1 + $0xdc8] sm:$0xff]
    %v461 = vld [vmem:[%s1 + $0xdd0] sm:$0xff]
    %v462 = vld [vmem:[%s1 + $0xdd8] sm:$0xff]
    %v463 = vld [vmem:[%s1 + $0xde0] sm:$0xff]
    %v464 = vld [vmem:[%s1 + $0xde8] sm:$0xff]
    %v465 = vld [vmem:[%s1 + $0xdf0] sm:$0xff]
    %v466 = vld [vmem:[%s1 + $0xdf8] sm:$0xff]
    %v467 = vld [vmem:[%s1 + $0xe00] sm:$0xff]
    %v468 = vld [vmem:[%s1 + $0xe08] sm:$0xff]
    %v469 = vld [vmem:[%s1 + $0xe10] sm:$0xff]
    %v470 = vld [vmem:[%s1 + $0xe18] sm:$0xff]
    %v471 = vld [vmem:[%s1 + $0xe20] sm:$0xff]
    %v472 = vld [vmem:[%s1 + $0xe28] sm:$0xff]
    %v473 = vld [vmem:[%s1 + $0xe30] sm:$0xff]
    %v474 = vld [vmem:[%s1 + $0xe38] sm:$0xff]
    %v475 = vld [vmem:[%s1 + $0xe40] sm:$0xff]
    %v476 = vld [vmem:[%s1 + $0xe48] sm:$0xff]
    %v477 = vld [vmem:[%s1 + $0xe50] sm:$0xff]
    %v478 = vld [vmem:[%s1 + $0xe58] sm:$0xff]
    %v479 = vld [vmem:[%s1 + $0xe60] sm:$0xff]
    %v480 = vld [vmem:[%s1 + $0xe68] sm:$0xff]
    %v481 = vld [vmem:[%s1 + $0xe70] sm:$0xff]
    %v482 = vld [vmem:[%s1 + $0xe78] sm:$0xff]
    %v483 = vld [vmem:[%s1 + $0xe80] sm:$0xff]
    %v484 = vld [vmem:[%s1 + $0xe88] sm:$0xff]
    %v485 = vld [vmem:[%s1 + $0xe90] sm:$0xff]
    %v486 = vld [vmem:[%s1 + $0xe98] sm:$0xff]
    %v487 = vld [vmem:[%s1 + $0xea0] sm:$0xff]
    %v488 = vld [vmem:[%s1 + $0xea8] sm:$0xff]
    %v489 = vld [vmem:[%s1 + $0xeb0] sm:$0xff]
    %v490 = vld [vmem:[%s1 + $0xeb8] sm:$0xff]
    %v491 = vld [vmem:[%s1 + $0xec0] sm:$0xff]
    %v492 = vld [vmem:[%s1 + $0xec8] sm:$0xff]
    %v493 = vld [vmem:[%s1 + $0xed0] sm:$0xff]
    %v494 = vld [vmem:[%s1 + $0xed8] sm:$0xff]
    %v495 = vld [vmem:[%s1 + $0xee0] sm:$0xff]
    %v496 = vld [vmem:[%s1 + $0xee8] sm:$0xff]
    %v497 = vld [vmem:[%s1 + $0xef0] sm:$0xff]
    %v498 = vld [vmem:[%s1 + $0xef8] sm:$0xff]
    %v499 = vld [vmem:[%s1 + $0xf00] sm:$0xff]
    %v500 = vld [vmem:[%s1 + $0xf08] sm:$0xff]
    %v501 = vld [vmem:[%s1 + $0xf10] sm:$0xff]
    %v502 = vld [vmem:[%s1 + $0xf18] sm:$0xff]
    %v503 = vld [vmem:[%s1 + $0xf20] sm:$0xff]
    %v504 = vld [vmem:[%s1 + $0xf28] sm:$0xff]
    %v505 = vld [vmem:[%s1 + $0xf30] sm:$0xff]
    %v506 = vld [vmem:[%s1 + $0xf38] sm:$0xff]
    %v507 = vld [vmem:[%s1 + $0xf40] sm:$0xff]
    %v508 = vld [vmem:[%s1 + $0xf48] sm:$0xff]
    %v509 = vld [vmem:[%s1 + $0xf50] sm:$0xff]
    %v510 = vld [vmem:[%s1 + $0xf58] sm:$0xff]
    %v511 = vld [vmem:[%s1 + $0xf60] sm:$0xff]
    %v512 = vld [vmem:[%s1 + $0xf68] sm:$0xff]
    %v513 = vld [vmem:[%s1 + $0xf70] sm:$0xff]
    %v514 = vld [vmem:[%s1 + $0xf78] sm:$0xff]
    %v515 = vld [vmem:[%s1 + $0xf80] sm:$0xff]
    %v516 = vld [vmem:[%s1 + $0xf88] sm:$0xff]
    %v517 = vld [vmem:[%s1 + $0xf90] sm:$0xff]
    %v518 = vld [vmem:[%s1 + $0xf98] sm:$0xff]
    %v519 = vld [vmem:[%s1 + $0xfa0] sm:$0xff]
    %v520 = vld [vmem:[%s1 + $0xfa8] sm:$0xff]
    %v521 = vld [vmem:[%s1 + $0xfb0] sm:$0xff]
    %v522 = vld [vmem:[%s1 + $0xfb8] sm:$0xff]
    %v523 = vld [vmem:[%s1 + $0xfc0] sm:$0xff]
    %v524 = vld [vmem:[%s1 + $0xfc8] sm:$0xff]
    %v525 = vld [vmem:[%s1 + $0xfd0] sm:$0xff]
    %v526 = vld [vmem:[%s1 + $0xfd8] sm:$0xff]
    %v527 = vld [vmem:[%s1 + $0xfe0] sm:$0xff]
    %v528 = vld [vmem:[%s1 + $0xfe8] sm:$0xff]
    %v529 = vld [vmem:[%s1 + $0xff0] sm:$0xff]
    %v530 = vld [vmem:[%s1 + $0xff8] sm:$0xff]
    %v531 = vld [vmem:[%s2] sm:$0x3]
    %v533 = vperm.slane %v531, 0
    %v534 = vperm.slane %v531, 1
    %538 = vst [vmem:[#allocation1] ss:$9 sm:$0xff] %v15
    %v539 = vld [vmem:[#allocation1] sm:$0xff]
    %v540 = vld [vmem:[#allocation1 + $0x9] sm:$0xff]
    %v541 = vld [vmem:[#allocation1 + $0x12] sm:$0xff]
    %v542 = vld [vmem:[#allocation1 + $0x1b] sm:$0xff]
    %v543 = vld [vmem:[#allocation1 + $0x24] sm:$0xff]
    %v544 = vld [vmem:[#allocation1 + $0x2d] sm:$0xff]
    %v545 = vld [vmem:[#allocation1 + $0x36] sm:$0xff]
    %v546 = vld [vmem:[#allocation1 + $0x3f] sm:$0xff]
    %548 = vst [vmem:[#allocation1] ss:$9 sm:$0xff] %v16
    %v549 = vld [vmem:[#allocation1] sm:$0xff]
    %v550 = vld [vmem:[#allocation1 + $0x9] sm:$0xff]
    %v551 = vld [vmem:[#allocation1 + $0x12] sm:$0xff]
    %v552 = vld [vmem:[#allocation1 + $0x1b] sm:$0xff]
    %v553 = vld [vmem:[#allocation1 + $0x24] sm:$0xff]
    %v554 = vld [vmem:[#allocation1 + $0x2d] sm:$0xff]
    %v555 = vld [vmem:[#allocation1 + $0x36] sm:$0xff]
    %v556 = vld [vmem:[#allocation1 + $0x3f] sm:$0xff]
    %558 = vst [vmem:[#allocation1] ss:$9 sm:$0xff] %v17
    %v559 = vld [vmem:[#allocation1] sm:$0xff]
    %v560 = vld [vmem:[#allocation1 + $0x9] sm:$0xff]
    %v561 = vld [vmem:[#allocation1 + $0x12] sm:$0xff]
    %v562 = vld [vmem:[#allocation1 + $0x1b] sm:$0xff]
    %v563 = vld [vmem:[#allocation1 + $0x24] sm:$0xff]
    %v564 = vld [vmem:[#allocation1 + $0x2d] sm:$0xff]
    %v565 = vld [vmem:[#allocation1 + $0x36] sm:$0xff]
    %v566 = vld [vmem:[#allocation1 + $0x3f] sm:$0xff]
    %568 = vst [vmem:[#allocation1] ss:$9 sm:$0xff] %v18
    %v569 = vld [vmem:[#allocation1] sm:$0xff]
    %v570 = vld [vmem:[#allocation1 + $0x9] sm:$0xff]
    %v571 = vld [vmem:[#allocation1 + $0x12] sm:$0xff]
    %v572 = vld [vmem:[#allocation1 + $0x1b] sm:$0xff]
    %v573 = vld [vmem:[#allocation1 + $0x24] sm:$0xff]
    %v574 = vld [vmem:[#allocation1 + $0x2d] sm:$0xff]
    %v575 = vld [vmem:[#allocation1 + $0x36] sm:$0xff]
    %v576 = vld [vmem:[#allocation1 + $0x3f] sm:$0xff]
    %v1121 = vunpack.c.l.b16 %v19
    %v1122 = vunpack.c.h.b16 %v19
    %v1123 = vunpack.c.l.b16 %v20
    %v1124 = vunpack.c.h.b16 %v20
    %v1125 = vunpack.c.l.b16 %v21
    %v1126 = vunpack.c.h.b16 %v21
    %v1127 = vunpack.c.l.b16 %v22
    %v1128 = vunpack.c.h.b16 %v22
    %v1129 = vunpack.c.l.b16 %v23
    %v1130 = vunpack.c.h.b16 %v23
    %v1131 = vunpack.c.l.b16 %v24
    %v1132 = vunpack.c.h.b16 %v24
    %v1133 = vunpack.c.l.b16 %v25
    %v1134 = vunpack.c.h.b16 %v25
    %v1135 = vunpack.c.l.b16 %v26
    %v1136 = vunpack.c.h.b16 %v26
    %v1137 = vunpack.c.l.b16 %v27
    %v1138 = vunpack.c.h.b16 %v27
    %v1139 = vunpack.c.l.b16 %v28
    %v1140 = vunpack.c.h.b16 %v28
    %v1141 = vunpack.c.l.b16 %v29
    %v1142 = vunpack.c.h.b16 %v29
    %v1143 = vunpack.c.l.b16 %v30
    %v1144 = vunpack.c.h.b16 %v30
    %v1145 = vunpack.c.l.b16 %v31
    %v1146 = vunpack.c.h.b16 %v31
    %v1147 = vunpack.c.l.b16 %v32
    %v1148 = vunpack.c.h.b16 %v32
    %v1149 = vunpack.c.l.b16 %v33
    %v1150 = vunpack.c.h.b16 %v33
    %v1151 = vunpack.c.l.b16 %v34
    %v1152 = vunpack.c.h.b16 %v34
    %v1153 = vunpack.c.l.b16 %v35
    %v1154 = vunpack.c.h.b16 %v35
    %v1155 = vunpack.c.l.b16 %v36
    %v1156 = vunpack.c.h.b16 %v36
    %v1157 = vunpack.c.l.b16 %v37
    %v1158 = vunpack.c.h.b16 %v37
    %v1159 = vunpack.c.l.b16 %v38
    %v1160 = vunpack.c.h.b16 %v38
    %v1161 = vunpack.c.l.b16 %v39
    %v1162 = vunpack.c.h.b16 %v39
    %v1163 = vunpack.c.l.b16 %v40
    %v1164 = vunpack.c.h.b16 %v40
    %v1165 = vunpack.c.l.b16 %v41
    %v1166 = vunpack.c.h.b16 %v41
    %v1167 = vunpack.c.l.b16 %v42
    %v1168 = vunpack.c.h.b16 %v42
    %v1169 = vunpack.c.l.b16 %v43
    %v1170 = vunpack.c.h.b16 %v43
    %v1171 = vunpack.c.l.b16 %v44
    %v1172 = vunpack.c.h.b16 %v44
    %v1173 = vunpack.c.l.b16 %v45
    %v1174 = vunpack.c.h.b16 %v45
    %v1175 = vunpack.c.l.b16 %v46
    %v1176 = vunpack.c.h.b16 %v46
    %v1177 = vunpack.c.l.b16 %v47
    %v1178 = vunpack.c.h.b16 %v47
    %v1179 = vunpack.c.l.b16 %v48
    %v1180 = vunpack.c.h.b16 %v48
    %v1181 = vunpack.c.l.b16 %v49
    %v1182 = vunpack.c.h.b16 %v49
    %v1183 = vunpack.c.l.b16 %v50
    %v1184 = vunpack.c.h.b16 %v50
    %v1185 = vunpack.c.l.b16 %v51
    %v1186 = vunpack.c.h.b16 %v51
    %v1187 = vunpack.c.l.b16 %v52
    %v1188 = vunpack.c.h.b16 %v52
    %v1189 = vunpack.c.l.b16 %v53
    %v1190 = vunpack.c.h.b16 %v53
    %v1191 = vunpack.c.l.b16 %v54
    %v1192 = vunpack.c.h.b16 %v54
    %v1193 = vunpack.c.l.b16 %v55
    %v1194 = vunpack.c.h.b16 %v55
    %v1195 = vunpack.c.l.b16 %v56
    %v1196 = vunpack.c.h.b16 %v56
    %v1197 = vunpack.c.l.b16 %v57
    %v1198 = vunpack.c.h.b16 %v57
    %v1199 = vunpack.c.l.b16 %v58
    %v1200 = vunpack.c.h.b16 %v58
    %v1201 = vunpack.c.l.b16 %v59
    %v1202 = vunpack.c.h.b16 %v59
    %v1203 = vunpack.c.l.b16 %v60
    %v1204 = vunpack.c.h.b16 %v60
    %v1205 = vunpack.c.l.b16 %v61
    %v1206 = vunpack.c.h.b16 %v61
    %v1207 = vunpack.c.l.b16 %v62
    %v1208 = vunpack.c.h.b16 %v62
    %v1209 = vunpack.c.l.b16 %v63
    %v1210 = vunpack.c.h.b16 %v63
    %v1211 = vunpack.c.l.b16 %v64
    %v1212 = vunpack.c.h.b16 %v64
    %v1213 = vunpack.c.l.b16 %v65
    %v1214 = vunpack.c.h.b16 %v65
    %v1215 = vunpack.c.l.b16 %v66
    %v1216 = vunpack.c.h.b16 %v66
    %v1217 = vunpack.c.l.b16 %v67
    %v1218 = vunpack.c.h.b16 %v67
    %v1219 = vunpack.c.l.b16 %v68
    %v1220 = vunpack.c.h.b16 %v68
    %v1221 = vunpack.c.l.b16 %v69
    %v1222 = vunpack.c.h.b16 %v69
    %v1223 = vunpack.c.l.b16 %v70
    %v1224 = vunpack.c.h.b16 %v70
    %v1225 = vunpack.c.l.b16 %v71
    %v1226 = vunpack.c.h.b16 %v71
    %v1227 = vunpack.c.l.b16 %v72
    %v1228 = vunpack.c.h.b16 %v72
    %v1229 = vunpack.c.l.b16 %v73
    %v1230 = vunpack.c.h.b16 %v73
    %v1231 = vunpack.c.l.b16 %v74
    %v1232 = vunpack.c.h.b16 %v74
    %v1233 = vunpack.c.l.b16 %v75
    %v1234 = vunpack.c.h.b16 %v75
    %v1235 = vunpack.c.l.b16 %v76
    %v1236 = vunpack.c.h.b16 %v76
    %v1237 = vunpack.c.l.b16 %v77
    %v1238 = vunpack.c.h.b16 %v77
    %v1239 = vunpack.c.l.b16 %v78
    %v1240 = vunpack.c.h.b16 %v78
    %v1241 = vunpack.c.l.b16 %v79
    %v1242 = vunpack.c.h.b16 %v79
    %v1243 = vunpack.c.l.b16 %v80
    %v1244 = vunpack.c.h.b16 %v80
    %v1245 = vunpack.c.l.b16 %v81
    %v1246 = vunpack.c.h.b16 %v81
    %v1247 = vunpack.c.l.b16 %v82
    %v1248 = vunpack.c.h.b16 %v82
    %v1249 = vunpack.c.l.b16 %v83
    %v1250 = vunpack.c.h.b16 %v83
    %v1251 = vunpack.c.l.b16 %v84
    %v1252 = vunpack.c.h.b16 %v84
    %v1253 = vunpack.c.l.b16 %v85
    %v1254 = vunpack.c.h.b16 %v85
    %v1255 = vunpack.c.l.b16 %v86
    %v1256 = vunpack.c.h.b16 %v86
    %v1257 = vunpack.c.l.b16 %v87
    %v1258 = vunpack.c.h.b16 %v87
    %v1259 = vunpack.c.l.b16 %v88
    %v1260 = vunpack.c.h.b16 %v88
    %v1261 = vunpack.c.l.b16 %v89
    %v1262 = vunpack.c.h.b16 %v89
    %v1263 = vunpack.c.l.b16 %v90
    %v1264 = vunpack.c.h.b16 %v90
    %v1265 = vunpack.c.l.b16 %v91
    %v1266 = vunpack.c.h.b16 %v91
    %v1267 = vunpack.c.l.b16 %v92
    %v1268 = vunpack.c.h.b16 %v92
    %v1269 = vunpack.c.l.b16 %v93
    %v1270 = vunpack.c.h.b16 %v93
    %v1271 = vunpack.c.l.b16 %v94
    %v1272 = vunpack.c.h.b16 %v94
    %v1273 = vunpack.c.l.b16 %v95
    %v1274 = vunpack.c.h.b16 %v95
    %v1275 = vunpack.c.l.b16 %v96
    %v1276 = vunpack.c.h.b16 %v96
    %v1277 = vunpack.c.l.b16 %v97
    %v1278 = vunpack.c.h.b16 %v97
    %v1279 = vunpack.c.l.b16 %v98
    %v1280 = vunpack.c.h.b16 %v98
    %v1281 = vunpack.c.l.b16 %v99
    %v1282 = vunpack.c.h.b16 %v99
    %v1283 = vunpack.c.l.b16 %v100
    %v1284 = vunpack.c.h.b16 %v100
    %v1285 = vunpack.c.l.b16 %v101
    %v1286 = vunpack.c.h.b16 %v101
    %v1287 = vunpack.c.l.b16 %v102
    %v1288 = vunpack.c.h.b16 %v102
    %v1289 = vunpack.c.l.b16 %v103
    %v1290 = vunpack.c.h.b16 %v103
    %v1291 = vunpack.c.l.b16 %v104
    %v1292 = vunpack.c.h.b16 %v104
    %v1293 = vunpack.c.l.b16 %v105
    %v1294 = vunpack.c.h.b16 %v105
    %v1295 = vunpack.c.l.b16 %v106
    %v1296 = vunpack.c.h.b16 %v106
    %v1297 = vunpack.c.l.b16 %v107
    %v1298 = vunpack.c.h.b16 %v107
    %v1299 = vunpack.c.l.b16 %v108
    %v1300 = vunpack.c.h.b16 %v108
    %v1301 = vunpack.c.l.b16 %v109
    %v1302 = vunpack.c.h.b16 %v109
    %v1303 = vunpack.c.l.b16 %v110
    %v1304 = vunpack.c.h.b16 %v110
    %v1305 = vunpack.c.l.b16 %v111
    %v1306 = vunpack.c.h.b16 %v111
    %v1307 = vunpack.c.l.b16 %v112
    %v1308 = vunpack.c.h.b16 %v112
    %v1309 = vunpack.c.l.b16 %v113
    %v1310 = vunpack.c.h.b16 %v113
    %v1311 = vunpack.c.l.b16 %v114
    %v1312 = vunpack.c.h.b16 %v114
    %v1313 = vunpack.c.l.b16 %v115
    %v1314 = vunpack.c.h.b16 %v115
    %v1315 = vunpack.c.l.b16 %v116
    %v1316 = vunpack.c.h.b16 %v116
    %v1317 = vunpack.c.l.b16 %v117
    %v1318 = vunpack.c.h.b16 %v117
    %v1319 = vunpack.c.l.b16 %v118
    %v1320 = vunpack.c.h.b16 %v118
    %v1321 = vunpack.c.l.b16 %v119
    %v1322 = vunpack.c.h.b16 %v119
    %v1323 = vunpack.c.l.b16 %v120
    %v1324 = vunpack.c.h.b16 %v120
    %v1325 = vunpack.c.l.b16 %v121
    %v1326 = vunpack.c.h.b16 %v121
    %v1327 = vunpack.c.l.b16 %v122
    %v1328 = vunpack.c.h.b16 %v122
    %v1329 = vunpack.c.l.b16 %v123
    %v1330 = vunpack.c.h.b16 %v123
    %v1331 = vunpack.c.l.b16 %v124
    %v1332 = vunpack.c.h.b16 %v124
    %v1333 = vunpack.c.l.b16 %v125
    %v1334 = vunpack.c.h.b16 %v125
    %v1335 = vunpack.c.l.b16 %v126
    %v1336 = vunpack.c.h.b16 %v126
    %v1337 = vunpack.c.l.b16 %v127
    %v1338 = vunpack.c.h.b16 %v127
    %v1339 = vunpack.c.l.b16 %v128
    %v1340 = vunpack.c.h.b16 %v128
    %v1341 = vunpack.c.l.b16 %v129
    %v1342 = vunpack.c.h.b16 %v129
    %v1343 = vunpack.c.l.b16 %v130
    %v1344 = vunpack.c.h.b16 %v130
    %v1345 = vunpack.c.l.b16 %v131
    %v1346 = vunpack.c.h.b16 %v131
    %v1347 = vunpack.c.l.b16 %v132
    %v1348 = vunpack.c.h.b16 %v132
    %v1349 = vunpack.c.l.b16 %v133
    %v1350 = vunpack.c.h.b16 %v133
    %v1351 = vunpack.c.l.b16 %v134
    %v1352 = vunpack.c.h.b16 %v134
    %v1353 = vunpack.c.l.b16 %v135
    %v1354 = vunpack.c.h.b16 %v135
    %v1355 = vunpack.c.l.b16 %v136
    %v1356 = vunpack.c.h.b16 %v136
    %v1357 = vunpack.c.l.b16 %v137
    %v1358 = vunpack.c.h.b16 %v137
    %v1359 = vunpack.c.l.b16 %v138
    %v1360 = vunpack.c.h.b16 %v138
    %v1361 = vunpack.c.l.b16 %v139
    %v1362 = vunpack.c.h.b16 %v139
    %v1363 = vunpack.c.l.b16 %v140
    %v1364 = vunpack.c.h.b16 %v140
    %v1365 = vunpack.c.l.b16 %v141
    %v1366 = vunpack.c.h.b16 %v141
    %v1367 = vunpack.c.l.b16 %v142
    %v1368 = vunpack.c.h.b16 %v142
    %v1369 = vunpack.c.l.b16 %v143
    %v1370 = vunpack.c.h.b16 %v143
    %v1371 = vunpack.c.l.b16 %v144
    %v1372 = vunpack.c.h.b16 %v144
    %v1373 = vunpack.c.l.b16 %v145
    %v1374 = vunpack.c.h.b16 %v145
    %v1375 = vunpack.c.l.b16 %v146
    %v1376 = vunpack.c.h.b16 %v146
    %v1377 = vunpack.c.l.b16 %v147
    %v1378 = vunpack.c.h.b16 %v147
    %v1379 = vunpack.c.l.b16 %v148
    %v1380 = vunpack.c.h.b16 %v148
    %v1381 = vunpack.c.l.b16 %v149
    %v1382 = vunpack.c.h.b16 %v149
    %v1383 = vunpack.c.l.b16 %v150
    %v1384 = vunpack.c.h.b16 %v150
    %v1385 = vunpack.c.l.b16 %v151
    %v1386 = vunpack.c.h.b16 %v151
    %v1387 = vunpack.c.l.b16 %v152
    %v1388 = vunpack.c.h.b16 %v152
    %v1389 = vunpack.c.l.b16 %v153
    %v1390 = vunpack.c.h.b16 %v153
    %v1391 = vunpack.c.l.b16 %v154
    %v1392 = vunpack.c.h.b16 %v154
    %v1393 = vunpack.c.l.b16 %v155
    %v1394 = vunpack.c.h.b16 %v155
    %v1395 = vunpack.c.l.b16 %v156
    %v1396 = vunpack.c.h.b16 %v156
    %v1397 = vunpack.c.l.b16 %v157
    %v1398 = vunpack.c.h.b16 %v157
    %v1399 = vunpack.c.l.b16 %v158
    %v1400 = vunpack.c.h.b16 %v158
    %v1401 = vunpack.c.l.b16 %v159
    %v1402 = vunpack.c.h.b16 %v159
    %v1403 = vunpack.c.l.b16 %v160
    %v1404 = vunpack.c.h.b16 %v160
    %v1405 = vunpack.c.l.b16 %v161
    %v1406 = vunpack.c.h.b16 %v161
    %v1407 = vunpack.c.l.b16 %v162
    %v1408 = vunpack.c.h.b16 %v162
    %v1409 = vunpack.c.l.b16 %v163
    %v1410 = vunpack.c.h.b16 %v163
    %v1411 = vunpack.c.l.b16 %v164
    %v1412 = vunpack.c.h.b16 %v164
    %v1413 = vunpack.c.l.b16 %v165
    %v1414 = vunpack.c.h.b16 %v165
    %v1415 = vunpack.c.l.b16 %v166
    %v1416 = vunpack.c.h.b16 %v166
    %v1417 = vunpack.c.l.b16 %v167
    %v1418 = vunpack.c.h.b16 %v167
    %v1419 = vunpack.c.l.b16 %v168
    %v1420 = vunpack.c.h.b16 %v168
    %v1421 = vunpack.c.l.b16 %v169
    %v1422 = vunpack.c.h.b16 %v169
    %v1423 = vunpack.c.l.b16 %v170
    %v1424 = vunpack.c.h.b16 %v170
    %v1425 = vunpack.c.l.b16 %v171
    %v1426 = vunpack.c.h.b16 %v171
    %v1427 = vunpack.c.l.b16 %v172
    %v1428 = vunpack.c.h.b16 %v172
    %v1429 = vunpack.c.l.b16 %v173
    %v1430 = vunpack.c.h.b16 %v173
    %v1431 = vunpack.c.l.b16 %v174
    %v1432 = vunpack.c.h.b16 %v174
    %v1433 = vunpack.c.l.b16 %v175
    %v1434 = vunpack.c.h.b16 %v175
    %v1435 = vunpack.c.l.b16 %v176
    %v1436 = vunpack.c.h.b16 %v176
    %v1437 = vunpack.c.l.b16 %v177
    %v1438 = vunpack.c.h.b16 %v177
    %v1439 = vunpack.c.l.b16 %v178
    %v1440 = vunpack.c.h.b16 %v178
    %v1441 = vunpack.c.l.b16 %v179
    %v1442 = vunpack.c.h.b16 %v179
    %v1443 = vunpack.c.l.b16 %v180
    %v1444 = vunpack.c.h.b16 %v180
    %v1445 = vunpack.c.l.b16 %v181
    %v1446 = vunpack.c.h.b16 %v181
    %v1447 = vunpack.c.l.b16 %v182
    %v1448 = vunpack.c.h.b16 %v182
    %v1449 = vunpack.c.l.b16 %v183
    %v1450 = vunpack.c.h.b16 %v183
    %v1451 = vunpack.c.l.b16 %v184
    %v1452 = vunpack.c.h.b16 %v184
    %v1453 = vunpack.c.l.b16 %v185
    %v1454 = vunpack.c.h.b16 %v185
    %v1455 = vunpack.c.l.b16 %v186
    %v1456 = vunpack.c.h.b16 %v186
    %v1457 = vunpack.c.l.b16 %v187
    %v1458 = vunpack.c.h.b16 %v187
    %v1459 = vunpack.c.l.b16 %v188
    %v1460 = vunpack.c.h.b16 %v188
    %v1461 = vunpack.c.l.b16 %v189
    %v1462 = vunpack.c.h.b16 %v189
    %v1463 = vunpack.c.l.b16 %v190
    %v1464 = vunpack.c.h.b16 %v190
    %v1465 = vunpack.c.l.b16 %v191
    %v1466 = vunpack.c.h.b16 %v191
    %v1467 = vunpack.c.l.b16 %v192
    %v1468 = vunpack.c.h.b16 %v192
    %v1469 = vunpack.c.l.b16 %v193
    %v1470 = vunpack.c.h.b16 %v193
    %v1471 = vunpack.c.l.b16 %v194
    %v1472 = vunpack.c.h.b16 %v194
    %v1473 = vunpack.c.l.b16 %v195
    %v1474 = vunpack.c.h.b16 %v195
    %v1475 = vunpack.c.l.b16 %v196
    %v1476 = vunpack.c.h.b16 %v196
    %v1477 = vunpack.c.l.b16 %v197
    %v1478 = vunpack.c.h.b16 %v197
    %v1479 = vunpack.c.l.b16 %v198
    %v1480 = vunpack.c.h.b16 %v198
    %v1481 = vunpack.c.l.b16 %v199
    %v1482 = vunpack.c.h.b16 %v199
    %v1483 = vunpack.c.l.b16 %v200
    %v1484 = vunpack.c.h.b16 %v200
    %v1485 = vunpack.c.l.b16 %v201
    %v1486 = vunpack.c.h.b16 %v201
    %v1487 = vunpack.c.l.b16 %v202
    %v1488 = vunpack.c.h.b16 %v202
    %v1489 = vunpack.c.l.b16 %v203
    %v1490 = vunpack.c.h.b16 %v203
    %v1491 = vunpack.c.l.b16 %v204
    %v1492 = vunpack.c.h.b16 %v204
    %v1493 = vunpack.c.l.b16 %v205
    %v1494 = vunpack.c.h.b16 %v205
    %v1495 = vunpack.c.l.b16 %v206
    %v1496 = vunpack.c.h.b16 %v206
    %v1497 = vunpack.c.l.b16 %v207
    %v1498 = vunpack.c.h.b16 %v207
    %v1499 = vunpack.c.l.b16 %v208
    %v1500 = vunpack.c.h.b16 %v208
    %v1501 = vunpack.c.l.b16 %v209
    %v1502 = vunpack.c.h.b16 %v209
    %v1503 = vunpack.c.l.b16 %v210
    %v1504 = vunpack.c.h.b16 %v210
    %v1505 = vunpack.c.l.b16 %v211
    %v1506 = vunpack.c.h.b16 %v211
    %v1507 = vunpack.c.l.b16 %v212
    %v1508 = vunpack.c.h.b16 %v212
    %v1509 = vunpack.c.l.b16 %v213
    %v1510 = vunpack.c.h.b16 %v213
    %v1511 = vunpack.c.l.b16 %v214
    %v1512 = vunpack.c.h.b16 %v214
    %v1513 = vunpack.c.l.b16 %v215
    %v1514 = vunpack.c.h.b16 %v215
    %v1515 = vunpack.c.l.b16 %v216
    %v1516 = vunpack.c.h.b16 %v216
    %v1517 = vunpack.c.l.b16 %v217
    %v1518 = vunpack.c.h.b16 %v217
    %v1519 = vunpack.c.l.b16 %v218
    %v1520 = vunpack.c.h.b16 %v218
    %v1521 = vunpack.c.l.b16 %v219
    %v1522 = vunpack.c.h.b16 %v219
    %v1523 = vunpack.c.l.b16 %v220
    %v1524 = vunpack.c.h.b16 %v220
    %v1525 = vunpack.c.l.b16 %v221
    %v1526 = vunpack.c.h.b16 %v221
    %v1527 = vunpack.c.l.b16 %v222
    %v1528 = vunpack.c.h.b16 %v222
    %v1529 = vunpack.c.l.b16 %v223
    %v1530 = vunpack.c.h.b16 %v223
    %v1531 = vunpack.c.l.b16 %v224
    %v1532 = vunpack.c.h.b16 %v224
    %v1533 = vunpack.c.l.b16 %v225
    %v1534 = vunpack.c.h.b16 %v225
    %v1535 = vunpack.c.l.b16 %v226
    %v1536 = vunpack.c.h.b16 %v226
    %v1537 = vunpack.c.l.b16 %v227
    %v1538 = vunpack.c.h.b16 %v227
    %v1539 = vunpack.c.l.b16 %v228
    %v1540 = vunpack.c.h.b16 %v228
    %v1541 = vunpack.c.l.b16 %v229
    %v1542 = vunpack.c.h.b16 %v229
    %v1543 = vunpack.c.l.b16 %v230
    %v1544 = vunpack.c.h.b16 %v230
    %v1545 = vunpack.c.l.b16 %v231
    %v1546 = vunpack.c.h.b16 %v231
    %v1547 = vunpack.c.l.b16 %v232
    %v1548 = vunpack.c.h.b16 %v232
    %v1549 = vunpack.c.l.b16 %v233
    %v1550 = vunpack.c.h.b16 %v233
    %v1551 = vunpack.c.l.b16 %v234
    %v1552 = vunpack.c.h.b16 %v234
    %v1553 = vunpack.c.l.b16 %v235
    %v1554 = vunpack.c.h.b16 %v235
    %v1555 = vunpack.c.l.b16 %v236
    %v1556 = vunpack.c.h.b16 %v236
    %v1557 = vunpack.c.l.b16 %v237
    %v1558 = vunpack.c.h.b16 %v237
    %v1559 = vunpack.c.l.b16 %v238
    %v1560 = vunpack.c.h.b16 %v238
    %v1561 = vunpack.c.l.b16 %v239
    %v1562 = vunpack.c.h.b16 %v239
    %v1563 = vunpack.c.l.b16 %v240
    %v1564 = vunpack.c.h.b16 %v240
    %v1565 = vunpack.c.l.b16 %v241
    %v1566 = vunpack.c.h.b16 %v241
    %v1567 = vunpack.c.l.b16 %v242
    %v1568 = vunpack.c.h.b16 %v242
    %v1569 = vunpack.c.l.b16 %v243
    %v1570 = vunpack.c.h.b16 %v243
    %v1571 = vunpack.c.l.b16 %v244
    %v1572 = vunpack.c.h.b16 %v244
    %v1573 = vunpack.c.l.b16 %v245
    %v1574 = vunpack.c.h.b16 %v245
    %v1575 = vunpack.c.l.b16 %v246
    %v1576 = vunpack.c.h.b16 %v246
    %v1577 = vunpack.c.l.b16 %v247
    %v1578 = vunpack.c.h.b16 %v247
    %v1579 = vunpack.c.l.b16 %v248
    %v1580 = vunpack.c.h.b16 %v248
    %v1581 = vunpack.c.l.b16 %v249
    %v1582 = vunpack.c.h.b16 %v249
    %v1583 = vunpack.c.l.b16 %v250
    %v1584 = vunpack.c.h.b16 %v250
    %v1585 = vunpack.c.l.b16 %v251
    %v1586 = vunpack.c.h.b16 %v251
    %v1587 = vunpack.c.l.b16 %v252
    %v1588 = vunpack.c.h.b16 %v252
    %v1589 = vunpack.c.l.b16 %v253
    %v1590 = vunpack.c.h.b16 %v253
    %v1591 = vunpack.c.l.b16 %v254
    %v1592 = vunpack.c.h.b16 %v254
    %v1593 = vunpack.c.l.b16 %v255
    %v1594 = vunpack.c.h.b16 %v255
    %v1595 = vunpack.c.l.b16 %v256
    %v1596 = vunpack.c.h.b16 %v256
    %v1597 = vunpack.c.l.b16 %v257
    %v1598 = vunpack.c.h.b16 %v257
    %v1599 = vunpack.c.l.b16 %v258
    %v1600 = vunpack.c.h.b16 %v258
    %v1601 = vunpack.c.l.b16 %v259
    %v1602 = vunpack.c.h.b16 %v259
    %v1603 = vunpack.c.l.b16 %v260
    %v1604 = vunpack.c.h.b16 %v260
    %v1605 = vunpack.c.l.b16 %v261
    %v1606 = vunpack.c.h.b16 %v261
    %v1607 = vunpack.c.l.b16 %v262
    %v1608 = vunpack.c.h.b16 %v262
    %v1609 = vunpack.c.l.b16 %v263
    %v1610 = vunpack.c.h.b16 %v263
    %v1611 = vunpack.c.l.b16 %v264
    %v1612 = vunpack.c.h.b16 %v264
    %v1613 = vunpack.c.l.b16 %v265
    %v1614 = vunpack.c.h.b16 %v265
    %v1615 = vunpack.c.l.b16 %v266
    %v1616 = vunpack.c.h.b16 %v266
    %v1617 = vunpack.c.l.b16 %v267
    %v1618 = vunpack.c.h.b16 %v267
    %v1619 = vunpack.c.l.b16 %v268
    %v1620 = vunpack.c.h.b16 %v268
    %v1621 = vunpack.c.l.b16 %v269
    %v1622 = vunpack.c.h.b16 %v269
    %v1623 = vunpack.c.l.b16 %v270
    %v1624 = vunpack.c.h.b16 %v270
    %v1625 = vunpack.c.l.b16 %v271
    %v1626 = vunpack.c.h.b16 %v271
    %v1627 = vunpack.c.l.b16 %v272
    %v1628 = vunpack.c.h.b16 %v272
    %v1629 = vunpack.c.l.b16 %v273
    %v1630 = vunpack.c.h.b16 %v273
    %v1631 = vunpack.c.l.b16 %v274
    %v1632 = vunpack.c.h.b16 %v274
    %v1633 = vunpack.c.l.b16 %v275
    %v1634 = vunpack.c.h.b16 %v275
    %v1635 = vunpack.c.l.b16 %v276
    %v1636 = vunpack.c.h.b16 %v276
    %v1637 = vunpack.c.l.b16 %v277
    %v1638 = vunpack.c.h.b16 %v277
    %v1639 = vunpack.c.l.b16 %v278
    %v1640 = vunpack.c.h.b16 %v278
    %v1641 = vunpack.c.l.b16 %v279
    %v1642 = vunpack.c.h.b16 %v279
    %v1643 = vunpack.c.l.b16 %v280
    %v1644 = vunpack.c.h.b16 %v280
    %v1645 = vunpack.c.l.b16 %v281
    %v1646 = vunpack.c.h.b16 %v281
    %v1647 = vunpack.c.l.b16 %v282
    %v1648 = vunpack.c.h.b16 %v282
    %v1649 = vunpack.c.l.b16 %v283
    %v1650 = vunpack.c.h.b16 %v283
    %v1651 = vunpack.c.l.b16 %v284
    %v1652 = vunpack.c.h.b16 %v284
    %v1653 = vunpack.c.l.b16 %v285
    %v1654 = vunpack.c.h.b16 %v285
    %v1655 = vunpack.c.l.b16 %v286
    %v1656 = vunpack.c.h.b16 %v286
    %v1657 = vunpack.c.l.b16 %v287
    %v1658 = vunpack.c.h.b16 %v287
    %v1659 = vunpack.c.l.b16 %v288
    %v1660 = vunpack.c.h.b16 %v288
    %v1661 = vunpack.c.l.b16 %v289
    %v1662 = vunpack.c.h.b16 %v289
    %v1663 = vunpack.c.l.b16 %v290
    %v1664 = vunpack.c.h.b16 %v290
    %v1665 = vunpack.c.l.b16 %v291
    %v1666 = vunpack.c.h.b16 %v291
    %v1667 = vunpack.c.l.b16 %v292
    %v1668 = vunpack.c.h.b16 %v292
    %v1669 = vunpack.c.l.b16 %v293
    %v1670 = vunpack.c.h.b16 %v293
    %v1671 = vunpack.c.l.b16 %v294
    %v1672 = vunpack.c.h.b16 %v294
    %v1673 = vunpack.c.l.b16 %v295
    %v1674 = vunpack.c.h.b16 %v295
    %v1675 = vunpack.c.l.b16 %v296
    %v1676 = vunpack.c.h.b16 %v296
    %v1677 = vunpack.c.l.b16 %v297
    %v1678 = vunpack.c.h.b16 %v297
    %v1679 = vunpack.c.l.b16 %v298
    %v1680 = vunpack.c.h.b16 %v298
    %v1681 = vunpack.c.l.b16 %v299
    %v1682 = vunpack.c.h.b16 %v299
    %v1683 = vunpack.c.l.b16 %v300
    %v1684 = vunpack.c.h.b16 %v300
    %v1685 = vunpack.c.l.b16 %v301
    %v1686 = vunpack.c.h.b16 %v301
    %v1687 = vunpack.c.l.b16 %v302
    %v1688 = vunpack.c.h.b16 %v302
    %v1689 = vunpack.c.l.b16 %v303
    %v1690 = vunpack.c.h.b16 %v303
    %v1691 = vunpack.c.l.b16 %v304
    %v1692 = vunpack.c.h.b16 %v304
    %v1693 = vunpack.c.l.b16 %v305
    %v1694 = vunpack.c.h.b16 %v305
    %v1695 = vunpack.c.l.b16 %v306
    %v1696 = vunpack.c.h.b16 %v306
    %v1697 = vunpack.c.l.b16 %v307
    %v1698 = vunpack.c.h.b16 %v307
    %v1699 = vunpack.c.l.b16 %v308
    %v1700 = vunpack.c.h.b16 %v308
    %v1701 = vunpack.c.l.b16 %v309
    %v1702 = vunpack.c.h.b16 %v309
    %v1703 = vunpack.c.l.b16 %v310
    %v1704 = vunpack.c.h.b16 %v310
    %v1705 = vunpack.c.l.b16 %v311
    %v1706 = vunpack.c.h.b16 %v311
    %v1707 = vunpack.c.l.b16 %v312
    %v1708 = vunpack.c.h.b16 %v312
    %v1709 = vunpack.c.l.b16 %v313
    %v1710 = vunpack.c.h.b16 %v313
    %v1711 = vunpack.c.l.b16 %v314
    %v1712 = vunpack.c.h.b16 %v314
    %v1713 = vunpack.c.l.b16 %v315
    %v1714 = vunpack.c.h.b16 %v315
    %v1715 = vunpack.c.l.b16 %v316
    %v1716 = vunpack.c.h.b16 %v316
    %v1717 = vunpack.c.l.b16 %v317
    %v1718 = vunpack.c.h.b16 %v317
    %v1719 = vunpack.c.l.b16 %v318
    %v1720 = vunpack.c.h.b16 %v318
    %v1721 = vunpack.c.l.b16 %v319
    %v1722 = vunpack.c.h.b16 %v319
    %v1723 = vunpack.c.l.b16 %v320
    %v1724 = vunpack.c.h.b16 %v320
    %v1725 = vunpack.c.l.b16 %v321
    %v1726 = vunpack.c.h.b16 %v321
    %v1727 = vunpack.c.l.b16 %v322
    %v1728 = vunpack.c.h.b16 %v322
    %v1729 = vunpack.c.l.b16 %v323
    %v1730 = vunpack.c.h.b16 %v323
    %v1731 = vunpack.c.l.b16 %v324
    %v1732 = vunpack.c.h.b16 %v324
    %v1733 = vunpack.c.l.b16 %v325
    %v1734 = vunpack.c.h.b16 %v325
    %v1735 = vunpack.c.l.b16 %v326
    %v1736 = vunpack.c.h.b16 %v326
    %v1737 = vunpack.c.l.b16 %v327
    %v1738 = vunpack.c.h.b16 %v327
    %v1739 = vunpack.c.l.b16 %v328
    %v1740 = vunpack.c.h.b16 %v328
    %v1741 = vunpack.c.l.b16 %v329
    %v1742 = vunpack.c.h.b16 %v329
    %v1743 = vunpack.c.l.b16 %v330
    %v1744 = vunpack.c.h.b16 %v330
    %v1745 = vunpack.c.l.b16 %v331
    %v1746 = vunpack.c.h.b16 %v331
    %v1747 = vunpack.c.l.b16 %v332
    %v1748 = vunpack.c.h.b16 %v332
    %v1749 = vunpack.c.l.b16 %v333
    %v1750 = vunpack.c.h.b16 %v333
    %v1751 = vunpack.c.l.b16 %v334
    %v1752 = vunpack.c.h.b16 %v334
    %v1753 = vunpack.c.l.b16 %v335
    %v1754 = vunpack.c.h.b16 %v335
    %v1755 = vunpack.c.l.b16 %v336
    %v1756 = vunpack.c.h.b16 %v336
    %v1757 = vunpack.c.l.b16 %v337
    %v1758 = vunpack.c.h.b16 %v337
    %v1759 = vunpack.c.l.b16 %v338
    %v1760 = vunpack.c.h.b16 %v338
    %v1761 = vunpack.c.l.b16 %v339
    %v1762 = vunpack.c.h.b16 %v339
    %v1763 = vunpack.c.l.b16 %v340
    %v1764 = vunpack.c.h.b16 %v340
    %v1765 = vunpack.c.l.b16 %v341
    %v1766 = vunpack.c.h.b16 %v341
    %v1767 = vunpack.c.l.b16 %v342
    %v1768 = vunpack.c.h.b16 %v342
    %v1769 = vunpack.c.l.b16 %v343
    %v1770 = vunpack.c.h.b16 %v343
    %v1771 = vunpack.c.l.b16 %v344
    %v1772 = vunpack.c.h.b16 %v344
    %v1773 = vunpack.c.l.b16 %v345
    %v1774 = vunpack.c.h.b16 %v345
    %v1775 = vunpack.c.l.b16 %v346
    %v1776 = vunpack.c.h.b16 %v346
    %v1777 = vunpack.c.l.b16 %v347
    %v1778 = vunpack.c.h.b16 %v347
    %v1779 = vunpack.c.l.b16 %v348
    %v1780 = vunpack.c.h.b16 %v348
    %v1781 = vunpack.c.l.b16 %v349
    %v1782 = vunpack.c.h.b16 %v349
    %v1783 = vunpack.c.l.b16 %v350
    %v1784 = vunpack.c.h.b16 %v350
    %v1785 = vunpack.c.l.b16 %v351
    %v1786 = vunpack.c.h.b16 %v351
    %v1787 = vunpack.c.l.b16 %v352
    %v1788 = vunpack.c.h.b16 %v352
    %v1789 = vunpack.c.l.b16 %v353
    %v1790 = vunpack.c.h.b16 %v353
    %v1791 = vunpack.c.l.b16 %v354
    %v1792 = vunpack.c.h.b16 %v354
    %v1793 = vunpack.c.l.b16 %v355
    %v1794 = vunpack.c.h.b16 %v355
    %v1795 = vunpack.c.l.b16 %v356
    %v1796 = vunpack.c.h.b16 %v356
    %v1797 = vunpack.c.l.b16 %v357
    %v1798 = vunpack.c.h.b16 %v357
    %v1799 = vunpack.c.l.b16 %v358
    %v1800 = vunpack.c.h.b16 %v358
    %v1801 = vunpack.c.l.b16 %v359
    %v1802 = vunpack.c.h.b16 %v359
    %v1803 = vunpack.c.l.b16 %v360
    %v1804 = vunpack.c.h.b16 %v360
    %v1805 = vunpack.c.l.b16 %v361
    %v1806 = vunpack.c.h.b16 %v361
    %v1807 = vunpack.c.l.b16 %v362
    %v1808 = vunpack.c.h.b16 %v362
    %v1809 = vunpack.c.l.b16 %v363
    %v1810 = vunpack.c.h.b16 %v363
    %v1811 = vunpack.c.l.b16 %v364
    %v1812 = vunpack.c.h.b16 %v364
    %v1813 = vunpack.c.l.b16 %v365
    %v1814 = vunpack.c.h.b16 %v365
    %v1815 = vunpack.c.l.b16 %v366
    %v1816 = vunpack.c.h.b16 %v366
    %v1817 = vunpack.c.l.b16 %v367
    %v1818 = vunpack.c.h.b16 %v367
    %v1819 = vunpack.c.l.b16 %v368
    %v1820 = vunpack.c.h.b16 %v368
    %v1821 = vunpack.c.l.b16 %v369
    %v1822 = vunpack.c.h.b16 %v369
    %v1823 = vunpack.c.l.b16 %v370
    %v1824 = vunpack.c.h.b16 %v370
    %v1825 = vunpack.c.l.b16 %v371
    %v1826 = vunpack.c.h.b16 %v371
    %v1827 = vunpack.c.l.b16 %v372
    %v1828 = vunpack.c.h.b16 %v372
    %v1829 = vunpack.c.l.b16 %v373
    %v1830 = vunpack.c.h.b16 %v373
    %v1831 = vunpack.c.l.b16 %v374
    %v1832 = vunpack.c.h.b16 %v374
    %v1833 = vunpack.c.l.b16 %v375
    %v1834 = vunpack.c.h.b16 %v375
    %v1835 = vunpack.c.l.b16 %v376
    %v1836 = vunpack.c.h.b16 %v376
    %v1837 = vunpack.c.l.b16 %v377
    %v1838 = vunpack.c.h.b16 %v377
    %v1839 = vunpack.c.l.b16 %v378
    %v1840 = vunpack.c.h.b16 %v378
    %v1841 = vunpack.c.l.b16 %v379
    %v1842 = vunpack.c.h.b16 %v379
    %v1843 = vunpack.c.l.b16 %v380
    %v1844 = vunpack.c.h.b16 %v380
    %v1845 = vunpack.c.l.b16 %v381
    %v1846 = vunpack.c.h.b16 %v381
    %v1847 = vunpack.c.l.b16 %v382
    %v1848 = vunpack.c.h.b16 %v382
    %v1849 = vunpack.c.l.b16 %v383
    %v1850 = vunpack.c.h.b16 %v383
    %v1851 = vunpack.c.l.b16 %v384
    %v1852 = vunpack.c.h.b16 %v384
    %v1853 = vunpack.c.l.b16 %v385
    %v1854 = vunpack.c.h.b16 %v385
    %v1855 = vunpack.c.l.b16 %v386
    %v1856 = vunpack.c.h.b16 %v386
    %v1857 = vunpack.c.l.b16 %v387
    %v1858 = vunpack.c.h.b16 %v387
    %v1859 = vunpack.c.l.b16 %v388
    %v1860 = vunpack.c.h.b16 %v388
    %v1861 = vunpack.c.l.b16 %v389
    %v1862 = vunpack.c.h.b16 %v389
    %v1863 = vunpack.c.l.b16 %v390
    %v1864 = vunpack.c.h.b16 %v390
    %v1865 = vunpack.c.l.b16 %v391
    %v1866 = vunpack.c.h.b16 %v391
    %v1867 = vunpack.c.l.b16 %v392
    %v1868 = vunpack.c.h.b16 %v392
    %v1869 = vunpack.c.l.b16 %v393
    %v1870 = vunpack.c.h.b16 %v393
    %v1871 = vunpack.c.l.b16 %v394
    %v1872 = vunpack.c.h.b16 %v394
    %v1873 = vunpack.c.l.b16 %v395
    %v1874 = vunpack.c.h.b16 %v395
    %v1875 = vunpack.c.l.b16 %v396
    %v1876 = vunpack.c.h.b16 %v396
    %v1877 = vunpack.c.l.b16 %v397
    %v1878 = vunpack.c.h.b16 %v397
    %v1879 = vunpack.c.l.b16 %v398
    %v1880 = vunpack.c.h.b16 %v398
    %v1881 = vunpack.c.l.b16 %v399
    %v1882 = vunpack.c.h.b16 %v399
    %v1883 = vunpack.c.l.b16 %v400
    %v1884 = vunpack.c.h.b16 %v400
    %v1885 = vunpack.c.l.b16 %v401
    %v1886 = vunpack.c.h.b16 %v401
    %v1887 = vunpack.c.l.b16 %v402
    %v1888 = vunpack.c.h.b16 %v402
    %v1889 = vunpack.c.l.b16 %v403
    %v1890 = vunpack.c.h.b16 %v403
    %v1891 = vunpack.c.l.b16 %v404
    %v1892 = vunpack.c.h.b16 %v404
    %v1893 = vunpack.c.l.b16 %v405
    %v1894 = vunpack.c.h.b16 %v405
    %v1895 = vunpack.c.l.b16 %v406
    %v1896 = vunpack.c.h.b16 %v406
    %v1897 = vunpack.c.l.b16 %v407
    %v1898 = vunpack.c.h.b16 %v407
    %v1899 = vunpack.c.l.b16 %v408
    %v1900 = vunpack.c.h.b16 %v408
    %v1901 = vunpack.c.l.b16 %v409
    %v1902 = vunpack.c.h.b16 %v409
    %v1903 = vunpack.c.l.b16 %v410
    %v1904 = vunpack.c.h.b16 %v410
    %v1905 = vunpack.c.l.b16 %v411
    %v1906 = vunpack.c.h.b16 %v411
    %v1907 = vunpack.c.l.b16 %v412
    %v1908 = vunpack.c.h.b16 %v412
    %v1909 = vunpack.c.l.b16 %v413
    %v1910 = vunpack.c.h.b16 %v413
    %v1911 = vunpack.c.l.b16 %v414
    %v1912 = vunpack.c.h.b16 %v414
    %v1913 = vunpack.c.l.b16 %v415
    %v1914 = vunpack.c.h.b16 %v415
    %v1915 = vunpack.c.l.b16 %v416
    %v1916 = vunpack.c.h.b16 %v416
    %v1917 = vunpack.c.l.b16 %v417
    %v1918 = vunpack.c.h.b16 %v417
    %v1919 = vunpack.c.l.b16 %v418
    %v1920 = vunpack.c.h.b16 %v418
    %v1921 = vunpack.c.l.b16 %v419
    %v1922 = vunpack.c.h.b16 %v419
    %v1923 = vunpack.c.l.b16 %v420
    %v1924 = vunpack.c.h.b16 %v420
    %v1925 = vunpack.c.l.b16 %v421
    %v1926 = vunpack.c.h.b16 %v421
    %v1927 = vunpack.c.l.b16 %v422
    %v1928 = vunpack.c.h.b16 %v422
    %v1929 = vunpack.c.l.b16 %v423
    %v1930 = vunpack.c.h.b16 %v423
    %v1931 = vunpack.c.l.b16 %v424
    %v1932 = vunpack.c.h.b16 %v424
    %v1933 = vunpack.c.l.b16 %v425
    %v1934 = vunpack.c.h.b16 %v425
    %v1935 = vunpack.c.l.b16 %v426
    %v1936 = vunpack.c.h.b16 %v426
    %v1937 = vunpack.c.l.b16 %v427
    %v1938 = vunpack.c.h.b16 %v427
    %v1939 = vunpack.c.l.b16 %v428
    %v1940 = vunpack.c.h.b16 %v428
    %v1941 = vunpack.c.l.b16 %v429
    %v1942 = vunpack.c.h.b16 %v429
    %v1943 = vunpack.c.l.b16 %v430
    %v1944 = vunpack.c.h.b16 %v430
    %v1945 = vunpack.c.l.b16 %v431
    %v1946 = vunpack.c.h.b16 %v431
    %v1947 = vunpack.c.l.b16 %v432
    %v1948 = vunpack.c.h.b16 %v432
    %v1949 = vunpack.c.l.b16 %v433
    %v1950 = vunpack.c.h.b16 %v433
    %v1951 = vunpack.c.l.b16 %v434
    %v1952 = vunpack.c.h.b16 %v434
    %v1953 = vunpack.c.l.b16 %v435
    %v1954 = vunpack.c.h.b16 %v435
    %v1955 = vunpack.c.l.b16 %v436
    %v1956 = vunpack.c.h.b16 %v436
    %v1957 = vunpack.c.l.b16 %v437
    %v1958 = vunpack.c.h.b16 %v437
    %v1959 = vunpack.c.l.b16 %v438
    %v1960 = vunpack.c.h.b16 %v438
    %v1961 = vunpack.c.l.b16 %v439
    %v1962 = vunpack.c.h.b16 %v439
    %v1963 = vunpack.c.l.b16 %v440
    %v1964 = vunpack.c.h.b16 %v440
    %v1965 = vunpack.c.l.b16 %v441
    %v1966 = vunpack.c.h.b16 %v441
    %v1967 = vunpack.c.l.b16 %v442
    %v1968 = vunpack.c.h.b16 %v442
    %v1969 = vunpack.c.l.b16 %v443
    %v1970 = vunpack.c.h.b16 %v443
    %v1971 = vunpack.c.l.b16 %v444
    %v1972 = vunpack.c.h.b16 %v444
    %v1973 = vunpack.c.l.b16 %v445
    %v1974 = vunpack.c.h.b16 %v445
    %v1975 = vunpack.c.l.b16 %v446
    %v1976 = vunpack.c.h.b16 %v446
    %v1977 = vunpack.c.l.b16 %v447
    %v1978 = vunpack.c.h.b16 %v447
    %v1979 = vunpack.c.l.b16 %v448
    %v1980 = vunpack.c.h.b16 %v448
    %v1981 = vunpack.c.l.b16 %v449
    %v1982 = vunpack.c.h.b16 %v449
    %v1983 = vunpack.c.l.b16 %v450
    %v1984 = vunpack.c.h.b16 %v450
    %v1985 = vunpack.c.l.b16 %v451
    %v1986 = vunpack.c.h.b16 %v451
    %v1987 = vunpack.c.l.b16 %v452
    %v1988 = vunpack.c.h.b16 %v452
    %v1989 = vunpack.c.l.b16 %v453
    %v1990 = vunpack.c.h.b16 %v453
    %v1991 = vunpack.c.l.b16 %v454
    %v1992 = vunpack.c.h.b16 %v454
    %v1993 = vunpack.c.l.b16 %v455
    %v1994 = vunpack.c.h.b16 %v455
    %v1995 = vunpack.c.l.b16 %v456
    %v1996 = vunpack.c.h.b16 %v456
    %v1997 = vunpack.c.l.b16 %v457
    %v1998 = vunpack.c.h.b16 %v457
    %v1999 = vunpack.c.l.b16 %v458
    %v2000 = vunpack.c.h.b16 %v458
    %v2001 = vunpack.c.l.b16 %v459
    %v2002 = vunpack.c.h.b16 %v459
    %v2003 = vunpack.c.l.b16 %v460
    %v2004 = vunpack.c.h.b16 %v460
    %v2005 = vunpack.c.l.b16 %v461
    %v2006 = vunpack.c.h.b16 %v461
    %v2007 = vunpack.c.l.b16 %v462
    %v2008 = vunpack.c.h.b16 %v462
    %v2009 = vunpack.c.l.b16 %v463
    %v2010 = vunpack.c.h.b16 %v463
    %v2011 = vunpack.c.l.b16 %v464
    %v2012 = vunpack.c.h.b16 %v464
    %v2013 = vunpack.c.l.b16 %v465
    %v2014 = vunpack.c.h.b16 %v465
    %v2015 = vunpack.c.l.b16 %v466
    %v2016 = vunpack.c.h.b16 %v466
    %v2017 = vunpack.c.l.b16 %v467
    %v2018 = vunpack.c.h.b16 %v467
    %v2019 = vunpack.c.l.b16 %v468
    %v2020 = vunpack.c.h.b16 %v468
    %v2021 = vunpack.c.l.b16 %v469
    %v2022 = vunpack.c.h.b16 %v469
    %v2023 = vunpack.c.l.b16 %v470
    %v2024 = vunpack.c.h.b16 %v470
    %v2025 = vunpack.c.l.b16 %v471
    %v2026 = vunpack.c.h.b16 %v471
    %v2027 = vunpack.c.l.b16 %v472
    %v2028 = vunpack.c.h.b16 %v472
    %v2029 = vunpack.c.l.b16 %v473
    %v2030 = vunpack.c.h.b16 %v473
    %v2031 = vunpack.c.l.b16 %v474
    %v2032 = vunpack.c.h.b16 %v474
    %v2033 = vunpack.c.l.b16 %v475
    %v2034 = vunpack.c.h.b16 %v475
    %v2035 = vunpack.c.l.b16 %v476
    %v2036 = vunpack.c.h.b16 %v476
    %v2037 = vunpack.c.l.b16 %v477
    %v2038 = vunpack.c.h.b16 %v477
    %v2039 = vunpack.c.l.b16 %v478
    %v2040 = vunpack.c.h.b16 %v478
    %v2041 = vunpack.c.l.b16 %v479
    %v2042 = vunpack.c.h.b16 %v479
    %v2043 = vunpack.c.l.b16 %v480
    %v2044 = vunpack.c.h.b16 %v480
    %v2045 = vunpack.c.l.b16 %v481
    %v2046 = vunpack.c.h.b16 %v481
    %v2047 = vunpack.c.l.b16 %v482
    %v2048 = vunpack.c.h.b16 %v482
    %v2049 = vunpack.c.l.b16 %v483
    %v2050 = vunpack.c.h.b16 %v483
    %v2051 = vunpack.c.l.b16 %v484
    %v2052 = vunpack.c.h.b16 %v484
    %v2053 = vunpack.c.l.b16 %v485
    %v2054 = vunpack.c.h.b16 %v485
    %v2055 = vunpack.c.l.b16 %v486
    %v2056 = vunpack.c.h.b16 %v486
    %v2057 = vunpack.c.l.b16 %v487
    %v2058 = vunpack.c.h.b16 %v487
    %v2059 = vunpack.c.l.b16 %v488
    %v2060 = vunpack.c.h.b16 %v488
    %v2061 = vunpack.c.l.b16 %v489
    %v2062 = vunpack.c.h.b16 %v489
    %v2063 = vunpack.c.l.b16 %v490
    %v2064 = vunpack.c.h.b16 %v490
    %v2065 = vunpack.c.l.b16 %v491
    %v2066 = vunpack.c.h.b16 %v491
    %v2067 = vunpack.c.l.b16 %v492
    %v2068 = vunpack.c.h.b16 %v492
    %v2069 = vunpack.c.l.b16 %v493
    %v2070 = vunpack.c.h.b16 %v493
    %v2071 = vunpack.c.l.b16 %v494
    %v2072 = vunpack.c.h.b16 %v494
    %v2073 = vunpack.c.l.b16 %v495
    %v2074 = vunpack.c.h.b16 %v495
    %v2075 = vunpack.c.l.b16 %v496
    %v2076 = vunpack.c.h.b16 %v496
    %v2077 = vunpack.c.l.b16 %v497
    %v2078 = vunpack.c.h.b16 %v497
    %v2079 = vunpack.c.l.b16 %v498
    %v2080 = vunpack.c.h.b16 %v498
    %v2081 = vunpack.c.l.b16 %v499
    %v2082 = vunpack.c.h.b16 %v499
    %v2083 = vunpack.c.l.b16 %v500
    %v2084 = vunpack.c.h.b16 %v500
    %v2085 = vunpack.c.l.b16 %v501
    %v2086 = vunpack.c.h.b16 %v501
    %v2087 = vunpack.c.l.b16 %v502
    %v2088 = vunpack.c.h.b16 %v502
    %v2089 = vunpack.c.l.b16 %v503
    %v2090 = vunpack.c.h.b16 %v503
    %v2091 = vunpack.c.l.b16 %v504
    %v2092 = vunpack.c.h.b16 %v504
    %v2093 = vunpack.c.l.b16 %v505
    %v2094 = vunpack.c.h.b16 %v505
    %v2095 = vunpack.c.l.b16 %v506
    %v2096 = vunpack.c.h.b16 %v506
    %v2097 = vunpack.c.l.b16 %v507
    %v2098 = vunpack.c.h.b16 %v507
    %v2099 = vunpack.c.l.b16 %v508
    %v2100 = vunpack.c.h.b16 %v508
    %v2101 = vunpack.c.l.b16 %v509
    %v2102 = vunpack.c.h.b16 %v509
    %v2103 = vunpack.c.l.b16 %v510
    %v2104 = vunpack.c.h.b16 %v510
    %v2105 = vunpack.c.l.b16 %v511
    %v2106 = vunpack.c.h.b16 %v511
    %v2107 = vunpack.c.l.b16 %v512
    %v2108 = vunpack.c.h.b16 %v512
    %v2109 = vunpack.c.l.b16 %v513
    %v2110 = vunpack.c.h.b16 %v513
    %v2111 = vunpack.c.l.b16 %v514
    %v2112 = vunpack.c.h.b16 %v514
    %v2113 = vunpack.c.l.b16 %v515
    %v2114 = vunpack.c.h.b16 %v515
    %v2115 = vunpack.c.l.b16 %v516
    %v2116 = vunpack.c.h.b16 %v516
    %v2117 = vunpack.c.l.b16 %v517
    %v2118 = vunpack.c.h.b16 %v517
    %v2119 = vunpack.c.l.b16 %v518
    %v2120 = vunpack.c.h.b16 %v518
    %v2121 = vunpack.c.l.b16 %v519
    %v2122 = vunpack.c.h.b16 %v519
    %v2123 = vunpack.c.l.b16 %v520
    %v2124 = vunpack.c.h.b16 %v520
    %v2125 = vunpack.c.l.b16 %v521
    %v2126 = vunpack.c.h.b16 %v521
    %v2127 = vunpack.c.l.b16 %v522
    %v2128 = vunpack.c.h.b16 %v522
    %v2129 = vunpack.c.l.b16 %v523
    %v2130 = vunpack.c.h.b16 %v523
    %v2131 = vunpack.c.l.b16 %v524
    %v2132 = vunpack.c.h.b16 %v524
    %v2133 = vunpack.c.l.b16 %v525
    %v2134 = vunpack.c.h.b16 %v525
    %v2135 = vunpack.c.l.b16 %v526
    %v2136 = vunpack.c.h.b16 %v526
    %v2137 = vunpack.c.l.b16 %v527
    %v2138 = vunpack.c.h.b16 %v527
    %v2139 = vunpack.c.l.b16 %v528
    %v2140 = vunpack.c.h.b16 %v528
    %v2141 = vunpack.c.l.b16 %v529
    %v2142 = vunpack.c.h.b16 %v529
    %v2143 = vunpack.c.l.b16 %v530
    %v2144 = vunpack.c.h.b16 %v530
    %v2145 = vpack.c.b16 %v1123, %v1121
    %v2146 = vpack.c.b16 %v1124, %v1122
    %v2147 = vpack.c.b16 %v1127, %v1125
    %v2148 = vpack.c.b16 %v1128, %v1126
    %v2149 = vpack.c.b16 %v1131, %v1129
    %v2150 = vpack.c.b16 %v1132, %v1130
    %v2151 = vpack.c.b16 %v1135, %v1133
    %v2152 = vpack.c.b16 %v1136, %v1134
    %v2153 = vpack.c.b16 %v1139, %v1137
    %v2154 = vpack.c.b16 %v1140, %v1138
    %v2155 = vpack.c.b16 %v1143, %v1141
    %v2156 = vpack.c.b16 %v1144, %v1142
    %v2157 = vpack.c.b16 %v1147, %v1145
    %v2158 = vpack.c.b16 %v1148, %v1146
    %v2159 = vpack.c.b16 %v1151, %v1149
    %v2160 = vpack.c.b16 %v1152, %v1150
    %v2161 = vpack.c.b16 %v1155, %v1153
    %v2162 = vpack.c.b16 %v1156, %v1154
    %v2163 = vpack.c.b16 %v1159, %v1157
    %v2164 = vpack.c.b16 %v1160, %v1158
    %v2165 = vpack.c.b16 %v1163, %v1161
    %v2166 = vpack.c.b16 %v1164, %v1162
    %v2167 = vpack.c.b16 %v1167, %v1165
    %v2168 = vpack.c.b16 %v1168, %v1166
    %v2169 = vpack.c.b16 %v1171, %v1169
    %v2170 = vpack.c.b16 %v1172, %v1170
    %v2171 = vpack.c.b16 %v1175, %v1173
    %v2172 = vpack.c.b16 %v1176, %v1174
    %v2173 = vpack.c.b16 %v1179, %v1177
    %v2174 = vpack.c.b16 %v1180, %v1178
    %v2175 = vpack.c.b16 %v1183, %v1181
    %v2176 = vpack.c.b16 %v1184, %v1182
    %v2177 = vpack.c.b16 %v1187, %v1185
    %v2178 = vpack.c.b16 %v1188, %v1186
    %v2179 = vpack.c.b16 %v1191, %v1189
    %v2180 = vpack.c.b16 %v1192, %v1190
    %v2181 = vpack.c.b16 %v1195, %v1193
    %v2182 = vpack.c.b16 %v1196, %v1194
    %v2183 = vpack.c.b16 %v1199, %v1197
    %v2184 = vpack.c.b16 %v1200, %v1198
    %v2185 = vpack.c.b16 %v1203, %v1201
    %v2186 = vpack.c.b16 %v1204, %v1202
    %v2187 = vpack.c.b16 %v1207, %v1205
    %v2188 = vpack.c.b16 %v1208, %v1206
    %v2189 = vpack.c.b16 %v1211, %v1209
    %v2190 = vpack.c.b16 %v1212, %v1210
    %v2191 = vpack.c.b16 %v1215, %v1213
    %v2192 = vpack.c.b16 %v1216, %v1214
    %v2193 = vpack.c.b16 %v1219, %v1217
    %v2194 = vpack.c.b16 %v1220, %v1218
    %v2195 = vpack.c.b16 %v1223, %v1221
    %v2196 = vpack.c.b16 %v1224, %v1222
    %v2197 = vpack.c.b16 %v1227, %v1225
    %v2198 = vpack.c.b16 %v1228, %v1226
    %v2199 = vpack.c.b16 %v1231, %v1229
    %v2200 = vpack.c.b16 %v1232, %v1230
    %v2201 = vpack.c.b16 %v1235, %v1233
    %v2202 = vpack.c.b16 %v1236, %v1234
    %v2203 = vpack.c.b16 %v1239, %v1237
    %v2204 = vpack.c.b16 %v1240, %v1238
    %v2205 = vpack.c.b16 %v1243, %v1241
    %v2206 = vpack.c.b16 %v1244, %v1242
    %v2207 = vpack.c.b16 %v1247, %v1245
    %v2208 = vpack.c.b16 %v1248, %v1246
    %v2209 = vpack.c.b16 %v1251, %v1249
    %v2210 = vpack.c.b16 %v1252, %v1250
    %v2211 = vpack.c.b16 %v1255, %v1253
    %v2212 = vpack.c.b16 %v1256, %v1254
    %v2213 = vpack.c.b16 %v1259, %v1257
    %v2214 = vpack.c.b16 %v1260, %v1258
    %v2215 = vpack.c.b16 %v1263, %v1261
    %v2216 = vpack.c.b16 %v1264, %v1262
    %v2217 = vpack.c.b16 %v1267, %v1265
    %v2218 = vpack.c.b16 %v1268, %v1266
    %v2219 = vpack.c.b16 %v1271, %v1269
    %v2220 = vpack.c.b16 %v1272, %v1270
    %v2221 = vpack.c.b16 %v1275, %v1273
    %v2222 = vpack.c.b16 %v1276, %v1274
    %v2223 = vpack.c.b16 %v1279, %v1277
    %v2224 = vpack.c.b16 %v1280, %v1278
    %v2225 = vpack.c.b16 %v1283, %v1281
    %v2226 = vpack.c.b16 %v1284, %v1282
    %v2227 = vpack.c.b16 %v1287, %v1285
    %v2228 = vpack.c.b16 %v1288, %v1286
    %v2229 = vpack.c.b16 %v1291, %v1289
    %v2230 = vpack.c.b16 %v1292, %v1290
    %v2231 = vpack.c.b16 %v1295, %v1293
    %v2232 = vpack.c.b16 %v1296, %v1294
    %v2233 = vpack.c.b16 %v1299, %v1297
    %v2234 = vpack.c.b16 %v1300, %v1298
    %v2235 = vpack.c.b16 %v1303, %v1301
    %v2236 = vpack.c.b16 %v1304, %v1302
    %v2237 = vpack.c.b16 %v1307, %v1305
    %v2238 = vpack.c.b16 %v1308, %v1306
    %v2239 = vpack.c.b16 %v1311, %v1309
    %v2240 = vpack.c.b16 %v1312, %v1310
    %v2241 = vpack.c.b16 %v1315, %v1313
    %v2242 = vpack.c.b16 %v1316, %v1314
    %v2243 = vpack.c.b16 %v1319, %v1317
    %v2244 = vpack.c.b16 %v1320, %v1318
    %v2245 = vpack.c.b16 %v1323, %v1321
    %v2246 = vpack.c.b16 %v1324, %v1322
    %v2247 = vpack.c.b16 %v1327, %v1325
    %v2248 = vpack.c.b16 %v1328, %v1326
    %v2249 = vpack.c.b16 %v1331, %v1329
    %v2250 = vpack.c.b16 %v1332, %v1330
    %v2251 = vpack.c.b16 %v1335, %v1333
    %v2252 = vpack.c.b16 %v1336, %v1334
    %v2253 = vpack.c.b16 %v1339, %v1337
    %v2254 = vpack.c.b16 %v1340, %v1338
    %v2255 = vpack.c.b16 %v1343, %v1341
    %v2256 = vpack.c.b16 %v1344, %v1342
    %v2257 = vpack.c.b16 %v1347, %v1345
    %v2258 = vpack.c.b16 %v1348, %v1346
    %v2259 = vpack.c.b16 %v1351, %v1349
    %v2260 = vpack.c.b16 %v1352, %v1350
    %v2261 = vpack.c.b16 %v1355, %v1353
    %v2262 = vpack.c.b16 %v1356, %v1354
    %v2263 = vpack.c.b16 %v1359, %v1357
    %v2264 = vpack.c.b16 %v1360, %v1358
    %v2265 = vpack.c.b16 %v1363, %v1361
    %v2266 = vpack.c.b16 %v1364, %v1362
    %v2267 = vpack.c.b16 %v1367, %v1365
    %v2268 = vpack.c.b16 %v1368, %v1366
    %v2269 = vpack.c.b16 %v1371, %v1369
    %v2270 = vpack.c.b16 %v1372, %v1370
    %v2271 = vpack.c.b16 %v1375, %v1373
    %v2272 = vpack.c.b16 %v1376, %v1374
    %v2273 = vpack.c.b16 %v1379, %v1377
    %v2274 = vpack.c.b16 %v1380, %v1378
    %v2275 = vpack.c.b16 %v1383, %v1381
    %v2276 = vpack.c.b16 %v1384, %v1382
    %v2277 = vpack.c.b16 %v1387, %v1385
    %v2278 = vpack.c.b16 %v1388, %v1386
    %v2279 = vpack.c.b16 %v1391, %v1389
    %v2280 = vpack.c.b16 %v1392, %v1390
    %v2281 = vpack.c.b16 %v1395, %v1393
    %v2282 = vpack.c.b16 %v1396, %v1394
    %v2283 = vpack.c.b16 %v1399, %v1397
    %v2284 = vpack.c.b16 %v1400, %v1398
    %v2285 = vpack.c.b16 %v1403, %v1401
    %v2286 = vpack.c.b16 %v1404, %v1402
    %v2287 = vpack.c.b16 %v1407, %v1405
    %v2288 = vpack.c.b16 %v1408, %v1406
    %v2289 = vpack.c.b16 %v1411, %v1409
    %v2290 = vpack.c.b16 %v1412, %v1410
    %v2291 = vpack.c.b16 %v1415, %v1413
    %v2292 = vpack.c.b16 %v1416, %v1414
    %v2293 = vpack.c.b16 %v1419, %v1417
    %v2294 = vpack.c.b16 %v1420, %v1418
    %v2295 = vpack.c.b16 %v1423, %v1421
    %v2296 = vpack.c.b16 %v1424, %v1422
    %v2297 = vpack.c.b16 %v1427, %v1425
    %v2298 = vpack.c.b16 %v1428, %v1426
    %v2299 = vpack.c.b16 %v1431, %v1429
    %v2300 = vpack.c.b16 %v1432, %v1430
    %v2301 = vpack.c.b16 %v1435, %v1433
    %v2302 = vpack.c.b16 %v1436, %v1434
    %v2303 = vpack.c.b16 %v1439, %v1437
    %v2304 = vpack.c.b16 %v1440, %v1438
    %v2305 = vpack.c.b16 %v1443, %v1441
    %v2306 = vpack.c.b16 %v1444, %v1442
    %v2307 = vpack.c.b16 %v1447, %v1445
    %v2308 = vpack.c.b16 %v1448, %v1446
    %v2309 = vpack.c.b16 %v1451, %v1449
    %v2310 = vpack.c.b16 %v1452, %v1450
    %v2311 = vpack.c.b16 %v1455, %v1453
    %v2312 = vpack.c.b16 %v1456, %v1454
    %v2313 = vpack.c.b16 %v1459, %v1457
    %v2314 = vpack.c.b16 %v1460, %v1458
    %v2315 = vpack.c.b16 %v1463, %v1461
    %v2316 = vpack.c.b16 %v1464, %v1462
    %v2317 = vpack.c.b16 %v1467, %v1465
    %v2318 = vpack.c.b16 %v1468, %v1466
    %v2319 = vpack.c.b16 %v1471, %v1469
    %v2320 = vpack.c.b16 %v1472, %v1470
    %v2321 = vpack.c.b16 %v1475, %v1473
    %v2322 = vpack.c.b16 %v1476, %v1474
    %v2323 = vpack.c.b16 %v1479, %v1477
    %v2324 = vpack.c.b16 %v1480, %v1478
    %v2325 = vpack.c.b16 %v1483, %v1481
    %v2326 = vpack.c.b16 %v1484, %v1482
    %v2327 = vpack.c.b16 %v1487, %v1485
    %v2328 = vpack.c.b16 %v1488, %v1486
    %v2329 = vpack.c.b16 %v1491, %v1489
    %v2330 = vpack.c.b16 %v1492, %v1490
    %v2331 = vpack.c.b16 %v1495, %v1493
    %v2332 = vpack.c.b16 %v1496, %v1494
    %v2333 = vpack.c.b16 %v1499, %v1497
    %v2334 = vpack.c.b16 %v1500, %v1498
    %v2335 = vpack.c.b16 %v1503, %v1501
    %v2336 = vpack.c.b16 %v1504, %v1502
    %v2337 = vpack.c.b16 %v1507, %v1505
    %v2338 = vpack.c.b16 %v1508, %v1506
    %v2339 = vpack.c.b16 %v1511, %v1509
    %v2340 = vpack.c.b16 %v1512, %v1510
    %v2341 = vpack.c.b16 %v1515, %v1513
    %v2342 = vpack.c.b16 %v1516, %v1514
    %v2343 = vpack.c.b16 %v1519, %v1517
    %v2344 = vpack.c.b16 %v1520, %v1518
    %v2345 = vpack.c.b16 %v1523, %v1521
    %v2346 = vpack.c.b16 %v1524, %v1522
    %v2347 = vpack.c.b16 %v1527, %v1525
    %v2348 = vpack.c.b16 %v1528, %v1526
    %v2349 = vpack.c.b16 %v1531, %v1529
    %v2350 = vpack.c.b16 %v1532, %v1530
    %v2351 = vpack.c.b16 %v1535, %v1533
    %v2352 = vpack.c.b16 %v1536, %v1534
    %v2353 = vpack.c.b16 %v1539, %v1537
    %v2354 = vpack.c.b16 %v1540, %v1538
    %v2355 = vpack.c.b16 %v1543, %v1541
    %v2356 = vpack.c.b16 %v1544, %v1542
    %v2357 = vpack.c.b16 %v1547, %v1545
    %v2358 = vpack.c.b16 %v1548, %v1546
    %v2359 = vpack.c.b16 %v1551, %v1549
    %v2360 = vpack.c.b16 %v1552, %v1550
    %v2361 = vpack.c.b16 %v1555, %v1553
    %v2362 = vpack.c.b16 %v1556, %v1554
    %v2363 = vpack.c.b16 %v1559, %v1557
    %v2364 = vpack.c.b16 %v1560, %v1558
    %v2365 = vpack.c.b16 %v1563, %v1561
    %v2366 = vpack.c.b16 %v1564, %v1562
    %v2367 = vpack.c.b16 %v1567, %v1565
    %v2368 = vpack.c.b16 %v1568, %v1566
    %v2369 = vpack.c.b16 %v1571, %v1569
    %v2370 = vpack.c.b16 %v1572, %v1570
    %v2371 = vpack.c.b16 %v1575, %v1573
    %v2372 = vpack.c.b16 %v1576, %v1574
    %v2373 = vpack.c.b16 %v1579, %v1577
    %v2374 = vpack.c.b16 %v1580, %v1578
    %v2375 = vpack.c.b16 %v1583, %v1581
    %v2376 = vpack.c.b16 %v1584, %v1582
    %v2377 = vpack.c.b16 %v1587, %v1585
    %v2378 = vpack.c.b16 %v1588, %v1586
    %v2379 = vpack.c.b16 %v1591, %v1589
    %v2380 = vpack.c.b16 %v1592, %v1590
    %v2381 = vpack.c.b16 %v1595, %v1593
    %v2382 = vpack.c.b16 %v1596, %v1594
    %v2383 = vpack.c.b16 %v1599, %v1597
    %v2384 = vpack.c.b16 %v1600, %v1598
    %v2385 = vpack.c.b16 %v1603, %v1601
    %v2386 = vpack.c.b16 %v1604, %v1602
    %v2387 = vpack.c.b16 %v1607, %v1605
    %v2388 = vpack.c.b16 %v1608, %v1606
    %v2389 = vpack.c.b16 %v1611, %v1609
    %v2390 = vpack.c.b16 %v1612, %v1610
    %v2391 = vpack.c.b16 %v1615, %v1613
    %v2392 = vpack.c.b16 %v1616, %v1614
    %v2393 = vpack.c.b16 %v1619, %v1617
    %v2394 = vpack.c.b16 %v1620, %v1618
    %v2395 = vpack.c.b16 %v1623, %v1621
    %v2396 = vpack.c.b16 %v1624, %v1622
    %v2397 = vpack.c.b16 %v1627, %v1625
    %v2398 = vpack.c.b16 %v1628, %v1626
    %v2399 = vpack.c.b16 %v1631, %v1629
    %v2400 = vpack.c.b16 %v1632, %v1630
    %v2401 = vpack.c.b16 %v1635, %v1633
    %v2402 = vpack.c.b16 %v1636, %v1634
    %v2403 = vpack.c.b16 %v1639, %v1637
    %v2404 = vpack.c.b16 %v1640, %v1638
    %v2405 = vpack.c.b16 %v1643, %v1641
    %v2406 = vpack.c.b16 %v1644, %v1642
    %v2407 = vpack.c.b16 %v1647, %v1645
    %v2408 = vpack.c.b16 %v1648, %v1646
    %v2409 = vpack.c.b16 %v1651, %v1649
    %v2410 = vpack.c.b16 %v1652, %v1650
    %v2411 = vpack.c.b16 %v1655, %v1653
    %v2412 = vpack.c.b16 %v1656, %v1654
    %v2413 = vpack.c.b16 %v1659, %v1657
    %v2414 = vpack.c.b16 %v1660, %v1658
    %v2415 = vpack.c.b16 %v1663, %v1661
    %v2416 = vpack.c.b16 %v1664, %v1662
    %v2417 = vpack.c.b16 %v1667, %v1665
    %v2418 = vpack.c.b16 %v1668, %v1666
    %v2419 = vpack.c.b16 %v1671, %v1669
    %v2420 = vpack.c.b16 %v1672, %v1670
    %v2421 = vpack.c.b16 %v1675, %v1673
    %v2422 = vpack.c.b16 %v1676, %v1674
    %v2423 = vpack.c.b16 %v1679, %v1677
    %v2424 = vpack.c.b16 %v1680, %v1678
    %v2425 = vpack.c.b16 %v1683, %v1681
    %v2426 = vpack.c.b16 %v1684, %v1682
    %v2427 = vpack.c.b16 %v1687, %v1685
    %v2428 = vpack.c.b16 %v1688, %v1686
    %v2429 = vpack.c.b16 %v1691, %v1689
    %v2430 = vpack.c.b16 %v1692, %v1690
    %v2431 = vpack.c.b16 %v1695, %v1693
    %v2432 = vpack.c.b16 %v1696, %v1694
    %v2433 = vpack.c.b16 %v1699, %v1697
    %v2434 = vpack.c.b16 %v1700, %v1698
    %v2435 = vpack.c.b16 %v1703, %v1701
    %v2436 = vpack.c.b16 %v1704, %v1702
    %v2437 = vpack.c.b16 %v1707, %v1705
    %v2438 = vpack.c.b16 %v1708, %v1706
    %v2439 = vpack.c.b16 %v1711, %v1709
    %v2440 = vpack.c.b16 %v1712, %v1710
    %v2441 = vpack.c.b16 %v1715, %v1713
    %v2442 = vpack.c.b16 %v1716, %v1714
    %v2443 = vpack.c.b16 %v1719, %v1717
    %v2444 = vpack.c.b16 %v1720, %v1718
    %v2445 = vpack.c.b16 %v1723, %v1721
    %v2446 = vpack.c.b16 %v1724, %v1722
    %v2447 = vpack.c.b16 %v1727, %v1725
    %v2448 = vpack.c.b16 %v1728, %v1726
    %v2449 = vpack.c.b16 %v1731, %v1729
    %v2450 = vpack.c.b16 %v1732, %v1730
    %v2451 = vpack.c.b16 %v1735, %v1733
    %v2452 = vpack.c.b16 %v1736, %v1734
    %v2453 = vpack.c.b16 %v1739, %v1737
    %v2454 = vpack.c.b16 %v1740, %v1738
    %v2455 = vpack.c.b16 %v1743, %v1741
    %v2456 = vpack.c.b16 %v1744, %v1742
    %v2457 = vpack.c.b16 %v1747, %v1745
    %v2458 = vpack.c.b16 %v1748, %v1746
    %v2459 = vpack.c.b16 %v1751, %v1749
    %v2460 = vpack.c.b16 %v1752, %v1750
    %v2461 = vpack.c.b16 %v1755, %v1753
    %v2462 = vpack.c.b16 %v1756, %v1754
    %v2463 = vpack.c.b16 %v1759, %v1757
    %v2464 = vpack.c.b16 %v1760, %v1758
    %v2465 = vpack.c.b16 %v1763, %v1761
    %v2466 = vpack.c.b16 %v1764, %v1762
    %v2467 = vpack.c.b16 %v1767, %v1765
    %v2468 = vpack.c.b16 %v1768, %v1766
    %v2469 = vpack.c.b16 %v1771, %v1769
    %v2470 = vpack.c.b16 %v1772, %v1770
    %v2471 = vpack.c.b16 %v1775, %v1773
    %v2472 = vpack.c.b16 %v1776, %v1774
    %v2473 = vpack.c.b16 %v1779, %v1777
    %v2474 = vpack.c.b16 %v1780, %v1778
    %v2475 = vpack.c.b16 %v1783, %v1781
    %v2476 = vpack.c.b16 %v1784, %v1782
    %v2477 = vpack.c.b16 %v1787, %v1785
    %v2478 = vpack.c.b16 %v1788, %v1786
    %v2479 = vpack.c.b16 %v1791, %v1789
    %v2480 = vpack.c.b16 %v1792, %v1790
    %v2481 = vpack.c.b16 %v1795, %v1793
    %v2482 = vpack.c.b16 %v1796, %v1794
    %v2483 = vpack.c.b16 %v1799, %v1797
    %v2484 = vpack.c.b16 %v1800, %v1798
    %v2485 = vpack.c.b16 %v1803, %v1801
    %v2486 = vpack.c.b16 %v1804, %v1802
    %v2487 = vpack.c.b16 %v1807, %v1805
    %v2488 = vpack.c.b16 %v1808, %v1806
    %v2489 = vpack.c.b16 %v1811, %v1809
    %v2490 = vpack.c.b16 %v1812, %v1810
    %v2491 = vpack.c.b16 %v1815, %v1813
    %v2492 = vpack.c.b16 %v1816, %v1814
    %v2493 = vpack.c.b16 %v1819, %v1817
    %v2494 = vpack.c.b16 %v1820, %v1818
    %v2495 = vpack.c.b16 %v1823, %v1821
    %v2496 = vpack.c.b16 %v1824, %v1822
    %v2497 = vpack.c.b16 %v1827, %v1825
    %v2498 = vpack.c.b16 %v1828, %v1826
    %v2499 = vpack.c.b16 %v1831, %v1829
    %v2500 = vpack.c.b16 %v1832, %v1830
    %v2501 = vpack.c.b16 %v1835, %v1833
    %v2502 = vpack.c.b16 %v1836, %v1834
    %v2503 = vpack.c.b16 %v1839, %v1837
    %v2504 = vpack.c.b16 %v1840, %v1838
    %v2505 = vpack.c.b16 %v1843, %v1841
    %v2506 = vpack.c.b16 %v1844, %v1842
    %v2507 = vpack.c.b16 %v1847, %v1845
    %v2508 = vpack.c.b16 %v1848, %v1846
    %v2509 = vpack.c.b16 %v1851, %v1849
    %v2510 = vpack.c.b16 %v1852, %v1850
    %v2511 = vpack.c.b16 %v1855, %v1853
    %v2512 = vpack.c.b16 %v1856, %v1854
    %v2513 = vpack.c.b16 %v1859, %v1857
    %v2514 = vpack.c.b16 %v1860, %v1858
    %v2515 = vpack.c.b16 %v1863, %v1861
    %v2516 = vpack.c.b16 %v1864, %v1862
    %v2517 = vpack.c.b16 %v1867, %v1865
    %v2518 = vpack.c.b16 %v1868, %v1866
    %v2519 = vpack.c.b16 %v1871, %v1869
    %v2520 = vpack.c.b16 %v1872, %v1870
    %v2521 = vpack.c.b16 %v1875, %v1873
    %v2522 = vpack.c.b16 %v1876, %v1874
    %v2523 = vpack.c.b16 %v1879, %v1877
    %v2524 = vpack.c.b16 %v1880, %v1878
    %v2525 = vpack.c.b16 %v1883, %v1881
    %v2526 = vpack.c.b16 %v1884, %v1882
    %v2527 = vpack.c.b16 %v1887, %v1885
    %v2528 = vpack.c.b16 %v1888, %v1886
    %v2529 = vpack.c.b16 %v1891, %v1889
    %v2530 = vpack.c.b16 %v1892, %v1890
    %v2531 = vpack.c.b16 %v1895, %v1893
    %v2532 = vpack.c.b16 %v1896, %v1894
    %v2533 = vpack.c.b16 %v1899, %v1897
    %v2534 = vpack.c.b16 %v1900, %v1898
    %v2535 = vpack.c.b16 %v1903, %v1901
    %v2536 = vpack.c.b16 %v1904, %v1902
    %v2537 = vpack.c.b16 %v1907, %v1905
    %v2538 = vpack.c.b16 %v1908, %v1906
    %v2539 = vpack.c.b16 %v1911, %v1909
    %v2540 = vpack.c.b16 %v1912, %v1910
    %v2541 = vpack.c.b16 %v1915, %v1913
    %v2542 = vpack.c.b16 %v1916, %v1914
    %v2543 = vpack.c.b16 %v1919, %v1917
    %v2544 = vpack.c.b16 %v1920, %v1918
    %v2545 = vpack.c.b16 %v1923, %v1921
    %v2546 = vpack.c.b16 %v1924, %v1922
    %v2547 = vpack.c.b16 %v1927, %v1925
    %v2548 = vpack.c.b16 %v1928, %v1926
    %v2549 = vpack.c.b16 %v1931, %v1929
    %v2550 = vpack.c.b16 %v1932, %v1930
    %v2551 = vpack.c.b16 %v1935, %v1933
    %v2552 = vpack.c.b16 %v1936, %v1934
    %v2553 = vpack.c.b16 %v1939, %v1937
    %v2554 = vpack.c.b16 %v1940, %v1938
    %v2555 = vpack.c.b16 %v1943, %v1941
    %v2556 = vpack.c.b16 %v1944, %v1942
    %v2557 = vpack.c.b16 %v1947, %v1945
    %v2558 = vpack.c.b16 %v1948, %v1946
    %v2559 = vpack.c.b16 %v1951, %v1949
    %v2560 = vpack.c.b16 %v1952, %v1950
    %v2561 = vpack.c.b16 %v1955, %v1953
    %v2562 = vpack.c.b16 %v1956, %v1954
    %v2563 = vpack.c.b16 %v1959, %v1957
    %v2564 = vpack.c.b16 %v1960, %v1958
    %v2565 = vpack.c.b16 %v1963, %v1961
    %v2566 = vpack.c.b16 %v1964, %v1962
    %v2567 = vpack.c.b16 %v1967, %v1965
    %v2568 = vpack.c.b16 %v1968, %v1966
    %v2569 = vpack.c.b16 %v1971, %v1969
    %v2570 = vpack.c.b16 %v1972, %v1970
    %v2571 = vpack.c.b16 %v1975, %v1973
    %v2572 = vpack.c.b16 %v1976, %v1974
    %v2573 = vpack.c.b16 %v1979, %v1977
    %v2574 = vpack.c.b16 %v1980, %v1978
    %v2575 = vpack.c.b16 %v1983, %v1981
    %v2576 = vpack.c.b16 %v1984, %v1982
    %v2577 = vpack.c.b16 %v1987, %v1985
    %v2578 = vpack.c.b16 %v1988, %v1986
    %v2579 = vpack.c.b16 %v1991, %v1989
    %v2580 = vpack.c.b16 %v1992, %v1990
    %v2581 = vpack.c.b16 %v1995, %v1993
    %v2582 = vpack.c.b16 %v1996, %v1994
    %v2583 = vpack.c.b16 %v1999, %v1997
    %v2584 = vpack.c.b16 %v2000, %v1998
    %v2585 = vpack.c.b16 %v2003, %v2001
    %v2586 = vpack.c.b16 %v2004, %v2002
    %v2587 = vpack.c.b16 %v2007, %v2005
    %v2588 = vpack.c.b16 %v2008, %v2006
    %v2589 = vpack.c.b16 %v2011, %v2009
    %v2590 = vpack.c.b16 %v2012, %v2010
    %v2591 = vpack.c.b16 %v2015, %v2013
    %v2592 = vpack.c.b16 %v2016, %v2014
    %v2593 = vpack.c.b16 %v2019, %v2017
    %v2594 = vpack.c.b16 %v2020, %v2018
    %v2595 = vpack.c.b16 %v2023, %v2021
    %v2596 = vpack.c.b16 %v2024, %v2022
    %v2597 = vpack.c.b16 %v2027, %v2025
    %v2598 = vpack.c.b16 %v2028, %v2026
    %v2599 = vpack.c.b16 %v2031, %v2029
    %v2600 = vpack.c.b16 %v2032, %v2030
    %v2601 = vpack.c.b16 %v2035, %v2033
    %v2602 = vpack.c.b16 %v2036, %v2034
    %v2603 = vpack.c.b16 %v2039, %v2037
    %v2604 = vpack.c.b16 %v2040, %v2038
    %v2605 = vpack.c.b16 %v2043, %v2041
    %v2606 = vpack.c.b16 %v2044, %v2042
    %v2607 = vpack.c.b16 %v2047, %v2045
    %v2608 = vpack.c.b16 %v2048, %v2046
    %v2609 = vpack.c.b16 %v2051, %v2049
    %v2610 = vpack.c.b16 %v2052, %v2050
    %v2611 = vpack.c.b16 %v2055, %v2053
    %v2612 = vpack.c.b16 %v2056, %v2054
    %v2613 = vpack.c.b16 %v2059, %v2057
    %v2614 = vpack.c.b16 %v2060, %v2058
    %v2615 = vpack.c.b16 %v2063, %v2061
    %v2616 = vpack.c.b16 %v2064, %v2062
    %v2617 = vpack.c.b16 %v2067, %v2065
    %v2618 = vpack.c.b16 %v2068, %v2066
    %v2619 = vpack.c.b16 %v2071, %v2069
    %v2620 = vpack.c.b16 %v2072, %v2070
    %v2621 = vpack.c.b16 %v2075, %v2073
    %v2622 = vpack.c.b16 %v2076, %v2074
    %v2623 = vpack.c.b16 %v2079, %v2077
    %v2624 = vpack.c.b16 %v2080, %v2078
    %v2625 = vpack.c.b16 %v2083, %v2081
    %v2626 = vpack.c.b16 %v2084, %v2082
    %v2627 = vpack.c.b16 %v2087, %v2085
    %v2628 = vpack.c.b16 %v2088, %v2086
    %v2629 = vpack.c.b16 %v2091, %v2089
    %v2630 = vpack.c.b16 %v2092, %v2090
    %v2631 = vpack.c.b16 %v2095, %v2093
    %v2632 = vpack.c.b16 %v2096, %v2094
    %v2633 = vpack.c.b16 %v2099, %v2097
    %v2634 = vpack.c.b16 %v2100, %v2098
    %v2635 = vpack.c.b16 %v2103, %v2101
    %v2636 = vpack.c.b16 %v2104, %v2102
    %v2637 = vpack.c.b16 %v2107, %v2105
    %v2638 = vpack.c.b16 %v2108, %v2106
    %v2639 = vpack.c.b16 %v2111, %v2109
    %v2640 = vpack.c.b16 %v2112, %v2110
    %v2641 = vpack.c.b16 %v2115, %v2113
    %v2642 = vpack.c.b16 %v2116, %v2114
    %v2643 = vpack.c.b16 %v2119, %v2117
    %v2644 = vpack.c.b16 %v2120, %v2118
    %v2645 = vpack.c.b16 %v2123, %v2121
    %v2646 = vpack.c.b16 %v2124, %v2122
    %v2647 = vpack.c.b16 %v2127, %v2125
    %v2648 = vpack.c.b16 %v2128, %v2126
    %v2649 = vpack.c.b16 %v2131, %v2129
    %v2650 = vpack.c.b16 %v2132, %v2130
    %v2651 = vpack.c.b16 %v2135, %v2133
    %v2652 = vpack.c.b16 %v2136, %v2134
    %v2653 = vpack.c.b16 %v2139, %v2137
    %v2654 = vpack.c.b16 %v2140, %v2138
    %v2655 = vpack.c.b16 %v2143, %v2141
    %v2656 = vpack.c.b16 %v2144, %v2142
    %3169 = vmatpush.bf16.msra.mxu0 %v2159
    %3170 = vmatpush.bf16.msra.mxu0 %v2157
    %3171 = vmatpush.bf16.msra.mxu0 %v2155
    %3172 = vmatpush.bf16.msra.mxu0 %v2153
    %3173 = vmatpush.bf16.msra.mxu0 %v2151
    %3174 = vmatpush.bf16.msra.mxu0 %v2149
    %3175 = vmatpush.bf16.msra.mxu0 %v2147
    %3176 = vmatpush.bf16.msra.mxu0 %v2145
    %3177 = vmatmul.bf16.gmra.mxu0 %v539
    %v3178 = vpop.f32.mrf.mxu0
    %v3179 = vadd.f32 %v533, %v3178
    %v3180 = vpop.f32.mrf.mxu0
    %3181 = vdwg.mxu0
    %3182 = vmatpush.bf16.msra.mxu0 %v2175
    %3183 = vmatpush.bf16.msra.mxu0 %v2173
    %3184 = vmatpush.bf16.msra.mxu0 %v2171
    %3185 = vmatpush.bf16.msra.mxu0 %v2169
    %3186 = vmatpush.bf16.msra.mxu0 %v2167
    %3187 = vmatpush.bf16.msra.mxu0 %v2165
    %3188 = vmatpush.bf16.msra.mxu0 %v2163
    %3189 = vmatpush.bf16.msra.mxu0 %v2161
    %3190 = vmatmul.bf16.gmra.mxu0 %v540
    %v3191 = vpop.f32.mrf.mxu0
    %v3192 = vadd.f32 %v3179, %v3191
    %v3193 = vpop.f32.mrf.mxu0
    %3194 = vdwg.mxu0
    %3195 = vmatpush.bf16.msra.mxu0 %v2191
    %3196 = vmatpush.bf16.msra.mxu0 %v2189
    %3197 = vmatpush.bf16.msra.mxu0 %v2187
    %3198 = vmatpush.bf16.msra.mxu0 %v2185
    %3199 = vmatpush.bf16.msra.mxu0 %v2183
    %3200 = vmatpush.bf16.msra.mxu0 %v2181
    %3201 = vmatpush.bf16.msra.mxu0 %v2179
    %3202 = vmatpush.bf16.msra.mxu0 %v2177
    %3203 = vmatmul.bf16.gmra.mxu0 %v541
    %v3204 = vpop.f32.mrf.mxu0
    %v3205 = vadd.f32 %v3192, %v3204
    %v3206 = vpop.f32.mrf.mxu0
    %3207 = vdwg.mxu0
    %3208 = vmatpush.bf16.msra.mxu0 %v2207
    %3209 = vmatpush.bf16.msra.mxu0 %v2205
    %3210 = vmatpush.bf16.msra.mxu0 %v2203
    %3211 = vmatpush.bf16.msra.mxu0 %v2201
    %3212 = vmatpush.bf16.msra.mxu0 %v2199
    %3213 = vmatpush.bf16.msra.mxu0 %v2197
    %3214 = vmatpush.bf16.msra.mxu0 %v2195
    %3215 = vmatpush.bf16.msra.mxu0 %v2193
    %3216 = vmatmul.bf16.gmra.mxu0 %v542
    %v3217 = vpop.f32.mrf.mxu0
    %v3218 = vadd.f32 %v3205, %v3217
    %v3219 = vpop.f32.mrf.mxu0
    %3220 = vdwg.mxu0
    %3221 = vmatpush.bf16.msra.mxu0 %v2223
    %3222 = vmatpush.bf16.msra.mxu0 %v2221
    %3223 = vmatpush.bf16.msra.mxu0 %v2219
    %3224 = vmatpush.bf16.msra.mxu0 %v2217
    %3225 = vmatpush.bf16.msra.mxu0 %v2215
    %3226 = vmatpush.bf16.msra.mxu0 %v2213
    %3227 = vmatpush.bf16.msra.mxu0 %v2211
    %3228 = vmatpush.bf16.msra.mxu0 %v2209
    %3229 = vmatmul.bf16.gmra.mxu0 %v543
    %v3230 = vpop.f32.mrf.mxu0
    %v3231 = vadd.f32 %v3218, %v3230
    %v3232 = vpop.f32.mrf.mxu0
    %3233 = vdwg.mxu0
    %3234 = vmatpush.bf16.msra.mxu0 %v2239
    %3235 = vmatpush.bf16.msra.mxu0 %v2237
    %3236 = vmatpush.bf16.msra.mxu0 %v2235
    %3237 = vmatpush.bf16.msra.mxu0 %v2233
    %3238 = vmatpush.bf16.msra.mxu0 %v2231
    %3239 = vmatpush.bf16.msra.mxu0 %v2229
    %3240 = vmatpush.bf16.msra.mxu0 %v2227
    %3241 = vmatpush.bf16.msra.mxu0 %v2225
    %3242 = vmatmul.bf16.gmra.mxu0 %v544
    %v3243 = vpop.f32.mrf.mxu0
    %v3244 = vadd.f32 %v3231, %v3243
    %v3245 = vpop.f32.mrf.mxu0
    %3246 = vdwg.mxu0
    %3247 = vmatpush.bf16.msra.mxu0 %v2255
    %3248 = vmatpush.bf16.msra.mxu0 %v2253
    %3249 = vmatpush.bf16.msra.mxu0 %v2251
    %3250 = vmatpush.bf16.msra.mxu0 %v2249
    %3251 = vmatpush.bf16.msra.mxu0 %v2247
    %3252 = vmatpush.bf16.msra.mxu0 %v2245
    %3253 = vmatpush.bf16.msra.mxu0 %v2243
    %3254 = vmatpush.bf16.msra.mxu0 %v2241
    %3255 = vmatmul.bf16.gmra.mxu0 %v545
    %v3256 = vpop.f32.mrf.mxu0
    %v3257 = vadd.f32 %v3244, %v3256
    %v3258 = vpop.f32.mrf.mxu0
    %3259 = vdwg.mxu0
    %3260 = vmatpush.bf16.msra.mxu0 %v2271
    %3261 = vmatpush.bf16.msra.mxu0 %v2269
    %3262 = vmatpush.bf16.msra.mxu0 %v2267
    %3263 = vmatpush.bf16.msra.mxu0 %v2265
    %3264 = vmatpush.bf16.msra.mxu0 %v2263
    %3265 = vmatpush.bf16.msra.mxu0 %v2261
    %3266 = vmatpush.bf16.msra.mxu0 %v2259
    %3267 = vmatpush.bf16.msra.mxu0 %v2257
    %3268 = vmatmul.bf16.gmra.mxu0 %v546
    %v3269 = vpop.f32.mrf.mxu0
    %v3270 = vadd.f32 %v3257, %v3269
    %v3271 = vpop.f32.mrf.mxu0
    %3272 = vdwg.mxu0
    %3273 = vmatpush.bf16.msra.mxu0 %v2287
    %3274 = vmatpush.bf16.msra.mxu0 %v2285
    %3275 = vmatpush.bf16.msra.mxu0 %v2283
    %3276 = vmatpush.bf16.msra.mxu0 %v2281
    %3277 = vmatpush.bf16.msra.mxu0 %v2279
    %3278 = vmatpush.bf16.msra.mxu0 %v2277
    %3279 = vmatpush.bf16.msra.mxu0 %v2275
    %3280 = vmatpush.bf16.msra.mxu0 %v2273
    %3281 = vmatmul.bf16.gmra.mxu0 %v549
    %v3282 = vpop.f32.mrf.mxu0
    %v3283 = vadd.f32 %v3270, %v3282
    %v3284 = vpop.f32.mrf.mxu0
    %3285 = vdwg.mxu0
    %3286 = vmatpush.bf16.msra.mxu0 %v2303
    %3287 = vmatpush.bf16.msra.mxu0 %v2301
    %3288 = vmatpush.bf16.msra.mxu0 %v2299
    %3289 = vmatpush.bf16.msra.mxu0 %v2297
    %3290 = vmatpush.bf16.msra.mxu0 %v2295
    %3291 = vmatpush.bf16.msra.mxu0 %v2293
    %3292 = vmatpush.bf16.msra.mxu0 %v2291
    %3293 = vmatpush.bf16.msra.mxu0 %v2289
    %3294 = vmatmul.bf16.gmra.mxu0 %v550
    %v3295 = vpop.f32.mrf.mxu0
    %v3296 = vadd.f32 %v3283, %v3295
    %v3297 = vpop.f32.mrf.mxu0
    %3298 = vdwg.mxu0
    %3299 = vmatpush.bf16.msra.mxu0 %v2319
    %3300 = vmatpush.bf16.msra.mxu0 %v2317
    %3301 = vmatpush.bf16.msra.mxu0 %v2315
    %3302 = vmatpush.bf16.msra.mxu0 %v2313
    %3303 = vmatpush.bf16.msra.mxu0 %v2311
    %3304 = vmatpush.bf16.msra.mxu0 %v2309
    %3305 = vmatpush.bf16.msra.mxu0 %v2307
    %3306 = vmatpush.bf16.msra.mxu0 %v2305
    %3307 = vmatmul.bf16.gmra.mxu0 %v551
    %v3308 = vpop.f32.mrf.mxu0
    %v3309 = vadd.f32 %v3296, %v3308
    %v3310 = vpop.f32.mrf.mxu0
    %3311 = vdwg.mxu0
    %3312 = vmatpush.bf16.msra.mxu0 %v2335
    %3313 = vmatpush.bf16.msra.mxu0 %v2333
    %3314 = vmatpush.bf16.msra.mxu0 %v2331
    %3315 = vmatpush.bf16.msra.mxu0 %v2329
    %3316 = vmatpush.bf16.msra.mxu0 %v2327
    %3317 = vmatpush.bf16.msra.mxu0 %v2325
    %3318 = vmatpush.bf16.msra.mxu0 %v2323
    %3319 = vmatpush.bf16.msra.mxu0 %v2321
    %3320 = vmatmul.bf16.gmra.mxu0 %v552
    %v3321 = vpop.f32.mrf.mxu0
    %v3322 = vadd.f32 %v3309, %v3321
    %v3323 = vpop.f32.mrf.mxu0
    %3324 = vdwg.mxu0
    %3325 = vmatpush.bf16.msra.mxu0 %v2351
    %3326 = vmatpush.bf16.msra.mxu0 %v2349
    %3327 = vmatpush.bf16.msra.mxu0 %v2347
    %3328 = vmatpush.bf16.msra.mxu0 %v2345
    %3329 = vmatpush.bf16.msra.mxu0 %v2343
    %3330 = vmatpush.bf16.msra.mxu0 %v2341
    %3331 = vmatpush.bf16.msra.mxu0 %v2339
    %3332 = vmatpush.bf16.msra.mxu0 %v2337
    %3333 = vmatmul.bf16.gmra.mxu0 %v553
    %v3334 = vpop.f32.mrf.mxu0
    %v3335 = vadd.f32 %v3322, %v3334
    %v3336 = vpop.f32.mrf.mxu0
    %3337 = vdwg.mxu0
    %3338 = vmatpush.bf16.msra.mxu0 %v2367
    %3339 = vmatpush.bf16.msra.mxu0 %v2365
    %3340 = vmatpush.bf16.msra.mxu0 %v2363
    %3341 = vmatpush.bf16.msra.mxu0 %v2361
    %3342 = vmatpush.bf16.msra.mxu0 %v2359
    %3343 = vmatpush.bf16.msra.mxu0 %v2357
    %3344 = vmatpush.bf16.msra.mxu0 %v2355
    %3345 = vmatpush.bf16.msra.mxu0 %v2353
    %3346 = vmatmul.bf16.gmra.mxu0 %v554
    %v3347 = vpop.f32.mrf.mxu0
    %v3348 = vadd.f32 %v3335, %v3347
    %v3349 = vpop.f32.mrf.mxu0
    %3350 = vdwg.mxu0
    %3351 = vmatpush.bf16.msra.mxu0 %v2383
    %3352 = vmatpush.bf16.msra.mxu0 %v2381
    %3353 = vmatpush.bf16.msra.mxu0 %v2379
    %3354 = vmatpush.bf16.msra.mxu0 %v2377
    %3355 = vmatpush.bf16.msra.mxu0 %v2375
    %3356 = vmatpush.bf16.msra.mxu0 %v2373
    %3357 = vmatpush.bf16.msra.mxu0 %v2371
    %3358 = vmatpush.bf16.msra.mxu0 %v2369
    %3359 = vmatmul.bf16.gmra.mxu0 %v555
    %v3360 = vpop.f32.mrf.mxu0
    %v3361 = vadd.f32 %v3348, %v3360
    %v3362 = vpop.f32.mrf.mxu0
    %3363 = vdwg.mxu0
    %3364 = vmatpush.bf16.msra.mxu0 %v2399
    %3365 = vmatpush.bf16.msra.mxu0 %v2397
    %3366 = vmatpush.bf16.msra.mxu0 %v2395
    %3367 = vmatpush.bf16.msra.mxu0 %v2393
    %3368 = vmatpush.bf16.msra.mxu0 %v2391
    %3369 = vmatpush.bf16.msra.mxu0 %v2389
    %3370 = vmatpush.bf16.msra.mxu0 %v2387
    %3371 = vmatpush.bf16.msra.mxu0 %v2385
    %3372 = vmatmul.bf16.gmra.mxu0 %v556
    %v3373 = vpop.f32.mrf.mxu0
    %v3374 = vadd.f32 %v3361, %v3373
    %v3375 = vpop.f32.mrf.mxu0
    %3376 = vdwg.mxu0
    %3377 = vmatpush.bf16.msra.mxu0 %v2415
    %3378 = vmatpush.bf16.msra.mxu0 %v2413
    %3379 = vmatpush.bf16.msra.mxu0 %v2411
    %3380 = vmatpush.bf16.msra.mxu0 %v2409
    %3381 = vmatpush.bf16.msra.mxu0 %v2407
    %3382 = vmatpush.bf16.msra.mxu0 %v2405
    %3383 = vmatpush.bf16.msra.mxu0 %v2403
    %3384 = vmatpush.bf16.msra.mxu0 %v2401
    %3385 = vmatmul.bf16.gmra.mxu0 %v559
    %v3386 = vpop.f32.mrf.mxu0
    %v3387 = vadd.f32 %v3374, %v3386
    %v3388 = vpop.f32.mrf.mxu0
    %3389 = vdwg.mxu0
    %3390 = vmatpush.bf16.msra.mxu0 %v2431
    %3391 = vmatpush.bf16.msra.mxu0 %v2429
    %3392 = vmatpush.bf16.msra.mxu0 %v2427
    %3393 = vmatpush.bf16.msra.mxu0 %v2425
    %3394 = vmatpush.bf16.msra.mxu0 %v2423
    %3395 = vmatpush.bf16.msra.mxu0 %v2421
    %3396 = vmatpush.bf16.msra.mxu0 %v2419
    %3397 = vmatpush.bf16.msra.mxu0 %v2417
    %3398 = vmatmul.bf16.gmra.mxu0 %v560
    %v3399 = vpop.f32.mrf.mxu0
    %v3400 = vadd.f32 %v3387, %v3399
    %v3401 = vpop.f32.mrf.mxu0
    %3402 = vdwg.mxu0
    %3403 = vmatpush.bf16.msra.mxu0 %v2447
    %3404 = vmatpush.bf16.msra.mxu0 %v2445
    %3405 = vmatpush.bf16.msra.mxu0 %v2443
    %3406 = vmatpush.bf16.msra.mxu0 %v2441
    %3407 = vmatpush.bf16.msra.mxu0 %v2439
    %3408 = vmatpush.bf16.msra.mxu0 %v2437
    %3409 = vmatpush.bf16.msra.mxu0 %v2435
    %3410 = vmatpush.bf16.msra.mxu0 %v2433
    %3411 = vmatmul.bf16.gmra.mxu0 %v561
    %v3412 = vpop.f32.mrf.mxu0
    %v3413 = vadd.f32 %v3400, %v3412
    %v3414 = vpop.f32.mrf.mxu0
    %3415 = vdwg.mxu0
    %3416 = vmatpush.bf16.msra.mxu0 %v2463
    %3417 = vmatpush.bf16.msra.mxu0 %v2461
    %3418 = vmatpush.bf16.msra.mxu0 %v2459
    %3419 = vmatpush.bf16.msra.mxu0 %v2457
    %3420 = vmatpush.bf16.msra.mxu0 %v2455
    %3421 = vmatpush.bf16.msra.mxu0 %v2453
    %3422 = vmatpush.bf16.msra.mxu0 %v2451
    %3423 = vmatpush.bf16.msra.mxu0 %v2449
    %3424 = vmatmul.bf16.gmra.mxu0 %v562
    %v3425 = vpop.f32.mrf.mxu0
    %v3426 = vadd.f32 %v3413, %v3425
    %v3427 = vpop.f32.mrf.mxu0
    %3428 = vdwg.mxu0
    %3429 = vmatpush.bf16.msra.mxu0 %v2479
    %3430 = vmatpush.bf16.msra.mxu0 %v2477
    %3431 = vmatpush.bf16.msra.mxu0 %v2475
    %3432 = vmatpush.bf16.msra.mxu0 %v2473
    %3433 = vmatpush.bf16.msra.mxu0 %v2471
    %3434 = vmatpush.bf16.msra.mxu0 %v2469
    %3435 = vmatpush.bf16.msra.mxu0 %v2467
    %3436 = vmatpush.bf16.msra.mxu0 %v2465
    %3437 = vmatmul.bf16.gmra.mxu0 %v563
    %v3438 = vpop.f32.mrf.mxu0
    %v3439 = vadd.f32 %v3426, %v3438
    %v3440 = vpop.f32.mrf.mxu0
    %3441 = vdwg.mxu0
    %3442 = vmatpush.bf16.msra.mxu0 %v2495
    %3443 = vmatpush.bf16.msra.mxu0 %v2493
    %3444 = vmatpush.bf16.msra.mxu0 %v2491
    %3445 = vmatpush.bf16.msra.mxu0 %v2489
    %3446 = vmatpush.bf16.msra.mxu0 %v2487
    %3447 = vmatpush.bf16.msra.mxu0 %v2485
    %3448 = vmatpush.bf16.msra.mxu0 %v2483
    %3449 = vmatpush.bf16.msra.mxu0 %v2481
    %3450 = vmatmul.bf16.gmra.mxu0 %v564
    %v3451 = vpop.f32.mrf.mxu0
    %v3452 = vadd.f32 %v3439, %v3451
    %v3453 = vpop.f32.mrf.mxu0
    %3454 = vdwg.mxu0
    %3455 = vmatpush.bf16.msra.mxu0 %v2511
    %3456 = vmatpush.bf16.msra.mxu0 %v2509
    %3457 = vmatpush.bf16.msra.mxu0 %v2507
    %3458 = vmatpush.bf16.msra.mxu0 %v2505
    %3459 = vmatpush.bf16.msra.mxu0 %v2503
    %3460 = vmatpush.bf16.msra.mxu0 %v2501
    %3461 = vmatpush.bf16.msra.mxu0 %v2499
    %3462 = vmatpush.bf16.msra.mxu0 %v2497
    %3463 = vmatmul.bf16.gmra.mxu0 %v565
    %v3464 = vpop.f32.mrf.mxu0
    %v3465 = vadd.f32 %v3452, %v3464
    %v3466 = vpop.f32.mrf.mxu0
    %3467 = vdwg.mxu0
    %3468 = vmatpush.bf16.msra.mxu0 %v2527
    %3469 = vmatpush.bf16.msra.mxu0 %v2525
    %3470 = vmatpush.bf16.msra.mxu0 %v2523
    %3471 = vmatpush.bf16.msra.mxu0 %v2521
    %3472 = vmatpush.bf16.msra.mxu0 %v2519
    %3473 = vmatpush.bf16.msra.mxu0 %v2517
    %3474 = vmatpush.bf16.msra.mxu0 %v2515
    %3475 = vmatpush.bf16.msra.mxu0 %v2513
    %3476 = vmatmul.bf16.gmra.mxu0 %v566
    %v3477 = vpop.f32.mrf.mxu0
    %v3478 = vadd.f32 %v3465, %v3477
    %v3479 = vpop.f32.mrf.mxu0
    %3480 = vdwg.mxu0
    %3481 = vmatpush.bf16.msra.mxu0 %v2543
    %3482 = vmatpush.bf16.msra.mxu0 %v2541
    %3483 = vmatpush.bf16.msra.mxu0 %v2539
    %3484 = vmatpush.bf16.msra.mxu0 %v2537
    %3485 = vmatpush.bf16.msra.mxu0 %v2535
    %3486 = vmatpush.bf16.msra.mxu0 %v2533
    %3487 = vmatpush.bf16.msra.mxu0 %v2531
    %3488 = vmatpush.bf16.msra.mxu0 %v2529
    %3489 = vmatmul.bf16.gmra.mxu0 %v569
    %v3490 = vpop.f32.mrf.mxu0
    %v3491 = vadd.f32 %v3478, %v3490
    %v3492 = vpop.f32.mrf.mxu0
    %3493 = vdwg.mxu0
    %3494 = vmatpush.bf16.msra.mxu0 %v2559
    %3495 = vmatpush.bf16.msra.mxu0 %v2557
    %3496 = vmatpush.bf16.msra.mxu0 %v2555
    %3497 = vmatpush.bf16.msra.mxu0 %v2553
    %3498 = vmatpush.bf16.msra.mxu0 %v2551
    %3499 = vmatpush.bf16.msra.mxu0 %v2549
    %3500 = vmatpush.bf16.msra.mxu0 %v2547
    %3501 = vmatpush.bf16.msra.mxu0 %v2545
    %3502 = vmatmul.bf16.gmra.mxu0 %v570
    %v3503 = vpop.f32.mrf.mxu0
    %v3504 = vadd.f32 %v3491, %v3503
    %v3505 = vpop.f32.mrf.mxu0
    %3506 = vdwg.mxu0
    %3507 = vmatpush.bf16.msra.mxu0 %v2575
    %3508 = vmatpush.bf16.msra.mxu0 %v2573
    %3509 = vmatpush.bf16.msra.mxu0 %v2571
    %3510 = vmatpush.bf16.msra.mxu0 %v2569
    %3511 = vmatpush.bf16.msra.mxu0 %v2567
    %3512 = vmatpush.bf16.msra.mxu0 %v2565
    %3513 = vmatpush.bf16.msra.mxu0 %v2563
    %3514 = vmatpush.bf16.msra.mxu0 %v2561
    %3515 = vmatmul.bf16.gmra.mxu0 %v571
    %v3516 = vpop.f32.mrf.mxu0
    %v3517 = vadd.f32 %v3504, %v3516
    %v3518 = vpop.f32.mrf.mxu0
    %3519 = vdwg.mxu0
    %3520 = vmatpush.bf16.msra.mxu0 %v2591
    %3521 = vmatpush.bf16.msra.mxu0 %v2589
    %3522 = vmatpush.bf16.msra.mxu0 %v2587
    %3523 = vmatpush.bf16.msra.mxu0 %v2585
    %3524 = vmatpush.bf16.msra.mxu0 %v2583
    %3525 = vmatpush.bf16.msra.mxu0 %v2581
    %3526 = vmatpush.bf16.msra.mxu0 %v2579
    %3527 = vmatpush.bf16.msra.mxu0 %v2577
    %3528 = vmatmul.bf16.gmra.mxu0 %v572
    %v3529 = vpop.f32.mrf.mxu0
    %v3530 = vadd.f32 %v3517, %v3529
    %v3531 = vpop.f32.mrf.mxu0
    %3532 = vdwg.mxu0
    %3533 = vmatpush.bf16.msra.mxu0 %v2607
    %3534 = vmatpush.bf16.msra.mxu0 %v2605
    %3535 = vmatpush.bf16.msra.mxu0 %v2603
    %3536 = vmatpush.bf16.msra.mxu0 %v2601
    %3537 = vmatpush.bf16.msra.mxu0 %v2599
    %3538 = vmatpush.bf16.msra.mxu0 %v2597
    %3539 = vmatpush.bf16.msra.mxu0 %v2595
    %3540 = vmatpush.bf16.msra.mxu0 %v2593
    %3541 = vmatmul.bf16.gmra.mxu0 %v573
    %v3542 = vpop.f32.mrf.mxu0
    %v3543 = vadd.f32 %v3530, %v3542
    %v3544 = vpop.f32.mrf.mxu0
    %3545 = vdwg.mxu0
    %3546 = vmatpush.bf16.msra.mxu0 %v2623
    %3547 = vmatpush.bf16.msra.mxu0 %v2621
    %3548 = vmatpush.bf16.msra.mxu0 %v2619
    %3549 = vmatpush.bf16.msra.mxu0 %v2617
    %3550 = vmatpush.bf16.msra.mxu0 %v2615
    %3551 = vmatpush.bf16.msra.mxu0 %v2613
    %3552 = vmatpush.bf16.msra.mxu0 %v2611
    %3553 = vmatpush.bf16.msra.mxu0 %v2609
    %3554 = vmatmul.bf16.gmra.mxu0 %v574
    %v3555 = vpop.f32.mrf.mxu0
    %v3556 = vadd.f32 %v3543, %v3555
    %v3557 = vpop.f32.mrf.mxu0
    %3558 = vdwg.mxu0
    %3559 = vmatpush.bf16.msra.mxu0 %v2639
    %3560 = vmatpush.bf16.msra.mxu0 %v2637
    %3561 = vmatpush.bf16.msra.mxu0 %v2635
    %3562 = vmatpush.bf16.msra.mxu0 %v2633
    %3563 = vmatpush.bf16.msra.mxu0 %v2631
    %3564 = vmatpush.bf16.msra.mxu0 %v2629
    %3565 = vmatpush.bf16.msra.mxu0 %v2627
    %3566 = vmatpush.bf16.msra.mxu0 %v2625
    %3567 = vmatmul.bf16.gmra.mxu0 %v575
    %v3568 = vpop.f32.mrf.mxu0
    %v3569 = vadd.f32 %v3556, %v3568
    %v3570 = vpop.f32.mrf.mxu0
    %3571 = vdwg.mxu0
    %3572 = vmatpush.bf16.msra.mxu0 %v2655
    %3573 = vmatpush.bf16.msra.mxu0 %v2653
    %3574 = vmatpush.bf16.msra.mxu0 %v2651
    %3575 = vmatpush.bf16.msra.mxu0 %v2649
    %3576 = vmatpush.bf16.msra.mxu0 %v2647
    %3577 = vmatpush.bf16.msra.mxu0 %v2645
    %3578 = vmatpush.bf16.msra.mxu0 %v2643
    %3579 = vmatpush.bf16.msra.mxu0 %v2641
    %3580 = vmatmul.bf16.gmra.mxu0 %v576
    %v3581 = vpop.f32.mrf.mxu0
    %v3582 = vadd.f32 %v3569, %v3581
    %v3583 = vpop.f32.mrf.mxu0
    %3584 = vdwg.mxu0
    %3585 = vmatpush.bf16.msra.mxu0 %v2160
    %3586 = vmatpush.bf16.msra.mxu0 %v2158
    %3587 = vmatpush.bf16.msra.mxu0 %v2156
    %3588 = vmatpush.bf16.msra.mxu0 %v2154
    %3589 = vmatpush.bf16.msra.mxu0 %v2152
    %3590 = vmatpush.bf16.msra.mxu0 %v2150
    %3591 = vmatpush.bf16.msra.mxu0 %v2148
    %3592 = vmatpush.bf16.msra.mxu0 %v2146
    %3593 = vmatmul.bf16.gmra.mxu0 %v539
    %v3594 = vpop.f32.mrf.mxu0
    %v3595 = vadd.f32 %v534, %v3594
    %v3596 = vpop.f32.mrf.mxu0
    %3597 = vdwg.mxu0
    %3598 = vmatpush.bf16.msra.mxu0 %v2176
    %3599 = vmatpush.bf16.msra.mxu0 %v2174
    %3600 = vmatpush.bf16.msra.mxu0 %v2172
    %3601 = vmatpush.bf16.msra.mxu0 %v2170
    %3602 = vmatpush.bf16.msra.mxu0 %v2168
    %3603 = vmatpush.bf16.msra.mxu0 %v2166
    %3604 = vmatpush.bf16.msra.mxu0 %v2164
    %3605 = vmatpush.bf16.msra.mxu0 %v2162
    %3606 = vmatmul.bf16.gmra.mxu0 %v540
    %v3607 = vpop.f32.mrf.mxu0
    %v3608 = vadd.f32 %v3595, %v3607
    %v3609 = vpop.f32.mrf.mxu0
    %3610 = vdwg.mxu0
    %3611 = vmatpush.bf16.msra.mxu0 %v2192
    %3612 = vmatpush.bf16.msra.mxu0 %v2190
    %3613 = vmatpush.bf16.msra.mxu0 %v2188
    %3614 = vmatpush.bf16.msra.mxu0 %v2186
    %3615 = vmatpush.bf16.msra.mxu0 %v2184
    %3616 = vmatpush.bf16.msra.mxu0 %v2182
    %3617 = vmatpush.bf16.msra.mxu0 %v2180
    %3618 = vmatpush.bf16.msra.mxu0 %v2178
    %3619 = vmatmul.bf16.gmra.mxu0 %v541
    %v3620 = vpop.f32.mrf.mxu0
    %v3621 = vadd.f32 %v3608, %v3620
    %v3622 = vpop.f32.mrf.mxu0
    %3623 = vdwg.mxu0
    %3624 = vmatpush.bf16.msra.mxu0 %v2208
    %3625 = vmatpush.bf16.msra.mxu0 %v2206
    %3626 = vmatpush.bf16.msra.mxu0 %v2204
    %3627 = vmatpush.bf16.msra.mxu0 %v2202
    %3628 = vmatpush.bf16.msra.mxu0 %v2200
    %3629 = vmatpush.bf16.msra.mxu0 %v2198
    %3630 = vmatpush.bf16.msra.mxu0 %v2196
    %3631 = vmatpush.bf16.msra.mxu0 %v2194
    %3632 = vmatmul.bf16.gmra.mxu0 %v542
    %v3633 = vpop.f32.mrf.mxu0
    %v3634 = vadd.f32 %v3621, %v3633
    %v3635 = vpop.f32.mrf.mxu0
    %3636 = vdwg.mxu0
    %3637 = vmatpush.bf16.msra.mxu0 %v2224
    %3638 = vmatpush.bf16.msra.mxu0 %v2222
    %3639 = vmatpush.bf16.msra.mxu0 %v2220
    %3640 = vmatpush.bf16.msra.mxu0 %v2218
    %3641 = vmatpush.bf16.msra.mxu0 %v2216
    %3642 = vmatpush.bf16.msra.mxu0 %v2214
    %3643 = vmatpush.bf16.msra.mxu0 %v2212
    %3644 = vmatpush.bf16.msra.mxu0 %v2210
    %3645 = vmatmul.bf16.gmra.mxu0 %v543
    %v3646 = vpop.f32.mrf.mxu0
    %v3647 = vadd.f32 %v3634, %v3646
    %v3648 = vpop.f32.mrf.mxu0
    %3649 = vdwg.mxu0
    %3650 = vmatpush.bf16.msra.mxu0 %v2240
    %3651 = vmatpush.bf16.msra.mxu0 %v2238
    %3652 = vmatpush.bf16.msra.mxu0 %v2236
    %3653 = vmatpush.bf16.msra.mxu0 %v2234
    %3654 = vmatpush.bf16.msra.mxu0 %v2232
    %3655 = vmatpush.bf16.msra.mxu0 %v2230
    %3656 = vmatpush.bf16.msra.mxu0 %v2228
    %3657 = vmatpush.bf16.msra.mxu0 %v2226
    %3658 = vmatmul.bf16.gmra.mxu0 %v544
    %v3659 = vpop.f32.mrf.mxu0
    %v3660 = vadd.f32 %v3647, %v3659
    %v3661 = vpop.f32.mrf.mxu0
    %3662 = vdwg.mxu0
    %3663 = vmatpush.bf16.msra.mxu0 %v2256
    %3664 = vmatpush.bf16.msra.mxu0 %v2254
    %3665 = vmatpush.bf16.msra.mxu0 %v2252
    %3666 = vmatpush.bf16.msra.mxu0 %v2250
    %3667 = vmatpush.bf16.msra.mxu0 %v2248
    %3668 = vmatpush.bf16.msra.mxu0 %v2246
    %3669 = vmatpush.bf16.msra.mxu0 %v2244
    %3670 = vmatpush.bf16.msra.mxu0 %v2242
    %3671 = vmatmul.bf16.gmra.mxu0 %v545
    %v3672 = vpop.f32.mrf.mxu0
    %v3673 = vadd.f32 %v3660, %v3672
    %v3674 = vpop.f32.mrf.mxu0
    %3675 = vdwg.mxu0
    %3676 = vmatpush.bf16.msra.mxu0 %v2272
    %3677 = vmatpush.bf16.msra.mxu0 %v2270
    %3678 = vmatpush.bf16.msra.mxu0 %v2268
    %3679 = vmatpush.bf16.msra.mxu0 %v2266
    %3680 = vmatpush.bf16.msra.mxu0 %v2264
    %3681 = vmatpush.bf16.msra.mxu0 %v2262
    %3682 = vmatpush.bf16.msra.mxu0 %v2260
    %3683 = vmatpush.bf16.msra.mxu0 %v2258
    %3684 = vmatmul.bf16.gmra.mxu0 %v546
    %v3685 = vpop.f32.mrf.mxu0
    %v3686 = vadd.f32 %v3673, %v3685
    %v3687 = vpop.f32.mrf.mxu0
    %3688 = vdwg.mxu0
    %3689 = vmatpush.bf16.msra.mxu0 %v2288
    %3690 = vmatpush.bf16.msra.mxu0 %v2286
    %3691 = vmatpush.bf16.msra.mxu0 %v2284
    %3692 = vmatpush.bf16.msra.mxu0 %v2282
    %3693 = vmatpush.bf16.msra.mxu0 %v2280
    %3694 = vmatpush.bf16.msra.mxu0 %v2278
    %3695 = vmatpush.bf16.msra.mxu0 %v2276
    %3696 = vmatpush.bf16.msra.mxu0 %v2274
    %3697 = vmatmul.bf16.gmra.mxu0 %v549
    %v3698 = vpop.f32.mrf.mxu0
    %v3699 = vadd.f32 %v3686, %v3698
    %v3700 = vpop.f32.mrf.mxu0
    %3701 = vdwg.mxu0
    %3702 = vmatpush.bf16.msra.mxu0 %v2304
    %3703 = vmatpush.bf16.msra.mxu0 %v2302
    %3704 = vmatpush.bf16.msra.mxu0 %v2300
    %3705 = vmatpush.bf16.msra.mxu0 %v2298
    %3706 = vmatpush.bf16.msra.mxu0 %v2296
    %3707 = vmatpush.bf16.msra.mxu0 %v2294
    %3708 = vmatpush.bf16.msra.mxu0 %v2292
    %3709 = vmatpush.bf16.msra.mxu0 %v2290
    %3710 = vmatmul.bf16.gmra.mxu0 %v550
    %v3711 = vpop.f32.mrf.mxu0
    %v3712 = vadd.f32 %v3699, %v3711
    %v3713 = vpop.f32.mrf.mxu0
    %3714 = vdwg.mxu0
    %3715 = vmatpush.bf16.msra.mxu0 %v2320
    %3716 = vmatpush.bf16.msra.mxu0 %v2318
    %3717 = vmatpush.bf16.msra.mxu0 %v2316
    %3718 = vmatpush.bf16.msra.mxu0 %v2314
    %3719 = vmatpush.bf16.msra.mxu0 %v2312
    %3720 = vmatpush.bf16.msra.mxu0 %v2310
    %3721 = vmatpush.bf16.msra.mxu0 %v2308
    %3722 = vmatpush.bf16.msra.mxu0 %v2306
    %3723 = vmatmul.bf16.gmra.mxu0 %v551
    %v3724 = vpop.f32.mrf.mxu0
    %v3725 = vadd.f32 %v3712, %v3724
    %v3726 = vpop.f32.mrf.mxu0
    %3727 = vdwg.mxu0
    %3728 = vmatpush.bf16.msra.mxu0 %v2336
    %3729 = vmatpush.bf16.msra.mxu0 %v2334
    %3730 = vmatpush.bf16.msra.mxu0 %v2332
    %3731 = vmatpush.bf16.msra.mxu0 %v2330
    %3732 = vmatpush.bf16.msra.mxu0 %v2328
    %3733 = vmatpush.bf16.msra.mxu0 %v2326
    %3734 = vmatpush.bf16.msra.mxu0 %v2324
    %3735 = vmatpush.bf16.msra.mxu0 %v2322
    %3736 = vmatmul.bf16.gmra.mxu0 %v552
    %v3737 = vpop.f32.mrf.mxu0
    %v3738 = vadd.f32 %v3725, %v3737
    %v3739 = vpop.f32.mrf.mxu0
    %3740 = vdwg.mxu0
    %3741 = vmatpush.bf16.msra.mxu0 %v2352
    %3742 = vmatpush.bf16.msra.mxu0 %v2350
    %3743 = vmatpush.bf16.msra.mxu0 %v2348
    %3744 = vmatpush.bf16.msra.mxu0 %v2346
    %3745 = vmatpush.bf16.msra.mxu0 %v2344
    %3746 = vmatpush.bf16.msra.mxu0 %v2342
    %3747 = vmatpush.bf16.msra.mxu0 %v2340
    %3748 = vmatpush.bf16.msra.mxu0 %v2338
    %3749 = vmatmul.bf16.gmra.mxu0 %v553
    %v3750 = vpop.f32.mrf.mxu0
    %v3751 = vadd.f32 %v3738, %v3750
    %v3752 = vpop.f32.mrf.mxu0
    %3753 = vdwg.mxu0
    %3754 = vmatpush.bf16.msra.mxu0 %v2368
    %3755 = vmatpush.bf16.msra.mxu0 %v2366
    %3756 = vmatpush.bf16.msra.mxu0 %v2364
    %3757 = vmatpush.bf16.msra.mxu0 %v2362
    %3758 = vmatpush.bf16.msra.mxu0 %v2360
    %3759 = vmatpush.bf16.msra.mxu0 %v2358
    %3760 = vmatpush.bf16.msra.mxu0 %v2356
    %3761 = vmatpush.bf16.msra.mxu0 %v2354
    %3762 = vmatmul.bf16.gmra.mxu0 %v554
    %v3763 = vpop.f32.mrf.mxu0
    %v3764 = vadd.f32 %v3751, %v3763
    %v3765 = vpop.f32.mrf.mxu0
    %3766 = vdwg.mxu0
    %3767 = vmatpush.bf16.msra.mxu0 %v2384
    %3768 = vmatpush.bf16.msra.mxu0 %v2382
    %3769 = vmatpush.bf16.msra.mxu0 %v2380
    %3770 = vmatpush.bf16.msra.mxu0 %v2378
    %3771 = vmatpush.bf16.msra.mxu0 %v2376
    %3772 = vmatpush.bf16.msra.mxu0 %v2374
    %3773 = vmatpush.bf16.msra.mxu0 %v2372
    %3774 = vmatpush.bf16.msra.mxu0 %v2370
    %3775 = vmatmul.bf16.gmra.mxu0 %v555
    %v3776 = vpop.f32.mrf.mxu0
    %v3777 = vadd.f32 %v3764, %v3776
    %v3778 = vpop.f32.mrf.mxu0
    %3779 = vdwg.mxu0
    %3780 = vmatpush.bf16.msra.mxu0 %v2400
    %3781 = vmatpush.bf16.msra.mxu0 %v2398
    %3782 = vmatpush.bf16.msra.mxu0 %v2396
    %3783 = vmatpush.bf16.msra.mxu0 %v2394
    %3784 = vmatpush.bf16.msra.mxu0 %v2392
    %3785 = vmatpush.bf16.msra.mxu0 %v2390
    %3786 = vmatpush.bf16.msra.mxu0 %v2388
    %3787 = vmatpush.bf16.msra.mxu0 %v2386
    %3788 = vmatmul.bf16.gmra.mxu0 %v556
    %v3789 = vpop.f32.mrf.mxu0
    %v3790 = vadd.f32 %v3777, %v3789
    %v3791 = vpop.f32.mrf.mxu0
    %3792 = vdwg.mxu0
    %3793 = vmatpush.bf16.msra.mxu0 %v2416
    %3794 = vmatpush.bf16.msra.mxu0 %v2414
    %3795 = vmatpush.bf16.msra.mxu0 %v2412
    %3796 = vmatpush.bf16.msra.mxu0 %v2410
    %3797 = vmatpush.bf16.msra.mxu0 %v2408
    %3798 = vmatpush.bf16.msra.mxu0 %v2406
    %3799 = vmatpush.bf16.msra.mxu0 %v2404
    %3800 = vmatpush.bf16.msra.mxu0 %v2402
    %3801 = vmatmul.bf16.gmra.mxu0 %v559
    %v3802 = vpop.f32.mrf.mxu0
    %v3803 = vadd.f32 %v3790, %v3802
    %v3804 = vpop.f32.mrf.mxu0
    %3805 = vdwg.mxu0
    %3806 = vmatpush.bf16.msra.mxu0 %v2432
    %3807 = vmatpush.bf16.msra.mxu0 %v2430
    %3808 = vmatpush.bf16.msra.mxu0 %v2428
    %3809 = vmatpush.bf16.msra.mxu0 %v2426
    %3810 = vmatpush.bf16.msra.mxu0 %v2424
    %3811 = vmatpush.bf16.msra.mxu0 %v2422
    %3812 = vmatpush.bf16.msra.mxu0 %v2420
    %3813 = vmatpush.bf16.msra.mxu0 %v2418
    %3814 = vmatmul.bf16.gmra.mxu0 %v560
    %v3815 = vpop.f32.mrf.mxu0
    %v3816 = vadd.f32 %v3803, %v3815
    %v3817 = vpop.f32.mrf.mxu0
    %3818 = vdwg.mxu0
    %3819 = vmatpush.bf16.msra.mxu0 %v2448
    %3820 = vmatpush.bf16.msra.mxu0 %v2446
    %3821 = vmatpush.bf16.msra.mxu0 %v2444
    %3822 = vmatpush.bf16.msra.mxu0 %v2442
    %3823 = vmatpush.bf16.msra.mxu0 %v2440
    %3824 = vmatpush.bf16.msra.mxu0 %v2438
    %3825 = vmatpush.bf16.msra.mxu0 %v2436
    %3826 = vmatpush.bf16.msra.mxu0 %v2434
    %3827 = vmatmul.bf16.gmra.mxu0 %v561
    %v3828 = vpop.f32.mrf.mxu0
    %v3829 = vadd.f32 %v3816, %v3828
    %v3830 = vpop.f32.mrf.mxu0
    %3831 = vdwg.mxu0
    %3832 = vmatpush.bf16.msra.mxu0 %v2464
    %3833 = vmatpush.bf16.msra.mxu0 %v2462
    %3834 = vmatpush.bf16.msra.mxu0 %v2460
    %3835 = vmatpush.bf16.msra.mxu0 %v2458
    %3836 = vmatpush.bf16.msra.mxu0 %v2456
    %3837 = vmatpush.bf16.msra.mxu0 %v2454
    %3838 = vmatpush.bf16.msra.mxu0 %v2452
    %3839 = vmatpush.bf16.msra.mxu0 %v2450
    %3840 = vmatmul.bf16.gmra.mxu0 %v562
    %v3841 = vpop.f32.mrf.mxu0
    %v3842 = vadd.f32 %v3829, %v3841
    %v3843 = vpop.f32.mrf.mxu0
    %3844 = vdwg.mxu0
    %3845 = vmatpush.bf16.msra.mxu0 %v2480
    %3846 = vmatpush.bf16.msra.mxu0 %v2478
    %3847 = vmatpush.bf16.msra.mxu0 %v2476
    %3848 = vmatpush.bf16.msra.mxu0 %v2474
    %3849 = vmatpush.bf16.msra.mxu0 %v2472
    %3850 = vmatpush.bf16.msra.mxu0 %v2470
    %3851 = vmatpush.bf16.msra.mxu0 %v2468
    %3852 = vmatpush.bf16.msra.mxu0 %v2466
    %3853 = vmatmul.bf16.gmra.mxu0 %v563
    %v3854 = vpop.f32.mrf.mxu0
    %v3855 = vadd.f32 %v3842, %v3854
    %v3856 = vpop.f32.mrf.mxu0
    %3857 = vdwg.mxu0
    %3858 = vmatpush.bf16.msra.mxu0 %v2496
    %3859 = vmatpush.bf16.msra.mxu0 %v2494
    %3860 = vmatpush.bf16.msra.mxu0 %v2492
    %3861 = vmatpush.bf16.msra.mxu0 %v2490
    %3862 = vmatpush.bf16.msra.mxu0 %v2488
    %3863 = vmatpush.bf16.msra.mxu0 %v2486
    %3864 = vmatpush.bf16.msra.mxu0 %v2484
    %3865 = vmatpush.bf16.msra.mxu0 %v2482
    %3866 = vmatmul.bf16.gmra.mxu0 %v564
    %v3867 = vpop.f32.mrf.mxu0
    %v3868 = vadd.f32 %v3855, %v3867
    %v3869 = vpop.f32.mrf.mxu0
    %3870 = vdwg.mxu0
    %3871 = vmatpush.bf16.msra.mxu0 %v2512
    %3872 = vmatpush.bf16.msra.mxu0 %v2510
    %3873 = vmatpush.bf16.msra.mxu0 %v2508
    %3874 = vmatpush.bf16.msra.mxu0 %v2506
    %3875 = vmatpush.bf16.msra.mxu0 %v2504
    %3876 = vmatpush.bf16.msra.mxu0 %v2502
    %3877 = vmatpush.bf16.msra.mxu0 %v2500
    %3878 = vmatpush.bf16.msra.mxu0 %v2498
    %3879 = vmatmul.bf16.gmra.mxu0 %v565
    %v3880 = vpop.f32.mrf.mxu0
    %v3881 = vadd.f32 %v3868, %v3880
    %v3882 = vpop.f32.mrf.mxu0
    %3883 = vdwg.mxu0
    %3884 = vmatpush.bf16.msra.mxu0 %v2528
    %3885 = vmatpush.bf16.msra.mxu0 %v2526
    %3886 = vmatpush.bf16.msra.mxu0 %v2524
    %3887 = vmatpush.bf16.msra.mxu0 %v2522
    %3888 = vmatpush.bf16.msra.mxu0 %v2520
    %3889 = vmatpush.bf16.msra.mxu0 %v2518
    %3890 = vmatpush.bf16.msra.mxu0 %v2516
    %3891 = vmatpush.bf16.msra.mxu0 %v2514
    %3892 = vmatmul.bf16.gmra.mxu0 %v566
    %v3893 = vpop.f32.mrf.mxu0
    %v3894 = vadd.f32 %v3881, %v3893
    %v3895 = vpop.f32.mrf.mxu0
    %3896 = vdwg.mxu0
    %3897 = vmatpush.bf16.msra.mxu0 %v2544
    %3898 = vmatpush.bf16.msra.mxu0 %v2542
    %3899 = vmatpush.bf16.msra.mxu0 %v2540
    %3900 = vmatpush.bf16.msra.mxu0 %v2538
    %3901 = vmatpush.bf16.msra.mxu0 %v2536
    %3902 = vmatpush.bf16.msra.mxu0 %v2534
    %3903 = vmatpush.bf16.msra.mxu0 %v2532
    %3904 = vmatpush.bf16.msra.mxu0 %v2530
    %3905 = vmatmul.bf16.gmra.mxu0 %v569
    %v3906 = vpop.f32.mrf.mxu0
    %v3907 = vadd.f32 %v3894, %v3906
    %v3908 = vpop.f32.mrf.mxu0
    %3909 = vdwg.mxu0
    %3910 = vmatpush.bf16.msra.mxu0 %v2560
    %3911 = vmatpush.bf16.msra.mxu0 %v2558
    %3912 = vmatpush.bf16.msra.mxu0 %v2556
    %3913 = vmatpush.bf16.msra.mxu0 %v2554
    %3914 = vmatpush.bf16.msra.mxu0 %v2552
    %3915 = vmatpush.bf16.msra.mxu0 %v2550
    %3916 = vmatpush.bf16.msra.mxu0 %v2548
    %3917 = vmatpush.bf16.msra.mxu0 %v2546
    %3918 = vmatmul.bf16.gmra.mxu0 %v570
    %v3919 = vpop.f32.mrf.mxu0
    %v3920 = vadd.f32 %v3907, %v3919
    %v3921 = vpop.f32.mrf.mxu0
    %3922 = vdwg.mxu0
    %3923 = vmatpush.bf16.msra.mxu0 %v2576
    %3924 = vmatpush.bf16.msra.mxu0 %v2574
    %3925 = vmatpush.bf16.msra.mxu0 %v2572
    %3926 = vmatpush.bf16.msra.mxu0 %v2570
    %3927 = vmatpush.bf16.msra.mxu0 %v2568
    %3928 = vmatpush.bf16.msra.mxu0 %v2566
    %3929 = vmatpush.bf16.msra.mxu0 %v2564
    %3930 = vmatpush.bf16.msra.mxu0 %v2562
    %3931 = vmatmul.bf16.gmra.mxu0 %v571
    %v3932 = vpop.f32.mrf.mxu0
    %v3933 = vadd.f32 %v3920, %v3932
    %v3934 = vpop.f32.mrf.mxu0
    %3935 = vdwg.mxu0
    %3936 = vmatpush.bf16.msra.mxu0 %v2592
    %3937 = vmatpush.bf16.msra.mxu0 %v2590
    %3938 = vmatpush.bf16.msra.mxu0 %v2588
    %3939 = vmatpush.bf16.msra.mxu0 %v2586
    %3940 = vmatpush.bf16.msra.mxu0 %v2584
    %3941 = vmatpush.bf16.msra.mxu0 %v2582
    %3942 = vmatpush.bf16.msra.mxu0 %v2580
    %3943 = vmatpush.bf16.msra.mxu0 %v2578
    %3944 = vmatmul.bf16.gmra.mxu0 %v572
    %v3945 = vpop.f32.mrf.mxu0
    %v3946 = vadd.f32 %v3933, %v3945
    %v3947 = vpop.f32.mrf.mxu0
    %3948 = vdwg.mxu0
    %3949 = vmatpush.bf16.msra.mxu0 %v2608
    %3950 = vmatpush.bf16.msra.mxu0 %v2606
    %3951 = vmatpush.bf16.msra.mxu0 %v2604
    %3952 = vmatpush.bf16.msra.mxu0 %v2602
    %3953 = vmatpush.bf16.msra.mxu0 %v2600
    %3954 = vmatpush.bf16.msra.mxu0 %v2598
    %3955 = vmatpush.bf16.msra.mxu0 %v2596
    %3956 = vmatpush.bf16.msra.mxu0 %v2594
    %3957 = vmatmul.bf16.gmra.mxu0 %v573
    %v3958 = vpop.f32.mrf.mxu0
    %v3959 = vadd.f32 %v3946, %v3958
    %v3960 = vpop.f32.mrf.mxu0
    %3961 = vdwg.mxu0
    %3962 = vmatpush.bf16.msra.mxu0 %v2624
    %3963 = vmatpush.bf16.msra.mxu0 %v2622
    %3964 = vmatpush.bf16.msra.mxu0 %v2620
    %3965 = vmatpush.bf16.msra.mxu0 %v2618
    %3966 = vmatpush.bf16.msra.mxu0 %v2616
    %3967 = vmatpush.bf16.msra.mxu0 %v2614
    %3968 = vmatpush.bf16.msra.mxu0 %v2612
    %3969 = vmatpush.bf16.msra.mxu0 %v2610
    %3970 = vmatmul.bf16.gmra.mxu0 %v574
    %v3971 = vpop.f32.mrf.mxu0
    %v3972 = vadd.f32 %v3959, %v3971
    %v3973 = vpop.f32.mrf.mxu0
    %3974 = vdwg.mxu0
    %3975 = vmatpush.bf16.msra.mxu0 %v2640
    %3976 = vmatpush.bf16.msra.mxu0 %v2638
    %3977 = vmatpush.bf16.msra.mxu0 %v2636
    %3978 = vmatpush.bf16.msra.mxu0 %v2634
    %3979 = vmatpush.bf16.msra.mxu0 %v2632
    %3980 = vmatpush.bf16.msra.mxu0 %v2630
    %3981 = vmatpush.bf16.msra.mxu0 %v2628
    %3982 = vmatpush.bf16.msra.mxu0 %v2626
    %3983 = vmatmul.bf16.gmra.mxu0 %v575
    %v3984 = vpop.f32.mrf.mxu0
    %v3985 = vadd.f32 %v3972, %v3984
    %v3986 = vpop.f32.mrf.mxu0
    %3987 = vdwg.mxu0
    %3988 = vmatpush.bf16.msra.mxu0 %v2656
    %3989 = vmatpush.bf16.msra.mxu0 %v2654
    %3990 = vmatpush.bf16.msra.mxu0 %v2652
    %3991 = vmatpush.bf16.msra.mxu0 %v2650
    %3992 = vmatpush.bf16.msra.mxu0 %v2648
    %3993 = vmatpush.bf16.msra.mxu0 %v2646
    %3994 = vmatpush.bf16.msra.mxu0 %v2644
    %3995 = vmatpush.bf16.msra.mxu0 %v2642
    %3996 = vmatmul.bf16.gmra.mxu0 %v576
    %v3997 = vpop.f32.mrf.mxu0
    %v3998 = vadd.f32 %v3985, %v3997
    %v3999 = vpop.f32.mrf.mxu0
    %4000 = vdwg.mxu0
    %v4003 = vrot.slane %v3998, 6
    %vm4004 = vcmask 1041408
    %v4005 = vsel %vm4004, %v3582, %v4003
    %4007 = vst [vmem:[#allocation2] sm:$0xf] %v4005
    // Predicated region
    $region14: #{encoder_forward.7} parent=1 // pred_check
      _
    $region15: #{encoder_forward.7} parent=1 // pred_check_branch
      %4009 = sbr.rel (0) target = $region17
    $region16: #{encoder_forward.7} parent=1 // pred_region
      %4011 = vsyncadd [#allocation3], 0
      %s4013 = sshll.u32 [#allocation2], 4
      %s4014 = int_to_ptr.vmem [resolvable:$true] %s4013
      %s4015 = sshll.u32 %s3, 4
      %s4016 = int_to_ptr.hbm [resolvable:$true] %s4015
      %4018 = dma.vmem_to_hbm [thread:$0]  %s4014, 64, %s4016, [#allocation3]
    $region17: #{encoder_forward.7} parent=1 // pred_fallthru
      _
    // Predicated region
    $region18: #{encoder_forward.7} parent=1 // pred_check
      _
    $region19: #{encoder_forward.7} parent=1 // pred_check_branch
      %4020 = sbr.rel (0) target = $region21
    $region20: #{encoder_forward.7} parent=1 // pred_region
      %4022 = dma.done [#allocation3], 64
    $region21: #{encoder_forward.7} parent=1 // pred_fallthru
      _
    %4023 = vsyncpa [#allocation3], 1

</llo_original>
